<compile_context>
chip_gen: v7x
topology: tpu7x:2x2x1
jax: 0.10.0
libtpu: 0.0.40
codegen_flags: <defaults>
</compile_context>

<pallas_src>
import jax
import jax.numpy as jnp
from jax.experimental import pallas as pl
from jax.experimental.pallas import tpu as pltpu


# ----------------------------------------------------------------------------
# Kernel 1: fused conv1(3x3,p=1)+ReLU+pool2x2 + conv2(3x3,p=1)+ReLU+pool2x2
#           for one batch element; activations never leave VMEM.
# ----------------------------------------------------------------------------
def conv_stack_kernel(p1_ref, w1_ref, b1_ref, w2_ref, b2_ref, o_ref,
                      y1_scr, apad_scr, y2_scr):
    """
    p1_ref  : (1, 1024, 27)  im2col patches of the 32x32x3 input, (ky,kx,cin)
    w1_ref  : (27, 32)       conv1 weight, rows in (ky,kx,cin) order
    b1_ref  : (1, 32)
    w2_ref  : (3, 96, 64)    conv2 weight, per-ky (kx,cin) packed into K=96
    b2_ref  : (1, 64)
    o_ref   : (1, 8, 8, 64)  pooled conv2 output (H, W, C)
    y1_scr  : (32, 32, 32)   conv1 pre-pool activation (VMEM)
    apad_scr: (18, 18, 32)   zero-halo padded pooled conv1 activation (VMEM)
    y2_scr  : (16, 16, 64)   conv2 pre-pool activation (VMEM)
    """
    f32 = jnp.float32

    # ---- conv1: single MXU matmul over im2col patches (K = 27) ----
    h1 = jnp.dot(p1_ref[0], w1_ref[...], preferred_element_type=f32)   # (1024, 32)
    h1 = jnp.maximum(h1 + b1_ref[...], 0.0)
    y1_scr[...] = h1.reshape(32, 32, 32)                               # (H, W, C)

    # ---- 2x2 maxpool (stride 2) via strided VMEM reads ----
    hmax = jnp.maximum(y1_scr[pl.ds(0, 16, stride=2), :, :],
                       y1_scr[pl.ds(1, 16, stride=2), :, :])           # (16, 32, 32)
    y1_scr[0:16, :, :] = hmax
    a1 = jnp.maximum(y1_scr[0:16, pl.ds(0, 16, stride=2), :],
                     y1_scr[0:16, pl.ds(1, 16, stride=2), :])          # (16, 16, 32)

    # ---- zero halo for conv2 "same" padding, built directly in VMEM ----
    apad_scr[...] = jnp.zeros_like(apad_scr)
    apad_scr[1:17, 1:17, :] = a1

    # ---- conv2: 3 matmuls (one per ky), kx taps packed into K = 96 ----
    acc2 = jnp.zeros((256, 64), f32)
    for ky in range(3):
        rows = apad_scr[ky:ky + 16, :, :]                              # (16, 18, 32)
        patch = jnp.concatenate(
            [rows[:, 0:16, :], rows[:, 1:17, :], rows[:, 2:18, :]],
            axis=-1)                                                   # (16, 16, 96)
        acc2 = acc2 + jnp.dot(patch.reshape(256, 96), w2_ref[ky],
                              preferred_element_type=f32)
    h2 = jnp.maximum(acc2 + b2_ref[...], 0.0)                          # (256, 64)
    y2_scr[...] = h2.reshape(16, 16, 64)

    # ---- 2x2 maxpool ----
    hmax = jnp.maximum(y2_scr[pl.ds(0, 8, stride=2), :, :],
                       y2_scr[pl.ds(1, 8, stride=2), :, :])            # (8, 16, 64)
    y2_scr[0:8, :, :] = hmax
    o_ref[0] = jnp.maximum(y2_scr[0:8, pl.ds(0, 8, stride=2), :],
                           y2_scr[0:8, pl.ds(1, 8, stride=2), :]
                           ).astype(o_ref.dtype)                       # (8, 8, 64)


# ----------------------------------------------------------------------------
# Kernel 2: fused fc1 + ReLU + fc2 (batch stacked into the matmul M dim).
# ----------------------------------------------------------------------------
def mlp_kernel(x_ref, w1_ref, b1_ref, w2_ref, b2_ref, o_ref):
    h = jnp.dot(x_ref[...], w1_ref[...], preferred_element_type=jnp.float32)
    h = jnp.maximum(h + b1_ref[...], 0.0)
    out = jnp.dot(h, w2_ref[...], preferred_element_type=jnp.float32)
    o_ref[...] = (out + b2_ref[...]).astype(o_ref.dtype)


# ----------------------------------------------------------------------------
# Pallas wrappers
# ----------------------------------------------------------------------------
def conv_stack(p1, w1, b1, w2, b2):
    """p1: (N, 1024, 27) im2col patches.  Returns (N, 8, 8, 64) features."""
    N = p1.shape[0]
    return pl.pallas_call(
        conv_stack_kernel,
        out_shape=jax.ShapeDtypeStruct((N, 8, 8, 64), jnp.float32),
        grid_spec=pltpu.PrefetchScalarGridSpec(
            num_scalar_prefetch=0,
            grid=(N,),
            in_specs=[
                pl.BlockSpec((1, 1024, 27), lambda n: (n, 0, 0)),
                pl.BlockSpec((27, 32), lambda n: (0, 0)),
                pl.BlockSpec((1, 32), lambda n: (0, 0)),
                pl.BlockSpec((3, 96, 64), lambda n: (0, 0, 0)),
                pl.BlockSpec((1, 64), lambda n: (0, 0)),
            ],
            out_specs=pl.BlockSpec((1, 8, 8, 64), lambda n: (n, 0, 0, 0)),
            scratch_shapes=[
                pltpu.VMEM((32, 32, 32), jnp.float32),
                pltpu.VMEM((18, 18, 32), jnp.float32),
                pltpu.VMEM((16, 16, 64), jnp.float32),
            ],
        ),
        compiler_params=pltpu.CompilerParams(
            dimension_semantics=("parallel",)),
    )(p1, w1, b1, w2, b2)


def mlp(x, w1, b1, w2, b2):
    """x: (N, 4096); w1: (4096, 128); w2: (128, 128 zero-padded)."""
    N, D = x.shape
    H1 = w1.shape[1]
    D2 = w2.shape[1]
    return pl.pallas_call(
        mlp_kernel,
        out_shape=jax.ShapeDtypeStruct((N, D2), jnp.float32),
        grid_spec=pltpu.PrefetchScalarGridSpec(
            num_scalar_prefetch=0,
            grid=(1,),
            in_specs=[
                pl.BlockSpec((N, D), lambda i: (0, 0)),
                pl.BlockSpec((D, H1), lambda i: (0, 0)),
                pl.BlockSpec((1, H1), lambda i: (0, 0)),
                pl.BlockSpec((H1, D2), lambda i: (0, 0)),
                pl.BlockSpec((1, D2), lambda i: (0, 0)),
            ],
            out_specs=pl.BlockSpec((N, D2), lambda i: (0, 0)),
        ),
        compiler_params=pltpu.CompilerParams(
            dimension_semantics=("arbitrary",)),
    )(x, w1, b1, w2, b2)


# ----------------------------------------------------------------------------
# Parameters (PyTorch-equivalent layout) + one-time kernel-layout preparation
# ----------------------------------------------------------------------------
def init_params(key, num_classes=10):
    ks = jax.random.split(key, 8)

    def scaled(k, shape, fan_in):
        return jax.random.normal(k, shape, jnp.float32) / jnp.sqrt(fan_in)

    return {
        # conv weights in HWIO layout
        "w_conv1": scaled(ks[0], (3, 3, 3, 32), 3 * 3 * 3),
        "b_conv1": scaled(ks[1], (32,), 3 * 3 * 3),
        "w_conv2": scaled(ks[2], (3, 3, 32, 64), 3 * 3 * 32),
        "b_conv2": scaled(ks[3], (64,), 3 * 3 * 32),
        # fc1 rows in PyTorch flatten order (C, H, W)
        "w_fc1": scaled(ks[4], (64 * 8 * 8, 128), 64 * 8 * 8),
        "b_fc1": scaled(ks[5], (128,), 64 * 8 * 8),
        "w_fc2": scaled(ks[6], (128, num_classes * 2), 128),
        "b_fc2": scaled(ks[7], (num_classes * 2,), 128),
    }


def prepare_params(p, num_classes=10):
    """One-time host-side repacking into kernel-friendly layouts."""
    nc2 = num_classes * 2
    d2_pad = max(128, ((nc2 + 127) // 128) * 128)   # lane-dense fc2 output
    # fc1 rows: CHW (PyTorch flatten) -> HWC (NHWC conv output flatten)
    wf1 = (p["w_fc1"].reshape(64, 8, 8, 128)
           .transpose(1, 2, 0, 3).reshape(64 * 8 * 8, 128))
    wf2 = jnp.zeros((128, d2_pad), jnp.float32).at[:, :nc2].set(p["w_fc2"])
    bf2 = jnp.zeros((d2_pad,), jnp.float32).at[:nc2].set(p["b_fc2"])
    return {
        "w1": p["w_conv1"].reshape(27, 32),          # (ky,kx,cin) rows
        "b1": p["b_conv1"].reshape(1, 32),
        "w2": p["w_conv2"].reshape(3, 96, 64),       # per-ky (kx,cin) rows
        "b2": p["b_conv2"].reshape(1, 64),
        "wf1": wf1,
        "bf1": p["b_fc1"].reshape(1, 128),
        "wf2": wf2,
        "bf2": bf2.reshape(1, d2_pad),
    }


# ----------------------------------------------------------------------------
# Forward
# ----------------------------------------------------------------------------
def _im2col_3x3(x_nhwc):
    """Cheap XLA-side im2col for the tiny Cin=3 first layer."""
    N, H, W, C = x_nhwc.shape
    xp = jnp.pad(x_nhwc, ((0, 0), (1, 1), (1, 1), (0, 0)))
    cols = [xp[:, ky:ky + H, kx:kx + W, :]
            for ky in range(3) for kx in range(3)]
    return jnp.concatenate(cols, axis=-1).reshape(N, H * W, 9 * C)


def credal_cnn_forward(x_nchw, kp, num_classes=10):
    N = x_nchw.shape[0]
    x = jnp.transpose(x_nchw, (0, 2, 3, 1))                      # NHWC
    p1 = _im2col_3x3(x)                                          # (N, 1024, 27)
    feat = conv_stack(p1, kp["w1"], kp["b1"], kp["w2"], kp["b2"])  # (N,8,8,64)
    feat = feat.reshape(N, 8 * 8 * 64)                           # HWC flatten
    logits = mlp(feat, kp["wf1"], kp["bf1"], kp["wf2"], kp["bf2"])
    nc2 = 2 * num_classes
    logits = logits[:, :nc2]
    return logits[:, :num_classes], logits[:, num_classes:]


# ----------------------------------------------------------------------------
# Pure-JAX reference (uses the original PyTorch-layout params)
# ----------------------------------------------------------------------------
def reference_forward(x_nchw, p):
    x = jnp.transpose(x_nchw, (0, 2, 3, 1))

    def conv(x, w, b):
        y = jax.lax.conv_general_dilated(
            x, w, window_strides=(1, 1), padding="SAME",
            dimension_numbers=("NHWC", "HWIO", "NHWC"))
        return y + b

    def pool(x):
        return jax.lax.reduce_window(
            x, -jnp.inf, jax.lax.max, (1, 2, 2, 1), (1, 2, 2, 1), "VALID")

    x = pool(jax.nn.relu(conv(x, p["w_conv1"], p["b_conv1"])))
    x = pool(jax.nn.relu(conv(x, p["w_conv2"], p["b_conv2"])))
    x = jnp.transpose(x, (0, 3, 1, 2)).reshape(x.shape[0], -1)
    x = jax.nn.relu(x @ p["w_fc1"] + p["b_fc1"])
    x = x @ p["w_fc2"] + p["b_fc2"]
    nc = x.shape[1] // 2
    return x[:, :nc], x[:, nc:]


# ----------------------------------------------------------------------------
if __name__ == "__main__":
    key = jax.random.PRNGKey(0)
    k_x, k_p = jax.random.split(key)

    # fc1 expects 64*8*8 features -> input must be (N, 3, 32, 32).
    x = jax.random.normal(k_x, (2, 3, 32, 32), dtype=jnp.float32)
    params = init_params(k_p, num_classes=10)
    kparams = prepare_params(params, num_classes=10)   # one-time repacking

    lower, upper = jax.jit(credal_cnn_forward)(x, kparams)
    jax.block_until_ready((lower, upper))

    assert lower.shape == (2, 10) and upper.shape == (2, 10)

    # Sanity check against a pure-JAX reference (MXU vs XLA tolerance).
    ref_lower, ref_upper = reference_forward(x, params)
    assert jnp.allclose(lower, ref_lower, atol=2e-2, rtol=2e-2)
    assert jnp.allclose(upper, ref_upper, atol=2e-2, rtol=2e-2)

    print("KERNEL_OK")
</pallas_src>

<mosaic_0001>
module attributes {stable_mosaic.version = 11 : i64} {
  func.func @conv_stack_kernel(%arg0: i32, %arg1: memref<1x1024x27xf32, #tpu.memory_space<vmem>>, %arg2: memref<27x32xf32, #tpu.memory_space<vmem>>, %arg3: memref<1x32xf32, #tpu.memory_space<vmem>>, %arg4: memref<3x96x64xf32, #tpu.memory_space<vmem>>, %arg5: memref<1x64xf32, #tpu.memory_space<vmem>>, %arg6: memref<1x8x8x64xf32, #tpu.memory_space<vmem>>, %arg7: memref<32x32x32xf32, #tpu.memory_space<vmem>>, %arg8: memref<18x18x32xf32, #tpu.memory_space<vmem>>, %arg9: memref<16x16x64xf32, #tpu.memory_space<vmem>>) attributes {dimension_semantics = [#tpu.dimension_semantics<parallel>], iteration_bounds = array<i64: 2>, scalar_prefetch = 0 : i64, scratch_operands = 3 : i64, tpu.core_type = #tpu.core_type<tc>, window_params = [{transform_indices = @transform_0, window_bounds = array<i64: 1, 1024, 27>}, {pipeline_mode = #tpu.pipeline_mode<synchronous>, transform_indices = @transform_1, window_bounds = array<i64: 27, 32>}, {pipeline_mode = #tpu.pipeline_mode<synchronous>, transform_indices = @transform_2, window_bounds = array<i64: 1, 32>}, {pipeline_mode = #tpu.pipeline_mode<synchronous>, transform_indices = @transform_3, window_bounds = array<i64: 3, 96, 64>}, {pipeline_mode = #tpu.pipeline_mode<synchronous>, transform_indices = @transform_4, window_bounds = array<i64: 1, 64>}, {transform_indices = @transform_5, window_bounds = array<i64: 1, 8, 8, 64>}]} {
    %c0 = arith.constant 0 : index
    %c0_0 = arith.constant 0 : index
    %c0_1 = arith.constant 0 : index
    %0 = vector.load %arg1[%c0, %c0_0, %c0_1] : memref<1x1024x27xf32, #tpu.memory_space<vmem>>, vector<1x1024x27xf32>
    %1 = vector.shape_cast %0 : vector<1x1024x27xf32> to vector<1024x27xf32>
    %c0_2 = arith.constant 0 : index
    %c0_3 = arith.constant 0 : index
    %2 = vector.load %arg2[%c0_2, %c0_3] : memref<27x32xf32, #tpu.memory_space<vmem>>, vector<27x32xf32>
    %cst = arith.constant dense<0.000000e+00> : vector<1024x32xf32>
    %3 = tpu.matmul %1, %2, %cst {dimension_numbers = #tpu.dot_dimension_numbers<[1], [0], [0], [1], [0, 0, 1, 1], [], []>} : vector<1024x27xf32>, vector<27x32xf32>, vector<1024x32xf32> -> vector<1024x32xf32>
    %c0_4 = arith.constant 0 : index
    %c0_5 = arith.constant 0 : index
    %4 = vector.load %arg3[%c0_4, %c0_5] : memref<1x32xf32, #tpu.memory_space<vmem>>, vector<1x32xf32>
    %5 = vector.broadcast %4 : vector<1x32xf32> to vector<1024x32xf32>
    %6 = arith.addf %3, %5 : vector<1024x32xf32>
    %cst_6 = arith.constant 0.000000e+00 : f32
    %7 = vector.broadcast %cst_6 : f32 to vector<1024x32xf32>
    %8 = arith.maximumf %6, %7 : vector<1024x32xf32>
    %9 = vector.shape_cast %8 : vector<1024x32xf32> to vector<32x32x32xf32>
    %c0_7 = arith.constant 0 : index
    %c0_8 = arith.constant 0 : index
    %c0_9 = arith.constant 0 : index
    %10 = vector.load %arg7[%c0_7, %c0_8, %c0_9] : memref<32x32x32xf32, #tpu.memory_space<vmem>>, vector<32x32x32xf32>
    tpu.vector_store %arg7[%c0_7, %c0_8, %c0_9], %9 {strides = array<i32>} : memref<32x32x32xf32, #tpu.memory_space<vmem>>, vector<32x32x32xf32>,
    %c0_10 = arith.constant 0 : index
    %c0_11 = arith.constant 0 : index
    %c0_12 = arith.constant 0 : index
    %11 = tpu.strided_load %arg7[%c0_10, %c0_11, %c0_12] {strides = array<i32: 2, 1, 1>} : memref<32x32x32xf32, #tpu.memory_space<vmem>>, vector<16x32x32xf32>
    %c1 = arith.constant 1 : index
    %c0_13 = arith.constant 0 : index
    %c0_14 = arith.constant 0 : index
    %12 = tpu.strided_load %arg7[%c1, %c0_13, %c0_14] {strides = array<i32: 2, 1, 1>} : memref<32x32x32xf32, #tpu.memory_space<vmem>>, vector<16x32x32xf32>
    %13 = arith.maximumf %11, %12 : vector<16x32x32xf32>
    %c0_15 = arith.constant 0 : index
    %c0_16 = arith.constant 0 : index
    %c0_17 = arith.constant 0 : index
    %14 = vector.load %arg7[%c0_15, %c0_16, %c0_17] : memref<32x32x32xf32, #tpu.memory_space<vmem>>, vector<16x32x32xf32>
    tpu.vector_store %arg7[%c0_15, %c0_16, %c0_17], %13 {strides = array<i32>} : memref<32x32x32xf32, #tpu.memory_space<vmem>>, vector<16x32x32xf32>,
    %c0_18 = arith.constant 0 : index
    %c0_19 = arith.constant 0 : index
    %c0_20 = arith.constant 0 : index
    %15 = tpu.strided_load %arg7[%c0_18, %c0_19, %c0_20] {strides = array<i32: 1, 2, 1>} : memref<32x32x32xf32, #tpu.memory_space<vmem>>, vector<16x16x32xf32>
    %c0_21 = arith.constant 0 : index
    %c1_22 = arith.constant 1 : index
    %c0_23 = arith.constant 0 : index
    %16 = tpu.strided_load %arg7[%c0_21, %c1_22, %c0_23] {strides = array<i32: 1, 2, 1>} : memref<32x32x32xf32, #tpu.memory_space<vmem>>, vector<16x16x32xf32>
    %17 = arith.maximumf %15, %16 : vector<16x16x32xf32>
    %cst_24 = arith.constant 0.000000e+00 : f32
    %18 = vector.broadcast %cst_24 : f32 to vector<18x18x32xf32>
    %c0_25 = arith.constant 0 : index
    %c0_26 = arith.constant 0 : index
    %c0_27 = arith.constant 0 : index
    %19 = vector.load %arg8[%c0_25, %c0_26, %c0_27] : memref<18x18x32xf32, #tpu.memory_space<vmem>>, vector<18x18x32xf32>
    tpu.vector_store %arg8[%c0_25, %c0_26, %c0_27], %18 {strides = array<i32>} : memref<18x18x32xf32, #tpu.memory_space<vmem>>, vector<18x18x32xf32>,
    %c1_28 = arith.constant 1 : index
    %c1_29 = arith.constant 1 : index
    %c0_30 = arith.constant 0 : index
    %20 = vector.load %arg8[%c1_28, %c1_29, %c0_30] : memref<18x18x32xf32, #tpu.memory_space<vmem>>, vector<16x16x32xf32>
    tpu.vector_store %arg8[%c1_28, %c1_29, %c0_30], %17 {strides = array<i32>} : memref<18x18x32xf32, #tpu.memory_space<vmem>>, vector<16x16x32xf32>,
    %cst_31 = arith.constant 0.000000e+00 : f32
    %21 = vector.broadcast %cst_31 : f32 to vector<256x64xf32>
    %c0_32 = arith.constant 0 : index
    %c0_33 = arith.constant 0 : index
    %c0_34 = arith.constant 0 : index
    %22 = vector.load %arg8[%c0_32, %c0_33, %c0_34] : memref<18x18x32xf32, #tpu.memory_space<vmem>>, vector<16x18x32xf32>
    %23 = vector.extract_strided_slice %22 {offsets = [0, 0, 0], sizes = [16, 16, 32], strides = [1, 1, 1]} : vector<16x18x32xf32> to vector<16x16x32xf32>
    %24 = vector.extract_strided_slice %22 {offsets = [0, 1, 0], sizes = [16, 16, 32], strides = [1, 1, 1]} : vector<16x18x32xf32> to vector<16x16x32xf32>
    %25 = vector.extract_strided_slice %22 {offsets = [0, 2, 0], sizes = [16, 16, 32], strides = [1, 1, 1]} : vector<16x18x32xf32> to vector<16x16x32xf32>
    %26 = tpu.concatenate %23, %24, %25 in 2 : vector<16x16x32xf32>, vector<16x16x32xf32>, vector<16x16x32xf32> -> vector<16x16x96xf32>
    %27 = vector.shape_cast %26 : vector<16x16x96xf32> to vector<256x96xf32>
    %c0_35 = arith.constant 0 : index
    %c0_36 = arith.constant 0 : index
    %c0_37 = arith.constant 0 : index
    %28 = vector.load %arg4[%c0_35, %c0_36, %c0_37] : memref<3x96x64xf32, #tpu.memory_space<vmem>>, vector<1x96x64xf32>
    %29 = vector.shape_cast %28 : vector<1x96x64xf32> to vector<96x64xf32>
    %cst_38 = arith.constant dense<0.000000e+00> : vector<256x64xf32>
    %30 = tpu.matmul %27, %29, %cst_38 {dimension_numbers = #tpu.dot_dimension_numbers<[1], [0], [0], [1], [0, 0, 1, 1], [], []>} : vector<256x96xf32>, vector<96x64xf32>, vector<256x64xf32> -> vector<256x64xf32>
    %31 = arith.addf %21, %30 : vector<256x64xf32>
    %c1_39 = arith.constant 1 : index
    %c0_40 = arith.constant 0 : index
    %c0_41 = arith.constant 0 : index
    %32 = vector.load %arg8[%c1_39, %c0_40, %c0_41] : memref<18x18x32xf32, #tpu.memory_space<vmem>>, vector<16x18x32xf32>
    %33 = vector.extract_strided_slice %32 {offsets = [0, 0, 0], sizes = [16, 16, 32], strides = [1, 1, 1]} : vector<16x18x32xf32> to vector<16x16x32xf32>
    %34 = vector.extract_strided_slice %32 {offsets = [0, 1, 0], sizes = [16, 16, 32], strides = [1, 1, 1]} : vector<16x18x32xf32> to vector<16x16x32xf32>
    %35 = vector.extract_strided_slice %32 {offsets = [0, 2, 0], sizes = [16, 16, 32], strides = [1, 1, 1]} : vector<16x18x32xf32> to vector<16x16x32xf32>
    %36 = tpu.concatenate %33, %34, %35 in 2 : vector<16x16x32xf32>, vector<16x16x32xf32>, vector<16x16x32xf32> -> vector<16x16x96xf32>
    %37 = vector.shape_cast %36 : vector<16x16x96xf32> to vector<256x96xf32>
    %c1_42 = arith.constant 1 : index
    %c0_43 = arith.constant 0 : index
    %c0_44 = arith.constant 0 : index
    %38 = vector.load %arg4[%c1_42, %c0_43, %c0_44] : memref<3x96x64xf32, #tpu.memory_space<vmem>>, vector<1x96x64xf32>
    %39 = vector.shape_cast %38 : vector<1x96x64xf32> to vector<96x64xf32>
    %cst_45 = arith.constant dense<0.000000e+00> : vector<256x64xf32>
    %40 = tpu.matmul %37, %39, %cst_45 {dimension_numbers = #tpu.dot_dimension_numbers<[1], [0], [0], [1], [0, 0, 1, 1], [], []>} : vector<256x96xf32>, vector<96x64xf32>, vector<256x64xf32> -> vector<256x64xf32>
    %41 = arith.addf %31, %40 : vector<256x64xf32>
    %c2 = arith.constant 2 : index
    %c0_46 = arith.constant 0 : index
    %c0_47 = arith.constant 0 : index
    %42 = vector.load %arg8[%c2, %c0_46, %c0_47] : memref<18x18x32xf32, #tpu.memory_space<vmem>>, vector<16x18x32xf32>
    %43 = vector.extract_strided_slice %42 {offsets = [0, 0, 0], sizes = [16, 16, 32], strides = [1, 1, 1]} : vector<16x18x32xf32> to vector<16x16x32xf32>
    %44 = vector.extract_strided_slice %42 {offsets = [0, 1, 0], sizes = [16, 16, 32], strides = [1, 1, 1]} : vector<16x18x32xf32> to vector<16x16x32xf32>
    %45 = vector.extract_strided_slice %42 {offsets = [0, 2, 0], sizes = [16, 16, 32], strides = [1, 1, 1]} : vector<16x18x32xf32> to vector<16x16x32xf32>
    %46 = tpu.concatenate %43, %44, %45 in 2 : vector<16x16x32xf32>, vector<16x16x32xf32>, vector<16x16x32xf32> -> vector<16x16x96xf32>
    %47 = vector.shape_cast %46 : vector<16x16x96xf32> to vector<256x96xf32>
    %c2_48 = arith.constant 2 : index
    %c0_49 = arith.constant 0 : index
    %c0_50 = arith.constant 0 : index
    %48 = vector.load %arg4[%c2_48, %c0_49, %c0_50] : memref<3x96x64xf32, #tpu.memory_space<vmem>>, vector<1x96x64xf32>
    %49 = vector.shape_cast %48 : vector<1x96x64xf32> to vector<96x64xf32>
    %cst_51 = arith.constant dense<0.000000e+00> : vector<256x64xf32>
    %50 = tpu.matmul %47, %49, %cst_51 {dimension_numbers = #tpu.dot_dimension_numbers<[1], [0], [0], [1], [0, 0, 1, 1], [], []>} : vector<256x96xf32>, vector<96x64xf32>, vector<256x64xf32> -> vector<256x64xf32>
    %51 = arith.addf %41, %50 : vector<256x64xf32>
    %c0_52 = arith.constant 0 : index
    %c0_53 = arith.constant 0 : index
    %52 = vector.load %arg5[%c0_52, %c0_53] : memref<1x64xf32, #tpu.memory_space<vmem>>, vector<1x64xf32>
    %53 = vector.broadcast %52 : vector<1x64xf32> to vector<256x64xf32>
    %54 = arith.addf %51, %53 : vector<256x64xf32>
    %cst_54 = arith.constant 0.000000e+00 : f32
    %55 = vector.broadcast %cst_54 : f32 to vector<256x64xf32>
    %56 = arith.maximumf %54, %55 : vector<256x64xf32>
    %57 = vector.shape_cast %56 : vector<256x64xf32> to vector<16x16x64xf32>
    %c0_55 = arith.constant 0 : index
    %c0_56 = arith.constant 0 : index
    %c0_57 = arith.constant 0 : index
    %58 = vector.load %arg9[%c0_55, %c0_56, %c0_57] : memref<16x16x64xf32, #tpu.memory_space<vmem>>, vector<16x16x64xf32>
    tpu.vector_store %arg9[%c0_55, %c0_56, %c0_57], %57 {strides = array<i32>} : memref<16x16x64xf32, #tpu.memory_space<vmem>>, vector<16x16x64xf32>,
    %c0_58 = arith.constant 0 : index
    %c0_59 = arith.constant 0 : index
    %c0_60 = arith.constant 0 : index
    %59 = tpu.strided_load %arg9[%c0_58, %c0_59, %c0_60] {strides = array<i32: 2, 1, 1>} : memref<16x16x64xf32, #tpu.memory_space<vmem>>, vector<8x16x64xf32>
    %c1_61 = arith.constant 1 : index
    %c0_62 = arith.constant 0 : index
    %c0_63 = arith.constant 0 : index
    %60 = tpu.strided_load %arg9[%c1_61, %c0_62, %c0_63] {strides = array<i32: 2, 1, 1>} : memref<16x16x64xf32, #tpu.memory_space<vmem>>, vector<8x16x64xf32>
    %61 = arith.maximumf %59, %60 : vector<8x16x64xf32>
    %c0_64 = arith.constant 0 : index
    %c0_65 = arith.constant 0 : index
    %c0_66 = arith.constant 0 : index
    %62 = vector.load %arg9[%c0_64, %c0_65, %c0_66] : memref<16x16x64xf32, #tpu.memory_space<vmem>>, vector<8x16x64xf32>
    tpu.vector_store %arg9[%c0_64, %c0_65, %c0_66], %61 {strides = array<i32>} : memref<16x16x64xf32, #tpu.memory_space<vmem>>, vector<8x16x64xf32>,
    %c0_67 = arith.constant 0 : index
    %c0_68 = arith.constant 0 : index
    %c0_69 = arith.constant 0 : index
    %63 = tpu.strided_load %arg9[%c0_67, %c0_68, %c0_69] {strides = array<i32: 1, 2, 1>} : memref<16x16x64xf32, #tpu.memory_space<vmem>>, vector<8x8x64xf32>
    %c0_70 = arith.constant 0 : index
    %c1_71 = arith.constant 1 : index
    %c0_72 = arith.constant 0 : index
    %64 = tpu.strided_load %arg9[%c0_70, %c1_71, %c0_72] {strides = array<i32: 1, 2, 1>} : memref<16x16x64xf32, #tpu.memory_space<vmem>>, vector<8x8x64xf32>
    %65 = arith.maximumf %63, %64 : vector<8x8x64xf32>
    %c0_73 = arith.constant 0 : index
    %c0_74 = arith.constant 0 : index
    %c0_75 = arith.constant 0 : index
    %c0_76 = arith.constant 0 : index
    %66 = vector.load %arg6[%c0_73, %c0_74, %c0_75, %c0_76] : memref<1x8x8x64xf32, #tpu.memory_space<vmem>>, vector<1x8x8x64xf32>
    %67 = vector.shape_cast %66 : vector<1x8x8x64xf32> to vector<8x8x64xf32>
    %68 = vector.shape_cast %65 : vector<8x8x64xf32> to vector<1x8x8x64xf32>
    tpu.vector_store %arg6[%c0_73, %c0_74, %c0_75, %c0_76], %68 {strides = array<i32>} : memref<1x8x8x64xf32, #tpu.memory_space<vmem>>, vector<1x8x8x64xf32>,
    return
  }
  func.func @transform_0(%arg0: i32) -> (i32, i32, i32) {
    %c0_i32 = arith.constant 0 : i32
    %c0_i32_0 = arith.constant 0 : i32
    %c0_i32_1 = arith.constant 0 : i32
    return %arg0, %c0_i32, %c0_i32_0 : i32, i32, i32
  }
  func.func @transform_1(%arg0: i32) -> (i32, i32) {
    %c0_i32 = arith.constant 0 : i32
    %c0_i32_0 = arith.constant 0 : i32
    %c0_i32_1 = arith.constant 0 : i32
    return %c0_i32, %c0_i32_0 : i32, i32
  }
  func.func @transform_2(%arg0: i32) -> (i32, i32) {
    %c0_i32 = arith.constant 0 : i32
    %c0_i32_0 = arith.constant 0 : i32
    %c0_i32_1 = arith.constant 0 : i32
    return %c0_i32, %c0_i32_0 : i32, i32
  }
  func.func @transform_3(%arg0: i32) -> (i32, i32, i32) {
    %c0_i32 = arith.constant 0 : i32
    %c0_i32_0 = arith.constant 0 : i32
    %c0_i32_1 = arith.constant 0 : i32
    %c0_i32_2 = arith.constant 0 : i32
    return %c0_i32, %c0_i32_0, %c0_i32_1 : i32, i32, i32
  }
  func.func @transform_4(%arg0: i32) -> (i32, i32) {
    %c0_i32 = arith.constant 0 : i32
    %c0_i32_0 = arith.constant 0 : i32
    %c0_i32_1 = arith.constant 0 : i32
    return %c0_i32, %c0_i32_0 : i32, i32
  }
  func.func @transform_5(%arg0: i32) -> (i32, i32, i32, i32) {
    %c0_i32 = arith.constant 0 : i32
    %c0_i32_0 = arith.constant 0 : i32
    %c0_i32_1 = arith.constant 0 : i32
    %c0_i32_2 = arith.constant 0 : i32
    return %arg0, %c0_i32, %c0_i32_0, %c0_i32_1 : i32, i32, i32, i32
  }
}

module attributes {stable_mosaic.version = 11 : i64} {
  func.func @mlp_kernel(%arg0: i32, %arg1: memref<2x4096xf32, #tpu.memory_space<vmem>>, %arg2: memref<4096x128xf32, #tpu.memory_space<vmem>>, %arg3: memref<1x128xf32, #tpu.memory_space<vmem>>, %arg4: memref<128x128xf32, #tpu.memory_space<vmem>>, %arg5: memref<1x128xf32, #tpu.memory_space<vmem>>, %arg6: memref<2x128xf32, #tpu.memory_space<vmem>>) attributes {dimension_semantics = [#tpu.dimension_semantics<arbitrary>], iteration_bounds = array<i64: 1>, scalar_prefetch = 0 : i64, scratch_operands = 0 : i64, tpu.core_type = #tpu.core_type<tc>, window_params = [{pipeline_mode = #tpu.pipeline_mode<synchronous>, transform_indices = @transform_0, window_bounds = array<i64: 2, 4096>}, {pipeline_mode = #tpu.pipeline_mode<synchronous>, transform_indices = @transform_1, window_bounds = array<i64: 4096, 128>}, {pipeline_mode = #tpu.pipeline_mode<synchronous>, transform_indices = @transform_2, window_bounds = array<i64: 1, 128>}, {pipeline_mode = #tpu.pipeline_mode<synchronous>, transform_indices = @transform_3, window_bounds = array<i64: 128, 128>}, {pipeline_mode = #tpu.pipeline_mode<synchronous>, transform_indices = @transform_4, window_bounds = array<i64: 1, 128>}, {pipeline_mode = #tpu.pipeline_mode<synchronous>, transform_indices = @transform_5, window_bounds = array<i64: 2, 128>}]} {
    %c0 = arith.constant 0 : index
    %c0_0 = arith.constant 0 : index
    %0 = vector.load %arg1[%c0, %c0_0] : memref<2x4096xf32, #tpu.memory_space<vmem>>, vector<2x4096xf32>
    %c0_1 = arith.constant 0 : index
    %c0_2 = arith.constant 0 : index
    %1 = vector.load %arg2[%c0_1, %c0_2] : memref<4096x128xf32, #tpu.memory_space<vmem>>, vector<4096x128xf32>
    %cst = arith.constant dense<0.000000e+00> : vector<2x128xf32>
    %2 = tpu.matmul %0, %1, %cst {dimension_numbers = #tpu.dot_dimension_numbers<[1], [0], [0], [1], [0, 0, 1, 1], [], []>} : vector<2x4096xf32>, vector<4096x128xf32>, vector<2x128xf32> -> vector<2x128xf32>
    %c0_3 = arith.constant 0 : index
    %c0_4 = arith.constant 0 : index
    %3 = vector.load %arg3[%c0_3, %c0_4] : memref<1x128xf32, #tpu.memory_space<vmem>>, vector<1x128xf32>
    %4 = vector.broadcast %3 : vector<1x128xf32> to vector<2x128xf32>
    %5 = arith.addf %2, %4 : vector<2x128xf32>
    %cst_5 = arith.constant 0.000000e+00 : f32
    %6 = vector.broadcast %cst_5 : f32 to vector<2x128xf32>
    %7 = arith.maximumf %5, %6 : vector<2x128xf32>
    %c0_6 = arith.constant 0 : index
    %c0_7 = arith.constant 0 : index
    %8 = vector.load %arg4[%c0_6, %c0_7] : memref<128x128xf32, #tpu.memory_space<vmem>>, vector<128x128xf32>
    %cst_8 = arith.constant dense<0.000000e+00> : vector<2x128xf32>
    %9 = tpu.matmul %7, %8, %cst_8 {dimension_numbers = #tpu.dot_dimension_numbers<[1], [0], [0], [1], [0, 0, 1, 1], [], []>} : vector<2x128xf32>, vector<128x128xf32>, vector<2x128xf32> -> vector<2x128xf32>
    %c0_9 = arith.constant 0 : index
    %c0_10 = arith.constant 0 : index
    %10 = vector.load %arg5[%c0_9, %c0_10] : memref<1x128xf32, #tpu.memory_space<vmem>>, vector<1x128xf32>
    %11 = vector.broadcast %10 : vector<1x128xf32> to vector<2x128xf32>
    %12 = arith.addf %9, %11 : vector<2x128xf32>
    %c0_11 = arith.constant 0 : index
    %c0_12 = arith.constant 0 : index
    %13 = vector.load %arg6[%c0_11, %c0_12] : memref<2x128xf32, #tpu.memory_space<vmem>>, vector<2x128xf32>
    tpu.vector_store %arg6[%c0_11, %c0_12], %12 {strides = array<i32>} : memref<2x128xf32, #tpu.memory_space<vmem>>, vector<2x128xf32>,
    return
  }
  func.func @transform_0(%arg0: i32) -> (i32, i32) {
    %c0_i32 = arith.constant 0 : i32
    %c0_i32_0 = arith.constant 0 : i32
    %c0_i32_1 = arith.constant 0 : i32
    return %c0_i32, %c0_i32_0 : i32, i32
  }
  func.func @transform_1(%arg0: i32) -> (i32, i32) {
    %c0_i32 = arith.constant 0 : i32
    %c0_i32_0 = arith.constant 0 : i32
    %c0_i32_1 = arith.constant 0 : i32
    return %c0_i32, %c0_i32_0 : i32, i32
  }
  func.func @transform_2(%arg0: i32) -> (i32, i32) {
    %c0_i32 = arith.constant 0 : i32
    %c0_i32_0 = arith.constant 0 : i32
    %c0_i32_1 = arith.constant 0 : i32
    return %c0_i32, %c0_i32_0 : i32, i32
  }
  func.func @transform_3(%arg0: i32) -> (i32, i32) {
    %c0_i32 = arith.constant 0 : i32
    %c0_i32_0 = arith.constant 0 : i32
    %c0_i32_1 = arith.constant 0 : i32
    return %c0_i32, %c0_i32_0 : i32, i32
  }
  func.func @transform_4(%arg0: i32) -> (i32, i32) {
    %c0_i32 = arith.constant 0 : i32
    %c0_i32_0 = arith.constant 0 : i32
    %c0_i32_1 = arith.constant 0 : i32
    return %c0_i32, %c0_i32_0 : i32, i32
  }
  func.func @transform_5(%arg0: i32) -> (i32, i32) {
    %c0_i32 = arith.constant 0 : i32
    %c0_i32_0 = arith.constant 0 : i32
    %c0_i32_1 = arith.constant 0 : i32
    return %c0_i32, %c0_i32_0 : i32, i32
  }
}

</mosaic_0001>

<llo_original>
// kernel: credal_cnn_forward.3
$region0: #{credal_cnn_forward.3}
  #allocation0 [shape = 'u32[]', space=smem, size = 0x4, offset = 0x4, fixed_abs, tag = 'smem constant byte address 0x4 - core index']
  #allocation1 [shape = 'u32[144,128]{1,0:T(1,128)}', space=vmem, size = 0x12000, scoped, tag = 'internal scratch']
  %s0 = inlined_call_operand.vmem [shape: f32[2,4096], index: 0, kind: input, shape index: {}]
  %s1 = inlined_call_operand.vmem [shape: f32[4096,128], index: 1, kind: input, shape index: {}]
  %s2 = inlined_call_operand.vmem [shape: f32[1,128], index: 2, kind: input, shape index: {}]
  %s3 = inlined_call_operand.vmem [shape: f32[128,128], index: 3, kind: input, shape index: {}]
  %s4 = inlined_call_operand.vmem [shape: f32[1,128], index: 4, kind: input, shape index: {}]
  %s5 = inlined_call_operand.vmem [shape: f32[2,128], index: 5, kind: output, shape index: {}]
  %s6 = sld [smem:[#allocation0]]
  $region30: #{credal_cnn_forward.3} parent=0
    _
  %s8 = ssub.s32 1, %s6
  %s9 = scalar_select 0, %s8, %s6
  // Predicated region
  $region2: #{credal_cnn_forward.3} parent=0 // pred_check
    _
  $region3: #{credal_cnn_forward.3} parent=0 // pred_check_branch
    %11 = sbr.rel (0) target = $region5
  $region4: #{credal_cnn_forward.3} parent=0 // pred_region
    _
  $region5: #{credal_cnn_forward.3} parent=0 // pred_fallthru
    _
  // Predicated region
  $region6: #{credal_cnn_forward.3} parent=0 // pred_check
    _
  $region7: #{credal_cnn_forward.3} parent=0 // pred_check_branch
    %13 = sbr.rel (0) target = $region9
  $region8: #{credal_cnn_forward.3} parent=0 // pred_region
    _
  $region9: #{credal_cnn_forward.3} parent=0 // pred_fallthru
    _
  // Predicated region
  $region10: #{credal_cnn_forward.3} parent=0 // pred_check
    _
  $region11: #{credal_cnn_forward.3} parent=0 // pred_check_branch
    %15 = sbr.rel (0) target = $region13
  $region12: #{credal_cnn_forward.3} parent=0 // pred_region
    _
  $region13: #{credal_cnn_forward.3} parent=0 // pred_fallthru
    _
  // Predicated region
  $region14: #{credal_cnn_forward.3} parent=0 // pred_check
    _
  $region15: #{credal_cnn_forward.3} parent=0 // pred_check_branch
    %17 = sbr.rel (0) target = $region17
  $region16: #{credal_cnn_forward.3} parent=0 // pred_region
    _
  $region17: #{credal_cnn_forward.3} parent=0 // pred_fallthru
    _
  // Predicated region
  $region18: #{credal_cnn_forward.3} parent=0 // pred_check
    _
  $region19: #{credal_cnn_forward.3} parent=0 // pred_check_branch
    %19 = sbr.rel (0) target = $region21
  $region20: #{credal_cnn_forward.3} parent=0 // pred_region
    _
  $region21: #{credal_cnn_forward.3} parent=0 // pred_fallthru
    _
  %v20 = vld [vmem:[%s0] sm:$0xff]
  %v21 = vld [vmem:[%s0 + $0x8] sm:$0xff]
  %v22 = vld [vmem:[%s0 + $0x10] sm:$0xff]
  %v23 = vld [vmem:[%s0 + $0x18] sm:$0xff]
  %v24 = vld [vmem:[%s0 + $0x20] sm:$0xff]
  %v25 = vld [vmem:[%s0 + $0x28] sm:$0xff]
  %v26 = vld [vmem:[%s0 + $0x30] sm:$0xff]
  %v27 = vld [vmem:[%s0 + $0x38] sm:$0xff]
  %v28 = vld [vmem:[%s1] sm:$0xff]
  %v29 = vld [vmem:[%s1 + $0x8] sm:$0xff]
  %v30 = vld [vmem:[%s1 + $0x10] sm:$0xff]
  %v31 = vld [vmem:[%s1 + $0x18] sm:$0xff]
  %v32 = vld [vmem:[%s1 + $0x20] sm:$0xff]
  %v33 = vld [vmem:[%s1 + $0x28] sm:$0xff]
  %v34 = vld [vmem:[%s1 + $0x30] sm:$0xff]
  %v35 = vld [vmem:[%s1 + $0x38] sm:$0xff]
  %v36 = vld [vmem:[%s1 + $0x40] sm:$0xff]
  %v37 = vld [vmem:[%s1 + $0x48] sm:$0xff]
  %v38 = vld [vmem:[%s1 + $0x50] sm:$0xff]
  %v39 = vld [vmem:[%s1 + $0x58] sm:$0xff]
  %v40 = vld [vmem:[%s1 + $0x60] sm:$0xff]
  %v41 = vld [vmem:[%s1 + $0x68] sm:$0xff]
  %v42 = vld [vmem:[%s1 + $0x70] sm:$0xff]
  %v43 = vld [vmem:[%s1 + $0x78] sm:$0xff]
  %v44 = vld [vmem:[%s1 + $0x80] sm:$0xff]
  %v45 = vld [vmem:[%s1 + $0x88] sm:$0xff]
  %v46 = vld [vmem:[%s1 + $0x90] sm:$0xff]
  %v47 = vld [vmem:[%s1 + $0x98] sm:$0xff]
  %v48 = vld [vmem:[%s1 + $0xa0] sm:$0xff]
  %v49 = vld [vmem:[%s1 + $0xa8] sm:$0xff]
  %v50 = vld [vmem:[%s1 + $0xb0] sm:$0xff]
  %v51 = vld [vmem:[%s1 + $0xb8] sm:$0xff]
  %v52 = vld [vmem:[%s1 + $0xc0] sm:$0xff]
  %v53 = vld [vmem:[%s1 + $0xc8] sm:$0xff]
  %v54 = vld [vmem:[%s1 + $0xd0] sm:$0xff]
  %v55 = vld [vmem:[%s1 + $0xd8] sm:$0xff]
  %v56 = vld [vmem:[%s1 + $0xe0] sm:$0xff]
  %v57 = vld [vmem:[%s1 + $0xe8] sm:$0xff]
  %v58 = vld [vmem:[%s1 + $0xf0] sm:$0xff]
  %v59 = vld [vmem:[%s1 + $0xf8] sm:$0xff]
  %v60 = vld [vmem:[%s1 + $0x100] sm:$0xff]
  %v61 = vld [vmem:[%s1 + $0x108] sm:$0xff]
  %v62 = vld [vmem:[%s1 + $0x110] sm:$0xff]
  %v63 = vld [vmem:[%s1 + $0x118] sm:$0xff]
  %v64 = vld [vmem:[%s1 + $0x120] sm:$0xff]
  %v65 = vld [vmem:[%s1 + $0x128] sm:$0xff]
  %v66 = vld [vmem:[%s1 + $0x130] sm:$0xff]
  %v67 = vld [vmem:[%s1 + $0x138] sm:$0xff]
  %v68 = vld [vmem:[%s1 + $0x140] sm:$0xff]
  %v69 = vld [vmem:[%s1 + $0x148] sm:$0xff]
  %v70 = vld [vmem:[%s1 + $0x150] sm:$0xff]
  %v71 = vld [vmem:[%s1 + $0x158] sm:$0xff]
  %v72 = vld [vmem:[%s1 + $0x160] sm:$0xff]
  %v73 = vld [vmem:[%s1 + $0x168] sm:$0xff]
  %v74 = vld [vmem:[%s1 + $0x170] sm:$0xff]
  %v75 = vld [vmem:[%s1 + $0x178] sm:$0xff]
  %v76 = vld [vmem:[%s1 + $0x180] sm:$0xff]
  %v77 = vld [vmem:[%s1 + $0x188] sm:$0xff]
  %v78 = vld [vmem:[%s1 + $0x190] sm:$0xff]
  %v79 = vld [vmem:[%s1 + $0x198] sm:$0xff]
  %v80 = vld [vmem:[%s1 + $0x1a0] sm:$0xff]
  %v81 = vld [vmem:[%s1 + $0x1a8] sm:$0xff]
  %v82 = vld [vmem:[%s1 + $0x1b0] sm:$0xff]
  %v83 = vld [vmem:[%s1 + $0x1b8] sm:$0xff]
  %v84 = vld [vmem:[%s1 + $0x1c0] sm:$0xff]
  %v85 = vld [vmem:[%s1 + $0x1c8] sm:$0xff]
  %v86 = vld [vmem:[%s1 + $0x1d0] sm:$0xff]
  %v87 = vld [vmem:[%s1 + $0x1d8] sm:$0xff]
  %v88 = vld [vmem:[%s1 + $0x1e0] sm:$0xff]
  %v89 = vld [vmem:[%s1 + $0x1e8] sm:$0xff]
  %v90 = vld [vmem:[%s1 + $0x1f0] sm:$0xff]
  %v91 = vld [vmem:[%s1 + $0x1f8] sm:$0xff]
  %v92 = vld [vmem:[%s1 + $0x200] sm:$0xff]
  %v93 = vld [vmem:[%s1 + $0x208] sm:$0xff]
  %v94 = vld [vmem:[%s1 + $0x210] sm:$0xff]
  %v95 = vld [vmem:[%s1 + $0x218] sm:$0xff]
  %v96 = vld [vmem:[%s1 + $0x220] sm:$0xff]
  %v97 = vld [vmem:[%s1 + $0x228] sm:$0xff]
  %v98 = vld [vmem:[%s1 + $0x230] sm:$0xff]
  %v99 = vld [vmem:[%s1 + $0x238] sm:$0xff]
  %v100 = vld [vmem:[%s1 + $0x240] sm:$0xff]
  %v101 = vld [vmem:[%s1 + $0x248] sm:$0xff]
  %v102 = vld [vmem:[%s1 + $0x250] sm:$0xff]
  %v103 = vld [vmem:[%s1 + $0x258] sm:$0xff]
  %v104 = vld [vmem:[%s1 + $0x260] sm:$0xff]
  %v105 = vld [vmem:[%s1 + $0x268] sm:$0xff]
  %v106 = vld [vmem:[%s1 + $0x270] sm:$0xff]
  %v107 = vld [vmem:[%s1 + $0x278] sm:$0xff]
  %v108 = vld [vmem:[%s1 + $0x280] sm:$0xff]
  %v109 = vld [vmem:[%s1 + $0x288] sm:$0xff]
  %v110 = vld [vmem:[%s1 + $0x290] sm:$0xff]
  %v111 = vld [vmem:[%s1 + $0x298] sm:$0xff]
  %v112 = vld [vmem:[%s1 + $0x2a0] sm:$0xff]
  %v113 = vld [vmem:[%s1 + $0x2a8] sm:$0xff]
  %v114 = vld [vmem:[%s1 + $0x2b0] sm:$0xff]
  %v115 = vld [vmem:[%s1 + $0x2b8] sm:$0xff]
  %v116 = vld [vmem:[%s1 + $0x2c0] sm:$0xff]
  %v117 = vld [vmem:[%s1 + $0x2c8] sm:$0xff]
  %v118 = vld [vmem:[%s1 + $0x2d0] sm:$0xff]
  %v119 = vld [vmem:[%s1 + $0x2d8] sm:$0xff]
  %v120 = vld [vmem:[%s1 + $0x2e0] sm:$0xff]
  %v121 = vld [vmem:[%s1 + $0x2e8] sm:$0xff]
  %v122 = vld [vmem:[%s1 + $0x2f0] sm:$0xff]
  %v123 = vld [vmem:[%s1 + $0x2f8] sm:$0xff]
  %v124 = vld [vmem:[%s1 + $0x300] sm:$0xff]
  %v125 = vld [vmem:[%s1 + $0x308] sm:$0xff]
  %v126 = vld [vmem:[%s1 + $0x310] sm:$0xff]
  %v127 = vld [vmem:[%s1 + $0x318] sm:$0xff]
  %v128 = vld [vmem:[%s1 + $0x320] sm:$0xff]
  %v129 = vld [vmem:[%s1 + $0x328] sm:$0xff]
  %v130 = vld [vmem:[%s1 + $0x330] sm:$0xff]
  %v131 = vld [vmem:[%s1 + $0x338] sm:$0xff]
  %v132 = vld [vmem:[%s1 + $0x340] sm:$0xff]
  %v133 = vld [vmem:[%s1 + $0x348] sm:$0xff]
  %v134 = vld [vmem:[%s1 + $0x350] sm:$0xff]
  %v135 = vld [vmem:[%s1 + $0x358] sm:$0xff]
  %v136 = vld [vmem:[%s1 + $0x360] sm:$0xff]
  %v137 = vld [vmem:[%s1 + $0x368] sm:$0xff]
  %v138 = vld [vmem:[%s1 + $0x370] sm:$0xff]
  %v139 = vld [vmem:[%s1 + $0x378] sm:$0xff]
  %v140 = vld [vmem:[%s1 + $0x380] sm:$0xff]
  %v141 = vld [vmem:[%s1 + $0x388] sm:$0xff]
  %v142 = vld [vmem:[%s1 + $0x390] sm:$0xff]
  %v143 = vld [vmem:[%s1 + $0x398] sm:$0xff]
  %v144 = vld [vmem:[%s1 + $0x3a0] sm:$0xff]
  %v145 = vld [vmem:[%s1 + $0x3a8] sm:$0xff]
  %v146 = vld [vmem:[%s1 + $0x3b0] sm:$0xff]
  %v147 = vld [vmem:[%s1 + $0x3b8] sm:$0xff]
  %v148 = vld [vmem:[%s1 + $0x3c0] sm:$0xff]
  %v149 = vld [vmem:[%s1 + $0x3c8] sm:$0xff]
  %v150 = vld [vmem:[%s1 + $0x3d0] sm:$0xff]
  %v151 = vld [vmem:[%s1 + $0x3d8] sm:$0xff]
  %v152 = vld [vmem:[%s1 + $0x3e0] sm:$0xff]
  %v153 = vld [vmem:[%s1 + $0x3e8] sm:$0xff]
  %v154 = vld [vmem:[%s1 + $0x3f0] sm:$0xff]
  %v155 = vld [vmem:[%s1 + $0x3f8] sm:$0xff]
  %v156 = vld [vmem:[%s1 + $0x400] sm:$0xff]
  %v157 = vld [vmem:[%s1 + $0x408] sm:$0xff]
  %v158 = vld [vmem:[%s1 + $0x410] sm:$0xff]
  %v159 = vld [vmem:[%s1 + $0x418] sm:$0xff]
  %v160 = vld [vmem:[%s1 + $0x420] sm:$0xff]
  %v161 = vld [vmem:[%s1 + $0x428] sm:$0xff]
  %v162 = vld [vmem:[%s1 + $0x430] sm:$0xff]
  %v163 = vld [vmem:[%s1 + $0x438] sm:$0xff]
  %v164 = vld [vmem:[%s1 + $0x440] sm:$0xff]
  %v165 = vld [vmem:[%s1 + $0x448] sm:$0xff]
  %v166 = vld [vmem:[%s1 + $0x450] sm:$0xff]
  %v167 = vld [vmem:[%s1 + $0x458] sm:$0xff]
  %v168 = vld [vmem:[%s1 + $0x460] sm:$0xff]
  %v169 = vld [vmem:[%s1 + $0x468] sm:$0xff]
  %v170 = vld [vmem:[%s1 + $0x470] sm:$0xff]
  %v171 = vld [vmem:[%s1 + $0x478] sm:$0xff]
  %v172 = vld [vmem:[%s1 + $0x480] sm:$0xff]
  %v173 = vld [vmem:[%s1 + $0x488] sm:$0xff]
  %v174 = vld [vmem:[%s1 + $0x490] sm:$0xff]
  %v175 = vld [vmem:[%s1 + $0x498] sm:$0xff]
  %v176 = vld [vmem:[%s1 + $0x4a0] sm:$0xff]
  %v177 = vld [vmem:[%s1 + $0x4a8] sm:$0xff]
  %v178 = vld [vmem:[%s1 + $0x4b0] sm:$0xff]
  %v179 = vld [vmem:[%s1 + $0x4b8] sm:$0xff]
  %v180 = vld [vmem:[%s1 + $0x4c0] sm:$0xff]
  %v181 = vld [vmem:[%s1 + $0x4c8] sm:$0xff]
  %v182 = vld [vmem:[%s1 + $0x4d0] sm:$0xff]
  %v183 = vld [vmem:[%s1 + $0x4d8] sm:$0xff]
  %v184 = vld [vmem:[%s1 + $0x4e0] sm:$0xff]
  %v185 = vld [vmem:[%s1 + $0x4e8] sm:$0xff]
  %v186 = vld [vmem:[%s1 + $0x4f0] sm:$0xff]
  %v187 = vld [vmem:[%s1 + $0x4f8] sm:$0xff]
  %v188 = vld [vmem:[%s1 + $0x500] sm:$0xff]
  %v189 = vld [vmem:[%s1 + $0x508] sm:$0xff]
  %v190 = vld [vmem:[%s1 + $0x510] sm:$0xff]
  %v191 = vld [vmem:[%s1 + $0x518] sm:$0xff]
  %v192 = vld [vmem:[%s1 + $0x520] sm:$0xff]
  %v193 = vld [vmem:[%s1 + $0x528] sm:$0xff]
  %v194 = vld [vmem:[%s1 + $0x530] sm:$0xff]
  %v195 = vld [vmem:[%s1 + $0x538] sm:$0xff]
  %v196 = vld [vmem:[%s1 + $0x540] sm:$0xff]
  %v197 = vld [vmem:[%s1 + $0x548] sm:$0xff]
  %v198 = vld [vmem:[%s1 + $0x550] sm:$0xff]
  %v199 = vld [vmem:[%s1 + $0x558] sm:$0xff]
  %v200 = vld [vmem:[%s1 + $0x560] sm:$0xff]
  %v201 = vld [vmem:[%s1 + $0x568] sm:$0xff]
  %v202 = vld [vmem:[%s1 + $0x570] sm:$0xff]
  %v203 = vld [vmem:[%s1 + $0x578] sm:$0xff]
  %v204 = vld [vmem:[%s1 + $0x580] sm:$0xff]
  %v205 = vld [vmem:[%s1 + $0x588] sm:$0xff]
  %v206 = vld [vmem:[%s1 + $0x590] sm:$0xff]
  %v207 = vld [vmem:[%s1 + $0x598] sm:$0xff]
  %v208 = vld [vmem:[%s1 + $0x5a0] sm:$0xff]
  %v209 = vld [vmem:[%s1 + $0x5a8] sm:$0xff]
  %v210 = vld [vmem:[%s1 + $0x5b0] sm:$0xff]
  %v211 = vld [vmem:[%s1 + $0x5b8] sm:$0xff]
  %v212 = vld [vmem:[%s1 + $0x5c0] sm:$0xff]
  %v213 = vld [vmem:[%s1 + $0x5c8] sm:$0xff]
  %v214 = vld [vmem:[%s1 + $0x5d0] sm:$0xff]
  %v215 = vld [vmem:[%s1 + $0x5d8] sm:$0xff]
  %v216 = vld [vmem:[%s1 + $0x5e0] sm:$0xff]
  %v217 = vld [vmem:[%s1 + $0x5e8] sm:$0xff]
  %v218 = vld [vmem:[%s1 + $0x5f0] sm:$0xff]
  %v219 = vld [vmem:[%s1 + $0x5f8] sm:$0xff]
  %v220 = vld [vmem:[%s1 + $0x600] sm:$0xff]
  %v221 = vld [vmem:[%s1 + $0x608] sm:$0xff]
  %v222 = vld [vmem:[%s1 + $0x610] sm:$0xff]
  %v223 = vld [vmem:[%s1 + $0x618] sm:$0xff]
  %v224 = vld [vmem:[%s1 + $0x620] sm:$0xff]
  %v225 = vld [vmem:[%s1 + $0x628] sm:$0xff]
  %v226 = vld [vmem:[%s1 + $0x630] sm:$0xff]
  %v227 = vld [vmem:[%s1 + $0x638] sm:$0xff]
  %v228 = vld [vmem:[%s1 + $0x640] sm:$0xff]
  %v229 = vld [vmem:[%s1 + $0x648] sm:$0xff]
  %v230 = vld [vmem:[%s1 + $0x650] sm:$0xff]
  %v231 = vld [vmem:[%s1 + $0x658] sm:$0xff]
  %v232 = vld [vmem:[%s1 + $0x660] sm:$0xff]
  %v233 = vld [vmem:[%s1 + $0x668] sm:$0xff]
  %v234 = vld [vmem:[%s1 + $0x670] sm:$0xff]
  %v235 = vld [vmem:[%s1 + $0x678] sm:$0xff]
  %v236 = vld [vmem:[%s1 + $0x680] sm:$0xff]
  %v237 = vld [vmem:[%s1 + $0x688] sm:$0xff]
  %v238 = vld [vmem:[%s1 + $0x690] sm:$0xff]
  %v239 = vld [vmem:[%s1 + $0x698] sm:$0xff]
  %v240 = vld [vmem:[%s1 + $0x6a0] sm:$0xff]
  %v241 = vld [vmem:[%s1 + $0x6a8] sm:$0xff]
  %v242 = vld [vmem:[%s1 + $0x6b0] sm:$0xff]
  %v243 = vld [vmem:[%s1 + $0x6b8] sm:$0xff]
  %v244 = vld [vmem:[%s1 + $0x6c0] sm:$0xff]
  %v245 = vld [vmem:[%s1 + $0x6c8] sm:$0xff]
  %v246 = vld [vmem:[%s1 + $0x6d0] sm:$0xff]
  %v247 = vld [vmem:[%s1 + $0x6d8] sm:$0xff]
  %v248 = vld [vmem:[%s1 + $0x6e0] sm:$0xff]
  %v249 = vld [vmem:[%s1 + $0x6e8] sm:$0xff]
  %v250 = vld [vmem:[%s1 + $0x6f0] sm:$0xff]
  %v251 = vld [vmem:[%s1 + $0x6f8] sm:$0xff]
  %v252 = vld [vmem:[%s1 + $0x700] sm:$0xff]
  %v253 = vld [vmem:[%s1 + $0x708] sm:$0xff]
  %v254 = vld [vmem:[%s1 + $0x710] sm:$0xff]
  %v255 = vld [vmem:[%s1 + $0x718] sm:$0xff]
  %v256 = vld [vmem:[%s1 + $0x720] sm:$0xff]
  %v257 = vld [vmem:[%s1 + $0x728] sm:$0xff]
  %v258 = vld [vmem:[%s1 + $0x730] sm:$0xff]
  %v259 = vld [vmem:[%s1 + $0x738] sm:$0xff]
  %v260 = vld [vmem:[%s1 + $0x740] sm:$0xff]
  %v261 = vld [vmem:[%s1 + $0x748] sm:$0xff]
  %v262 = vld [vmem:[%s1 + $0x750] sm:$0xff]
  %v263 = vld [vmem:[%s1 + $0x758] sm:$0xff]
  %v264 = vld [vmem:[%s1 + $0x760] sm:$0xff]
  %v265 = vld [vmem:[%s1 + $0x768] sm:$0xff]
  %v266 = vld [vmem:[%s1 + $0x770] sm:$0xff]
  %v267 = vld [vmem:[%s1 + $0x778] sm:$0xff]
  %v268 = vld [vmem:[%s1 + $0x780] sm:$0xff]
  %v269 = vld [vmem:[%s1 + $0x788] sm:$0xff]
  %v270 = vld [vmem:[%s1 + $0x790] sm:$0xff]
  %v271 = vld [vmem:[%s1 + $0x798] sm:$0xff]
  %v272 = vld [vmem:[%s1 + $0x7a0] sm:$0xff]
  %v273 = vld [vmem:[%s1 + $0x7a8] sm:$0xff]
  %v274 = vld [vmem:[%s1 + $0x7b0] sm:$0xff]
  %v275 = vld [vmem:[%s1 + $0x7b8] sm:$0xff]
  %v276 = vld [vmem:[%s1 + $0x7c0] sm:$0xff]
  %v277 = vld [vmem:[%s1 + $0x7c8] sm:$0xff]
  %v278 = vld [vmem:[%s1 + $0x7d0] sm:$0xff]
  %v279 = vld [vmem:[%s1 + $0x7d8] sm:$0xff]
  %v280 = vld [vmem:[%s1 + $0x7e0] sm:$0xff]
  %v281 = vld [vmem:[%s1 + $0x7e8] sm:$0xff]
  %v282 = vld [vmem:[%s1 + $0x7f0] sm:$0xff]
  %v283 = vld [vmem:[%s1 + $0x7f8] sm:$0xff]
  %v284 = vld [vmem:[%s1 + $0x800] sm:$0xff]
  %v285 = vld [vmem:[%s1 + $0x808] sm:$0xff]
  %v286 = vld [vmem:[%s1 + $0x810] sm:$0xff]
  %v287 = vld [vmem:[%s1 + $0x818] sm:$0xff]
  %v288 = vld [vmem:[%s1 + $0x820] sm:$0xff]
  %v289 = vld [vmem:[%s1 + $0x828] sm:$0xff]
  %v290 = vld [vmem:[%s1 + $0x830] sm:$0xff]
  %v291 = vld [vmem:[%s1 + $0x838] sm:$0xff]
  %v292 = vld [vmem:[%s1 + $0x840] sm:$0xff]
  %v293 = vld [vmem:[%s1 + $0x848] sm:$0xff]
  %v294 = vld [vmem:[%s1 + $0x850] sm:$0xff]
  %v295 = vld [vmem:[%s1 + $0x858] sm:$0xff]
  %v296 = vld [vmem:[%s1 + $0x860] sm:$0xff]
  %v297 = vld [vmem:[%s1 + $0x868] sm:$0xff]
  %v298 = vld [vmem:[%s1 + $0x870] sm:$0xff]
  %v299 = vld [vmem:[%s1 + $0x878] sm:$0xff]
  %v300 = vld [vmem:[%s1 + $0x880] sm:$0xff]
  %v301 = vld [vmem:[%s1 + $0x888] sm:$0xff]
  %v302 = vld [vmem:[%s1 + $0x890] sm:$0xff]
  %v303 = vld [vmem:[%s1 + $0x898] sm:$0xff]
  %v304 = vld [vmem:[%s1 + $0x8a0] sm:$0xff]
  %v305 = vld [vmem:[%s1 + $0x8a8] sm:$0xff]
  %v306 = vld [vmem:[%s1 + $0x8b0] sm:$0xff]
  %v307 = vld [vmem:[%s1 + $0x8b8] sm:$0xff]
  %v308 = vld [vmem:[%s1 + $0x8c0] sm:$0xff]
  %v309 = vld [vmem:[%s1 + $0x8c8] sm:$0xff]
  %v310 = vld [vmem:[%s1 + $0x8d0] sm:$0xff]
  %v311 = vld [vmem:[%s1 + $0x8d8] sm:$0xff]
  %v312 = vld [vmem:[%s1 + $0x8e0] sm:$0xff]
  %v313 = vld [vmem:[%s1 + $0x8e8] sm:$0xff]
  %v314 = vld [vmem:[%s1 + $0x8f0] sm:$0xff]
  %v315 = vld [vmem:[%s1 + $0x8f8] sm:$0xff]
  %v316 = vld [vmem:[%s1 + $0x900] sm:$0xff]
  %v317 = vld [vmem:[%s1 + $0x908] sm:$0xff]
  %v318 = vld [vmem:[%s1 + $0x910] sm:$0xff]
  %v319 = vld [vmem:[%s1 + $0x918] sm:$0xff]
  %v320 = vld [vmem:[%s1 + $0x920] sm:$0xff]
  %v321 = vld [vmem:[%s1 + $0x928] sm:$0xff]
  %v322 = vld [vmem:[%s1 + $0x930] sm:$0xff]
  %v323 = vld [vmem:[%s1 + $0x938] sm:$0xff]
  %v324 = vld [vmem:[%s1 + $0x940] sm:$0xff]
  %v325 = vld [vmem:[%s1 + $0x948] sm:$0xff]
  %v326 = vld [vmem:[%s1 + $0x950] sm:$0xff]
  %v327 = vld [vmem:[%s1 + $0x958] sm:$0xff]
  %v328 = vld [vmem:[%s1 + $0x960] sm:$0xff]
  %v329 = vld [vmem:[%s1 + $0x968] sm:$0xff]
  %v330 = vld [vmem:[%s1 + $0x970] sm:$0xff]
  %v331 = vld [vmem:[%s1 + $0x978] sm:$0xff]
  %v332 = vld [vmem:[%s1 + $0x980] sm:$0xff]
  %v333 = vld [vmem:[%s1 + $0x988] sm:$0xff]
  %v334 = vld [vmem:[%s1 + $0x990] sm:$0xff]
  %v335 = vld [vmem:[%s1 + $0x998] sm:$0xff]
  %v336 = vld [vmem:[%s1 + $0x9a0] sm:$0xff]
  %v337 = vld [vmem:[%s1 + $0x9a8] sm:$0xff]
  %v338 = vld [vmem:[%s1 + $0x9b0] sm:$0xff]
  %v339 = vld [vmem:[%s1 + $0x9b8] sm:$0xff]
  %v340 = vld [vmem:[%s1 + $0x9c0] sm:$0xff]
  %v341 = vld [vmem:[%s1 + $0x9c8] sm:$0xff]
  %v342 = vld [vmem:[%s1 + $0x9d0] sm:$0xff]
  %v343 = vld [vmem:[%s1 + $0x9d8] sm:$0xff]
  %v344 = vld [vmem:[%s1 + $0x9e0] sm:$0xff]
  %v345 = vld [vmem:[%s1 + $0x9e8] sm:$0xff]
  %v346 = vld [vmem:[%s1 + $0x9f0] sm:$0xff]
  %v347 = vld [vmem:[%s1 + $0x9f8] sm:$0xff]
  %v348 = vld [vmem:[%s1 + $0xa00] sm:$0xff]
  %v349 = vld [vmem:[%s1 + $0xa08] sm:$0xff]
  %v350 = vld [vmem:[%s1 + $0xa10] sm:$0xff]
  %v351 = vld [vmem:[%s1 + $0xa18] sm:$0xff]
  %v352 = vld [vmem:[%s1 + $0xa20] sm:$0xff]
  %v353 = vld [vmem:[%s1 + $0xa28] sm:$0xff]
  %v354 = vld [vmem:[%s1 + $0xa30] sm:$0xff]
  %v355 = vld [vmem:[%s1 + $0xa38] sm:$0xff]
  %v356 = vld [vmem:[%s1 + $0xa40] sm:$0xff]
  %v357 = vld [vmem:[%s1 + $0xa48] sm:$0xff]
  %v358 = vld [vmem:[%s1 + $0xa50] sm:$0xff]
  %v359 = vld [vmem:[%s1 + $0xa58] sm:$0xff]
  %v360 = vld [vmem:[%s1 + $0xa60] sm:$0xff]
  %v361 = vld [vmem:[%s1 + $0xa68] sm:$0xff]
  %v362 = vld [vmem:[%s1 + $0xa70] sm:$0xff]
  %v363 = vld [vmem:[%s1 + $0xa78] sm:$0xff]
  %v364 = vld [vmem:[%s1 + $0xa80] sm:$0xff]
  %v365 = vld [vmem:[%s1 + $0xa88] sm:$0xff]
  %v366 = vld [vmem:[%s1 + $0xa90] sm:$0xff]
  %v367 = vld [vmem:[%s1 + $0xa98] sm:$0xff]
  %v368 = vld [vmem:[%s1 + $0xaa0] sm:$0xff]
  %v369 = vld [vmem:[%s1 + $0xaa8] sm:$0xff]
  %v370 = vld [vmem:[%s1 + $0xab0] sm:$0xff]
  %v371 = vld [vmem:[%s1 + $0xab8] sm:$0xff]
  %v372 = vld [vmem:[%s1 + $0xac0] sm:$0xff]
  %v373 = vld [vmem:[%s1 + $0xac8] sm:$0xff]
  %v374 = vld [vmem:[%s1 + $0xad0] sm:$0xff]
  %v375 = vld [vmem:[%s1 + $0xad8] sm:$0xff]
  %v376 = vld [vmem:[%s1 + $0xae0] sm:$0xff]
  %v377 = vld [vmem:[%s1 + $0xae8] sm:$0xff]
  %v378 = vld [vmem:[%s1 + $0xaf0] sm:$0xff]
  %v379 = vld [vmem:[%s1 + $0xaf8] sm:$0xff]
  %v380 = vld [vmem:[%s1 + $0xb00] sm:$0xff]
  %v381 = vld [vmem:[%s1 + $0xb08] sm:$0xff]
  %v382 = vld [vmem:[%s1 + $0xb10] sm:$0xff]
  %v383 = vld [vmem:[%s1 + $0xb18] sm:$0xff]
  %v384 = vld [vmem:[%s1 + $0xb20] sm:$0xff]
  %v385 = vld [vmem:[%s1 + $0xb28] sm:$0xff]
  %v386 = vld [vmem:[%s1 + $0xb30] sm:$0xff]
  %v387 = vld [vmem:[%s1 + $0xb38] sm:$0xff]
  %v388 = vld [vmem:[%s1 + $0xb40] sm:$0xff]
  %v389 = vld [vmem:[%s1 + $0xb48] sm:$0xff]
  %v390 = vld [vmem:[%s1 + $0xb50] sm:$0xff]
  %v391 = vld [vmem:[%s1 + $0xb58] sm:$0xff]
  %v392 = vld [vmem:[%s1 + $0xb60] sm:$0xff]
  %v393 = vld [vmem:[%s1 + $0xb68] sm:$0xff]
  %v394 = vld [vmem:[%s1 + $0xb70] sm:$0xff]
  %v395 = vld [vmem:[%s1 + $0xb78] sm:$0xff]
  %v396 = vld [vmem:[%s1 + $0xb80] sm:$0xff]
  %v397 = vld [vmem:[%s1 + $0xb88] sm:$0xff]
  %v398 = vld [vmem:[%s1 + $0xb90] sm:$0xff]
  %v399 = vld [vmem:[%s1 + $0xb98] sm:$0xff]
  %v400 = vld [vmem:[%s1 + $0xba0] sm:$0xff]
  %v401 = vld [vmem:[%s1 + $0xba8] sm:$0xff]
  %v402 = vld [vmem:[%s1 + $0xbb0] sm:$0xff]
  %v403 = vld [vmem:[%s1 + $0xbb8] sm:$0xff]
  %v404 = vld [vmem:[%s1 + $0xbc0] sm:$0xff]
  %v405 = vld [vmem:[%s1 + $0xbc8] sm:$0xff]
  %v406 = vld [vmem:[%s1 + $0xbd0] sm:$0xff]
  %v407 = vld [vmem:[%s1 + $0xbd8] sm:$0xff]
  %v408 = vld [vmem:[%s1 + $0xbe0] sm:$0xff]
  %v409 = vld [vmem:[%s1 + $0xbe8] sm:$0xff]
  %v410 = vld [vmem:[%s1 + $0xbf0] sm:$0xff]
  %v411 = vld [vmem:[%s1 + $0xbf8] sm:$0xff]
  %v412 = vld [vmem:[%s1 + $0xc00] sm:$0xff]
  %v413 = vld [vmem:[%s1 + $0xc08] sm:$0xff]
  %v414 = vld [vmem:[%s1 + $0xc10] sm:$0xff]
  %v415 = vld [vmem:[%s1 + $0xc18] sm:$0xff]
  %v416 = vld [vmem:[%s1 + $0xc20] sm:$0xff]
  %v417 = vld [vmem:[%s1 + $0xc28] sm:$0xff]
  %v418 = vld [vmem:[%s1 + $0xc30] sm:$0xff]
  %v419 = vld [vmem:[%s1 + $0xc38] sm:$0xff]
  %v420 = vld [vmem:[%s1 + $0xc40] sm:$0xff]
  %v421 = vld [vmem:[%s1 + $0xc48] sm:$0xff]
  %v422 = vld [vmem:[%s1 + $0xc50] sm:$0xff]
  %v423 = vld [vmem:[%s1 + $0xc58] sm:$0xff]
  %v424 = vld [vmem:[%s1 + $0xc60] sm:$0xff]
  %v425 = vld [vmem:[%s1 + $0xc68] sm:$0xff]
  %v426 = vld [vmem:[%s1 + $0xc70] sm:$0xff]
  %v427 = vld [vmem:[%s1 + $0xc78] sm:$0xff]
  %v428 = vld [vmem:[%s1 + $0xc80] sm:$0xff]
  %v429 = vld [vmem:[%s1 + $0xc88] sm:$0xff]
  %v430 = vld [vmem:[%s1 + $0xc90] sm:$0xff]
  %v431 = vld [vmem:[%s1 + $0xc98] sm:$0xff]
  %v432 = vld [vmem:[%s1 + $0xca0] sm:$0xff]
  %v433 = vld [vmem:[%s1 + $0xca8] sm:$0xff]
  %v434 = vld [vmem:[%s1 + $0xcb0] sm:$0xff]
  %v435 = vld [vmem:[%s1 + $0xcb8] sm:$0xff]
  %v436 = vld [vmem:[%s1 + $0xcc0] sm:$0xff]
  %v437 = vld [vmem:[%s1 + $0xcc8] sm:$0xff]
  %v438 = vld [vmem:[%s1 + $0xcd0] sm:$0xff]
  %v439 = vld [vmem:[%s1 + $0xcd8] sm:$0xff]
  %v440 = vld [vmem:[%s1 + $0xce0] sm:$0xff]
  %v441 = vld [vmem:[%s1 + $0xce8] sm:$0xff]
  %v442 = vld [vmem:[%s1 + $0xcf0] sm:$0xff]
  %v443 = vld [vmem:[%s1 + $0xcf8] sm:$0xff]
  %v444 = vld [vmem:[%s1 + $0xd00] sm:$0xff]
  %v445 = vld [vmem:[%s1 + $0xd08] sm:$0xff]
  %v446 = vld [vmem:[%s1 + $0xd10] sm:$0xff]
  %v447 = vld [vmem:[%s1 + $0xd18] sm:$0xff]
  %v448 = vld [vmem:[%s1 + $0xd20] sm:$0xff]
  %v449 = vld [vmem:[%s1 + $0xd28] sm:$0xff]
  %v450 = vld [vmem:[%s1 + $0xd30] sm:$0xff]
  %v451 = vld [vmem:[%s1 + $0xd38] sm:$0xff]
  %v452 = vld [vmem:[%s1 + $0xd40] sm:$0xff]
  %v453 = vld [vmem:[%s1 + $0xd48] sm:$0xff]
  %v454 = vld [vmem:[%s1 + $0xd50] sm:$0xff]
  %v455 = vld [vmem:[%s1 + $0xd58] sm:$0xff]
  %v456 = vld [vmem:[%s1 + $0xd60] sm:$0xff]
  %v457 = vld [vmem:[%s1 + $0xd68] sm:$0xff]
  %v458 = vld [vmem:[%s1 + $0xd70] sm:$0xff]
  %v459 = vld [vmem:[%s1 + $0xd78] sm:$0xff]
  %v460 = vld [vmem:[%s1 + $0xd80] sm:$0xff]
  %v461 = vld [vmem:[%s1 + $0xd88] sm:$0xff]
  %v462 = vld [vmem:[%s1 + $0xd90] sm:$0xff]
  %v463 = vld [vmem:[%s1 + $0xd98] sm:$0xff]
  %v464 = vld [vmem:[%s1 + $0xda0] sm:$0xff]
  %v465 = vld [vmem:[%s1 + $0xda8] sm:$0xff]
  %v466 = vld [vmem:[%s1 + $0xdb0] sm:$0xff]
  %v467 = vld [vmem:[%s1 + $0xdb8] sm:$0xff]
  %v468 = vld [vmem:[%s1 + $0xdc0] sm:$0xff]
  %v469 = vld [vmem:[%s1 + $0xdc8] sm:$0xff]
  %v470 = vld [vmem:[%s1 + $0xdd0] sm:$0xff]
  %v471 = vld [vmem:[%s1 + $0xdd8] sm:$0xff]
  %v472 = vld [vmem:[%s1 + $0xde0] sm:$0xff]
  %v473 = vld [vmem:[%s1 + $0xde8] sm:$0xff]
  %v474 = vld [vmem:[%s1 + $0xdf0] sm:$0xff]
  %v475 = vld [vmem:[%s1 + $0xdf8] sm:$0xff]
  %v476 = vld [vmem:[%s1 + $0xe00] sm:$0xff]
  %v477 = vld [vmem:[%s1 + $0xe08] sm:$0xff]
  %v478 = vld [vmem:[%s1 + $0xe10] sm:$0xff]
  %v479 = vld [vmem:[%s1 + $0xe18] sm:$0xff]
  %v480 = vld [vmem:[%s1 + $0xe20] sm:$0xff]
  %v481 = vld [vmem:[%s1 + $0xe28] sm:$0xff]
  %v482 = vld [vmem:[%s1 + $0xe30] sm:$0xff]
  %v483 = vld [vmem:[%s1 + $0xe38] sm:$0xff]
  %v484 = vld [vmem:[%s1 + $0xe40] sm:$0xff]
  %v485 = vld [vmem:[%s1 + $0xe48] sm:$0xff]
  %v486 = vld [vmem:[%s1 + $0xe50] sm:$0xff]
  %v487 = vld [vmem:[%s1 + $0xe58] sm:$0xff]
  %v488 = vld [vmem:[%s1 + $0xe60] sm:$0xff]
  %v489 = vld [vmem:[%s1 + $0xe68] sm:$0xff]
  %v490 = vld [vmem:[%s1 + $0xe70] sm:$0xff]
  %v491 = vld [vmem:[%s1 + $0xe78] sm:$0xff]
  %v492 = vld [vmem:[%s1 + $0xe80] sm:$0xff]
  %v493 = vld [vmem:[%s1 + $0xe88] sm:$0xff]
  %v494 = vld [vmem:[%s1 + $0xe90] sm:$0xff]
  %v495 = vld [vmem:[%s1 + $0xe98] sm:$0xff]
  %v496 = vld [vmem:[%s1 + $0xea0] sm:$0xff]
  %v497 = vld [vmem:[%s1 + $0xea8] sm:$0xff]
  %v498 = vld [vmem:[%s1 + $0xeb0] sm:$0xff]
  %v499 = vld [vmem:[%s1 + $0xeb8] sm:$0xff]
  %v500 = vld [vmem:[%s1 + $0xec0] sm:$0xff]
  %v501 = vld [vmem:[%s1 + $0xec8] sm:$0xff]
  %v502 = vld [vmem:[%s1 + $0xed0] sm:$0xff]
  %v503 = vld [vmem:[%s1 + $0xed8] sm:$0xff]
  %v504 = vld [vmem:[%s1 + $0xee0] sm:$0xff]
  %v505 = vld [vmem:[%s1 + $0xee8] sm:$0xff]
  %v506 = vld [vmem:[%s1 + $0xef0] sm:$0xff]
  %v507 = vld [vmem:[%s1 + $0xef8] sm:$0xff]
  %v508 = vld [vmem:[%s1 + $0xf00] sm:$0xff]
  %v509 = vld [vmem:[%s1 + $0xf08] sm:$0xff]
  %v510 = vld [vmem:[%s1 + $0xf10] sm:$0xff]
  %v511 = vld [vmem:[%s1 + $0xf18] sm:$0xff]
  %v512 = vld [vmem:[%s1 + $0xf20] sm:$0xff]
  %v513 = vld [vmem:[%s1 + $0xf28] sm:$0xff]
  %v514 = vld [vmem:[%s1 + $0xf30] sm:$0xff]
  %v515 = vld [vmem:[%s1 + $0xf38] sm:$0xff]
  %v516 = vld [vmem:[%s1 + $0xf40] sm:$0xff]
  %v517 = vld [vmem:[%s1 + $0xf48] sm:$0xff]
  %v518 = vld [vmem:[%s1 + $0xf50] sm:$0xff]
  %v519 = vld [vmem:[%s1 + $0xf58] sm:$0xff]
  %v520 = vld [vmem:[%s1 + $0xf60] sm:$0xff]
  %v521 = vld [vmem:[%s1 + $0xf68] sm:$0xff]
  %v522 = vld [vmem:[%s1 + $0xf70] sm:$0xff]
  %v523 = vld [vmem:[%s1 + $0xf78] sm:$0xff]
  %v524 = vld [vmem:[%s1 + $0xf80] sm:$0xff]
  %v525 = vld [vmem:[%s1 + $0xf88] sm:$0xff]
  %v526 = vld [vmem:[%s1 + $0xf90] sm:$0xff]
  %v527 = vld [vmem:[%s1 + $0xf98] sm:$0xff]
  %v528 = vld [vmem:[%s1 + $0xfa0] sm:$0xff]
  %v529 = vld [vmem:[%s1 + $0xfa8] sm:$0xff]
  %v530 = vld [vmem:[%s1 + $0xfb0] sm:$0xff]
  %v531 = vld [vmem:[%s1 + $0xfb8] sm:$0xff]
  %v532 = vld [vmem:[%s1 + $0xfc0] sm:$0xff]
  %v533 = vld [vmem:[%s1 + $0xfc8] sm:$0xff]
  %v534 = vld [vmem:[%s1 + $0xfd0] sm:$0xff]
  %v535 = vld [vmem:[%s1 + $0xfd8] sm:$0xff]
  %v536 = vld [vmem:[%s1 + $0xfe0] sm:$0xff]
  %v537 = vld [vmem:[%s1 + $0xfe8] sm:$0xff]
  %v538 = vld [vmem:[%s1 + $0xff0] sm:$0xff]
  %v539 = vld [vmem:[%s1 + $0xff8] sm:$0xff]
  %v540 = vld [vmem:[%s2] sm:$0x1]
  %v542 = vlaneseq
  %v543 = vshrl.u32 %v542, 7
  %v544 = vsub.s32 0, %v543
  %v545 = vrot.slane %v540, %v544
  %v555 = vcombine.high %v20, %v20
  %v557 = vunpack.c.l.s4 1983009808
  %v558 = vunpack.c.0.s8 %v557
  %v559 = vlaneseq
  %v560 = vshrl.u32 %v559, 7
  %v561 = vsub.s32 %v558, %v560
  %v562 = vrot.slane %v20, %v561
  %v564 = vunpack.c.l.s4 1983009808
  %v565 = vunpack.c.0.s8 %v564
  %v566 = vlaneseq
  %v567 = vshrl.u32 %v566, 7
  %v568 = vsub.s32 %v565, %v567
  %v569 = vrot.slane %v555, %v568
  %v570 = vcombine.high %v562, %v562
  %v571 = vcombine.high %v569, %v569
  %v572 = vcombine.high %v21, %v21
  %v574 = vunpack.c.l.s4 1983009808
  %v575 = vunpack.c.0.s8 %v574
  %v576 = vlaneseq
  %v577 = vshrl.u32 %v576, 7
  %v578 = vsub.s32 %v575, %v577
  %v579 = vrot.slane %v21, %v578
  %v581 = vunpack.c.l.s4 1983009808
  %v582 = vunpack.c.0.s8 %v581
  %v583 = vlaneseq
  %v584 = vshrl.u32 %v583, 7
  %v585 = vsub.s32 %v582, %v584
  %v586 = vrot.slane %v572, %v585
  %v587 = vcombine.high %v579, %v579
  %v588 = vcombine.high %v586, %v586
  %v589 = vcombine.high %v22, %v22
  %v591 = vunpack.c.l.s4 1983009808
  %v592 = vunpack.c.0.s8 %v591
  %v593 = vlaneseq
  %v594 = vshrl.u32 %v593, 7
  %v595 = vsub.s32 %v592, %v594
  %v596 = vrot.slane %v22, %v595
  %v598 = vunpack.c.l.s4 1983009808
  %v599 = vunpack.c.0.s8 %v598
  %v600 = vlaneseq
  %v601 = vshrl.u32 %v600, 7
  %v602 = vsub.s32 %v599, %v601
  %v603 = vrot.slane %v589, %v602
  %v604 = vcombine.high %v596, %v596
  %v605 = vcombine.high %v603, %v603
  %v606 = vcombine.high %v23, %v23
  %v608 = vunpack.c.l.s4 1983009808
  %v609 = vunpack.c.0.s8 %v608
  %v610 = vlaneseq
  %v611 = vshrl.u32 %v610, 7
  %v612 = vsub.s32 %v609, %v611
  %v613 = vrot.slane %v23, %v612
  %v615 = vunpack.c.l.s4 1983009808
  %v616 = vunpack.c.0.s8 %v615
  %v617 = vlaneseq
  %v618 = vshrl.u32 %v617, 7
  %v619 = vsub.s32 %v616, %v618
  %v620 = vrot.slane %v606, %v619
  %v621 = vcombine.high %v613, %v613
  %v622 = vcombine.high %v620, %v620
  %v623 = vcombine.high %v24, %v24
  %v625 = vunpack.c.l.s4 1983009808
  %v626 = vunpack.c.0.s8 %v625
  %v627 = vlaneseq
  %v628 = vshrl.u32 %v627, 7
  %v629 = vsub.s32 %v626, %v628
  %v630 = vrot.slane %v24, %v629
  %v632 = vunpack.c.l.s4 1983009808
  %v633 = vunpack.c.0.s8 %v632
  %v634 = vlaneseq
  %v635 = vshrl.u32 %v634, 7
  %v636 = vsub.s32 %v633, %v635
  %v637 = vrot.slane %v623, %v636
  %v638 = vcombine.high %v630, %v630
  %v639 = vcombine.high %v637, %v637
  %v640 = vcombine.high %v25, %v25
  %v642 = vunpack.c.l.s4 1983009808
  %v643 = vunpack.c.0.s8 %v642
  %v644 = vlaneseq
  %v645 = vshrl.u32 %v644, 7
  %v646 = vsub.s32 %v643, %v645
  %v647 = vrot.slane %v25, %v646
  %v649 = vunpack.c.l.s4 1983009808
  %v650 = vunpack.c.0.s8 %v649
  %v651 = vlaneseq
  %v652 = vshrl.u32 %v651, 7
  %v653 = vsub.s32 %v650, %v652
  %v654 = vrot.slane %v640, %v653
  %v655 = vcombine.high %v647, %v647
  %v656 = vcombine.high %v654, %v654
  %v657 = vcombine.high %v26, %v26
  %v659 = vunpack.c.l.s4 1983009808
  %v660 = vunpack.c.0.s8 %v659
  %v661 = vlaneseq
  %v662 = vshrl.u32 %v661, 7
  %v663 = vsub.s32 %v660, %v662
  %v664 = vrot.slane %v26, %v663
  %v666 = vunpack.c.l.s4 1983009808
  %v667 = vunpack.c.0.s8 %v666
  %v668 = vlaneseq
  %v669 = vshrl.u32 %v668, 7
  %v670 = vsub.s32 %v667, %v669
  %v671 = vrot.slane %v657, %v670
  %v672 = vcombine.high %v664, %v664
  %v673 = vcombine.high %v671, %v671
  %v674 = vcombine.high %v27, %v27
  %v676 = vunpack.c.l.s4 1983009808
  %v677 = vunpack.c.0.s8 %v676
  %v678 = vlaneseq
  %v679 = vshrl.u32 %v678, 7
  %v680 = vsub.s32 %v677, %v679
  %v681 = vrot.slane %v27, %v680
  %v683 = vunpack.c.l.s4 1983009808
  %v684 = vunpack.c.0.s8 %v683
  %v685 = vlaneseq
  %v686 = vshrl.u32 %v685, 7
  %v687 = vsub.s32 %v684, %v686
  %v688 = vrot.slane %v674, %v687
  %v689 = vcombine.high %v681, %v681
  %v690 = vcombine.high %v688, %v688
  %723 = vmatprep.subr.mxu0 0.0
  %724 = vmatpush1.msra.mxu0 %v28
  %725 = vmatprep.subr.mxu0 0.0
  %726 = vmatpush1.msra.mxu0 %v29
  %727 = vmatprep.subr.mxu0 0.0
  %728 = vmatpush1.msra.mxu0 %v30
  %729 = vmatprep.subr.mxu0 0.0
  %730 = vmatpush1.msra.mxu0 %v31
  %731 = vmatprep.subr.mxu0 0.0
  %732 = vmatpush1.msra.mxu0 %v32
  %733 = vmatprep.subr.mxu0 0.0
  %734 = vmatpush1.msra.mxu0 %v33
  %735 = vmatprep.subr.mxu0 0.0
  %736 = vmatpush1.msra.mxu0 %v34
  %737 = vmatprep.subr.mxu0 0.0
  %738 = vmatpush1.msra.mxu0 %v35
  %739 = vmatprep.subr.mxu0 0.0
  %740 = vmatpush1.msra.mxu0 %v36
  %741 = vmatprep.subr.mxu0 0.0
  %742 = vmatpush1.msra.mxu0 %v37
  %743 = vmatprep.subr.mxu0 0.0
  %744 = vmatpush1.msra.mxu0 %v38
  %745 = vmatprep.subr.mxu0 0.0
  %746 = vmatpush1.msra.mxu0 %v39
  %747 = vmatprep.subr.mxu0 0.0
  %748 = vmatpush1.msra.mxu0 %v40
  %749 = vmatprep.subr.mxu0 0.0
  %750 = vmatpush1.msra.mxu0 %v41
  %751 = vmatprep.subr.mxu0 0.0
  %752 = vmatpush1.msra.mxu0 %v42
  %753 = vmatprep.subr.mxu0 0.0
  %754 = vmatpush1.msra.mxu0 %v43
  %755 = vmatprep.subr.mxu0 0.0
  %756 = vmatpush1.msra.mxu0 %v44
  %757 = vmatprep.subr.mxu0 0.0
  %758 = vmatpush1.msra.mxu0 %v45
  %759 = vmatprep.subr.mxu0 0.0
  %760 = vmatpush1.msra.mxu0 %v46
  %761 = vmatprep.subr.mxu0 0.0
  %762 = vmatpush1.msra.mxu0 %v47
  %763 = vmatprep.subr.mxu0 0.0
  %764 = vmatpush1.msra.mxu0 %v48
  %765 = vmatprep.subr.mxu0 0.0
  %766 = vmatpush1.msra.mxu0 %v49
  %767 = vmatprep.subr.mxu0 0.0
  %768 = vmatpush1.msra.mxu0 %v50
  %769 = vmatprep.subr.mxu0 0.0
  %770 = vmatpush1.msra.mxu0 %v51
  %771 = vmatprep.subr.mxu0 0.0
  %772 = vmatpush1.msra.mxu0 %v52
  %773 = vmatprep.subr.mxu0 0.0
  %774 = vmatpush1.msra.mxu0 %v53
  %775 = vmatprep.subr.mxu0 0.0
  %776 = vmatpush1.msra.mxu0 %v54
  %777 = vmatprep.subr.mxu0 0.0
  %778 = vmatpush1.msra.mxu0 %v55
  %779 = vmatprep.subr.mxu0 0.0
  %780 = vmatpush1.msra.mxu0 %v56
  %781 = vmatprep.subr.mxu0 0.0
  %782 = vmatpush1.msra.mxu0 %v57
  %783 = vmatprep.subr.mxu0 0.0
  %784 = vmatpush1.msra.mxu0 %v58
  %785 = vmatprep.subr.mxu0 0.0
  %786 = vmatpush1.msra.mxu0 %v59
  %787 = vmatprep.mubr.f32.mxu0 %v570
  %788 = vmatmul.mubr.f32.gmra.mrb[0].mxu0 %v562
  %v789 = vpop.f32.mrb[0].mxu0
  %v790 = vadd.f32 %v545, %v789
  %v791 = vpop.f32.mrb[0].mxu0
  %792 = vdwg.mxu0
  %793 = vmatprep.subr.mxu0 0.0
  %794 = vmatpush1.msra.mxu0 %v60
  %795 = vmatprep.subr.mxu0 0.0
  %796 = vmatpush1.msra.mxu0 %v61
  %797 = vmatprep.subr.mxu0 0.0
  %798 = vmatpush1.msra.mxu0 %v62
  %799 = vmatprep.subr.mxu0 0.0
  %800 = vmatpush1.msra.mxu0 %v63
  %801 = vmatprep.subr.mxu0 0.0
  %802 = vmatpush1.msra.mxu0 %v64
  %803 = vmatprep.subr.mxu0 0.0
  %804 = vmatpush1.msra.mxu0 %v65
  %805 = vmatprep.subr.mxu0 0.0
  %806 = vmatpush1.msra.mxu0 %v66
  %807 = vmatprep.subr.mxu0 0.0
  %808 = vmatpush1.msra.mxu0 %v67
  %809 = vmatprep.subr.mxu0 0.0
  %810 = vmatpush1.msra.mxu0 %v68
  %811 = vmatprep.subr.mxu0 0.0
  %812 = vmatpush1.msra.mxu0 %v69
  %813 = vmatprep.subr.mxu0 0.0
  %814 = vmatpush1.msra.mxu0 %v70
  %815 = vmatprep.subr.mxu0 0.0
  %816 = vmatpush1.msra.mxu0 %v71
  %817 = vmatprep.subr.mxu0 0.0
  %818 = vmatpush1.msra.mxu0 %v72
  %819 = vmatprep.subr.mxu0 0.0
  %820 = vmatpush1.msra.mxu0 %v73
  %821 = vmatprep.subr.mxu0 0.0
  %822 = vmatpush1.msra.mxu0 %v74
  %823 = vmatprep.subr.mxu0 0.0
  %824 = vmatpush1.msra.mxu0 %v75
  %825 = vmatprep.subr.mxu0 0.0
  %826 = vmatpush1.msra.mxu0 %v76
  %827 = vmatprep.subr.mxu0 0.0
  %828 = vmatpush1.msra.mxu0 %v77
  %829 = vmatprep.subr.mxu0 0.0
  %830 = vmatpush1.msra.mxu0 %v78
  %831 = vmatprep.subr.mxu0 0.0
  %832 = vmatpush1.msra.mxu0 %v79
  %833 = vmatprep.subr.mxu0 0.0
  %834 = vmatpush1.msra.mxu0 %v80
  %835 = vmatprep.subr.mxu0 0.0
  %836 = vmatpush1.msra.mxu0 %v81
  %837 = vmatprep.subr.mxu0 0.0
  %838 = vmatpush1.msra.mxu0 %v82
  %839 = vmatprep.subr.mxu0 0.0
  %840 = vmatpush1.msra.mxu0 %v83
  %841 = vmatprep.subr.mxu0 0.0
  %842 = vmatpush1.msra.mxu0 %v84
  %843 = vmatprep.subr.mxu0 0.0
  %844 = vmatpush1.msra.mxu0 %v85
  %845 = vmatprep.subr.mxu0 0.0
  %846 = vmatpush1.msra.mxu0 %v86
  %847 = vmatprep.subr.mxu0 0.0
  %848 = vmatpush1.msra.mxu0 %v87
  %849 = vmatprep.subr.mxu0 0.0
  %850 = vmatpush1.msra.mxu0 %v88
  %851 = vmatprep.subr.mxu0 0.0
  %852 = vmatpush1.msra.mxu0 %v89
  %853 = vmatprep.subr.mxu0 0.0
  %854 = vmatpush1.msra.mxu0 %v90
  %855 = vmatprep.subr.mxu0 0.0
  %856 = vmatpush1.msra.mxu0 %v91
  %857 = vmatprep.mubr.f32.mxu0 %v571
  %858 = vmatmul.mubr.f32.gmra.mrb[0].mxu0 %v569
  %v859 = vpop.f32.mrb[0].mxu0
  %v860 = vadd.f32 %v790, %v859
  %v861 = vpop.f32.mrb[0].mxu0
  %862 = vdwg.mxu0
  %863 = vmatprep.subr.mxu0 0.0
  %864 = vmatpush1.msra.mxu0 %v92
  %865 = vmatprep.subr.mxu0 0.0
  %866 = vmatpush1.msra.mxu0 %v93
  %867 = vmatprep.subr.mxu0 0.0
  %868 = vmatpush1.msra.mxu0 %v94
  %869 = vmatprep.subr.mxu0 0.0
  %870 = vmatpush1.msra.mxu0 %v95
  %871 = vmatprep.subr.mxu0 0.0
  %872 = vmatpush1.msra.mxu0 %v96
  %873 = vmatprep.subr.mxu0 0.0
  %874 = vmatpush1.msra.mxu0 %v97
  %875 = vmatprep.subr.mxu0 0.0
  %876 = vmatpush1.msra.mxu0 %v98
  %877 = vmatprep.subr.mxu0 0.0
  %878 = vmatpush1.msra.mxu0 %v99
  %879 = vmatprep.subr.mxu0 0.0
  %880 = vmatpush1.msra.mxu0 %v100
  %881 = vmatprep.subr.mxu0 0.0
  %882 = vmatpush1.msra.mxu0 %v101
  %883 = vmatprep.subr.mxu0 0.0
  %884 = vmatpush1.msra.mxu0 %v102
  %885 = vmatprep.subr.mxu0 0.0
  %886 = vmatpush1.msra.mxu0 %v103
  %887 = vmatprep.subr.mxu0 0.0
  %888 = vmatpush1.msra.mxu0 %v104
  %889 = vmatprep.subr.mxu0 0.0
  %890 = vmatpush1.msra.mxu0 %v105
  %891 = vmatprep.subr.mxu0 0.0
  %892 = vmatpush1.msra.mxu0 %v106
  %893 = vmatprep.subr.mxu0 0.0
  %894 = vmatpush1.msra.mxu0 %v107
  %895 = vmatprep.subr.mxu0 0.0
  %896 = vmatpush1.msra.mxu0 %v108
  %897 = vmatprep.subr.mxu0 0.0
  %898 = vmatpush1.msra.mxu0 %v109
  %899 = vmatprep.subr.mxu0 0.0
  %900 = vmatpush1.msra.mxu0 %v110
  %901 = vmatprep.subr.mxu0 0.0
  %902 = vmatpush1.msra.mxu0 %v111
  %903 = vmatprep.subr.mxu0 0.0
  %904 = vmatpush1.msra.mxu0 %v112
  %905 = vmatprep.subr.mxu0 0.0
  %906 = vmatpush1.msra.mxu0 %v113
  %907 = vmatprep.subr.mxu0 0.0
  %908 = vmatpush1.msra.mxu0 %v114
  %909 = vmatprep.subr.mxu0 0.0
  %910 = vmatpush1.msra.mxu0 %v115
  %911 = vmatprep.subr.mxu0 0.0
  %912 = vmatpush1.msra.mxu0 %v116
  %913 = vmatprep.subr.mxu0 0.0
  %914 = vmatpush1.msra.mxu0 %v117
  %915 = vmatprep.subr.mxu0 0.0
  %916 = vmatpush1.msra.mxu0 %v118
  %917 = vmatprep.subr.mxu0 0.0
  %918 = vmatpush1.msra.mxu0 %v119
  %919 = vmatprep.subr.mxu0 0.0
  %920 = vmatpush1.msra.mxu0 %v120
  %921 = vmatprep.subr.mxu0 0.0
  %922 = vmatpush1.msra.mxu0 %v121
  %923 = vmatprep.subr.mxu0 0.0
  %924 = vmatpush1.msra.mxu0 %v122
  %925 = vmatprep.subr.mxu0 0.0
  %926 = vmatpush1.msra.mxu0 %v123
  %927 = vmatprep.mubr.f32.mxu0 %v587
  %928 = vmatmul.mubr.f32.gmra.mrb[0].mxu0 %v579
  %v929 = vpop.f32.mrb[0].mxu0
  %v930 = vadd.f32 %v860, %v929
  %v931 = vpop.f32.mrb[0].mxu0
  %932 = vdwg.mxu0
  %933 = vmatprep.subr.mxu0 0.0
  %934 = vmatpush1.msra.mxu0 %v124
  %935 = vmatprep.subr.mxu0 0.0
  %936 = vmatpush1.msra.mxu0 %v125
  %937 = vmatprep.subr.mxu0 0.0
  %938 = vmatpush1.msra.mxu0 %v126
  %939 = vmatprep.subr.mxu0 0.0
  %940 = vmatpush1.msra.mxu0 %v127
  %941 = vmatprep.subr.mxu0 0.0
  %942 = vmatpush1.msra.mxu0 %v128
  %943 = vmatprep.subr.mxu0 0.0
  %944 = vmatpush1.msra.mxu0 %v129
  %945 = vmatprep.subr.mxu0 0.0
  %946 = vmatpush1.msra.mxu0 %v130
  %947 = vmatprep.subr.mxu0 0.0
  %948 = vmatpush1.msra.mxu0 %v131
  %949 = vmatprep.subr.mxu0 0.0
  %950 = vmatpush1.msra.mxu0 %v132
  %951 = vmatprep.subr.mxu0 0.0
  %952 = vmatpush1.msra.mxu0 %v133
  %953 = vmatprep.subr.mxu0 0.0
  %954 = vmatpush1.msra.mxu0 %v134
  %955 = vmatprep.subr.mxu0 0.0
  %956 = vmatpush1.msra.mxu0 %v135
  %957 = vmatprep.subr.mxu0 0.0
  %958 = vmatpush1.msra.mxu0 %v136
  %959 = vmatprep.subr.mxu0 0.0
  %960 = vmatpush1.msra.mxu0 %v137
  %961 = vmatprep.subr.mxu0 0.0
  %962 = vmatpush1.msra.mxu0 %v138
  %963 = vmatprep.subr.mxu0 0.0
  %964 = vmatpush1.msra.mxu0 %v139
  %965 = vmatprep.subr.mxu0 0.0
  %966 = vmatpush1.msra.mxu0 %v140
  %967 = vmatprep.subr.mxu0 0.0
  %968 = vmatpush1.msra.mxu0 %v141
  %969 = vmatprep.subr.mxu0 0.0
  %970 = vmatpush1.msra.mxu0 %v142
  %971 = vmatprep.subr.mxu0 0.0
  %972 = vmatpush1.msra.mxu0 %v143
  %973 = vmatprep.subr.mxu0 0.0
  %974 = vmatpush1.msra.mxu0 %v144
  %975 = vmatprep.subr.mxu0 0.0
  %976 = vmatpush1.msra.mxu0 %v145
  %977 = vmatprep.subr.mxu0 0.0
  %978 = vmatpush1.msra.mxu0 %v146
  %979 = vmatprep.subr.mxu0 0.0
  %980 = vmatpush1.msra.mxu0 %v147
  %981 = vmatprep.subr.mxu0 0.0
  %982 = vmatpush1.msra.mxu0 %v148
  %983 = vmatprep.subr.mxu0 0.0
  %984 = vmatpush1.msra.mxu0 %v149
  %985 = vmatprep.subr.mxu0 0.0
  %986 = vmatpush1.msra.mxu0 %v150
  %987 = vmatprep.subr.mxu0 0.0
  %988 = vmatpush1.msra.mxu0 %v151
  %989 = vmatprep.subr.mxu0 0.0
  %990 = vmatpush1.msra.mxu0 %v152
  %991 = vmatprep.subr.mxu0 0.0
  %992 = vmatpush1.msra.mxu0 %v153
  %993 = vmatprep.subr.mxu0 0.0
  %994 = vmatpush1.msra.mxu0 %v154
  %995 = vmatprep.subr.mxu0 0.0
  %996 = vmatpush1.msra.mxu0 %v155
  %997 = vmatprep.mubr.f32.mxu0 %v588
  %998 = vmatmul.mubr.f32.gmra.mrb[0].mxu0 %v586
  %v999 = vpop.f32.mrb[0].mxu0
  %v1000 = vadd.f32 %v930, %v999
  %v1001 = vpop.f32.mrb[0].mxu0
  %1002 = vdwg.mxu0
  %1003 = vmatprep.subr.mxu0 0.0
  %1004 = vmatpush1.msra.mxu0 %v156
  %1005 = vmatprep.subr.mxu0 0.0
  %1006 = vmatpush1.msra.mxu0 %v157
  %1007 = vmatprep.subr.mxu0 0.0
  %1008 = vmatpush1.msra.mxu0 %v158
  %1009 = vmatprep.subr.mxu0 0.0
  %1010 = vmatpush1.msra.mxu0 %v159
  %1011 = vmatprep.subr.mxu0 0.0
  %1012 = vmatpush1.msra.mxu0 %v160
  %1013 = vmatprep.subr.mxu0 0.0
  %1014 = vmatpush1.msra.mxu0 %v161
  %1015 = vmatprep.subr.mxu0 0.0
  %1016 = vmatpush1.msra.mxu0 %v162
  %1017 = vmatprep.subr.mxu0 0.0
  %1018 = vmatpush1.msra.mxu0 %v163
  %1019 = vmatprep.subr.mxu0 0.0
  %1020 = vmatpush1.msra.mxu0 %v164
  %1021 = vmatprep.subr.mxu0 0.0
  %1022 = vmatpush1.msra.mxu0 %v165
  %1023 = vmatprep.subr.mxu0 0.0
  %1024 = vmatpush1.msra.mxu0 %v166
  %1025 = vmatprep.subr.mxu0 0.0
  %1026 = vmatpush1.msra.mxu0 %v167
  %1027 = vmatprep.subr.mxu0 0.0
  %1028 = vmatpush1.msra.mxu0 %v168
  %1029 = vmatprep.subr.mxu0 0.0
  %1030 = vmatpush1.msra.mxu0 %v169
  %1031 = vmatprep.subr.mxu0 0.0
  %1032 = vmatpush1.msra.mxu0 %v170
  %1033 = vmatprep.subr.mxu0 0.0
  %1034 = vmatpush1.msra.mxu0 %v171
  %1035 = vmatprep.subr.mxu0 0.0
  %1036 = vmatpush1.msra.mxu0 %v172
  %1037 = vmatprep.subr.mxu0 0.0
  %1038 = vmatpush1.msra.mxu0 %v173
  %1039 = vmatprep.subr.mxu0 0.0
  %1040 = vmatpush1.msra.mxu0 %v174
  %1041 = vmatprep.subr.mxu0 0.0
  %1042 = vmatpush1.msra.mxu0 %v175
  %1043 = vmatprep.subr.mxu0 0.0
  %1044 = vmatpush1.msra.mxu0 %v176
  %1045 = vmatprep.subr.mxu0 0.0
  %1046 = vmatpush1.msra.mxu0 %v177
  %1047 = vmatprep.subr.mxu0 0.0
  %1048 = vmatpush1.msra.mxu0 %v178
  %1049 = vmatprep.subr.mxu0 0.0
  %1050 = vmatpush1.msra.mxu0 %v179
  %1051 = vmatprep.subr.mxu0 0.0
  %1052 = vmatpush1.msra.mxu0 %v180
  %1053 = vmatprep.subr.mxu0 0.0
  %1054 = vmatpush1.msra.mxu0 %v181
  %1055 = vmatprep.subr.mxu0 0.0
  %1056 = vmatpush1.msra.mxu0 %v182
  %1057 = vmatprep.subr.mxu0 0.0
  %1058 = vmatpush1.msra.mxu0 %v183
  %1059 = vmatprep.subr.mxu0 0.0
  %1060 = vmatpush1.msra.mxu0 %v184
  %1061 = vmatprep.subr.mxu0 0.0
  %1062 = vmatpush1.msra.mxu0 %v185
  %1063 = vmatprep.subr.mxu0 0.0
  %1064 = vmatpush1.msra.mxu0 %v186
  %1065 = vmatprep.subr.mxu0 0.0
  %1066 = vmatpush1.msra.mxu0 %v187
  %1067 = vmatprep.mubr.f32.mxu0 %v604
  %1068 = vmatmul.mubr.f32.gmra.mrb[0].mxu0 %v596
  %v1069 = vpop.f32.mrb[0].mxu0
  %v1070 = vadd.f32 %v1000, %v1069
  %v1071 = vpop.f32.mrb[0].mxu0
  %1072 = vdwg.mxu0
  %1073 = vmatprep.subr.mxu0 0.0
  %1074 = vmatpush1.msra.mxu0 %v188
  %1075 = vmatprep.subr.mxu0 0.0
  %1076 = vmatpush1.msra.mxu0 %v189
  %1077 = vmatprep.subr.mxu0 0.0
  %1078 = vmatpush1.msra.mxu0 %v190
  %1079 = vmatprep.subr.mxu0 0.0
  %1080 = vmatpush1.msra.mxu0 %v191
  %1081 = vmatprep.subr.mxu0 0.0
  %1082 = vmatpush1.msra.mxu0 %v192
  %1083 = vmatprep.subr.mxu0 0.0
  %1084 = vmatpush1.msra.mxu0 %v193
  %1085 = vmatprep.subr.mxu0 0.0
  %1086 = vmatpush1.msra.mxu0 %v194
  %1087 = vmatprep.subr.mxu0 0.0
  %1088 = vmatpush1.msra.mxu0 %v195
  %1089 = vmatprep.subr.mxu0 0.0
  %1090 = vmatpush1.msra.mxu0 %v196
  %1091 = vmatprep.subr.mxu0 0.0
  %1092 = vmatpush1.msra.mxu0 %v197
  %1093 = vmatprep.subr.mxu0 0.0
  %1094 = vmatpush1.msra.mxu0 %v198
  %1095 = vmatprep.subr.mxu0 0.0
  %1096 = vmatpush1.msra.mxu0 %v199
  %1097 = vmatprep.subr.mxu0 0.0
  %1098 = vmatpush1.msra.mxu0 %v200
  %1099 = vmatprep.subr.mxu0 0.0
  %1100 = vmatpush1.msra.mxu0 %v201
  %1101 = vmatprep.subr.mxu0 0.0
  %1102 = vmatpush1.msra.mxu0 %v202
  %1103 = vmatprep.subr.mxu0 0.0
  %1104 = vmatpush1.msra.mxu0 %v203
  %1105 = vmatprep.subr.mxu0 0.0
  %1106 = vmatpush1.msra.mxu0 %v204
  %1107 = vmatprep.subr.mxu0 0.0
  %1108 = vmatpush1.msra.mxu0 %v205
  %1109 = vmatprep.subr.mxu0 0.0
  %1110 = vmatpush1.msra.mxu0 %v206
  %1111 = vmatprep.subr.mxu0 0.0
  %1112 = vmatpush1.msra.mxu0 %v207
  %1113 = vmatprep.subr.mxu0 0.0
  %1114 = vmatpush1.msra.mxu0 %v208
  %1115 = vmatprep.subr.mxu0 0.0
  %1116 = vmatpush1.msra.mxu0 %v209
  %1117 = vmatprep.subr.mxu0 0.0
  %1118 = vmatpush1.msra.mxu0 %v210
  %1119 = vmatprep.subr.mxu0 0.0
  %1120 = vmatpush1.msra.mxu0 %v211
  %1121 = vmatprep.subr.mxu0 0.0
  %1122 = vmatpush1.msra.mxu0 %v212
  %1123 = vmatprep.subr.mxu0 0.0
  %1124 = vmatpush1.msra.mxu0 %v213
  %1125 = vmatprep.subr.mxu0 0.0
  %1126 = vmatpush1.msra.mxu0 %v214
  %1127 = vmatprep.subr.mxu0 0.0
  %1128 = vmatpush1.msra.mxu0 %v215
  %1129 = vmatprep.subr.mxu0 0.0
  %1130 = vmatpush1.msra.mxu0 %v216
  %1131 = vmatprep.subr.mxu0 0.0
  %1132 = vmatpush1.msra.mxu0 %v217
  %1133 = vmatprep.subr.mxu0 0.0
  %1134 = vmatpush1.msra.mxu0 %v218
  %1135 = vmatprep.subr.mxu0 0.0
  %1136 = vmatpush1.msra.mxu0 %v219
  %1137 = vmatprep.mubr.f32.mxu0 %v605
  %1138 = vmatmul.mubr.f32.gmra.mrb[0].mxu0 %v603
  %v1139 = vpop.f32.mrb[0].mxu0
  %v1140 = vadd.f32 %v1070, %v1139
  %v1141 = vpop.f32.mrb[0].mxu0
  %1142 = vdwg.mxu0
  %1143 = vmatprep.subr.mxu0 0.0
  %1144 = vmatpush1.msra.mxu0 %v220
  %1145 = vmatprep.subr.mxu0 0.0
  %1146 = vmatpush1.msra.mxu0 %v221
  %1147 = vmatprep.subr.mxu0 0.0
  %1148 = vmatpush1.msra.mxu0 %v222
  %1149 = vmatprep.subr.mxu0 0.0
  %1150 = vmatpush1.msra.mxu0 %v223
  %1151 = vmatprep.subr.mxu0 0.0
  %1152 = vmatpush1.msra.mxu0 %v224
  %1153 = vmatprep.subr.mxu0 0.0
  %1154 = vmatpush1.msra.mxu0 %v225
  %1155 = vmatprep.subr.mxu0 0.0
  %1156 = vmatpush1.msra.mxu0 %v226
  %1157 = vmatprep.subr.mxu0 0.0
  %1158 = vmatpush1.msra.mxu0 %v227
  %1159 = vmatprep.subr.mxu0 0.0
  %1160 = vmatpush1.msra.mxu0 %v228
  %1161 = vmatprep.subr.mxu0 0.0
  %1162 = vmatpush1.msra.mxu0 %v229
  %1163 = vmatprep.subr.mxu0 0.0
  %1164 = vmatpush1.msra.mxu0 %v230
  %1165 = vmatprep.subr.mxu0 0.0
  %1166 = vmatpush1.msra.mxu0 %v231
  %1167 = vmatprep.subr.mxu0 0.0
  %1168 = vmatpush1.msra.mxu0 %v232
  %1169 = vmatprep.subr.mxu0 0.0
  %1170 = vmatpush1.msra.mxu0 %v233
  %1171 = vmatprep.subr.mxu0 0.0
  %1172 = vmatpush1.msra.mxu0 %v234
  %1173 = vmatprep.subr.mxu0 0.0
  %1174 = vmatpush1.msra.mxu0 %v235
  %1175 = vmatprep.subr.mxu0 0.0
  %1176 = vmatpush1.msra.mxu0 %v236
  %1177 = vmatprep.subr.mxu0 0.0
  %1178 = vmatpush1.msra.mxu0 %v237
  %1179 = vmatprep.subr.mxu0 0.0
  %1180 = vmatpush1.msra.mxu0 %v238
  %1181 = vmatprep.subr.mxu0 0.0
  %1182 = vmatpush1.msra.mxu0 %v239
  %1183 = vmatprep.subr.mxu0 0.0
  %1184 = vmatpush1.msra.mxu0 %v240
  %1185 = vmatprep.subr.mxu0 0.0
  %1186 = vmatpush1.msra.mxu0 %v241
  %1187 = vmatprep.subr.mxu0 0.0
  %1188 = vmatpush1.msra.mxu0 %v242
  %1189 = vmatprep.subr.mxu0 0.0
  %1190 = vmatpush1.msra.mxu0 %v243
  %1191 = vmatprep.subr.mxu0 0.0
  %1192 = vmatpush1.msra.mxu0 %v244
  %1193 = vmatprep.subr.mxu0 0.0
  %1194 = vmatpush1.msra.mxu0 %v245
  %1195 = vmatprep.subr.mxu0 0.0
  %1196 = vmatpush1.msra.mxu0 %v246
  %1197 = vmatprep.subr.mxu0 0.0
  %1198 = vmatpush1.msra.mxu0 %v247
  %1199 = vmatprep.subr.mxu0 0.0
  %1200 = vmatpush1.msra.mxu0 %v248
  %1201 = vmatprep.subr.mxu0 0.0
  %1202 = vmatpush1.msra.mxu0 %v249
  %1203 = vmatprep.subr.mxu0 0.0
  %1204 = vmatpush1.msra.mxu0 %v250
  %1205 = vmatprep.subr.mxu0 0.0
  %1206 = vmatpush1.msra.mxu0 %v251
  %1207 = vmatprep.mubr.f32.mxu0 %v621
  %1208 = vmatmul.mubr.f32.gmra.mrb[0].mxu0 %v613
  %v1209 = vpop.f32.mrb[0].mxu0
  %v1210 = vadd.f32 %v1140, %v1209
  %v1211 = vpop.f32.mrb[0].mxu0
  %1212 = vdwg.mxu0
  %1213 = vmatprep.subr.mxu0 0.0
  %1214 = vmatpush1.msra.mxu0 %v252
  %1215 = vmatprep.subr.mxu0 0.0
  %1216 = vmatpush1.msra.mxu0 %v253
  %1217 = vmatprep.subr.mxu0 0.0
  %1218 = vmatpush1.msra.mxu0 %v254
  %1219 = vmatprep.subr.mxu0 0.0
  %1220 = vmatpush1.msra.mxu0 %v255
  %1221 = vmatprep.subr.mxu0 0.0
  %1222 = vmatpush1.msra.mxu0 %v256
  %1223 = vmatprep.subr.mxu0 0.0
  %1224 = vmatpush1.msra.mxu0 %v257
  %1225 = vmatprep.subr.mxu0 0.0
  %1226 = vmatpush1.msra.mxu0 %v258
  %1227 = vmatprep.subr.mxu0 0.0
  %1228 = vmatpush1.msra.mxu0 %v259
  %1229 = vmatprep.subr.mxu0 0.0
  %1230 = vmatpush1.msra.mxu0 %v260
  %1231 = vmatprep.subr.mxu0 0.0
  %1232 = vmatpush1.msra.mxu0 %v261
  %1233 = vmatprep.subr.mxu0 0.0
  %1234 = vmatpush1.msra.mxu0 %v262
  %1235 = vmatprep.subr.mxu0 0.0
  %1236 = vmatpush1.msra.mxu0 %v263
  %1237 = vmatprep.subr.mxu0 0.0
  %1238 = vmatpush1.msra.mxu0 %v264
  %1239 = vmatprep.subr.mxu0 0.0
  %1240 = vmatpush1.msra.mxu0 %v265
  %1241 = vmatprep.subr.mxu0 0.0
  %1242 = vmatpush1.msra.mxu0 %v266
  %1243 = vmatprep.subr.mxu0 0.0
  %1244 = vmatpush1.msra.mxu0 %v267
  %1245 = vmatprep.subr.mxu0 0.0
  %1246 = vmatpush1.msra.mxu0 %v268
  %1247 = vmatprep.subr.mxu0 0.0
  %1248 = vmatpush1.msra.mxu0 %v269
  %1249 = vmatprep.subr.mxu0 0.0
  %1250 = vmatpush1.msra.mxu0 %v270
  %1251 = vmatprep.subr.mxu0 0.0
  %1252 = vmatpush1.msra.mxu0 %v271
  %1253 = vmatprep.subr.mxu0 0.0
  %1254 = vmatpush1.msra.mxu0 %v272
  %1255 = vmatprep.subr.mxu0 0.0
  %1256 = vmatpush1.msra.mxu0 %v273
  %1257 = vmatprep.subr.mxu0 0.0
  %1258 = vmatpush1.msra.mxu0 %v274
  %1259 = vmatprep.subr.mxu0 0.0
  %1260 = vmatpush1.msra.mxu0 %v275
  %1261 = vmatprep.subr.mxu0 0.0
  %1262 = vmatpush1.msra.mxu0 %v276
  %1263 = vmatprep.subr.mxu0 0.0
  %1264 = vmatpush1.msra.mxu0 %v277
  %1265 = vmatprep.subr.mxu0 0.0
  %1266 = vmatpush1.msra.mxu0 %v278
  %1267 = vmatprep.subr.mxu0 0.0
  %1268 = vmatpush1.msra.mxu0 %v279
  %1269 = vmatprep.subr.mxu0 0.0
  %1270 = vmatpush1.msra.mxu0 %v280
  %1271 = vmatprep.subr.mxu0 0.0
  %1272 = vmatpush1.msra.mxu0 %v281
  %1273 = vmatprep.subr.mxu0 0.0
  %1274 = vmatpush1.msra.mxu0 %v282
  %1275 = vmatprep.subr.mxu0 0.0
  %1276 = vmatpush1.msra.mxu0 %v283
  %1277 = vmatprep.mubr.f32.mxu0 %v622
  %1278 = vmatmul.mubr.f32.gmra.mrb[0].mxu0 %v620
  %v1279 = vpop.f32.mrb[0].mxu0
  %v1280 = vadd.f32 %v1210, %v1279
  %v1281 = vpop.f32.mrb[0].mxu0
  %1282 = vdwg.mxu0
  %1283 = vmatprep.subr.mxu0 0.0
  %1284 = vmatpush1.msra.mxu0 %v284
  %1285 = vmatprep.subr.mxu0 0.0
  %1286 = vmatpush1.msra.mxu0 %v285
  %1287 = vmatprep.subr.mxu0 0.0
  %1288 = vmatpush1.msra.mxu0 %v286
  %1289 = vmatprep.subr.mxu0 0.0
  %1290 = vmatpush1.msra.mxu0 %v287
  %1291 = vmatprep.subr.mxu0 0.0
  %1292 = vmatpush1.msra.mxu0 %v288
  %1293 = vmatprep.subr.mxu0 0.0
  %1294 = vmatpush1.msra.mxu0 %v289
  %1295 = vmatprep.subr.mxu0 0.0
  %1296 = vmatpush1.msra.mxu0 %v290
  %1297 = vmatprep.subr.mxu0 0.0
  %1298 = vmatpush1.msra.mxu0 %v291
  %1299 = vmatprep.subr.mxu0 0.0
  %1300 = vmatpush1.msra.mxu0 %v292
  %1301 = vmatprep.subr.mxu0 0.0
  %1302 = vmatpush1.msra.mxu0 %v293
  %1303 = vmatprep.subr.mxu0 0.0
  %1304 = vmatpush1.msra.mxu0 %v294
  %1305 = vmatprep.subr.mxu0 0.0
  %1306 = vmatpush1.msra.mxu0 %v295
  %1307 = vmatprep.subr.mxu0 0.0
  %1308 = vmatpush1.msra.mxu0 %v296
  %1309 = vmatprep.subr.mxu0 0.0
  %1310 = vmatpush1.msra.mxu0 %v297
  %1311 = vmatprep.subr.mxu0 0.0
  %1312 = vmatpush1.msra.mxu0 %v298
  %1313 = vmatprep.subr.mxu0 0.0
  %1314 = vmatpush1.msra.mxu0 %v299
  %1315 = vmatprep.subr.mxu0 0.0
  %1316 = vmatpush1.msra.mxu0 %v300
  %1317 = vmatprep.subr.mxu0 0.0
  %1318 = vmatpush1.msra.mxu0 %v301
  %1319 = vmatprep.subr.mxu0 0.0
  %1320 = vmatpush1.msra.mxu0 %v302
  %1321 = vmatprep.subr.mxu0 0.0
  %1322 = vmatpush1.msra.mxu0 %v303
  %1323 = vmatprep.subr.mxu0 0.0
  %1324 = vmatpush1.msra.mxu0 %v304
  %1325 = vmatprep.subr.mxu0 0.0
  %1326 = vmatpush1.msra.mxu0 %v305
  %1327 = vmatprep.subr.mxu0 0.0
  %1328 = vmatpush1.msra.mxu0 %v306
  %1329 = vmatprep.subr.mxu0 0.0
  %1330 = vmatpush1.msra.mxu0 %v307
  %1331 = vmatprep.subr.mxu0 0.0
  %1332 = vmatpush1.msra.mxu0 %v308
  %1333 = vmatprep.subr.mxu0 0.0
  %1334 = vmatpush1.msra.mxu0 %v309
  %1335 = vmatprep.subr.mxu0 0.0
  %1336 = vmatpush1.msra.mxu0 %v310
  %1337 = vmatprep.subr.mxu0 0.0
  %1338 = vmatpush1.msra.mxu0 %v311
  %1339 = vmatprep.subr.mxu0 0.0
  %1340 = vmatpush1.msra.mxu0 %v312
  %1341 = vmatprep.subr.mxu0 0.0
  %1342 = vmatpush1.msra.mxu0 %v313
  %1343 = vmatprep.subr.mxu0 0.0
  %1344 = vmatpush1.msra.mxu0 %v314
  %1345 = vmatprep.subr.mxu0 0.0
  %1346 = vmatpush1.msra.mxu0 %v315
  %1347 = vmatprep.mubr.f32.mxu0 %v638
  %1348 = vmatmul.mubr.f32.gmra.mrb[0].mxu0 %v630
  %v1349 = vpop.f32.mrb[0].mxu0
  %v1350 = vadd.f32 %v1280, %v1349
  %v1351 = vpop.f32.mrb[0].mxu0
  %1352 = vdwg.mxu0
  %1353 = vmatprep.subr.mxu0 0.0
  %1354 = vmatpush1.msra.mxu0 %v316
  %1355 = vmatprep.subr.mxu0 0.0
  %1356 = vmatpush1.msra.mxu0 %v317
  %1357 = vmatprep.subr.mxu0 0.0
  %1358 = vmatpush1.msra.mxu0 %v318
  %1359 = vmatprep.subr.mxu0 0.0
  %1360 = vmatpush1.msra.mxu0 %v319
  %1361 = vmatprep.subr.mxu0 0.0
  %1362 = vmatpush1.msra.mxu0 %v320
  %1363 = vmatprep.subr.mxu0 0.0
  %1364 = vmatpush1.msra.mxu0 %v321
  %1365 = vmatprep.subr.mxu0 0.0
  %1366 = vmatpush1.msra.mxu0 %v322
  %1367 = vmatprep.subr.mxu0 0.0
  %1368 = vmatpush1.msra.mxu0 %v323
  %1369 = vmatprep.subr.mxu0 0.0
  %1370 = vmatpush1.msra.mxu0 %v324
  %1371 = vmatprep.subr.mxu0 0.0
  %1372 = vmatpush1.msra.mxu0 %v325
  %1373 = vmatprep.subr.mxu0 0.0
  %1374 = vmatpush1.msra.mxu0 %v326
  %1375 = vmatprep.subr.mxu0 0.0
  %1376 = vmatpush1.msra.mxu0 %v327
  %1377 = vmatprep.subr.mxu0 0.0
  %1378 = vmatpush1.msra.mxu0 %v328
  %1379 = vmatprep.subr.mxu0 0.0
  %1380 = vmatpush1.msra.mxu0 %v329
  %1381 = vmatprep.subr.mxu0 0.0
  %1382 = vmatpush1.msra.mxu0 %v330
  %1383 = vmatprep.subr.mxu0 0.0
  %1384 = vmatpush1.msra.mxu0 %v331
  %1385 = vmatprep.subr.mxu0 0.0
  %1386 = vmatpush1.msra.mxu0 %v332
  %1387 = vmatprep.subr.mxu0 0.0
  %1388 = vmatpush1.msra.mxu0 %v333
  %1389 = vmatprep.subr.mxu0 0.0
  %1390 = vmatpush1.msra.mxu0 %v334
  %1391 = vmatprep.subr.mxu0 0.0
  %1392 = vmatpush1.msra.mxu0 %v335
  %1393 = vmatprep.subr.mxu0 0.0
  %1394 = vmatpush1.msra.mxu0 %v336
  %1395 = vmatprep.subr.mxu0 0.0
  %1396 = vmatpush1.msra.mxu0 %v337
  %1397 = vmatprep.subr.mxu0 0.0
  %1398 = vmatpush1.msra.mxu0 %v338
  %1399 = vmatprep.subr.mxu0 0.0
  %1400 = vmatpush1.msra.mxu0 %v339
  %1401 = vmatprep.subr.mxu0 0.0
  %1402 = vmatpush1.msra.mxu0 %v340
  %1403 = vmatprep.subr.mxu0 0.0
  %1404 = vmatpush1.msra.mxu0 %v341
  %1405 = vmatprep.subr.mxu0 0.0
  %1406 = vmatpush1.msra.mxu0 %v342
  %1407 = vmatprep.subr.mxu0 0.0
  %1408 = vmatpush1.msra.mxu0 %v343
  %1409 = vmatprep.subr.mxu0 0.0
  %1410 = vmatpush1.msra.mxu0 %v344
  %1411 = vmatprep.subr.mxu0 0.0
  %1412 = vmatpush1.msra.mxu0 %v345
  %1413 = vmatprep.subr.mxu0 0.0
  %1414 = vmatpush1.msra.mxu0 %v346
  %1415 = vmatprep.subr.mxu0 0.0
  %1416 = vmatpush1.msra.mxu0 %v347
  %1417 = vmatprep.mubr.f32.mxu0 %v639
  %1418 = vmatmul.mubr.f32.gmra.mrb[0].mxu0 %v637
  %v1419 = vpop.f32.mrb[0].mxu0
  %v1420 = vadd.f32 %v1350, %v1419
  %v1421 = vpop.f32.mrb[0].mxu0
  %1422 = vdwg.mxu0
  %1423 = vmatprep.subr.mxu0 0.0
  %1424 = vmatpush1.msra.mxu0 %v348
  %1425 = vmatprep.subr.mxu0 0.0
  %1426 = vmatpush1.msra.mxu0 %v349
  %1427 = vmatprep.subr.mxu0 0.0
  %1428 = vmatpush1.msra.mxu0 %v350
  %1429 = vmatprep.subr.mxu0 0.0
  %1430 = vmatpush1.msra.mxu0 %v351
  %1431 = vmatprep.subr.mxu0 0.0
  %1432 = vmatpush1.msra.mxu0 %v352
  %1433 = vmatprep.subr.mxu0 0.0
  %1434 = vmatpush1.msra.mxu0 %v353
  %1435 = vmatprep.subr.mxu0 0.0
  %1436 = vmatpush1.msra.mxu0 %v354
  %1437 = vmatprep.subr.mxu0 0.0
  %1438 = vmatpush1.msra.mxu0 %v355
  %1439 = vmatprep.subr.mxu0 0.0
  %1440 = vmatpush1.msra.mxu0 %v356
  %1441 = vmatprep.subr.mxu0 0.0
  %1442 = vmatpush1.msra.mxu0 %v357
  %1443 = vmatprep.subr.mxu0 0.0
  %1444 = vmatpush1.msra.mxu0 %v358
  %1445 = vmatprep.subr.mxu0 0.0
  %1446 = vmatpush1.msra.mxu0 %v359
  %1447 = vmatprep.subr.mxu0 0.0
  %1448 = vmatpush1.msra.mxu0 %v360
  %1449 = vmatprep.subr.mxu0 0.0
  %1450 = vmatpush1.msra.mxu0 %v361
  %1451 = vmatprep.subr.mxu0 0.0
  %1452 = vmatpush1.msra.mxu0 %v362
  %1453 = vmatprep.subr.mxu0 0.0
  %1454 = vmatpush1.msra.mxu0 %v363
  %1455 = vmatprep.subr.mxu0 0.0
  %1456 = vmatpush1.msra.mxu0 %v364
  %1457 = vmatprep.subr.mxu0 0.0
  %1458 = vmatpush1.msra.mxu0 %v365
  %1459 = vmatprep.subr.mxu0 0.0
  %1460 = vmatpush1.msra.mxu0 %v366
  %1461 = vmatprep.subr.mxu0 0.0
  %1462 = vmatpush1.msra.mxu0 %v367
  %1463 = vmatprep.subr.mxu0 0.0
  %1464 = vmatpush1.msra.mxu0 %v368
  %1465 = vmatprep.subr.mxu0 0.0
  %1466 = vmatpush1.msra.mxu0 %v369
  %1467 = vmatprep.subr.mxu0 0.0
  %1468 = vmatpush1.msra.mxu0 %v370
  %1469 = vmatprep.subr.mxu0 0.0
  %1470 = vmatpush1.msra.mxu0 %v371
  %1471 = vmatprep.subr.mxu0 0.0
  %1472 = vmatpush1.msra.mxu0 %v372
  %1473 = vmatprep.subr.mxu0 0.0
  %1474 = vmatpush1.msra.mxu0 %v373
  %1475 = vmatprep.subr.mxu0 0.0
  %1476 = vmatpush1.msra.mxu0 %v374
  %1477 = vmatprep.subr.mxu0 0.0
  %1478 = vmatpush1.msra.mxu0 %v375
  %1479 = vmatprep.subr.mxu0 0.0
  %1480 = vmatpush1.msra.mxu0 %v376
  %1481 = vmatprep.subr.mxu0 0.0
  %1482 = vmatpush1.msra.mxu0 %v377
  %1483 = vmatprep.subr.mxu0 0.0
  %1484 = vmatpush1.msra.mxu0 %v378
  %1485 = vmatprep.subr.mxu0 0.0
  %1486 = vmatpush1.msra.mxu0 %v379
  %1487 = vmatprep.mubr.f32.mxu0 %v655
  %1488 = vmatmul.mubr.f32.gmra.mrb[0].mxu0 %v647
  %v1489 = vpop.f32.mrb[0].mxu0
  %v1490 = vadd.f32 %v1420, %v1489
  %v1491 = vpop.f32.mrb[0].mxu0
  %1492 = vdwg.mxu0
  %1493 = vmatprep.subr.mxu0 0.0
  %1494 = vmatpush1.msra.mxu0 %v380
  %1495 = vmatprep.subr.mxu0 0.0
  %1496 = vmatpush1.msra.mxu0 %v381
  %1497 = vmatprep.subr.mxu0 0.0
  %1498 = vmatpush1.msra.mxu0 %v382
  %1499 = vmatprep.subr.mxu0 0.0
  %1500 = vmatpush1.msra.mxu0 %v383
  %1501 = vmatprep.subr.mxu0 0.0
  %1502 = vmatpush1.msra.mxu0 %v384
  %1503 = vmatprep.subr.mxu0 0.0
  %1504 = vmatpush1.msra.mxu0 %v385
  %1505 = vmatprep.subr.mxu0 0.0
  %1506 = vmatpush1.msra.mxu0 %v386
  %1507 = vmatprep.subr.mxu0 0.0
  %1508 = vmatpush1.msra.mxu0 %v387
  %1509 = vmatprep.subr.mxu0 0.0
  %1510 = vmatpush1.msra.mxu0 %v388
  %1511 = vmatprep.subr.mxu0 0.0
  %1512 = vmatpush1.msra.mxu0 %v389
  %1513 = vmatprep.subr.mxu0 0.0
  %1514 = vmatpush1.msra.mxu0 %v390
  %1515 = vmatprep.subr.mxu0 0.0
  %1516 = vmatpush1.msra.mxu0 %v391
  %1517 = vmatprep.subr.mxu0 0.0
  %1518 = vmatpush1.msra.mxu0 %v392
  %1519 = vmatprep.subr.mxu0 0.0
  %1520 = vmatpush1.msra.mxu0 %v393
  %1521 = vmatprep.subr.mxu0 0.0
  %1522 = vmatpush1.msra.mxu0 %v394
  %1523 = vmatprep.subr.mxu0 0.0
  %1524 = vmatpush1.msra.mxu0 %v395
  %1525 = vmatprep.subr.mxu0 0.0
  %1526 = vmatpush1.msra.mxu0 %v396
  %1527 = vmatprep.subr.mxu0 0.0
  %1528 = vmatpush1.msra.mxu0 %v397
  %1529 = vmatprep.subr.mxu0 0.0
  %1530 = vmatpush1.msra.mxu0 %v398
  %1531 = vmatprep.subr.mxu0 0.0
  %1532 = vmatpush1.msra.mxu0 %v399
  %1533 = vmatprep.subr.mxu0 0.0
  %1534 = vmatpush1.msra.mxu0 %v400
  %1535 = vmatprep.subr.mxu0 0.0
  %1536 = vmatpush1.msra.mxu0 %v401
  %1537 = vmatprep.subr.mxu0 0.0
  %1538 = vmatpush1.msra.mxu0 %v402
  %1539 = vmatprep.subr.mxu0 0.0
  %1540 = vmatpush1.msra.mxu0 %v403
  %1541 = vmatprep.subr.mxu0 0.0
  %1542 = vmatpush1.msra.mxu0 %v404
  %1543 = vmatprep.subr.mxu0 0.0
  %1544 = vmatpush1.msra.mxu0 %v405
  %1545 = vmatprep.subr.mxu0 0.0
  %1546 = vmatpush1.msra.mxu0 %v406
  %1547 = vmatprep.subr.mxu0 0.0
  %1548 = vmatpush1.msra.mxu0 %v407
  %1549 = vmatprep.subr.mxu0 0.0
  %1550 = vmatpush1.msra.mxu0 %v408
  %1551 = vmatprep.subr.mxu0 0.0
  %1552 = vmatpush1.msra.mxu0 %v409
  %1553 = vmatprep.subr.mxu0 0.0
  %1554 = vmatpush1.msra.mxu0 %v410
  %1555 = vmatprep.subr.mxu0 0.0
  %1556 = vmatpush1.msra.mxu0 %v411
  %1557 = vmatprep.mubr.f32.mxu0 %v656
  %1558 = vmatmul.mubr.f32.gmra.mrb[0].mxu0 %v654
  %v1559 = vpop.f32.mrb[0].mxu0
  %v1560 = vadd.f32 %v1490, %v1559
  %v1561 = vpop.f32.mrb[0].mxu0
  %1562 = vdwg.mxu0
  %1563 = vmatprep.subr.mxu0 0.0
  %1564 = vmatpush1.msra.mxu0 %v412
  %1565 = vmatprep.subr.mxu0 0.0
  %1566 = vmatpush1.msra.mxu0 %v413
  %1567 = vmatprep.subr.mxu0 0.0
  %1568 = vmatpush1.msra.mxu0 %v414
  %1569 = vmatprep.subr.mxu0 0.0
  %1570 = vmatpush1.msra.mxu0 %v415
  %1571 = vmatprep.subr.mxu0 0.0
  %1572 = vmatpush1.msra.mxu0 %v416
  %1573 = vmatprep.subr.mxu0 0.0
  %1574 = vmatpush1.msra.mxu0 %v417
  %1575 = vmatprep.subr.mxu0 0.0
  %1576 = vmatpush1.msra.mxu0 %v418
  %1577 = vmatprep.subr.mxu0 0.0
  %1578 = vmatpush1.msra.mxu0 %v419
  %1579 = vmatprep.subr.mxu0 0.0
  %1580 = vmatpush1.msra.mxu0 %v420
  %1581 = vmatprep.subr.mxu0 0.0
  %1582 = vmatpush1.msra.mxu0 %v421
  %1583 = vmatprep.subr.mxu0 0.0
  %1584 = vmatpush1.msra.mxu0 %v422
  %1585 = vmatprep.subr.mxu0 0.0
  %1586 = vmatpush1.msra.mxu0 %v423
  %1587 = vmatprep.subr.mxu0 0.0
  %1588 = vmatpush1.msra.mxu0 %v424
  %1589 = vmatprep.subr.mxu0 0.0
  %1590 = vmatpush1.msra.mxu0 %v425
  %1591 = vmatprep.subr.mxu0 0.0
  %1592 = vmatpush1.msra.mxu0 %v426
  %1593 = vmatprep.subr.mxu0 0.0
  %1594 = vmatpush1.msra.mxu0 %v427
  %1595 = vmatprep.subr.mxu0 0.0
  %1596 = vmatpush1.msra.mxu0 %v428
  %1597 = vmatprep.subr.mxu0 0.0
  %1598 = vmatpush1.msra.mxu0 %v429
  %1599 = vmatprep.subr.mxu0 0.0
  %1600 = vmatpush1.msra.mxu0 %v430
  %1601 = vmatprep.subr.mxu0 0.0
  %1602 = vmatpush1.msra.mxu0 %v431
  %1603 = vmatprep.subr.mxu0 0.0
  %1604 = vmatpush1.msra.mxu0 %v432
  %1605 = vmatprep.subr.mxu0 0.0
  %1606 = vmatpush1.msra.mxu0 %v433
  %1607 = vmatprep.subr.mxu0 0.0
  %1608 = vmatpush1.msra.mxu0 %v434
  %1609 = vmatprep.subr.mxu0 0.0
  %1610 = vmatpush1.msra.mxu0 %v435
  %1611 = vmatprep.subr.mxu0 0.0
  %1612 = vmatpush1.msra.mxu0 %v436
  %1613 = vmatprep.subr.mxu0 0.0
  %1614 = vmatpush1.msra.mxu0 %v437
  %1615 = vmatprep.subr.mxu0 0.0
  %1616 = vmatpush1.msra.mxu0 %v438
  %1617 = vmatprep.subr.mxu0 0.0
  %1618 = vmatpush1.msra.mxu0 %v439
  %1619 = vmatprep.subr.mxu0 0.0
  %1620 = vmatpush1.msra.mxu0 %v440
  %1621 = vmatprep.subr.mxu0 0.0
  %1622 = vmatpush1.msra.mxu0 %v441
  %1623 = vmatprep.subr.mxu0 0.0
  %1624 = vmatpush1.msra.mxu0 %v442
  %1625 = vmatprep.subr.mxu0 0.0
  %1626 = vmatpush1.msra.mxu0 %v443
  %1627 = vmatprep.mubr.f32.mxu0 %v672
  %1628 = vmatmul.mubr.f32.gmra.mrb[0].mxu0 %v664
  %v1629 = vpop.f32.mrb[0].mxu0
  %v1630 = vadd.f32 %v1560, %v1629
  %v1631 = vpop.f32.mrb[0].mxu0
  %1632 = vdwg.mxu0
  %1633 = vmatprep.subr.mxu0 0.0
  %1634 = vmatpush1.msra.mxu0 %v444
  %1635 = vmatprep.subr.mxu0 0.0
  %1636 = vmatpush1.msra.mxu0 %v445
  %1637 = vmatprep.subr.mxu0 0.0
  %1638 = vmatpush1.msra.mxu0 %v446
  %1639 = vmatprep.subr.mxu0 0.0
  %1640 = vmatpush1.msra.mxu0 %v447
  %1641 = vmatprep.subr.mxu0 0.0
  %1642 = vmatpush1.msra.mxu0 %v448
  %1643 = vmatprep.subr.mxu0 0.0
  %1644 = vmatpush1.msra.mxu0 %v449
  %1645 = vmatprep.subr.mxu0 0.0
  %1646 = vmatpush1.msra.mxu0 %v450
  %1647 = vmatprep.subr.mxu0 0.0
  %1648 = vmatpush1.msra.mxu0 %v451
  %1649 = vmatprep.subr.mxu0 0.0
  %1650 = vmatpush1.msra.mxu0 %v452
  %1651 = vmatprep.subr.mxu0 0.0
  %1652 = vmatpush1.msra.mxu0 %v453
  %1653 = vmatprep.subr.mxu0 0.0
  %1654 = vmatpush1.msra.mxu0 %v454
  %1655 = vmatprep.subr.mxu0 0.0
  %1656 = vmatpush1.msra.mxu0 %v455
  %1657 = vmatprep.subr.mxu0 0.0
  %1658 = vmatpush1.msra.mxu0 %v456
  %1659 = vmatprep.subr.mxu0 0.0
  %1660 = vmatpush1.msra.mxu0 %v457
  %1661 = vmatprep.subr.mxu0 0.0
  %1662 = vmatpush1.msra.mxu0 %v458
  %1663 = vmatprep.subr.mxu0 0.0
  %1664 = vmatpush1.msra.mxu0 %v459
  %1665 = vmatprep.subr.mxu0 0.0
  %1666 = vmatpush1.msra.mxu0 %v460
  %1667 = vmatprep.subr.mxu0 0.0
  %1668 = vmatpush1.msra.mxu0 %v461
  %1669 = vmatprep.subr.mxu0 0.0
  %1670 = vmatpush1.msra.mxu0 %v462
  %1671 = vmatprep.subr.mxu0 0.0
  %1672 = vmatpush1.msra.mxu0 %v463
  %1673 = vmatprep.subr.mxu0 0.0
  %1674 = vmatpush1.msra.mxu0 %v464
  %1675 = vmatprep.subr.mxu0 0.0
  %1676 = vmatpush1.msra.mxu0 %v465
  %1677 = vmatprep.subr.mxu0 0.0
  %1678 = vmatpush1.msra.mxu0 %v466
  %1679 = vmatprep.subr.mxu0 0.0
  %1680 = vmatpush1.msra.mxu0 %v467
  %1681 = vmatprep.subr.mxu0 0.0
  %1682 = vmatpush1.msra.mxu0 %v468
  %1683 = vmatprep.subr.mxu0 0.0
  %1684 = vmatpush1.msra.mxu0 %v469
  %1685 = vmatprep.subr.mxu0 0.0
  %1686 = vmatpush1.msra.mxu0 %v470
  %1687 = vmatprep.subr.mxu0 0.0
  %1688 = vmatpush1.msra.mxu0 %v471
  %1689 = vmatprep.subr.mxu0 0.0
  %1690 = vmatpush1.msra.mxu0 %v472
  %1691 = vmatprep.subr.mxu0 0.0
  %1692 = vmatpush1.msra.mxu0 %v473
  %1693 = vmatprep.subr.mxu0 0.0
  %1694 = vmatpush1.msra.mxu0 %v474
  %1695 = vmatprep.subr.mxu0 0.0
  %1696 = vmatpush1.msra.mxu0 %v475
  %1697 = vmatprep.mubr.f32.mxu0 %v673
  %1698 = vmatmul.mubr.f32.gmra.mrb[0].mxu0 %v671
  %v1699 = vpop.f32.mrb[0].mxu0
  %v1700 = vadd.f32 %v1630, %v1699
  %v1701 = vpop.f32.mrb[0].mxu0
  %1702 = vdwg.mxu0
  %1703 = vmatprep.subr.mxu0 0.0
  %1704 = vmatpush1.msra.mxu0 %v476
  %1705 = vmatprep.subr.mxu0 0.0
  %1706 = vmatpush1.msra.mxu0 %v477
  %1707 = vmatprep.subr.mxu0 0.0
  %1708 = vmatpush1.msra.mxu0 %v478
  %1709 = vmatprep.subr.mxu0 0.0
  %1710 = vmatpush1.msra.mxu0 %v479
  %1711 = vmatprep.subr.mxu0 0.0
  %1712 = vmatpush1.msra.mxu0 %v480
  %1713 = vmatprep.subr.mxu0 0.0
  %1714 = vmatpush1.msra.mxu0 %v481
  %1715 = vmatprep.subr.mxu0 0.0
  %1716 = vmatpush1.msra.mxu0 %v482
  %1717 = vmatprep.subr.mxu0 0.0
  %1718 = vmatpush1.msra.mxu0 %v483
  %1719 = vmatprep.subr.mxu0 0.0
  %1720 = vmatpush1.msra.mxu0 %v484
  %1721 = vmatprep.subr.mxu0 0.0
  %1722 = vmatpush1.msra.mxu0 %v485
  %1723 = vmatprep.subr.mxu0 0.0
  %1724 = vmatpush1.msra.mxu0 %v486
  %1725 = vmatprep.subr.mxu0 0.0
  %1726 = vmatpush1.msra.mxu0 %v487
  %1727 = vmatprep.subr.mxu0 0.0
  %1728 = vmatpush1.msra.mxu0 %v488
  %1729 = vmatprep.subr.mxu0 0.0
  %1730 = vmatpush1.msra.mxu0 %v489
  %1731 = vmatprep.subr.mxu0 0.0
  %1732 = vmatpush1.msra.mxu0 %v490
  %1733 = vmatprep.subr.mxu0 0.0
  %1734 = vmatpush1.msra.mxu0 %v491
  %1735 = vmatprep.subr.mxu0 0.0
  %1736 = vmatpush1.msra.mxu0 %v492
  %1737 = vmatprep.subr.mxu0 0.0
  %1738 = vmatpush1.msra.mxu0 %v493
  %1739 = vmatprep.subr.mxu0 0.0
  %1740 = vmatpush1.msra.mxu0 %v494
  %1741 = vmatprep.subr.mxu0 0.0
  %1742 = vmatpush1.msra.mxu0 %v495
  %1743 = vmatprep.subr.mxu0 0.0
  %1744 = vmatpush1.msra.mxu0 %v496
  %1745 = vmatprep.subr.mxu0 0.0
  %1746 = vmatpush1.msra.mxu0 %v497
  %1747 = vmatprep.subr.mxu0 0.0
  %1748 = vmatpush1.msra.mxu0 %v498
  %1749 = vmatprep.subr.mxu0 0.0
  %1750 = vmatpush1.msra.mxu0 %v499
  %1751 = vmatprep.subr.mxu0 0.0
  %1752 = vmatpush1.msra.mxu0 %v500
  %1753 = vmatprep.subr.mxu0 0.0
  %1754 = vmatpush1.msra.mxu0 %v501
  %1755 = vmatprep.subr.mxu0 0.0
  %1756 = vmatpush1.msra.mxu0 %v502
  %1757 = vmatprep.subr.mxu0 0.0
  %1758 = vmatpush1.msra.mxu0 %v503
  %1759 = vmatprep.subr.mxu0 0.0
  %1760 = vmatpush1.msra.mxu0 %v504
  %1761 = vmatprep.subr.mxu0 0.0
  %1762 = vmatpush1.msra.mxu0 %v505
  %1763 = vmatprep.subr.mxu0 0.0
  %1764 = vmatpush1.msra.mxu0 %v506
  %1765 = vmatprep.subr.mxu0 0.0
  %1766 = vmatpush1.msra.mxu0 %v507
  %1767 = vmatprep.mubr.f32.mxu0 %v689
  %1768 = vmatmul.mubr.f32.gmra.mrb[0].mxu0 %v681
  %v1769 = vpop.f32.mrb[0].mxu0
  %v1770 = vadd.f32 %v1700, %v1769
  %v1771 = vpop.f32.mrb[0].mxu0
  %1772 = vdwg.mxu0
  %1773 = vmatprep.subr.mxu0 0.0
  %1774 = vmatpush1.msra.mxu0 %v508
  %1775 = vmatprep.subr.mxu0 0.0
  %1776 = vmatpush1.msra.mxu0 %v509
  %1777 = vmatprep.subr.mxu0 0.0
  %1778 = vmatpush1.msra.mxu0 %v510
  %1779 = vmatprep.subr.mxu0 0.0
  %1780 = vmatpush1.msra.mxu0 %v511
  %1781 = vmatprep.subr.mxu0 0.0
  %1782 = vmatpush1.msra.mxu0 %v512
  %1783 = vmatprep.subr.mxu0 0.0
  %1784 = vmatpush1.msra.mxu0 %v513
  %1785 = vmatprep.subr.mxu0 0.0
  %1786 = vmatpush1.msra.mxu0 %v514
  %1787 = vmatprep.subr.mxu0 0.0
  %1788 = vmatpush1.msra.mxu0 %v515
  %1789 = vmatprep.subr.mxu0 0.0
  %1790 = vmatpush1.msra.mxu0 %v516
  %1791 = vmatprep.subr.mxu0 0.0
  %1792 = vmatpush1.msra.mxu0 %v517
  %1793 = vmatprep.subr.mxu0 0.0
  %1794 = vmatpush1.msra.mxu0 %v518
  %1795 = vmatprep.subr.mxu0 0.0
  %1796 = vmatpush1.msra.mxu0 %v519
  %1797 = vmatprep.subr.mxu0 0.0
  %1798 = vmatpush1.msra.mxu0 %v520
  %1799 = vmatprep.subr.mxu0 0.0
  %1800 = vmatpush1.msra.mxu0 %v521
  %1801 = vmatprep.subr.mxu0 0.0
  %1802 = vmatpush1.msra.mxu0 %v522
  %1803 = vmatprep.subr.mxu0 0.0
  %1804 = vmatpush1.msra.mxu0 %v523
  %1805 = vmatprep.subr.mxu0 0.0
  %1806 = vmatpush1.msra.mxu0 %v524
  %1807 = vmatprep.subr.mxu0 0.0
  %1808 = vmatpush1.msra.mxu0 %v525
  %1809 = vmatprep.subr.mxu0 0.0
  %1810 = vmatpush1.msra.mxu0 %v526
  %1811 = vmatprep.subr.mxu0 0.0
  %1812 = vmatpush1.msra.mxu0 %v527
  %1813 = vmatprep.subr.mxu0 0.0
  %1814 = vmatpush1.msra.mxu0 %v528
  %1815 = vmatprep.subr.mxu0 0.0
  %1816 = vmatpush1.msra.mxu0 %v529
  %1817 = vmatprep.subr.mxu0 0.0
  %1818 = vmatpush1.msra.mxu0 %v530
  %1819 = vmatprep.subr.mxu0 0.0
  %1820 = vmatpush1.msra.mxu0 %v531
  %1821 = vmatprep.subr.mxu0 0.0
  %1822 = vmatpush1.msra.mxu0 %v532
  %1823 = vmatprep.subr.mxu0 0.0
  %1824 = vmatpush1.msra.mxu0 %v533
  %1825 = vmatprep.subr.mxu0 0.0
  %1826 = vmatpush1.msra.mxu0 %v534
  %1827 = vmatprep.subr.mxu0 0.0
  %1828 = vmatpush1.msra.mxu0 %v535
  %1829 = vmatprep.subr.mxu0 0.0
  %1830 = vmatpush1.msra.mxu0 %v536
  %1831 = vmatprep.subr.mxu0 0.0
  %1832 = vmatpush1.msra.mxu0 %v537
  %1833 = vmatprep.subr.mxu0 0.0
  %1834 = vmatpush1.msra.mxu0 %v538
  %1835 = vmatprep.subr.mxu0 0.0
  %1836 = vmatpush1.msra.mxu0 %v539
  %1837 = vmatprep.mubr.f32.mxu0 %v690
  %1838 = vmatmul.mubr.f32.gmra.mrb[0].mxu0 %v688
  %v1839 = vpop.f32.mrb[0].mxu0
  %v1840 = vadd.f32 %v1770, %v1839
  %v1841 = vpop.f32.mrb[0].mxu0
  %1842 = vdwg.mxu0
  %v1843 = vmax.f32 %v1840, 0.0
  %v1844 = vld [vmem:[%s3] sm:$0xff]
  %v1845 = vld [vmem:[%s3 + $0x8] sm:$0xff]
  %v1846 = vld [vmem:[%s3 + $0x10] sm:$0xff]
  %v1847 = vld [vmem:[%s3 + $0x18] sm:$0xff]
  %v1848 = vld [vmem:[%s3 + $0x20] sm:$0xff]
  %v1849 = vld [vmem:[%s3 + $0x28] sm:$0xff]
  %v1850 = vld [vmem:[%s3 + $0x30] sm:$0xff]
  %v1851 = vld [vmem:[%s3 + $0x38] sm:$0xff]
  %v1852 = vld [vmem:[%s3 + $0x40] sm:$0xff]
  %v1853 = vld [vmem:[%s3 + $0x48] sm:$0xff]
  %v1854 = vld [vmem:[%s3 + $0x50] sm:$0xff]
  %v1855 = vld [vmem:[%s3 + $0x58] sm:$0xff]
  %v1856 = vld [vmem:[%s3 + $0x60] sm:$0xff]
  %v1857 = vld [vmem:[%s3 + $0x68] sm:$0xff]
  %v1858 = vld [vmem:[%s3 + $0x70] sm:$0xff]
  %v1859 = vld [vmem:[%s3 + $0x78] sm:$0xff]
  %v1860 = vld [vmem:[%s4] sm:$0x1]
  %v1862 = vlaneseq
  %v1863 = vshrl.u32 %v1862, 7
  %v1864 = vsub.s32 0, %v1863
  %v1865 = vrot.slane %v1860, %v1864
  %1867 = vmatprep.subr.mxu0 0.0
  %1868 = vmatpush1.msra.mxu0 %v1844
  %1869 = vmatprep.subr.mxu0 0.0
  %1870 = vmatpush1.msra.mxu0 %v1845
  %1871 = vmatprep.subr.mxu0 0.0
  %1872 = vmatpush1.msra.mxu0 %v1846
  %1873 = vmatprep.subr.mxu0 0.0
  %1874 = vmatpush1.msra.mxu0 %v1847
  %1875 = vmatprep.subr.mxu0 0.0
  %1876 = vmatpush1.msra.mxu0 %v1848
  %1877 = vmatprep.subr.mxu0 0.0
  %1878 = vmatpush1.msra.mxu0 %v1849
  %1879 = vmatprep.subr.mxu0 0.0
  %1880 = vmatpush1.msra.mxu0 %v1850
  %1881 = vmatprep.subr.mxu0 0.0
  %1882 = vmatpush1.msra.mxu0 %v1851
  %1883 = vmatprep.subr.mxu0 0.0
  %1884 = vmatpush1.msra.mxu0 %v1852
  %1885 = vmatprep.subr.mxu0 0.0
  %1886 = vmatpush1.msra.mxu0 %v1853
  %1887 = vmatprep.subr.mxu0 0.0
  %1888 = vmatpush1.msra.mxu0 %v1854
  %1889 = vmatprep.subr.mxu0 0.0
  %1890 = vmatpush1.msra.mxu0 %v1855
  %1891 = vmatprep.subr.mxu0 0.0
  %1892 = vmatpush1.msra.mxu0 %v1856
  %1893 = vmatprep.subr.mxu0 0.0
  %1894 = vmatpush1.msra.mxu0 %v1857
  %1895 = vmatprep.subr.mxu0 0.0
  %1896 = vmatpush1.msra.mxu0 %v1858
  %1897 = vmatprep.subr.mxu0 0.0
  %1898 = vmatpush1.msra.mxu0 %v1859
  %1899 = vmatprep.subr.mxu0 0.0
  %1900 = vmatpush1.msra.mxu0 0.0
  %1901 = vmatprep.subr.mxu0 0.0
  %1902 = vmatpush1.msra.mxu0 0.0
  %1903 = vmatprep.subr.mxu0 0.0
  %1904 = vmatpush1.msra.mxu0 0.0
  %1905 = vmatprep.subr.mxu0 0.0
  %1906 = vmatpush1.msra.mxu0 0.0
  %1907 = vmatprep.subr.mxu0 0.0
  %1908 = vmatpush1.msra.mxu0 0.0
  %1909 = vmatprep.subr.mxu0 0.0
  %1910 = vmatpush1.msra.mxu0 0.0
  %1911 = vmatprep.subr.mxu0 0.0
  %1912 = vmatpush1.msra.mxu0 0.0
  %1913 = vmatprep.subr.mxu0 0.0
  %1914 = vmatpush1.msra.mxu0 0.0
  %1915 = vmatprep.subr.mxu0 0.0
  %1916 = vmatpush1.msra.mxu0 0.0
  %1917 = vmatprep.subr.mxu0 0.0
  %1918 = vmatpush1.msra.mxu0 0.0
  %1919 = vmatprep.subr.mxu0 0.0
  %1920 = vmatpush1.msra.mxu0 0.0
  %1921 = vmatprep.subr.mxu0 0.0
  %1922 = vmatpush1.msra.mxu0 0.0
  %1923 = vmatprep.subr.mxu0 0.0
  %1924 = vmatpush1.msra.mxu0 0.0
  %1925 = vmatprep.subr.mxu0 0.0
  %1926 = vmatpush1.msra.mxu0 0.0
  %1927 = vmatprep.subr.mxu0 0.0
  %1928 = vmatpush1.msra.mxu0 0.0
  %1929 = vmatprep.subr.mxu0 0.0
  %1930 = vmatpush1.msra.mxu0 0.0
  %1931 = vmatprep.mubr.f32.mxu0 0.0
  %1932 = vmatmul.mubr.f32.gmra.mrb[0].mxu0 %v1843
  %v1933 = vpop.f32.mrb[0].mxu0
  %v1934 = vadd.f32 %v1865, %v1933
  %v1935 = vpop.f32.mrb[0].mxu0
  %1936 = vdwg.mxu0
  %1937 = vst [vmem:[%s5] sm:$0x3] %v1934
  // Predicated region
  $region22: #{credal_cnn_forward.3} parent=0 // pred_check
    _
  $region23: #{credal_cnn_forward.3} parent=0 // pred_check_branch
    %1939 = sbr.rel (0) target = $region25
  $region24: #{credal_cnn_forward.3} parent=0 // pred_region
    _
  $region25: #{credal_cnn_forward.3} parent=0 // pred_fallthru
    _
  // Predicated region
  $region26: #{credal_cnn_forward.3} parent=0 // pred_check
    _
  $region27: #{credal_cnn_forward.3} parent=0 // pred_check_branch
    %1941 = sbr.rel (0) target = $region29
  $region28: #{credal_cnn_forward.3} parent=0 // pred_region
    _
  $region29: #{credal_cnn_forward.3} parent=0 // pred_fallthru
    _

// kernel: credal_cnn_forward.2
$region0: #{credal_cnn_forward.2}
  #allocation0 [shape = 'u32[]', space=smem, size = 0x4, offset = 0x4, fixed_abs, tag = 'smem constant byte address 0x4 - core index']
  #allocation1 [shape = 'u32[144,128]{1,0:T(1,128)}', space=vmem, size = 0x12000, scoped, tag = 'internal scratch']
  #allocation2 [shape = 'f32[32,32,32]{2,1,0:T(8,128)}', space=vmem, size = 0x80000, scoped, tag = 'scratch operand']
  #allocation3 [shape = 'f32[18,18,32]{2,1,0:T(8,128)}', space=vmem, size = 0x36000, scoped, tag = 'scratch operand']
  #allocation4 [shape = 'f32[16,16,64]{2,1,0:T(8,128)}', space=vmem, size = 0x20000, scoped, tag = 'scratch operand']
  %s0 = inlined_call_operand.vmem [shape: f32[2,1024,27], index: 0, kind: input, shape index: {}]
  %s1 = inlined_call_operand.vmem [shape: f32[27,32], index: 1, kind: input, shape index: {}]
  %s2 = inlined_call_operand.vmem [shape: f32[1,32], index: 2, kind: input, shape index: {}]
  %s3 = inlined_call_operand.vmem [shape: f32[3,96,64], index: 3, kind: input, shape index: {}]
  %s4 = inlined_call_operand.vmem [shape: f32[1,64], index: 4, kind: input, shape index: {}]
  %s5 = inlined_call_operand.vmem [shape: f32[2,8,8,64], index: 5, kind: output, shape index: {}]
  %s6 = sld [smem:[#allocation0]]
  $region53: #{credal_cnn_forward.2} parent=0
    _
  %s8 = ssub.s32 1, %s6
  %s9 = scalar_select 0, %s8, %s6
  loop: start=0, step=1, limit=4
  $region2: #{credal_cnn_forward.2} parent=0 // loop_pre_header
    _
  $region3: #{credal_cnn_forward.2} parent=0 // loop_header
    %s11 = sphi 0, %s15
    %p12 = scmp.ge.s32.totalorder %s11, 4
    %s21 = sphi 0, %s23
    %s24 = sphi 0, %s21
    %s25 = sphi 0, %s24
    %s41 = sphi 0, %s25
    %s45 = sphi 0, %s45
    %s47 = sphi 0, %s45
    %s48 = sphi 0, %s47
    %s62 = sphi 0, %s48
    %s66 = sphi 0, %s66
    %s68 = sphi 0, %s66
    %s69 = sphi 0, %s68
    %s83 = sphi 0, %s69
    %s87 = sphi 0, %s87
    %s89 = sphi 0, %s87
    %s90 = sphi 0, %s89
    %s104 = sphi 0, %s90
    %s108 = sphi 0, %s108
    %s110 = sphi 0, %s108
    %s111 = sphi 0, %s110
    %s125 = sphi 0, %s111
    %s131 = sphi 0, %s133
    %s134 = sphi 0, %s131
    %s135 = sphi 0, %s134
    %s151 = sphi 0, %s135
  $region4: #{credal_cnn_forward.2} parent=0 // loop_header_branch
    %14 = sbr.rel (%p12) target = $region8
  $region5: #{credal_cnn_forward.2} parent=0 // loop_body
    %s16 = ssub.s32 %s11, 1
    %s17 = ssub.s32 %s11, 2
    %s18 = sadd.s32 %s11, 1
    %s19 = ssub.s32 %s11, %s18
    %p20 = scmp.eq.s32.totalorder %s19, 0
    %s22 = sadd.s32 %s21, 1
    %s23 = scalar_select %p20, %s21, %s22
    %p26 = pneg %p20
    %p27 = scmp.eq.s32.totalorder %s11, 1
    %p28 = por %p26, %p27
    %p29 = scmp.ne.s32.totalorder %s21, %s24
    %p30 = scmp.eq.s32.totalorder %s11, 0
    %p31 = por %p29, %p30
    %p32 = scmp.ne.s32.totalorder %s21, %s24
    %p33 = scmp.eq.s32.totalorder %s16, 1
    %p34 = por %p32, %p33
    %p35 = scmp.ne.s32.totalorder %s24, %s25
    %p36 = scmp.eq.s32.totalorder %s16, 0
    %p37 = por %p35, %p36
    %p38 = scmp.ne.s32.totalorder %s24, %s25
    %p39 = scmp.eq.s32.totalorder %s17, 1
    %p40 = por %p38, %p39
    %p42 = scmp.ne.s32.totalorder %s25, %s41
    %p43 = scmp.eq.s32.totalorder %s17, 0
    %p44 = por %p42, %p43
    %s46 = sadd.s32 %s45, 1
    %p49 = scmp.eq.s32.totalorder %s11, 1
    %p50 = scmp.ne.s32.totalorder %s45, %s47
    %p51 = scmp.eq.s32.totalorder %s11, 0
    %p52 = por %p50, %p51
    %p53 = scmp.ne.s32.totalorder %s45, %s47
    %p54 = scmp.eq.s32.totalorder %s16, 1
    %p55 = por %p53, %p54
    %p56 = scmp.ne.s32.totalorder %s47, %s48
    %p57 = scmp.eq.s32.totalorder %s16, 0
    %p58 = por %p56, %p57
    %p59 = scmp.ne.s32.totalorder %s47, %s48
    %p60 = scmp.eq.s32.totalorder %s17, 1
    %p61 = por %p59, %p60
    %p63 = scmp.ne.s32.totalorder %s48, %s62
    %p64 = scmp.eq.s32.totalorder %s17, 0
    %p65 = por %p63, %p64
    %s67 = sadd.s32 %s66, 1
    %p70 = scmp.eq.s32.totalorder %s11, 1
    %p71 = scmp.ne.s32.totalorder %s66, %s68
    %p72 = scmp.eq.s32.totalorder %s11, 0
    %p73 = por %p71, %p72
    %p74 = scmp.ne.s32.totalorder %s66, %s68
    %p75 = scmp.eq.s32.totalorder %s16, 1
    %p76 = por %p74, %p75
    %p77 = scmp.ne.s32.totalorder %s68, %s69
    %p78 = scmp.eq.s32.totalorder %s16, 0
    %p79 = por %p77, %p78
    %p80 = scmp.ne.s32.totalorder %s68, %s69
    %p81 = scmp.eq.s32.totalorder %s17, 1
    %p82 = por %p80, %p81
    %p84 = scmp.ne.s32.totalorder %s69, %s83
    %p85 = scmp.eq.s32.totalorder %s17, 0
    %p86 = por %p84, %p85
    %s88 = sadd.s32 %s87, 1
    %p91 = scmp.eq.s32.totalorder %s11, 1
    %p92 = scmp.ne.s32.totalorder %s87, %s89
    %p93 = scmp.eq.s32.totalorder %s11, 0
    %p94 = por %p92, %p93
    %p95 = scmp.ne.s32.totalorder %s87, %s89
    %p96 = scmp.eq.s32.totalorder %s16, 1
    %p97 = por %p95, %p96
    %p98 = scmp.ne.s32.totalorder %s89, %s90
    %p99 = scmp.eq.s32.totalorder %s16, 0
    %p100 = por %p98, %p99
    %p101 = scmp.ne.s32.totalorder %s89, %s90
    %p102 = scmp.eq.s32.totalorder %s17, 1
    %p103 = por %p101, %p102
    %p105 = scmp.ne.s32.totalorder %s90, %s104
    %p106 = scmp.eq.s32.totalorder %s17, 0
    %p107 = por %p105, %p106
    %s109 = sadd.s32 %s108, 1
    %p112 = scmp.eq.s32.totalorder %s11, 1
    %p113 = scmp.ne.s32.totalorder %s108, %s110
    %p114 = scmp.eq.s32.totalorder %s11, 0
    %p115 = por %p113, %p114
    %p116 = scmp.ne.s32.totalorder %s108, %s110
    %p117 = scmp.eq.s32.totalorder %s16, 1
    %p118 = por %p116, %p117
    %p119 = scmp.ne.s32.totalorder %s110, %s111
    %p120 = scmp.eq.s32.totalorder %s16, 0
    %p121 = por %p119, %p120
    %p122 = scmp.ne.s32.totalorder %s110, %s111
    %p123 = scmp.eq.s32.totalorder %s17, 1
    %p124 = por %p122, %p123
    %p126 = scmp.ne.s32.totalorder %s111, %s125
    %p127 = scmp.eq.s32.totalorder %s17, 0
    %p128 = por %p126, %p127
    %s129 = ssub.s32 %s11, %s18
    %p130 = scmp.eq.s32.totalorder %s129, 0
    %s132 = sadd.s32 %s131, 1
    %s133 = scalar_select %p130, %s131, %s132
    %p136 = pneg %p130
    %p137 = scmp.eq.s32.totalorder %s11, 1
    %p138 = por %p136, %p137
    %p139 = scmp.ne.s32.totalorder %s131, %s134
    %p140 = scmp.eq.s32.totalorder %s11, 0
    %p141 = por %p139, %p140
    %p142 = scmp.ne.s32.totalorder %s131, %s134
    %p143 = scmp.eq.s32.totalorder %s16, 1
    %p144 = por %p142, %p143
    %p145 = scmp.ne.s32.totalorder %s134, %s135
    %p146 = scmp.eq.s32.totalorder %s16, 0
    %p147 = por %p145, %p146
    %p148 = scmp.ne.s32.totalorder %s134, %s135
    %p149 = scmp.eq.s32.totalorder %s17, 1
    %p150 = por %p148, %p149
    %p152 = scmp.ne.s32.totalorder %s135, %s151
    %p153 = scmp.eq.s32.totalorder %s17, 0
    %p154 = por %p152, %p153
    %p155 = scmp.le.s32.totalorder 1, %s11
    %p156 = scmp.lt.s32.totalorder %s11, 3
    %p157 = pnand %p155, %p156
    %p158 = pneg %p157
    // Predicated region
    $region9: #{credal_cnn_forward.2} parent=5 // pred_check
      _
    $region10: #{credal_cnn_forward.2} parent=5 // pred_check_branch
      %160 = sbr.rel (%p157) target = $region12
    $region11: #{credal_cnn_forward.2} parent=5 // pred_region
      %s161 = ssub.s32 %s11, 1
      // Predicated region
      $region13: #{credal_cnn_forward.2} parent=11 // pred_check
        %p162 = pneg %p58
      $region14: #{credal_cnn_forward.2} parent=11 // pred_check_branch
        %164 = sbr.rel (%p162) target = $region16
      $region15: #{credal_cnn_forward.2} parent=11 // pred_region
        _
      $region16: #{credal_cnn_forward.2} parent=11 // pred_fallthru
        _
      // Predicated region
      $region17: #{credal_cnn_forward.2} parent=11 // pred_check
        %p165 = pneg %p79
      $region18: #{credal_cnn_forward.2} parent=11 // pred_check_branch
        %167 = sbr.rel (%p165) target = $region20
      $region19: #{credal_cnn_forward.2} parent=11 // pred_region
        _
      $region20: #{credal_cnn_forward.2} parent=11 // pred_fallthru
        _
      // Predicated region
      $region21: #{credal_cnn_forward.2} parent=11 // pred_check
        %p168 = pneg %p100
      $region22: #{credal_cnn_forward.2} parent=11 // pred_check_branch
        %170 = sbr.rel (%p168) target = $region24
      $region23: #{credal_cnn_forward.2} parent=11 // pred_region
        _
      $region24: #{credal_cnn_forward.2} parent=11 // pred_fallthru
        _
      // Predicated region
      $region25: #{credal_cnn_forward.2} parent=11 // pred_check
        %p171 = pneg %p121
      $region26: #{credal_cnn_forward.2} parent=11 // pred_check_branch
        %173 = sbr.rel (%p171) target = $region28
      $region27: #{credal_cnn_forward.2} parent=11 // pred_region
        _
      $region28: #{credal_cnn_forward.2} parent=11 // pred_fallthru
        _
    $region12: #{credal_cnn_forward.2} parent=5 // pred_fallthru
      _
    %p174 = scmp.lt.s32.totalorder %s11, 2
    // Predicated region
    $region29: #{credal_cnn_forward.2} parent=5 // pred_check
      %p175 = pneg %p174
    $region30: #{credal_cnn_forward.2} parent=5 // pred_check_branch
      %177 = sbr.rel (%p175) target = $region32
    $region31: #{credal_cnn_forward.2} parent=5 // pred_region
      // Predicated region
      $region33: #{credal_cnn_forward.2} parent=31 // pred_check
        %p178 = pneg %p31
      $region34: #{credal_cnn_forward.2} parent=31 // pred_check_branch
        %180 = sbr.rel (%p178) target = $region36
      $region35: #{credal_cnn_forward.2} parent=31 // pred_region
        %p181 = scmp.lt.s32.totalorder %s11, 1
        %s182 = scalar_select %p181, %s11, 1
        %s183 = smul.addr %s182, 128
        %s184 = smul.addr %s183, 8
        %s185 = scalar_lea.vmem %s0, %s184
      $region36: #{credal_cnn_forward.2} parent=31 // pred_fallthru
        _
    $region32: #{credal_cnn_forward.2} parent=5 // pred_fallthru
      _
    %p186 = scmp.le.s32.totalorder 1, %s11
    %p187 = scmp.lt.s32.totalorder %s11, 3
    %p188 = pnand %p186, %p187
    %p189 = pneg %p188
    // Predicated region
    $region37: #{credal_cnn_forward.2} parent=5 // pred_check
      _
    $region38: #{credal_cnn_forward.2} parent=5 // pred_check_branch
      %191 = sbr.rel (%p188) target = $region40
    $region39: #{credal_cnn_forward.2} parent=5 // pred_region
      %s192 = ssub.s32 %s11, 1
      %p193 = scmp.lt.s32.totalorder %s16, 1
      %s194 = scalar_select %p193, %s16, 1
      %s195 = smul.addr %s194, 128
      %s196 = smul.addr %s195, 8
      %s197 = scalar_lea.vmem %s0, %s196
      %p198 = pneg %p37
      %p199 = pneg %p34
      %p200 = pneg %p58
      %p201 = pneg %p55
      %p202 = pneg %p79
      %p203 = pneg %p76
      %p204 = pneg %p100
      %p205 = pneg %p97
      %p206 = pneg %p121
      %p207 = pneg %p118
      %p208 = pneg %p147
      %p209 = pneg %p144
      %p210 = scmp.lt.s32.totalorder %s16, 1
      %s211 = scalar_select %p210, %s16, 1
      %s212 = smul.addr %s211, 8
      %s213 = smul.addr %s212, 8
      %s214 = scalar_lea.vmem %s5, %s213
      %p215 = scmp.lt.s32.totalorder %s16, 1
      %s216 = scalar_select %p215, %s16, 1
      %s217 = smul.addr %s216, 128
      %s218 = smul.addr %s217, 8
      %s219 = scalar_lea.vmem %s0, %s218
      %p220 = scmp.lt.s32.totalorder %s16, 1
      %s221 = scalar_select %p220, %s16, 1
      %s222 = smul.addr %s221, 8
      %s223 = smul.addr %s222, 8
      %s224 = scalar_lea.vmem %s5, %s223
      %v225 = vld [vmem:[%s219] sm:$0xff]
      %v226 = vld [vmem:[%s219 + $0x8] sm:$0xff]
      %v227 = vld [vmem:[%s219 + $0x10] sm:$0xff]
      %v228 = vld [vmem:[%s219 + $0x18] sm:$0xff]
      %v229 = vld [vmem:[%s219 + $0x20] sm:$0xff]
      %v230 = vld [vmem:[%s219 + $0x28] sm:$0xff]
      %v231 = vld [vmem:[%s219 + $0x30] sm:$0xff]
      %v232 = vld [vmem:[%s219 + $0x38] sm:$0xff]
      %v233 = vld [vmem:[%s219 + $0x40] sm:$0xff]
      %v234 = vld [vmem:[%s219 + $0x48] sm:$0xff]
      %v235 = vld [vmem:[%s219 + $0x50] sm:$0xff]
      %v236 = vld [vmem:[%s219 + $0x58] sm:$0xff]
      %v237 = vld [vmem:[%s219 + $0x60] sm:$0xff]
      %v238 = vld [vmem:[%s219 + $0x68] sm:$0xff]
      %v239 = vld [vmem:[%s219 + $0x70] sm:$0xff]
      %v240 = vld [vmem:[%s219 + $0x78] sm:$0xff]
      %v241 = vld [vmem:[%s219 + $0x80] sm:$0xff]
      %v242 = vld [vmem:[%s219 + $0x88] sm:$0xff]
      %v243 = vld [vmem:[%s219 + $0x90] sm:$0xff]
      %v244 = vld [vmem:[%s219 + $0x98] sm:$0xff]
      %v245 = vld [vmem:[%s219 + $0xa0] sm:$0xff]
      %v246 = vld [vmem:[%s219 + $0xa8] sm:$0xff]
      %v247 = vld [vmem:[%s219 + $0xb0] sm:$0xff]
      %v248 = vld [vmem:[%s219 + $0xb8] sm:$0xff]
      %v249 = vld [vmem:[%s219 + $0xc0] sm:$0xff]
      %v250 = vld [vmem:[%s219 + $0xc8] sm:$0xff]
      %v251 = vld [vmem:[%s219 + $0xd0] sm:$0xff]
      %v252 = vld [vmem:[%s219 + $0xd8] sm:$0xff]
      %v253 = vld [vmem:[%s219 + $0xe0] sm:$0xff]
      %v254 = vld [vmem:[%s219 + $0xe8] sm:$0xff]
      %v255 = vld [vmem:[%s219 + $0xf0] sm:$0xff]
      %v256 = vld [vmem:[%s219 + $0xf8] sm:$0xff]
      %v257 = vld [vmem:[%s219 + $0x100] sm:$0xff]
      %v258 = vld [vmem:[%s219 + $0x108] sm:$0xff]
      %v259 = vld [vmem:[%s219 + $0x110] sm:$0xff]
      %v260 = vld [vmem:[%s219 + $0x118] sm:$0xff]
      %v261 = vld [vmem:[%s219 + $0x120] sm:$0xff]
      %v262 = vld [vmem:[%s219 + $0x128] sm:$0xff]
      %v263 = vld [vmem:[%s219 + $0x130] sm:$0xff]
      %v264 = vld [vmem:[%s219 + $0x138] sm:$0xff]
      %v265 = vld [vmem:[%s219 + $0x140] sm:$0xff]
      %v266 = vld [vmem:[%s219 + $0x148] sm:$0xff]
      %v267 = vld [vmem:[%s219 + $0x150] sm:$0xff]
      %v268 = vld [vmem:[%s219 + $0x158] sm:$0xff]
      %v269 = vld [vmem:[%s219 + $0x160] sm:$0xff]
      %v270 = vld [vmem:[%s219 + $0x168] sm:$0xff]
      %v271 = vld [vmem:[%s219 + $0x170] sm:$0xff]
      %v272 = vld [vmem:[%s219 + $0x178] sm:$0xff]
      %v273 = vld [vmem:[%s219 + $0x180] sm:$0xff]
      %v274 = vld [vmem:[%s219 + $0x188] sm:$0xff]
      %v275 = vld [vmem:[%s219 + $0x190] sm:$0xff]
      %v276 = vld [vmem:[%s219 + $0x198] sm:$0xff]
      %v277 = vld [vmem:[%s219 + $0x1a0] sm:$0xff]
      %v278 = vld [vmem:[%s219 + $0x1a8] sm:$0xff]
      %v279 = vld [vmem:[%s219 + $0x1b0] sm:$0xff]
      %v280 = vld [vmem:[%s219 + $0x1b8] sm:$0xff]
      %v281 = vld [vmem:[%s219 + $0x1c0] sm:$0xff]
      %v282 = vld [vmem:[%s219 + $0x1c8] sm:$0xff]
      %v283 = vld [vmem:[%s219 + $0x1d0] sm:$0xff]
      %v284 = vld [vmem:[%s219 + $0x1d8] sm:$0xff]
      %v285 = vld [vmem:[%s219 + $0x1e0] sm:$0xff]
      %v286 = vld [vmem:[%s219 + $0x1e8] sm:$0xff]
      %v287 = vld [vmem:[%s219 + $0x1f0] sm:$0xff]
      %v288 = vld [vmem:[%s219 + $0x1f8] sm:$0xff]
      %v289 = vld [vmem:[%s219 + $0x200] sm:$0xff]
      %v290 = vld [vmem:[%s219 + $0x208] sm:$0xff]
      %v291 = vld [vmem:[%s219 + $0x210] sm:$0xff]
      %v292 = vld [vmem:[%s219 + $0x218] sm:$0xff]
      %v293 = vld [vmem:[%s219 + $0x220] sm:$0xff]
      %v294 = vld [vmem:[%s219 + $0x228] sm:$0xff]
      %v295 = vld [vmem:[%s219 + $0x230] sm:$0xff]
      %v296 = vld [vmem:[%s219 + $0x238] sm:$0xff]
      %v297 = vld [vmem:[%s219 + $0x240] sm:$0xff]
      %v298 = vld [vmem:[%s219 + $0x248] sm:$0xff]
      %v299 = vld [vmem:[%s219 + $0x250] sm:$0xff]
      %v300 = vld [vmem:[%s219 + $0x258] sm:$0xff]
      %v301 = vld [vmem:[%s219 + $0x260] sm:$0xff]
      %v302 = vld [vmem:[%s219 + $0x268] sm:$0xff]
      %v303 = vld [vmem:[%s219 + $0x270] sm:$0xff]
      %v304 = vld [vmem:[%s219 + $0x278] sm:$0xff]
      %v305 = vld [vmem:[%s219 + $0x280] sm:$0xff]
      %v306 = vld [vmem:[%s219 + $0x288] sm:$0xff]
      %v307 = vld [vmem:[%s219 + $0x290] sm:$0xff]
      %v308 = vld [vmem:[%s219 + $0x298] sm:$0xff]
      %v309 = vld [vmem:[%s219 + $0x2a0] sm:$0xff]
      %v310 = vld [vmem:[%s219 + $0x2a8] sm:$0xff]
      %v311 = vld [vmem:[%s219 + $0x2b0] sm:$0xff]
      %v312 = vld [vmem:[%s219 + $0x2b8] sm:$0xff]
      %v313 = vld [vmem:[%s219 + $0x2c0] sm:$0xff]
      %v314 = vld [vmem:[%s219 + $0x2c8] sm:$0xff]
      %v315 = vld [vmem:[%s219 + $0x2d0] sm:$0xff]
      %v316 = vld [vmem:[%s219 + $0x2d8] sm:$0xff]
      %v317 = vld [vmem:[%s219 + $0x2e0] sm:$0xff]
      %v318 = vld [vmem:[%s219 + $0x2e8] sm:$0xff]
      %v319 = vld [vmem:[%s219 + $0x2f0] sm:$0xff]
      %v320 = vld [vmem:[%s219 + $0x2f8] sm:$0xff]
      %v321 = vld [vmem:[%s219 + $0x300] sm:$0xff]
      %v322 = vld [vmem:[%s219 + $0x308] sm:$0xff]
      %v323 = vld [vmem:[%s219 + $0x310] sm:$0xff]
      %v324 = vld [vmem:[%s219 + $0x318] sm:$0xff]
      %v325 = vld [vmem:[%s219 + $0x320] sm:$0xff]
      %v326 = vld [vmem:[%s219 + $0x328] sm:$0xff]
      %v327 = vld [vmem:[%s219 + $0x330] sm:$0xff]
      %v328 = vld [vmem:[%s219 + $0x338] sm:$0xff]
      %v329 = vld [vmem:[%s219 + $0x340] sm:$0xff]
      %v330 = vld [vmem:[%s219 + $0x348] sm:$0xff]
      %v331 = vld [vmem:[%s219 + $0x350] sm:$0xff]
      %v332 = vld [vmem:[%s219 + $0x358] sm:$0xff]
      %v333 = vld [vmem:[%s219 + $0x360] sm:$0xff]
      %v334 = vld [vmem:[%s219 + $0x368] sm:$0xff]
      %v335 = vld [vmem:[%s219 + $0x370] sm:$0xff]
      %v336 = vld [vmem:[%s219 + $0x378] sm:$0xff]
      %v337 = vld [vmem:[%s219 + $0x380] sm:$0xff]
      %v338 = vld [vmem:[%s219 + $0x388] sm:$0xff]
      %v339 = vld [vmem:[%s219 + $0x390] sm:$0xff]
      %v340 = vld [vmem:[%s219 + $0x398] sm:$0xff]
      %v341 = vld [vmem:[%s219 + $0x3a0] sm:$0xff]
      %v342 = vld [vmem:[%s219 + $0x3a8] sm:$0xff]
      %v343 = vld [vmem:[%s219 + $0x3b0] sm:$0xff]
      %v344 = vld [vmem:[%s219 + $0x3b8] sm:$0xff]
      %v345 = vld [vmem:[%s219 + $0x3c0] sm:$0xff]
      %v346 = vld [vmem:[%s219 + $0x3c8] sm:$0xff]
      %v347 = vld [vmem:[%s219 + $0x3d0] sm:$0xff]
      %v348 = vld [vmem:[%s219 + $0x3d8] sm:$0xff]
      %v349 = vld [vmem:[%s219 + $0x3e0] sm:$0xff]
      %v350 = vld [vmem:[%s219 + $0x3e8] sm:$0xff]
      %v351 = vld [vmem:[%s219 + $0x3f0] sm:$0xff]
      %v352 = vld [vmem:[%s219 + $0x3f8] sm:$0xff]
      %v353 = vld [vmem:[%s1] sm:$0xff]
      %v354 = vld [vmem:[%s1 + $0x8] sm:$0xff]
      %v355 = vld [vmem:[%s1 + $0x10] sm:$0xff]
      %v356 = vld [vmem:[%s1 + $0x18] sm:$0x7]
      %v357 = vld [vmem:[%s2] sm:$0x1]
      %v359 = vlaneseq
      %v360 = vshrl.u32 %v359, 7
      %v361 = vsub.s32 0, %v360
      %v362 = vrot.slane %v357, %v361
      %vm364 = vcmask 220160
      %v366 = vsel %vm364, %v225, 0
      %v369 = vsel %vm364, %v226, 0
      %v372 = vsel %vm364, %v227, 0
      %v375 = vsel %vm364, %v228, 0
      %v378 = vsel %vm364, %v229, 0
      %v381 = vsel %vm364, %v230, 0
      %v384 = vsel %vm364, %v231, 0
      %v387 = vsel %vm364, %v232, 0
      %v390 = vsel %vm364, %v233, 0
      %v393 = vsel %vm364, %v234, 0
      %v396 = vsel %vm364, %v235, 0
      %v399 = vsel %vm364, %v236, 0
      %v402 = vsel %vm364, %v237, 0
      %v405 = vsel %vm364, %v238, 0
      %v408 = vsel %vm364, %v239, 0
      %v411 = vsel %vm364, %v240, 0
      %v414 = vsel %vm364, %v241, 0
      %v417 = vsel %vm364, %v242, 0
      %v420 = vsel %vm364, %v243, 0
      %v423 = vsel %vm364, %v244, 0
      %v426 = vsel %vm364, %v245, 0
      %v429 = vsel %vm364, %v246, 0
      %v432 = vsel %vm364, %v247, 0
      %v435 = vsel %vm364, %v248, 0
      %v438 = vsel %vm364, %v249, 0
      %v441 = vsel %vm364, %v250, 0
      %v444 = vsel %vm364, %v251, 0
      %v447 = vsel %vm364, %v252, 0
      %v450 = vsel %vm364, %v253, 0
      %v453 = vsel %vm364, %v254, 0
      %v456 = vsel %vm364, %v255, 0
      %v459 = vsel %vm364, %v256, 0
      %v462 = vsel %vm364, %v257, 0
      %v465 = vsel %vm364, %v258, 0
      %v468 = vsel %vm364, %v259, 0
      %v471 = vsel %vm364, %v260, 0
      %v474 = vsel %vm364, %v261, 0
      %v477 = vsel %vm364, %v262, 0
      %v480 = vsel %vm364, %v263, 0
      %v483 = vsel %vm364, %v264, 0
      %v486 = vsel %vm364, %v265, 0
      %v489 = vsel %vm364, %v266, 0
      %v492 = vsel %vm364, %v267, 0
      %v495 = vsel %vm364, %v268, 0
      %v498 = vsel %vm364, %v269, 0
      %v501 = vsel %vm364, %v270, 0
      %v504 = vsel %vm364, %v271, 0
      %v507 = vsel %vm364, %v272, 0
      %v510 = vsel %vm364, %v273, 0
      %v513 = vsel %vm364, %v274, 0
      %v516 = vsel %vm364, %v275, 0
      %v519 = vsel %vm364, %v276, 0
      %v522 = vsel %vm364, %v277, 0
      %v525 = vsel %vm364, %v278, 0
      %v528 = vsel %vm364, %v279, 0
      %v531 = vsel %vm364, %v280, 0
      %v534 = vsel %vm364, %v281, 0
      %v537 = vsel %vm364, %v282, 0
      %v540 = vsel %vm364, %v283, 0
      %v543 = vsel %vm364, %v284, 0
      %v546 = vsel %vm364, %v285, 0
      %v549 = vsel %vm364, %v286, 0
      %v552 = vsel %vm364, %v287, 0
      %v555 = vsel %vm364, %v288, 0
      %v558 = vsel %vm364, %v289, 0
      %v561 = vsel %vm364, %v290, 0
      %v564 = vsel %vm364, %v291, 0
      %v567 = vsel %vm364, %v292, 0
      %v570 = vsel %vm364, %v293, 0
      %v573 = vsel %vm364, %v294, 0
      %v576 = vsel %vm364, %v295, 0
      %v579 = vsel %vm364, %v296, 0
      %v582 = vsel %vm364, %v297, 0
      %v585 = vsel %vm364, %v298, 0
      %v588 = vsel %vm364, %v299, 0
      %v591 = vsel %vm364, %v300, 0
      %v594 = vsel %vm364, %v301, 0
      %v597 = vsel %vm364, %v302, 0
      %v600 = vsel %vm364, %v303, 0
      %v603 = vsel %vm364, %v304, 0
      %v606 = vsel %vm364, %v305, 0
      %v609 = vsel %vm364, %v306, 0
      %v612 = vsel %vm364, %v307, 0
      %v615 = vsel %vm364, %v308, 0
      %v618 = vsel %vm364, %v309, 0
      %v621 = vsel %vm364, %v310, 0
      %v624 = vsel %vm364, %v311, 0
      %v627 = vsel %vm364, %v312, 0
      %v630 = vsel %vm364, %v313, 0
      %v633 = vsel %vm364, %v314, 0
      %v636 = vsel %vm364, %v315, 0
      %v639 = vsel %vm364, %v316, 0
      %v642 = vsel %vm364, %v317, 0
      %v645 = vsel %vm364, %v318, 0
      %v648 = vsel %vm364, %v319, 0
      %v651 = vsel %vm364, %v320, 0
      %v654 = vsel %vm364, %v321, 0
      %v657 = vsel %vm364, %v322, 0
      %v660 = vsel %vm364, %v323, 0
      %v663 = vsel %vm364, %v324, 0
      %v666 = vsel %vm364, %v325, 0
      %v669 = vsel %vm364, %v326, 0
      %v672 = vsel %vm364, %v327, 0
      %v675 = vsel %vm364, %v328, 0
      %v678 = vsel %vm364, %v329, 0
      %v681 = vsel %vm364, %v330, 0
      %v684 = vsel %vm364, %v331, 0
      %v687 = vsel %vm364, %v332, 0
      %v690 = vsel %vm364, %v333, 0
      %v693 = vsel %vm364, %v334, 0
      %v696 = vsel %vm364, %v335, 0
      %v699 = vsel %vm364, %v336, 0
      %v702 = vsel %vm364, %v337, 0
      %v705 = vsel %vm364, %v338, 0
      %v708 = vsel %vm364, %v339, 0
      %v711 = vsel %vm364, %v340, 0
      %v714 = vsel %vm364, %v341, 0
      %v717 = vsel %vm364, %v342, 0
      %v720 = vsel %vm364, %v343, 0
      %v723 = vsel %vm364, %v344, 0
      %v726 = vsel %vm364, %v345, 0
      %v729 = vsel %vm364, %v346, 0
      %v732 = vsel %vm364, %v347, 0
      %v735 = vsel %vm364, %v348, 0
      %v738 = vsel %vm364, %v349, 0
      %v741 = vsel %vm364, %v350, 0
      %v744 = vsel %vm364, %v351, 0
      %v747 = vsel %vm364, %v352, 0
      %vm749 = vcmask 1042432
      %v751 = vsel %vm749, %v356, 0
      %753 = vmatprep.subr.mxu0 0.0
      %754 = vmatpush1.msra.mxu0 %v353
      %755 = vmatprep.subr.mxu0 0.0
      %756 = vmatpush1.msra.mxu0 %v354
      %757 = vmatprep.subr.mxu0 0.0
      %758 = vmatpush1.msra.mxu0 %v355
      %759 = vmatprep.subr.mxu0 0.0
      %760 = vmatpush1.msra.mxu0 %v751
      %761 = vmatprep.subr.mxu0 0.0
      %762 = vmatpush1.msra.mxu0 0.0
      %763 = vmatprep.subr.mxu0 0.0
      %764 = vmatpush1.msra.mxu0 0.0
      %765 = vmatprep.subr.mxu0 0.0
      %766 = vmatpush1.msra.mxu0 0.0
      %767 = vmatprep.subr.mxu0 0.0
      %768 = vmatpush1.msra.mxu0 0.0
      %769 = vmatprep.subr.mxu0 0.0
      %770 = vmatpush1.msra.mxu0 0.0
      %771 = vmatprep.subr.mxu0 0.0
      %772 = vmatpush1.msra.mxu0 0.0
      %773 = vmatprep.subr.mxu0 0.0
      %774 = vmatpush1.msra.mxu0 0.0
      %775 = vmatprep.subr.mxu0 0.0
      %776 = vmatpush1.msra.mxu0 0.0
      %777 = vmatprep.subr.mxu0 0.0
      %778 = vmatpush1.msra.mxu0 0.0
      %779 = vmatprep.subr.mxu0 0.0
      %780 = vmatpush1.msra.mxu0 0.0
      %781 = vmatprep.subr.mxu0 0.0
      %782 = vmatpush1.msra.mxu0 0.0
      %783 = vmatprep.subr.mxu0 0.0
      %784 = vmatpush1.msra.mxu0 0.0
      %785 = vmatprep.subr.mxu0 0.0
      %786 = vmatpush1.msra.mxu0 0.0
      %787 = vmatprep.subr.mxu0 0.0
      %788 = vmatpush1.msra.mxu0 0.0
      %789 = vmatprep.subr.mxu0 0.0
      %790 = vmatpush1.msra.mxu0 0.0
      %791 = vmatprep.subr.mxu0 0.0
      %792 = vmatpush1.msra.mxu0 0.0
      %793 = vmatprep.subr.mxu0 0.0
      %794 = vmatpush1.msra.mxu0 0.0
      %795 = vmatprep.subr.mxu0 0.0
      %796 = vmatpush1.msra.mxu0 0.0
      %797 = vmatprep.subr.mxu0 0.0
      %798 = vmatpush1.msra.mxu0 0.0
      %799 = vmatprep.subr.mxu0 0.0
      %800 = vmatpush1.msra.mxu0 0.0
      %801 = vmatprep.subr.mxu0 0.0
      %802 = vmatpush1.msra.mxu0 0.0
      %803 = vmatprep.subr.mxu0 0.0
      %804 = vmatpush1.msra.mxu0 0.0
      %805 = vmatprep.subr.mxu0 0.0
      %806 = vmatpush1.msra.mxu0 0.0
      %807 = vmatprep.subr.mxu0 0.0
      %808 = vmatpush1.msra.mxu0 0.0
      %809 = vmatprep.subr.mxu0 0.0
      %810 = vmatpush1.msra.mxu0 0.0
      %811 = vmatprep.subr.mxu0 0.0
      %812 = vmatpush1.msra.mxu0 0.0
      %813 = vmatprep.subr.mxu0 0.0
      %814 = vmatpush1.msra.mxu0 0.0
      %815 = vmatprep.subr.mxu0 0.0
      %816 = vmatpush1.msra.mxu0 0.0
      %817 = vmatprep.mubr.f32.mxu0 0.0
      %818 = vmatmul.mubr.f32.gmra.mrb[0].mxu0 %v366
      %v819 = vpop.f32.mrb[0].mxu0
      %v820 = vadd.f32 %v362, %v819
      %v821 = vpop.f32.mrb[0].mxu0
      %822 = vmatprep.mubr.f32.mxu0 0.0
      %823 = vmatmul.mubr.f32.gmra.mrb[0].mxu0 %v369
      %v824 = vpop.f32.mrb[0].mxu0
      %v825 = vadd.f32 %v362, %v824
      %v826 = vpop.f32.mrb[0].mxu0
      %827 = vmatprep.mubr.f32.mxu0 0.0
      %828 = vmatmul.mubr.f32.gmra.mrb[0].mxu0 %v372
      %v829 = vpop.f32.mrb[0].mxu0
      %v830 = vadd.f32 %v362, %v829
      %v831 = vpop.f32.mrb[0].mxu0
      %832 = vmatprep.mubr.f32.mxu0 0.0
      %833 = vmatmul.mubr.f32.gmra.mrb[0].mxu0 %v375
      %v834 = vpop.f32.mrb[0].mxu0
      %v835 = vadd.f32 %v362, %v834
      %v836 = vpop.f32.mrb[0].mxu0
      %837 = vmatprep.mubr.f32.mxu0 0.0
      %838 = vmatmul.mubr.f32.gmra.mrb[0].mxu0 %v378
      %v839 = vpop.f32.mrb[0].mxu0
      %v840 = vadd.f32 %v362, %v839
      %v841 = vpop.f32.mrb[0].mxu0
      %842 = vmatprep.mubr.f32.mxu0 0.0
      %843 = vmatmul.mubr.f32.gmra.mrb[0].mxu0 %v381
      %v844 = vpop.f32.mrb[0].mxu0
      %v845 = vadd.f32 %v362, %v844
      %v846 = vpop.f32.mrb[0].mxu0
      %847 = vmatprep.mubr.f32.mxu0 0.0
      %848 = vmatmul.mubr.f32.gmra.mrb[0].mxu0 %v384
      %v849 = vpop.f32.mrb[0].mxu0
      %v850 = vadd.f32 %v362, %v849
      %v851 = vpop.f32.mrb[0].mxu0
      %852 = vmatprep.mubr.f32.mxu0 0.0
      %853 = vmatmul.mubr.f32.gmra.mrb[0].mxu0 %v387
      %v854 = vpop.f32.mrb[0].mxu0
      %v855 = vadd.f32 %v362, %v854
      %v856 = vpop.f32.mrb[0].mxu0
      %857 = vmatprep.mubr.f32.mxu0 0.0
      %858 = vmatmul.mubr.f32.gmra.mrb[0].mxu0 %v390
      %v859 = vpop.f32.mrb[0].mxu0
      %v860 = vadd.f32 %v362, %v859
      %v861 = vpop.f32.mrb[0].mxu0
      %862 = vmatprep.mubr.f32.mxu0 0.0
      %863 = vmatmul.mubr.f32.gmra.mrb[0].mxu0 %v393
      %v864 = vpop.f32.mrb[0].mxu0
      %v865 = vadd.f32 %v362, %v864
      %v866 = vpop.f32.mrb[0].mxu0
      %867 = vmatprep.mubr.f32.mxu0 0.0
      %868 = vmatmul.mubr.f32.gmra.mrb[0].mxu0 %v396
      %v869 = vpop.f32.mrb[0].mxu0
      %v870 = vadd.f32 %v362, %v869
      %v871 = vpop.f32.mrb[0].mxu0
      %872 = vmatprep.mubr.f32.mxu0 0.0
      %873 = vmatmul.mubr.f32.gmra.mrb[0].mxu0 %v399
      %v874 = vpop.f32.mrb[0].mxu0
      %v875 = vadd.f32 %v362, %v874
      %v876 = vpop.f32.mrb[0].mxu0
      %877 = vmatprep.mubr.f32.mxu0 0.0
      %878 = vmatmul.mubr.f32.gmra.mrb[0].mxu0 %v402
      %v879 = vpop.f32.mrb[0].mxu0
      %v880 = vadd.f32 %v362, %v879
      %v881 = vpop.f32.mrb[0].mxu0
      %882 = vmatprep.mubr.f32.mxu0 0.0
      %883 = vmatmul.mubr.f32.gmra.mrb[0].mxu0 %v405
      %v884 = vpop.f32.mrb[0].mxu0
      %v885 = vadd.f32 %v362, %v884
      %v886 = vpop.f32.mrb[0].mxu0
      %887 = vmatprep.mubr.f32.mxu0 0.0
      %888 = vmatmul.mubr.f32.gmra.mrb[0].mxu0 %v408
      %v889 = vpop.f32.mrb[0].mxu0
      %v890 = vadd.f32 %v362, %v889
      %v891 = vpop.f32.mrb[0].mxu0
      %892 = vmatprep.mubr.f32.mxu0 0.0
      %893 = vmatmul.mubr.f32.gmra.mrb[0].mxu0 %v411
      %v894 = vpop.f32.mrb[0].mxu0
      %v895 = vadd.f32 %v362, %v894
      %v896 = vpop.f32.mrb[0].mxu0
      %897 = vmatprep.mubr.f32.mxu0 0.0
      %898 = vmatmul.mubr.f32.gmra.mrb[0].mxu0 %v414
      %v899 = vpop.f32.mrb[0].mxu0
      %v900 = vadd.f32 %v362, %v899
      %v901 = vpop.f32.mrb[0].mxu0
      %902 = vmatprep.mubr.f32.mxu0 0.0
      %903 = vmatmul.mubr.f32.gmra.mrb[0].mxu0 %v417
      %v904 = vpop.f32.mrb[0].mxu0
      %v905 = vadd.f32 %v362, %v904
      %v906 = vpop.f32.mrb[0].mxu0
      %907 = vmatprep.mubr.f32.mxu0 0.0
      %908 = vmatmul.mubr.f32.gmra.mrb[0].mxu0 %v420
      %v909 = vpop.f32.mrb[0].mxu0
      %v910 = vadd.f32 %v362, %v909
      %v911 = vpop.f32.mrb[0].mxu0
      %912 = vmatprep.mubr.f32.mxu0 0.0
      %913 = vmatmul.mubr.f32.gmra.mrb[0].mxu0 %v423
      %v914 = vpop.f32.mrb[0].mxu0
      %v915 = vadd.f32 %v362, %v914
      %v916 = vpop.f32.mrb[0].mxu0
      %917 = vmatprep.mubr.f32.mxu0 0.0
      %918 = vmatmul.mubr.f32.gmra.mrb[0].mxu0 %v426
      %v919 = vpop.f32.mrb[0].mxu0
      %v920 = vadd.f32 %v362, %v919
      %v921 = vpop.f32.mrb[0].mxu0
      %922 = vmatprep.mubr.f32.mxu0 0.0
      %923 = vmatmul.mubr.f32.gmra.mrb[0].mxu0 %v429
      %v924 = vpop.f32.mrb[0].mxu0
      %v925 = vadd.f32 %v362, %v924
      %v926 = vpop.f32.mrb[0].mxu0
      %927 = vmatprep.mubr.f32.mxu0 0.0
      %928 = vmatmul.mubr.f32.gmra.mrb[0].mxu0 %v432
      %v929 = vpop.f32.mrb[0].mxu0
      %v930 = vadd.f32 %v362, %v929
      %v931 = vpop.f32.mrb[0].mxu0
      %932 = vmatprep.mubr.f32.mxu0 0.0
      %933 = vmatmul.mubr.f32.gmra.mrb[0].mxu0 %v435
      %v934 = vpop.f32.mrb[0].mxu0
      %v935 = vadd.f32 %v362, %v934
      %v936 = vpop.f32.mrb[0].mxu0
      %937 = vmatprep.mubr.f32.mxu0 0.0
      %938 = vmatmul.mubr.f32.gmra.mrb[0].mxu0 %v438
      %v939 = vpop.f32.mrb[0].mxu0
      %v940 = vadd.f32 %v362, %v939
      %v941 = vpop.f32.mrb[0].mxu0
      %942 = vmatprep.mubr.f32.mxu0 0.0
      %943 = vmatmul.mubr.f32.gmra.mrb[0].mxu0 %v441
      %v944 = vpop.f32.mrb[0].mxu0
      %v945 = vadd.f32 %v362, %v944
      %v946 = vpop.f32.mrb[0].mxu0
      %947 = vmatprep.mubr.f32.mxu0 0.0
      %948 = vmatmul.mubr.f32.gmra.mrb[0].mxu0 %v444
      %v949 = vpop.f32.mrb[0].mxu0
      %v950 = vadd.f32 %v362, %v949
      %v951 = vpop.f32.mrb[0].mxu0
      %952 = vmatprep.mubr.f32.mxu0 0.0
      %953 = vmatmul.mubr.f32.gmra.mrb[0].mxu0 %v447
      %v954 = vpop.f32.mrb[0].mxu0
      %v955 = vadd.f32 %v362, %v954
      %v956 = vpop.f32.mrb[0].mxu0
      %957 = vmatprep.mubr.f32.mxu0 0.0
      %958 = vmatmul.mubr.f32.gmra.mrb[0].mxu0 %v450
      %v959 = vpop.f32.mrb[0].mxu0
      %v960 = vadd.f32 %v362, %v959
      %v961 = vpop.f32.mrb[0].mxu0
      %962 = vmatprep.mubr.f32.mxu0 0.0
      %963 = vmatmul.mubr.f32.gmra.mrb[0].mxu0 %v453
      %v964 = vpop.f32.mrb[0].mxu0
      %v965 = vadd.f32 %v362, %v964
      %v966 = vpop.f32.mrb[0].mxu0
      %967 = vmatprep.mubr.f32.mxu0 0.0
      %968 = vmatmul.mubr.f32.gmra.mrb[0].mxu0 %v456
      %v969 = vpop.f32.mrb[0].mxu0
      %v970 = vadd.f32 %v362, %v969
      %v971 = vpop.f32.mrb[0].mxu0
      %972 = vmatprep.mubr.f32.mxu0 0.0
      %973 = vmatmul.mubr.f32.gmra.mrb[0].mxu0 %v459
      %v974 = vpop.f32.mrb[0].mxu0
      %v975 = vadd.f32 %v362, %v974
      %v976 = vpop.f32.mrb[0].mxu0
      %977 = vmatprep.mubr.f32.mxu0 0.0
      %978 = vmatmul.mubr.f32.gmra.mrb[0].mxu0 %v462
      %v979 = vpop.f32.mrb[0].mxu0
      %v980 = vadd.f32 %v362, %v979
      %v981 = vpop.f32.mrb[0].mxu0
      %982 = vmatprep.mubr.f32.mxu0 0.0
      %983 = vmatmul.mubr.f32.gmra.mrb[0].mxu0 %v465
      %v984 = vpop.f32.mrb[0].mxu0
      %v985 = vadd.f32 %v362, %v984
      %v986 = vpop.f32.mrb[0].mxu0
      %987 = vmatprep.mubr.f32.mxu0 0.0
      %988 = vmatmul.mubr.f32.gmra.mrb[0].mxu0 %v468
      %v989 = vpop.f32.mrb[0].mxu0
      %v990 = vadd.f32 %v362, %v989
      %v991 = vpop.f32.mrb[0].mxu0
      %992 = vmatprep.mubr.f32.mxu0 0.0
      %993 = vmatmul.mubr.f32.gmra.mrb[0].mxu0 %v471
      %v994 = vpop.f32.mrb[0].mxu0
      %v995 = vadd.f32 %v362, %v994
      %v996 = vpop.f32.mrb[0].mxu0
      %997 = vmatprep.mubr.f32.mxu0 0.0
      %998 = vmatmul.mubr.f32.gmra.mrb[0].mxu0 %v474
      %v999 = vpop.f32.mrb[0].mxu0
      %v1000 = vadd.f32 %v362, %v999
      %v1001 = vpop.f32.mrb[0].mxu0
      %1002 = vmatprep.mubr.f32.mxu0 0.0
      %1003 = vmatmul.mubr.f32.gmra.mrb[0].mxu0 %v477
      %v1004 = vpop.f32.mrb[0].mxu0
      %v1005 = vadd.f32 %v362, %v1004
      %v1006 = vpop.f32.mrb[0].mxu0
      %1007 = vmatprep.mubr.f32.mxu0 0.0
      %1008 = vmatmul.mubr.f32.gmra.mrb[0].mxu0 %v480
      %v1009 = vpop.f32.mrb[0].mxu0
      %v1010 = vadd.f32 %v362, %v1009
      %v1011 = vpop.f32.mrb[0].mxu0
      %1012 = vmatprep.mubr.f32.mxu0 0.0
      %1013 = vmatmul.mubr.f32.gmra.mrb[0].mxu0 %v483
      %v1014 = vpop.f32.mrb[0].mxu0
      %v1015 = vadd.f32 %v362, %v1014
      %v1016 = vpop.f32.mrb[0].mxu0
      %1017 = vmatprep.mubr.f32.mxu0 0.0
      %1018 = vmatmul.mubr.f32.gmra.mrb[0].mxu0 %v486
      %v1019 = vpop.f32.mrb[0].mxu0
      %v1020 = vadd.f32 %v362, %v1019
      %v1021 = vpop.f32.mrb[0].mxu0
      %1022 = vmatprep.mubr.f32.mxu0 0.0
      %1023 = vmatmul.mubr.f32.gmra.mrb[0].mxu0 %v489
      %v1024 = vpop.f32.mrb[0].mxu0
      %v1025 = vadd.f32 %v362, %v1024
      %v1026 = vpop.f32.mrb[0].mxu0
      %1027 = vmatprep.mubr.f32.mxu0 0.0
      %1028 = vmatmul.mubr.f32.gmra.mrb[0].mxu0 %v492
      %v1029 = vpop.f32.mrb[0].mxu0
      %v1030 = vadd.f32 %v362, %v1029
      %v1031 = vpop.f32.mrb[0].mxu0
      %1032 = vmatprep.mubr.f32.mxu0 0.0
      %1033 = vmatmul.mubr.f32.gmra.mrb[0].mxu0 %v495
      %v1034 = vpop.f32.mrb[0].mxu0
      %v1035 = vadd.f32 %v362, %v1034
      %v1036 = vpop.f32.mrb[0].mxu0
      %1037 = vmatprep.mubr.f32.mxu0 0.0
      %1038 = vmatmul.mubr.f32.gmra.mrb[0].mxu0 %v498
      %v1039 = vpop.f32.mrb[0].mxu0
      %v1040 = vadd.f32 %v362, %v1039
      %v1041 = vpop.f32.mrb[0].mxu0
      %1042 = vmatprep.mubr.f32.mxu0 0.0
      %1043 = vmatmul.mubr.f32.gmra.mrb[0].mxu0 %v501
      %v1044 = vpop.f32.mrb[0].mxu0
      %v1045 = vadd.f32 %v362, %v1044
      %v1046 = vpop.f32.mrb[0].mxu0
      %1047 = vmatprep.mubr.f32.mxu0 0.0
      %1048 = vmatmul.mubr.f32.gmra.mrb[0].mxu0 %v504
      %v1049 = vpop.f32.mrb[0].mxu0
      %v1050 = vadd.f32 %v362, %v1049
      %v1051 = vpop.f32.mrb[0].mxu0
      %1052 = vmatprep.mubr.f32.mxu0 0.0
      %1053 = vmatmul.mubr.f32.gmra.mrb[0].mxu0 %v507
      %v1054 = vpop.f32.mrb[0].mxu0
      %v1055 = vadd.f32 %v362, %v1054
      %v1056 = vpop.f32.mrb[0].mxu0
      %1057 = vmatprep.mubr.f32.mxu0 0.0
      %1058 = vmatmul.mubr.f32.gmra.mrb[0].mxu0 %v510
      %v1059 = vpop.f32.mrb[0].mxu0
      %v1060 = vadd.f32 %v362, %v1059
      %v1061 = vpop.f32.mrb[0].mxu0
      %1062 = vmatprep.mubr.f32.mxu0 0.0
      %1063 = vmatmul.mubr.f32.gmra.mrb[0].mxu0 %v513
      %v1064 = vpop.f32.mrb[0].mxu0
      %v1065 = vadd.f32 %v362, %v1064
      %v1066 = vpop.f32.mrb[0].mxu0
      %1067 = vmatprep.mubr.f32.mxu0 0.0
      %1068 = vmatmul.mubr.f32.gmra.mrb[0].mxu0 %v516
      %v1069 = vpop.f32.mrb[0].mxu0
      %v1070 = vadd.f32 %v362, %v1069
      %v1071 = vpop.f32.mrb[0].mxu0
      %1072 = vmatprep.mubr.f32.mxu0 0.0
      %1073 = vmatmul.mubr.f32.gmra.mrb[0].mxu0 %v519
      %v1074 = vpop.f32.mrb[0].mxu0
      %v1075 = vadd.f32 %v362, %v1074
      %v1076 = vpop.f32.mrb[0].mxu0
      %1077 = vmatprep.mubr.f32.mxu0 0.0
      %1078 = vmatmul.mubr.f32.gmra.mrb[0].mxu0 %v522
      %v1079 = vpop.f32.mrb[0].mxu0
      %v1080 = vadd.f32 %v362, %v1079
      %v1081 = vpop.f32.mrb[0].mxu0
      %1082 = vmatprep.mubr.f32.mxu0 0.0
      %1083 = vmatmul.mubr.f32.gmra.mrb[0].mxu0 %v525
      %v1084 = vpop.f32.mrb[0].mxu0
      %v1085 = vadd.f32 %v362, %v1084
      %v1086 = vpop.f32.mrb[0].mxu0
      %1087 = vmatprep.mubr.f32.mxu0 0.0
      %1088 = vmatmul.mubr.f32.gmra.mrb[0].mxu0 %v528
      %v1089 = vpop.f32.mrb[0].mxu0
      %v1090 = vadd.f32 %v362, %v1089
      %v1091 = vpop.f32.mrb[0].mxu0
      %1092 = vmatprep.mubr.f32.mxu0 0.0
      %1093 = vmatmul.mubr.f32.gmra.mrb[0].mxu0 %v531
      %v1094 = vpop.f32.mrb[0].mxu0
      %v1095 = vadd.f32 %v362, %v1094
      %v1096 = vpop.f32.mrb[0].mxu0
      %1097 = vmatprep.mubr.f32.mxu0 0.0
      %1098 = vmatmul.mubr.f32.gmra.mrb[0].mxu0 %v534
      %v1099 = vpop.f32.mrb[0].mxu0
      %v1100 = vadd.f32 %v362, %v1099
      %v1101 = vpop.f32.mrb[0].mxu0
      %1102 = vmatprep.mubr.f32.mxu0 0.0
      %1103 = vmatmul.mubr.f32.gmra.mrb[0].mxu0 %v537
      %v1104 = vpop.f32.mrb[0].mxu0
      %v1105 = vadd.f32 %v362, %v1104
      %v1106 = vpop.f32.mrb[0].mxu0
      %1107 = vmatprep.mubr.f32.mxu0 0.0
      %1108 = vmatmul.mubr.f32.gmra.mrb[0].mxu0 %v540
      %v1109 = vpop.f32.mrb[0].mxu0
      %v1110 = vadd.f32 %v362, %v1109
      %v1111 = vpop.f32.mrb[0].mxu0
      %1112 = vmatprep.mubr.f32.mxu0 0.0
      %1113 = vmatmul.mubr.f32.gmra.mrb[0].mxu0 %v543
      %v1114 = vpop.f32.mrb[0].mxu0
      %v1115 = vadd.f32 %v362, %v1114
      %v1116 = vpop.f32.mrb[0].mxu0
      %1117 = vmatprep.mubr.f32.mxu0 0.0
      %1118 = vmatmul.mubr.f32.gmra.mrb[0].mxu0 %v546
      %v1119 = vpop.f32.mrb[0].mxu0
      %v1120 = vadd.f32 %v362, %v1119
      %v1121 = vpop.f32.mrb[0].mxu0
      %1122 = vmatprep.mubr.f32.mxu0 0.0
      %1123 = vmatmul.mubr.f32.gmra.mrb[0].mxu0 %v549
      %v1124 = vpop.f32.mrb[0].mxu0
      %v1125 = vadd.f32 %v362, %v1124
      %v1126 = vpop.f32.mrb[0].mxu0
      %1127 = vmatprep.mubr.f32.mxu0 0.0
      %1128 = vmatmul.mubr.f32.gmra.mrb[0].mxu0 %v552
      %v1129 = vpop.f32.mrb[0].mxu0
      %v1130 = vadd.f32 %v362, %v1129
      %v1131 = vpop.f32.mrb[0].mxu0
      %1132 = vmatprep.mubr.f32.mxu0 0.0
      %1133 = vmatmul.mubr.f32.gmra.mrb[0].mxu0 %v555
      %v1134 = vpop.f32.mrb[0].mxu0
      %v1135 = vadd.f32 %v362, %v1134
      %v1136 = vpop.f32.mrb[0].mxu0
      %1137 = vmatprep.mubr.f32.mxu0 0.0
      %1138 = vmatmul.mubr.f32.gmra.mrb[0].mxu0 %v558
      %v1139 = vpop.f32.mrb[0].mxu0
      %v1140 = vadd.f32 %v362, %v1139
      %v1141 = vpop.f32.mrb[0].mxu0
      %1142 = vmatprep.mubr.f32.mxu0 0.0
      %1143 = vmatmul.mubr.f32.gmra.mrb[0].mxu0 %v561
      %v1144 = vpop.f32.mrb[0].mxu0
      %v1145 = vadd.f32 %v362, %v1144
      %v1146 = vpop.f32.mrb[0].mxu0
      %1147 = vmatprep.mubr.f32.mxu0 0.0
      %1148 = vmatmul.mubr.f32.gmra.mrb[0].mxu0 %v564
      %v1149 = vpop.f32.mrb[0].mxu0
      %v1150 = vadd.f32 %v362, %v1149
      %v1151 = vpop.f32.mrb[0].mxu0
      %1152 = vmatprep.mubr.f32.mxu0 0.0
      %1153 = vmatmul.mubr.f32.gmra.mrb[0].mxu0 %v567
      %v1154 = vpop.f32.mrb[0].mxu0
      %v1155 = vadd.f32 %v362, %v1154
      %v1156 = vpop.f32.mrb[0].mxu0
      %1157 = vmatprep.mubr.f32.mxu0 0.0
      %1158 = vmatmul.mubr.f32.gmra.mrb[0].mxu0 %v570
      %v1159 = vpop.f32.mrb[0].mxu0
      %v1160 = vadd.f32 %v362, %v1159
      %v1161 = vpop.f32.mrb[0].mxu0
      %1162 = vmatprep.mubr.f32.mxu0 0.0
      %1163 = vmatmul.mubr.f32.gmra.mrb[0].mxu0 %v573
      %v1164 = vpop.f32.mrb[0].mxu0
      %v1165 = vadd.f32 %v362, %v1164
      %v1166 = vpop.f32.mrb[0].mxu0
      %1167 = vmatprep.mubr.f32.mxu0 0.0
      %1168 = vmatmul.mubr.f32.gmra.mrb[0].mxu0 %v576
      %v1169 = vpop.f32.mrb[0].mxu0
      %v1170 = vadd.f32 %v362, %v1169
      %v1171 = vpop.f32.mrb[0].mxu0
      %1172 = vmatprep.mubr.f32.mxu0 0.0
      %1173 = vmatmul.mubr.f32.gmra.mrb[0].mxu0 %v579
      %v1174 = vpop.f32.mrb[0].mxu0
      %v1175 = vadd.f32 %v362, %v1174
      %v1176 = vpop.f32.mrb[0].mxu0
      %1177 = vmatprep.mubr.f32.mxu0 0.0
      %1178 = vmatmul.mubr.f32.gmra.mrb[0].mxu0 %v582
      %v1179 = vpop.f32.mrb[0].mxu0
      %v1180 = vadd.f32 %v362, %v1179
      %v1181 = vpop.f32.mrb[0].mxu0
      %1182 = vmatprep.mubr.f32.mxu0 0.0
      %1183 = vmatmul.mubr.f32.gmra.mrb[0].mxu0 %v585
      %v1184 = vpop.f32.mrb[0].mxu0
      %v1185 = vadd.f32 %v362, %v1184
      %v1186 = vpop.f32.mrb[0].mxu0
      %1187 = vmatprep.mubr.f32.mxu0 0.0
      %1188 = vmatmul.mubr.f32.gmra.mrb[0].mxu0 %v588
      %v1189 = vpop.f32.mrb[0].mxu0
      %v1190 = vadd.f32 %v362, %v1189
      %v1191 = vpop.f32.mrb[0].mxu0
      %1192 = vmatprep.mubr.f32.mxu0 0.0
      %1193 = vmatmul.mubr.f32.gmra.mrb[0].mxu0 %v591
      %v1194 = vpop.f32.mrb[0].mxu0
      %v1195 = vadd.f32 %v362, %v1194
      %v1196 = vpop.f32.mrb[0].mxu0
      %1197 = vmatprep.mubr.f32.mxu0 0.0
      %1198 = vmatmul.mubr.f32.gmra.mrb[0].mxu0 %v594
      %v1199 = vpop.f32.mrb[0].mxu0
      %v1200 = vadd.f32 %v362, %v1199
      %v1201 = vpop.f32.mrb[0].mxu0
      %1202 = vmatprep.mubr.f32.mxu0 0.0
      %1203 = vmatmul.mubr.f32.gmra.mrb[0].mxu0 %v597
      %v1204 = vpop.f32.mrb[0].mxu0
      %v1205 = vadd.f32 %v362, %v1204
      %v1206 = vpop.f32.mrb[0].mxu0
      %1207 = vmatprep.mubr.f32.mxu0 0.0
      %1208 = vmatmul.mubr.f32.gmra.mrb[0].mxu0 %v600
      %v1209 = vpop.f32.mrb[0].mxu0
      %v1210 = vadd.f32 %v362, %v1209
      %v1211 = vpop.f32.mrb[0].mxu0
      %1212 = vmatprep.mubr.f32.mxu0 0.0
      %1213 = vmatmul.mubr.f32.gmra.mrb[0].mxu0 %v603
      %v1214 = vpop.f32.mrb[0].mxu0
      %v1215 = vadd.f32 %v362, %v1214
      %v1216 = vpop.f32.mrb[0].mxu0
      %1217 = vmatprep.mubr.f32.mxu0 0.0
      %1218 = vmatmul.mubr.f32.gmra.mrb[0].mxu0 %v606
      %v1219 = vpop.f32.mrb[0].mxu0
      %v1220 = vadd.f32 %v362, %v1219
      %v1221 = vpop.f32.mrb[0].mxu0
      %1222 = vmatprep.mubr.f32.mxu0 0.0
      %1223 = vmatmul.mubr.f32.gmra.mrb[0].mxu0 %v609
      %v1224 = vpop.f32.mrb[0].mxu0
      %v1225 = vadd.f32 %v362, %v1224
      %v1226 = vpop.f32.mrb[0].mxu0
      %1227 = vmatprep.mubr.f32.mxu0 0.0
      %1228 = vmatmul.mubr.f32.gmra.mrb[0].mxu0 %v612
      %v1229 = vpop.f32.mrb[0].mxu0
      %v1230 = vadd.f32 %v362, %v1229
      %v1231 = vpop.f32.mrb[0].mxu0
      %1232 = vmatprep.mubr.f32.mxu0 0.0
      %1233 = vmatmul.mubr.f32.gmra.mrb[0].mxu0 %v615
      %v1234 = vpop.f32.mrb[0].mxu0
      %v1235 = vadd.f32 %v362, %v1234
      %v1236 = vpop.f32.mrb[0].mxu0
      %1237 = vmatprep.mubr.f32.mxu0 0.0
      %1238 = vmatmul.mubr.f32.gmra.mrb[0].mxu0 %v618
      %v1239 = vpop.f32.mrb[0].mxu0
      %v1240 = vadd.f32 %v362, %v1239
      %v1241 = vpop.f32.mrb[0].mxu0
      %1242 = vmatprep.mubr.f32.mxu0 0.0
      %1243 = vmatmul.mubr.f32.gmra.mrb[0].mxu0 %v621
      %v1244 = vpop.f32.mrb[0].mxu0
      %v1245 = vadd.f32 %v362, %v1244
      %v1246 = vpop.f32.mrb[0].mxu0
      %1247 = vmatprep.mubr.f32.mxu0 0.0
      %1248 = vmatmul.mubr.f32.gmra.mrb[0].mxu0 %v624
      %v1249 = vpop.f32.mrb[0].mxu0
      %v1250 = vadd.f32 %v362, %v1249
      %v1251 = vpop.f32.mrb[0].mxu0
      %1252 = vmatprep.mubr.f32.mxu0 0.0
      %1253 = vmatmul.mubr.f32.gmra.mrb[0].mxu0 %v627
      %v1254 = vpop.f32.mrb[0].mxu0
      %v1255 = vadd.f32 %v362, %v1254
      %v1256 = vpop.f32.mrb[0].mxu0
      %1257 = vmatprep.mubr.f32.mxu0 0.0
      %1258 = vmatmul.mubr.f32.gmra.mrb[0].mxu0 %v630
      %v1259 = vpop.f32.mrb[0].mxu0
      %v1260 = vadd.f32 %v362, %v1259
      %v1261 = vpop.f32.mrb[0].mxu0
      %1262 = vmatprep.mubr.f32.mxu0 0.0
      %1263 = vmatmul.mubr.f32.gmra.mrb[0].mxu0 %v633
      %v1264 = vpop.f32.mrb[0].mxu0
      %v1265 = vadd.f32 %v362, %v1264
      %v1266 = vpop.f32.mrb[0].mxu0
      %1267 = vmatprep.mubr.f32.mxu0 0.0
      %1268 = vmatmul.mubr.f32.gmra.mrb[0].mxu0 %v636
      %v1269 = vpop.f32.mrb[0].mxu0
      %v1270 = vadd.f32 %v362, %v1269
      %v1271 = vpop.f32.mrb[0].mxu0
      %1272 = vmatprep.mubr.f32.mxu0 0.0
      %1273 = vmatmul.mubr.f32.gmra.mrb[0].mxu0 %v639
      %v1274 = vpop.f32.mrb[0].mxu0
      %v1275 = vadd.f32 %v362, %v1274
      %v1276 = vpop.f32.mrb[0].mxu0
      %1277 = vmatprep.mubr.f32.mxu0 0.0
      %1278 = vmatmul.mubr.f32.gmra.mrb[0].mxu0 %v642
      %v1279 = vpop.f32.mrb[0].mxu0
      %v1280 = vadd.f32 %v362, %v1279
      %v1281 = vpop.f32.mrb[0].mxu0
      %1282 = vmatprep.mubr.f32.mxu0 0.0
      %1283 = vmatmul.mubr.f32.gmra.mrb[0].mxu0 %v645
      %v1284 = vpop.f32.mrb[0].mxu0
      %v1285 = vadd.f32 %v362, %v1284
      %v1286 = vpop.f32.mrb[0].mxu0
      %1287 = vmatprep.mubr.f32.mxu0 0.0
      %1288 = vmatmul.mubr.f32.gmra.mrb[0].mxu0 %v648
      %v1289 = vpop.f32.mrb[0].mxu0
      %v1290 = vadd.f32 %v362, %v1289
      %v1291 = vpop.f32.mrb[0].mxu0
      %1292 = vmatprep.mubr.f32.mxu0 0.0
      %1293 = vmatmul.mubr.f32.gmra.mrb[0].mxu0 %v651
      %v1294 = vpop.f32.mrb[0].mxu0
      %v1295 = vadd.f32 %v362, %v1294
      %v1296 = vpop.f32.mrb[0].mxu0
      %1297 = vmatprep.mubr.f32.mxu0 0.0
      %1298 = vmatmul.mubr.f32.gmra.mrb[0].mxu0 %v654
      %v1299 = vpop.f32.mrb[0].mxu0
      %v1300 = vadd.f32 %v362, %v1299
      %v1301 = vpop.f32.mrb[0].mxu0
      %1302 = vmatprep.mubr.f32.mxu0 0.0
      %1303 = vmatmul.mubr.f32.gmra.mrb[0].mxu0 %v657
      %v1304 = vpop.f32.mrb[0].mxu0
      %v1305 = vadd.f32 %v362, %v1304
      %v1306 = vpop.f32.mrb[0].mxu0
      %1307 = vmatprep.mubr.f32.mxu0 0.0
      %1308 = vmatmul.mubr.f32.gmra.mrb[0].mxu0 %v660
      %v1309 = vpop.f32.mrb[0].mxu0
      %v1310 = vadd.f32 %v362, %v1309
      %v1311 = vpop.f32.mrb[0].mxu0
      %1312 = vmatprep.mubr.f32.mxu0 0.0
      %1313 = vmatmul.mubr.f32.gmra.mrb[0].mxu0 %v663
      %v1314 = vpop.f32.mrb[0].mxu0
      %v1315 = vadd.f32 %v362, %v1314
      %v1316 = vpop.f32.mrb[0].mxu0
      %1317 = vmatprep.mubr.f32.mxu0 0.0
      %1318 = vmatmul.mubr.f32.gmra.mrb[0].mxu0 %v666
      %v1319 = vpop.f32.mrb[0].mxu0
      %v1320 = vadd.f32 %v362, %v1319
      %v1321 = vpop.f32.mrb[0].mxu0
      %1322 = vmatprep.mubr.f32.mxu0 0.0
      %1323 = vmatmul.mubr.f32.gmra.mrb[0].mxu0 %v669
      %v1324 = vpop.f32.mrb[0].mxu0
      %v1325 = vadd.f32 %v362, %v1324
      %v1326 = vpop.f32.mrb[0].mxu0
      %1327 = vmatprep.mubr.f32.mxu0 0.0
      %1328 = vmatmul.mubr.f32.gmra.mrb[0].mxu0 %v672
      %v1329 = vpop.f32.mrb[0].mxu0
      %v1330 = vadd.f32 %v362, %v1329
      %v1331 = vpop.f32.mrb[0].mxu0
      %1332 = vmatprep.mubr.f32.mxu0 0.0
      %1333 = vmatmul.mubr.f32.gmra.mrb[0].mxu0 %v675
      %v1334 = vpop.f32.mrb[0].mxu0
      %v1335 = vadd.f32 %v362, %v1334
      %v1336 = vpop.f32.mrb[0].mxu0
      %1337 = vmatprep.mubr.f32.mxu0 0.0
      %1338 = vmatmul.mubr.f32.gmra.mrb[0].mxu0 %v678
      %v1339 = vpop.f32.mrb[0].mxu0
      %v1340 = vadd.f32 %v362, %v1339
      %v1341 = vpop.f32.mrb[0].mxu0
      %1342 = vmatprep.mubr.f32.mxu0 0.0
      %1343 = vmatmul.mubr.f32.gmra.mrb[0].mxu0 %v681
      %v1344 = vpop.f32.mrb[0].mxu0
      %v1345 = vadd.f32 %v362, %v1344
      %v1346 = vpop.f32.mrb[0].mxu0
      %1347 = vmatprep.mubr.f32.mxu0 0.0
      %1348 = vmatmul.mubr.f32.gmra.mrb[0].mxu0 %v684
      %v1349 = vpop.f32.mrb[0].mxu0
      %v1350 = vadd.f32 %v362, %v1349
      %v1351 = vpop.f32.mrb[0].mxu0
      %1352 = vmatprep.mubr.f32.mxu0 0.0
      %1353 = vmatmul.mubr.f32.gmra.mrb[0].mxu0 %v687
      %v1354 = vpop.f32.mrb[0].mxu0
      %v1355 = vadd.f32 %v362, %v1354
      %v1356 = vpop.f32.mrb[0].mxu0
      %1357 = vmatprep.mubr.f32.mxu0 0.0
      %1358 = vmatmul.mubr.f32.gmra.mrb[0].mxu0 %v690
      %v1359 = vpop.f32.mrb[0].mxu0
      %v1360 = vadd.f32 %v362, %v1359
      %v1361 = vpop.f32.mrb[0].mxu0
      %1362 = vmatprep.mubr.f32.mxu0 0.0
      %1363 = vmatmul.mubr.f32.gmra.mrb[0].mxu0 %v693
      %v1364 = vpop.f32.mrb[0].mxu0
      %v1365 = vadd.f32 %v362, %v1364
      %v1366 = vpop.f32.mrb[0].mxu0
      %1367 = vmatprep.mubr.f32.mxu0 0.0
      %1368 = vmatmul.mubr.f32.gmra.mrb[0].mxu0 %v696
      %v1369 = vpop.f32.mrb[0].mxu0
      %v1370 = vadd.f32 %v362, %v1369
      %v1371 = vpop.f32.mrb[0].mxu0
      %1372 = vmatprep.mubr.f32.mxu0 0.0
      %1373 = vmatmul.mubr.f32.gmra.mrb[0].mxu0 %v699
      %v1374 = vpop.f32.mrb[0].mxu0
      %v1375 = vadd.f32 %v362, %v1374
      %v1376 = vpop.f32.mrb[0].mxu0
      %1377 = vmatprep.mubr.f32.mxu0 0.0
      %1378 = vmatmul.mubr.f32.gmra.mrb[0].mxu0 %v702
      %v1379 = vpop.f32.mrb[0].mxu0
      %v1380 = vadd.f32 %v362, %v1379
      %v1381 = vpop.f32.mrb[0].mxu0
      %1382 = vmatprep.mubr.f32.mxu0 0.0
      %1383 = vmatmul.mubr.f32.gmra.mrb[0].mxu0 %v705
      %v1384 = vpop.f32.mrb[0].mxu0
      %v1385 = vadd.f32 %v362, %v1384
      %v1386 = vpop.f32.mrb[0].mxu0
      %1387 = vmatprep.mubr.f32.mxu0 0.0
      %1388 = vmatmul.mubr.f32.gmra.mrb[0].mxu0 %v708
      %v1389 = vpop.f32.mrb[0].mxu0
      %v1390 = vadd.f32 %v362, %v1389
      %v1391 = vpop.f32.mrb[0].mxu0
      %1392 = vmatprep.mubr.f32.mxu0 0.0
      %1393 = vmatmul.mubr.f32.gmra.mrb[0].mxu0 %v711
      %v1394 = vpop.f32.mrb[0].mxu0
      %v1395 = vadd.f32 %v362, %v1394
      %v1396 = vpop.f32.mrb[0].mxu0
      %1397 = vmatprep.mubr.f32.mxu0 0.0
      %1398 = vmatmul.mubr.f32.gmra.mrb[0].mxu0 %v714
      %v1399 = vpop.f32.mrb[0].mxu0
      %v1400 = vadd.f32 %v362, %v1399
      %v1401 = vpop.f32.mrb[0].mxu0
      %1402 = vmatprep.mubr.f32.mxu0 0.0
      %1403 = vmatmul.mubr.f32.gmra.mrb[0].mxu0 %v717
      %v1404 = vpop.f32.mrb[0].mxu0
      %v1405 = vadd.f32 %v362, %v1404
      %v1406 = vpop.f32.mrb[0].mxu0
      %1407 = vmatprep.mubr.f32.mxu0 0.0
      %1408 = vmatmul.mubr.f32.gmra.mrb[0].mxu0 %v720
      %v1409 = vpop.f32.mrb[0].mxu0
      %v1410 = vadd.f32 %v362, %v1409
      %v1411 = vpop.f32.mrb[0].mxu0
      %1412 = vmatprep.mubr.f32.mxu0 0.0
      %1413 = vmatmul.mubr.f32.gmra.mrb[0].mxu0 %v723
      %v1414 = vpop.f32.mrb[0].mxu0
      %v1415 = vadd.f32 %v362, %v1414
      %v1416 = vpop.f32.mrb[0].mxu0
      %1417 = vmatprep.mubr.f32.mxu0 0.0
      %1418 = vmatmul.mubr.f32.gmra.mrb[0].mxu0 %v726
      %v1419 = vpop.f32.mrb[0].mxu0
      %v1420 = vadd.f32 %v362, %v1419
      %v1421 = vpop.f32.mrb[0].mxu0
      %1422 = vmatprep.mubr.f32.mxu0 0.0
      %1423 = vmatmul.mubr.f32.gmra.mrb[0].mxu0 %v729
      %v1424 = vpop.f32.mrb[0].mxu0
      %v1425 = vadd.f32 %v362, %v1424
      %v1426 = vpop.f32.mrb[0].mxu0
      %1427 = vmatprep.mubr.f32.mxu0 0.0
      %1428 = vmatmul.mubr.f32.gmra.mrb[0].mxu0 %v732
      %v1429 = vpop.f32.mrb[0].mxu0
      %v1430 = vadd.f32 %v362, %v1429
      %v1431 = vpop.f32.mrb[0].mxu0
      %1432 = vmatprep.mubr.f32.mxu0 0.0
      %1433 = vmatmul.mubr.f32.gmra.mrb[0].mxu0 %v735
      %v1434 = vpop.f32.mrb[0].mxu0
      %v1435 = vadd.f32 %v362, %v1434
      %v1436 = vpop.f32.mrb[0].mxu0
      %1437 = vmatprep.mubr.f32.mxu0 0.0
      %1438 = vmatmul.mubr.f32.gmra.mrb[0].mxu0 %v738
      %v1439 = vpop.f32.mrb[0].mxu0
      %v1440 = vadd.f32 %v362, %v1439
      %v1441 = vpop.f32.mrb[0].mxu0
      %1442 = vmatprep.mubr.f32.mxu0 0.0
      %1443 = vmatmul.mubr.f32.gmra.mrb[0].mxu0 %v741
      %v1444 = vpop.f32.mrb[0].mxu0
      %v1445 = vadd.f32 %v362, %v1444
      %v1446 = vpop.f32.mrb[0].mxu0
      %1447 = vmatprep.mubr.f32.mxu0 0.0
      %1448 = vmatmul.mubr.f32.gmra.mrb[0].mxu0 %v744
      %v1449 = vpop.f32.mrb[0].mxu0
      %v1450 = vadd.f32 %v362, %v1449
      %v1451 = vpop.f32.mrb[0].mxu0
      %1452 = vmatprep.mubr.f32.mxu0 0.0
      %1453 = vmatmul.mubr.f32.gmra.mrb[0].mxu0 %v747
      %v1454 = vpop.f32.mrb[0].mxu0
      %v1455 = vadd.f32 %v362, %v1454
      %v1456 = vpop.f32.mrb[0].mxu0
      %1457 = vdwg.mxu0
      %v1458 = vmax.f32 %v820, 0.0
      %v1459 = vmax.f32 %v825, 0.0
      %v1460 = vmax.f32 %v830, 0.0
      %v1461 = vmax.f32 %v835, 0.0
      %v1462 = vmax.f32 %v840, 0.0
      %v1463 = vmax.f32 %v845, 0.0
      %v1464 = vmax.f32 %v850, 0.0
      %v1465 = vmax.f32 %v855, 0.0
      %v1466 = vmax.f32 %v860, 0.0
      %v1467 = vmax.f32 %v865, 0.0
      %v1468 = vmax.f32 %v870, 0.0
      %v1469 = vmax.f32 %v875, 0.0
      %v1470 = vmax.f32 %v880, 0.0
      %v1471 = vmax.f32 %v885, 0.0
      %v1472 = vmax.f32 %v890, 0.0
      %v1473 = vmax.f32 %v895, 0.0
      %v1474 = vmax.f32 %v900, 0.0
      %v1475 = vmax.f32 %v905, 0.0
      %v1476 = vmax.f32 %v910, 0.0
      %v1477 = vmax.f32 %v915, 0.0
      %v1478 = vmax.f32 %v920, 0.0
      %v1479 = vmax.f32 %v925, 0.0
      %v1480 = vmax.f32 %v930, 0.0
      %v1481 = vmax.f32 %v935, 0.0
      %v1482 = vmax.f32 %v940, 0.0
      %v1483 = vmax.f32 %v945, 0.0
      %v1484 = vmax.f32 %v950, 0.0
      %v1485 = vmax.f32 %v955, 0.0
      %v1486 = vmax.f32 %v960, 0.0
      %v1487 = vmax.f32 %v965, 0.0
      %v1488 = vmax.f32 %v970, 0.0
      %v1489 = vmax.f32 %v975, 0.0
      %v1490 = vmax.f32 %v980, 0.0
      %v1491 = vmax.f32 %v985, 0.0
      %v1492 = vmax.f32 %v990, 0.0
      %v1493 = vmax.f32 %v995, 0.0
      %v1494 = vmax.f32 %v1000, 0.0
      %v1495 = vmax.f32 %v1005, 0.0
      %v1496 = vmax.f32 %v1010, 0.0
      %v1497 = vmax.f32 %v1015, 0.0
      %v1498 = vmax.f32 %v1020, 0.0
      %v1499 = vmax.f32 %v1025, 0.0
      %v1500 = vmax.f32 %v1030, 0.0
      %v1501 = vmax.f32 %v1035, 0.0
      %v1502 = vmax.f32 %v1040, 0.0
      %v1503 = vmax.f32 %v1045, 0.0
      %v1504 = vmax.f32 %v1050, 0.0
      %v1505 = vmax.f32 %v1055, 0.0
      %v1506 = vmax.f32 %v1060, 0.0
      %v1507 = vmax.f32 %v1065, 0.0
      %v1508 = vmax.f32 %v1070, 0.0
      %v1509 = vmax.f32 %v1075, 0.0
      %v1510 = vmax.f32 %v1080, 0.0
      %v1511 = vmax.f32 %v1085, 0.0
      %v1512 = vmax.f32 %v1090, 0.0
      %v1513 = vmax.f32 %v1095, 0.0
      %v1514 = vmax.f32 %v1100, 0.0
      %v1515 = vmax.f32 %v1105, 0.0
      %v1516 = vmax.f32 %v1110, 0.0
      %v1517 = vmax.f32 %v1115, 0.0
      %v1518 = vmax.f32 %v1120, 0.0
      %v1519 = vmax.f32 %v1125, 0.0
      %v1520 = vmax.f32 %v1130, 0.0
      %v1521 = vmax.f32 %v1135, 0.0
      %v1522 = vmax.f32 %v1140, 0.0
      %v1523 = vmax.f32 %v1145, 0.0
      %v1524 = vmax.f32 %v1150, 0.0
      %v1525 = vmax.f32 %v1155, 0.0
      %v1526 = vmax.f32 %v1160, 0.0
      %v1527 = vmax.f32 %v1165, 0.0
      %v1528 = vmax.f32 %v1170, 0.0
      %v1529 = vmax.f32 %v1175, 0.0
      %v1530 = vmax.f32 %v1180, 0.0
      %v1531 = vmax.f32 %v1185, 0.0
      %v1532 = vmax.f32 %v1190, 0.0
      %v1533 = vmax.f32 %v1195, 0.0
      %v1534 = vmax.f32 %v1200, 0.0
      %v1535 = vmax.f32 %v1205, 0.0
      %v1536 = vmax.f32 %v1210, 0.0
      %v1537 = vmax.f32 %v1215, 0.0
      %v1538 = vmax.f32 %v1220, 0.0
      %v1539 = vmax.f32 %v1225, 0.0
      %v1540 = vmax.f32 %v1230, 0.0
      %v1541 = vmax.f32 %v1235, 0.0
      %v1542 = vmax.f32 %v1240, 0.0
      %v1543 = vmax.f32 %v1245, 0.0
      %v1544 = vmax.f32 %v1250, 0.0
      %v1545 = vmax.f32 %v1255, 0.0
      %v1546 = vmax.f32 %v1260, 0.0
      %v1547 = vmax.f32 %v1265, 0.0
      %v1548 = vmax.f32 %v1270, 0.0
      %v1549 = vmax.f32 %v1275, 0.0
      %v1550 = vmax.f32 %v1280, 0.0
      %v1551 = vmax.f32 %v1285, 0.0
      %v1552 = vmax.f32 %v1290, 0.0
      %v1553 = vmax.f32 %v1295, 0.0
      %v1554 = vmax.f32 %v1300, 0.0
      %v1555 = vmax.f32 %v1305, 0.0
      %v1556 = vmax.f32 %v1310, 0.0
      %v1557 = vmax.f32 %v1315, 0.0
      %v1558 = vmax.f32 %v1320, 0.0
      %v1559 = vmax.f32 %v1325, 0.0
      %v1560 = vmax.f32 %v1330, 0.0
      %v1561 = vmax.f32 %v1335, 0.0
      %v1562 = vmax.f32 %v1340, 0.0
      %v1563 = vmax.f32 %v1345, 0.0
      %v1564 = vmax.f32 %v1350, 0.0
      %v1565 = vmax.f32 %v1355, 0.0
      %v1566 = vmax.f32 %v1360, 0.0
      %v1567 = vmax.f32 %v1365, 0.0
      %v1568 = vmax.f32 %v1370, 0.0
      %v1569 = vmax.f32 %v1375, 0.0
      %v1570 = vmax.f32 %v1380, 0.0
      %v1571 = vmax.f32 %v1385, 0.0
      %v1572 = vmax.f32 %v1390, 0.0
      %v1573 = vmax.f32 %v1395, 0.0
      %v1574 = vmax.f32 %v1400, 0.0
      %v1575 = vmax.f32 %v1405, 0.0
      %v1576 = vmax.f32 %v1410, 0.0
      %v1577 = vmax.f32 %v1415, 0.0
      %v1578 = vmax.f32 %v1420, 0.0
      %v1579 = vmax.f32 %v1425, 0.0
      %v1580 = vmax.f32 %v1430, 0.0
      %v1581 = vmax.f32 %v1435, 0.0
      %v1582 = vmax.f32 %v1440, 0.0
      %v1583 = vmax.f32 %v1445, 0.0
      %v1584 = vmax.f32 %v1450, 0.0
      %v1585 = vmax.f32 %v1455, 0.0
      %vm1586 = vcmask 261120
      %1587 = vst.msk [vmem:[#allocation2] sm:$0xff] %vm1586, %v1458
      %1588 = vst.msk [vmem:[#allocation2 + $0x8] sm:$0xff] %vm1586, %v1459
      %1589 = vst.msk [vmem:[#allocation2 + $0x10] sm:$0xff] %vm1586, %v1460
      %1590 = vst.msk [vmem:[#allocation2 + $0x18] sm:$0xff] %vm1586, %v1461
      %1591 = vst.msk [vmem:[#allocation2 + $0x20] sm:$0xff] %vm1586, %v1462
      %1592 = vst.msk [vmem:[#allocation2 + $0x28] sm:$0xff] %vm1586, %v1463
      %1593 = vst.msk [vmem:[#allocation2 + $0x30] sm:$0xff] %vm1586, %v1464
      %1594 = vst.msk [vmem:[#allocation2 + $0x38] sm:$0xff] %vm1586, %v1465
      %1595 = vst.msk [vmem:[#allocation2 + $0x40] sm:$0xff] %vm1586, %v1466
      %1596 = vst.msk [vmem:[#allocation2 + $0x48] sm:$0xff] %vm1586, %v1467
      %1597 = vst.msk [vmem:[#allocation2 + $0x50] sm:$0xff] %vm1586, %v1468
      %1598 = vst.msk [vmem:[#allocation2 + $0x58] sm:$0xff] %vm1586, %v1469
      %1599 = vst.msk [vmem:[#allocation2 + $0x60] sm:$0xff] %vm1586, %v1470
      %1600 = vst.msk [vmem:[#allocation2 + $0x68] sm:$0xff] %vm1586, %v1471
      %1601 = vst.msk [vmem:[#allocation2 + $0x70] sm:$0xff] %vm1586, %v1472
      %1602 = vst.msk [vmem:[#allocation2 + $0x78] sm:$0xff] %vm1586, %v1473
      %1603 = vst.msk [vmem:[#allocation2 + $0x80] sm:$0xff] %vm1586, %v1474
      %1604 = vst.msk [vmem:[#allocation2 + $0x88] sm:$0xff] %vm1586, %v1475
      %1605 = vst.msk [vmem:[#allocation2 + $0x90] sm:$0xff] %vm1586, %v1476
      %1606 = vst.msk [vmem:[#allocation2 + $0x98] sm:$0xff] %vm1586, %v1477
      %1607 = vst.msk [vmem:[#allocation2 + $0xa0] sm:$0xff] %vm1586, %v1478
      %1608 = vst.msk [vmem:[#allocation2 + $0xa8] sm:$0xff] %vm1586, %v1479
      %1609 = vst.msk [vmem:[#allocation2 + $0xb0] sm:$0xff] %vm1586, %v1480
      %1610 = vst.msk [vmem:[#allocation2 + $0xb8] sm:$0xff] %vm1586, %v1481
      %1611 = vst.msk [vmem:[#allocation2 + $0xc0] sm:$0xff] %vm1586, %v1482
      %1612 = vst.msk [vmem:[#allocation2 + $0xc8] sm:$0xff] %vm1586, %v1483
      %1613 = vst.msk [vmem:[#allocation2 + $0xd0] sm:$0xff] %vm1586, %v1484
      %1614 = vst.msk [vmem:[#allocation2 + $0xd8] sm:$0xff] %vm1586, %v1485
      %1615 = vst.msk [vmem:[#allocation2 + $0xe0] sm:$0xff] %vm1586, %v1486
      %1616 = vst.msk [vmem:[#allocation2 + $0xe8] sm:$0xff] %vm1586, %v1487
      %1617 = vst.msk [vmem:[#allocation2 + $0xf0] sm:$0xff] %vm1586, %v1488
      %1618 = vst.msk [vmem:[#allocation2 + $0xf8] sm:$0xff] %vm1586, %v1489
      %1619 = vst.msk [vmem:[#allocation2 + $0x100] sm:$0xff] %vm1586, %v1490
      %1620 = vst.msk [vmem:[#allocation2 + $0x108] sm:$0xff] %vm1586, %v1491
      %1621 = vst.msk [vmem:[#allocation2 + $0x110] sm:$0xff] %vm1586, %v1492
      %1622 = vst.msk [vmem:[#allocation2 + $0x118] sm:$0xff] %vm1586, %v1493
      %1623 = vst.msk [vmem:[#allocation2 + $0x120] sm:$0xff] %vm1586, %v1494
      %1624 = vst.msk [vmem:[#allocation2 + $0x128] sm:$0xff] %vm1586, %v1495
      %1625 = vst.msk [vmem:[#allocation2 + $0x130] sm:$0xff] %vm1586, %v1496
      %1626 = vst.msk [vmem:[#allocation2 + $0x138] sm:$0xff] %vm1586, %v1497
      %1627 = vst.msk [vmem:[#allocation2 + $0x140] sm:$0xff] %vm1586, %v1498
      %1628 = vst.msk [vmem:[#allocation2 + $0x148] sm:$0xff] %vm1586, %v1499
      %1629 = vst.msk [vmem:[#allocation2 + $0x150] sm:$0xff] %vm1586, %v1500
      %1630 = vst.msk [vmem:[#allocation2 + $0x158] sm:$0xff] %vm1586, %v1501
      %1631 = vst.msk [vmem:[#allocation2 + $0x160] sm:$0xff] %vm1586, %v1502
      %1632 = vst.msk [vmem:[#allocation2 + $0x168] sm:$0xff] %vm1586, %v1503
      %1633 = vst.msk [vmem:[#allocation2 + $0x170] sm:$0xff] %vm1586, %v1504
      %1634 = vst.msk [vmem:[#allocation2 + $0x178] sm:$0xff] %vm1586, %v1505
      %1635 = vst.msk [vmem:[#allocation2 + $0x180] sm:$0xff] %vm1586, %v1506
      %1636 = vst.msk [vmem:[#allocation2 + $0x188] sm:$0xff] %vm1586, %v1507
      %1637 = vst.msk [vmem:[#allocation2 + $0x190] sm:$0xff] %vm1586, %v1508
      %1638 = vst.msk [vmem:[#allocation2 + $0x198] sm:$0xff] %vm1586, %v1509
      %1639 = vst.msk [vmem:[#allocation2 + $0x1a0] sm:$0xff] %vm1586, %v1510
      %1640 = vst.msk [vmem:[#allocation2 + $0x1a8] sm:$0xff] %vm1586, %v1511
      %1641 = vst.msk [vmem:[#allocation2 + $0x1b0] sm:$0xff] %vm1586, %v1512
      %1642 = vst.msk [vmem:[#allocation2 + $0x1b8] sm:$0xff] %vm1586, %v1513
      %1643 = vst.msk [vmem:[#allocation2 + $0x1c0] sm:$0xff] %vm1586, %v1514
      %1644 = vst.msk [vmem:[#allocation2 + $0x1c8] sm:$0xff] %vm1586, %v1515
      %1645 = vst.msk [vmem:[#allocation2 + $0x1d0] sm:$0xff] %vm1586, %v1516
      %1646 = vst.msk [vmem:[#allocation2 + $0x1d8] sm:$0xff] %vm1586, %v1517
      %1647 = vst.msk [vmem:[#allocation2 + $0x1e0] sm:$0xff] %vm1586, %v1518
      %1648 = vst.msk [vmem:[#allocation2 + $0x1e8] sm:$0xff] %vm1586, %v1519
      %1649 = vst.msk [vmem:[#allocation2 + $0x1f0] sm:$0xff] %vm1586, %v1520
      %1650 = vst.msk [vmem:[#allocation2 + $0x1f8] sm:$0xff] %vm1586, %v1521
      %1651 = vst.msk [vmem:[#allocation2 + $0x200] sm:$0xff] %vm1586, %v1522
      %1652 = vst.msk [vmem:[#allocation2 + $0x208] sm:$0xff] %vm1586, %v1523
      %1653 = vst.msk [vmem:[#allocation2 + $0x210] sm:$0xff] %vm1586, %v1524
      %1654 = vst.msk [vmem:[#allocation2 + $0x218] sm:$0xff] %vm1586, %v1525
      %1655 = vst.msk [vmem:[#allocation2 + $0x220] sm:$0xff] %vm1586, %v1526
      %1656 = vst.msk [vmem:[#allocation2 + $0x228] sm:$0xff] %vm1586, %v1527
      %1657 = vst.msk [vmem:[#allocation2 + $0x230] sm:$0xff] %vm1586, %v1528
      %1658 = vst.msk [vmem:[#allocation2 + $0x238] sm:$0xff] %vm1586, %v1529
      %1659 = vst.msk [vmem:[#allocation2 + $0x240] sm:$0xff] %vm1586, %v1530
      %1660 = vst.msk [vmem:[#allocation2 + $0x248] sm:$0xff] %vm1586, %v1531
      %1661 = vst.msk [vmem:[#allocation2 + $0x250] sm:$0xff] %vm1586, %v1532
      %1662 = vst.msk [vmem:[#allocation2 + $0x258] sm:$0xff] %vm1586, %v1533
      %1663 = vst.msk [vmem:[#allocation2 + $0x260] sm:$0xff] %vm1586, %v1534
      %1664 = vst.msk [vmem:[#allocation2 + $0x268] sm:$0xff] %vm1586, %v1535
      %1665 = vst.msk [vmem:[#allocation2 + $0x270] sm:$0xff] %vm1586, %v1536
      %1666 = vst.msk [vmem:[#allocation2 + $0x278] sm:$0xff] %vm1586, %v1537
      %1667 = vst.msk [vmem:[#allocation2 + $0x280] sm:$0xff] %vm1586, %v1538
      %1668 = vst.msk [vmem:[#allocation2 + $0x288] sm:$0xff] %vm1586, %v1539
      %1669 = vst.msk [vmem:[#allocation2 + $0x290] sm:$0xff] %vm1586, %v1540
      %1670 = vst.msk [vmem:[#allocation2 + $0x298] sm:$0xff] %vm1586, %v1541
      %1671 = vst.msk [vmem:[#allocation2 + $0x2a0] sm:$0xff] %vm1586, %v1542
      %1672 = vst.msk [vmem:[#allocation2 + $0x2a8] sm:$0xff] %vm1586, %v1543
      %1673 = vst.msk [vmem:[#allocation2 + $0x2b0] sm:$0xff] %vm1586, %v1544
      %1674 = vst.msk [vmem:[#allocation2 + $0x2b8] sm:$0xff] %vm1586, %v1545
      %1675 = vst.msk [vmem:[#allocation2 + $0x2c0] sm:$0xff] %vm1586, %v1546
      %1676 = vst.msk [vmem:[#allocation2 + $0x2c8] sm:$0xff] %vm1586, %v1547
      %1677 = vst.msk [vmem:[#allocation2 + $0x2d0] sm:$0xff] %vm1586, %v1548
      %1678 = vst.msk [vmem:[#allocation2 + $0x2d8] sm:$0xff] %vm1586, %v1549
      %1679 = vst.msk [vmem:[#allocation2 + $0x2e0] sm:$0xff] %vm1586, %v1550
      %1680 = vst.msk [vmem:[#allocation2 + $0x2e8] sm:$0xff] %vm1586, %v1551
      %1681 = vst.msk [vmem:[#allocation2 + $0x2f0] sm:$0xff] %vm1586, %v1552
      %1682 = vst.msk [vmem:[#allocation2 + $0x2f8] sm:$0xff] %vm1586, %v1553
      %1683 = vst.msk [vmem:[#allocation2 + $0x300] sm:$0xff] %vm1586, %v1554
      %1684 = vst.msk [vmem:[#allocation2 + $0x308] sm:$0xff] %vm1586, %v1555
      %1685 = vst.msk [vmem:[#allocation2 + $0x310] sm:$0xff] %vm1586, %v1556
      %1686 = vst.msk [vmem:[#allocation2 + $0x318] sm:$0xff] %vm1586, %v1557
      %1687 = vst.msk [vmem:[#allocation2 + $0x320] sm:$0xff] %vm1586, %v1558
      %1688 = vst.msk [vmem:[#allocation2 + $0x328] sm:$0xff] %vm1586, %v1559
      %1689 = vst.msk [vmem:[#allocation2 + $0x330] sm:$0xff] %vm1586, %v1560
      %1690 = vst.msk [vmem:[#allocation2 + $0x338] sm:$0xff] %vm1586, %v1561
      %1691 = vst.msk [vmem:[#allocation2 + $0x340] sm:$0xff] %vm1586, %v1562
      %1692 = vst.msk [vmem:[#allocation2 + $0x348] sm:$0xff] %vm1586, %v1563
      %1693 = vst.msk [vmem:[#allocation2 + $0x350] sm:$0xff] %vm1586, %v1564
      %1694 = vst.msk [vmem:[#allocation2 + $0x358] sm:$0xff] %vm1586, %v1565
      %1695 = vst.msk [vmem:[#allocation2 + $0x360] sm:$0xff] %vm1586, %v1566
      %1696 = vst.msk [vmem:[#allocation2 + $0x368] sm:$0xff] %vm1586, %v1567
      %1697 = vst.msk [vmem:[#allocation2 + $0x370] sm:$0xff] %vm1586, %v1568
      %1698 = vst.msk [vmem:[#allocation2 + $0x378] sm:$0xff] %vm1586, %v1569
      %1699 = vst.msk [vmem:[#allocation2 + $0x380] sm:$0xff] %vm1586, %v1570
      %1700 = vst.msk [vmem:[#allocation2 + $0x388] sm:$0xff] %vm1586, %v1571
      %1701 = vst.msk [vmem:[#allocation2 + $0x390] sm:$0xff] %vm1586, %v1572
      %1702 = vst.msk [vmem:[#allocation2 + $0x398] sm:$0xff] %vm1586, %v1573
      %1703 = vst.msk [vmem:[#allocation2 + $0x3a0] sm:$0xff] %vm1586, %v1574
      %1704 = vst.msk [vmem:[#allocation2 + $0x3a8] sm:$0xff] %vm1586, %v1575
      %1705 = vst.msk [vmem:[#allocation2 + $0x3b0] sm:$0xff] %vm1586, %v1576
      %1706 = vst.msk [vmem:[#allocation2 + $0x3b8] sm:$0xff] %vm1586, %v1577
      %1707 = vst.msk [vmem:[#allocation2 + $0x3c0] sm:$0xff] %vm1586, %v1578
      %1708 = vst.msk [vmem:[#allocation2 + $0x3c8] sm:$0xff] %vm1586, %v1579
      %1709 = vst.msk [vmem:[#allocation2 + $0x3d0] sm:$0xff] %vm1586, %v1580
      %1710 = vst.msk [vmem:[#allocation2 + $0x3d8] sm:$0xff] %vm1586, %v1581
      %1711 = vst.msk [vmem:[#allocation2 + $0x3e0] sm:$0xff] %vm1586, %v1582
      %1712 = vst.msk [vmem:[#allocation2 + $0x3e8] sm:$0xff] %vm1586, %v1583
      %1713 = vst.msk [vmem:[#allocation2 + $0x3f0] sm:$0xff] %vm1586, %v1584
      %1714 = vst.msk [vmem:[#allocation2 + $0x3f8] sm:$0xff] %vm1586, %v1585
      %v1715 = vld [vmem:[#allocation2] sm:$0xff]
      %v1716 = vld [vmem:[#allocation2 + $0x8] sm:$0xff]
      %v1717 = vld [vmem:[#allocation2 + $0x10] sm:$0xff]
      %v1718 = vld [vmem:[#allocation2 + $0x18] sm:$0xff]
      %v1719 = vld [vmem:[#allocation2 + $0x40] sm:$0xff]
      %v1720 = vld [vmem:[#allocation2 + $0x48] sm:$0xff]
      %v1721 = vld [vmem:[#allocation2 + $0x50] sm:$0xff]
      %v1722 = vld [vmem:[#allocation2 + $0x58] sm:$0xff]
      %v1723 = vld [vmem:[#allocation2 + $0x80] sm:$0xff]
      %v1724 = vld [vmem:[#allocation2 + $0x88] sm:$0xff]
      %v1725 = vld [vmem:[#allocation2 + $0x90] sm:$0xff]
      %v1726 = vld [vmem:[#allocation2 + $0x98] sm:$0xff]
      %v1727 = vld [vmem:[#allocation2 + $0xc0] sm:$0xff]
      %v1728 = vld [vmem:[#allocation2 + $0xc8] sm:$0xff]
      %v1729 = vld [vmem:[#allocation2 + $0xd0] sm:$0xff]
      %v1730 = vld [vmem:[#allocation2 + $0xd8] sm:$0xff]
      %v1731 = vld [vmem:[#allocation2 + $0x100] sm:$0xff]
      %v1732 = vld [vmem:[#allocation2 + $0x108] sm:$0xff]
      %v1733 = vld [vmem:[#allocation2 + $0x110] sm:$0xff]
      %v1734 = vld [vmem:[#allocation2 + $0x118] sm:$0xff]
      %v1735 = vld [vmem:[#allocation2 + $0x140] sm:$0xff]
      %v1736 = vld [vmem:[#allocation2 + $0x148] sm:$0xff]
      %v1737 = vld [vmem:[#allocation2 + $0x150] sm:$0xff]
      %v1738 = vld [vmem:[#allocation2 + $0x158] sm:$0xff]
      %v1739 = vld [vmem:[#allocation2 + $0x180] sm:$0xff]
      %v1740 = vld [vmem:[#allocation2 + $0x188] sm:$0xff]
      %v1741 = vld [vmem:[#allocation2 + $0x190] sm:$0xff]
      %v1742 = vld [vmem:[#allocation2 + $0x198] sm:$0xff]
      %v1743 = vld [vmem:[#allocation2 + $0x1c0] sm:$0xff]
      %v1744 = vld [vmem:[#allocation2 + $0x1c8] sm:$0xff]
      %v1745 = vld [vmem:[#allocation2 + $0x1d0] sm:$0xff]
      %v1746 = vld [vmem:[#allocation2 + $0x1d8] sm:$0xff]
      %v1747 = vld [vmem:[#allocation2 + $0x200] sm:$0xff]
      %v1748 = vld [vmem:[#allocation2 + $0x208] sm:$0xff]
      %v1749 = vld [vmem:[#allocation2 + $0x210] sm:$0xff]
      %v1750 = vld [vmem:[#allocation2 + $0x218] sm:$0xff]
      %v1751 = vld [vmem:[#allocation2 + $0x240] sm:$0xff]
      %v1752 = vld [vmem:[#allocation2 + $0x248] sm:$0xff]
      %v1753 = vld [vmem:[#allocation2 + $0x250] sm:$0xff]
      %v1754 = vld [vmem:[#allocation2 + $0x258] sm:$0xff]
      %v1755 = vld [vmem:[#allocation2 + $0x280] sm:$0xff]
      %v1756 = vld [vmem:[#allocation2 + $0x288] sm:$0xff]
      %v1757 = vld [vmem:[#allocation2 + $0x290] sm:$0xff]
      %v1758 = vld [vmem:[#allocation2 + $0x298] sm:$0xff]
      %v1759 = vld [vmem:[#allocation2 + $0x2c0] sm:$0xff]
      %v1760 = vld [vmem:[#allocation2 + $0x2c8] sm:$0xff]
      %v1761 = vld [vmem:[#allocation2 + $0x2d0] sm:$0xff]
      %v1762 = vld [vmem:[#allocation2 + $0x2d8] sm:$0xff]
      %v1763 = vld [vmem:[#allocation2 + $0x300] sm:$0xff]
      %v1764 = vld [vmem:[#allocation2 + $0x308] sm:$0xff]
      %v1765 = vld [vmem:[#allocation2 + $0x310] sm:$0xff]
      %v1766 = vld [vmem:[#allocation2 + $0x318] sm:$0xff]
      %v1767 = vld [vmem:[#allocation2 + $0x340] sm:$0xff]
      %v1768 = vld [vmem:[#allocation2 + $0x348] sm:$0xff]
      %v1769 = vld [vmem:[#allocation2 + $0x350] sm:$0xff]
      %v1770 = vld [vmem:[#allocation2 + $0x358] sm:$0xff]
      %v1771 = vld [vmem:[#allocation2 + $0x380] sm:$0xff]
      %v1772 = vld [vmem:[#allocation2 + $0x388] sm:$0xff]
      %v1773 = vld [vmem:[#allocation2 + $0x390] sm:$0xff]
      %v1774 = vld [vmem:[#allocation2 + $0x398] sm:$0xff]
      %v1775 = vld [vmem:[#allocation2 + $0x3c0] sm:$0xff]
      %v1776 = vld [vmem:[#allocation2 + $0x3c8] sm:$0xff]
      %v1777 = vld [vmem:[#allocation2 + $0x3d0] sm:$0xff]
      %v1778 = vld [vmem:[#allocation2 + $0x3d8] sm:$0xff]
      %s1779 = scalar_lea.vmem [#allocation2], 32
      %v1780 = vld [vmem:[%s1779] sm:$0xff]
      %v1781 = vld [vmem:[%s1779 + $0x8] sm:$0xff]
      %v1782 = vld [vmem:[%s1779 + $0x10] sm:$0xff]
      %v1783 = vld [vmem:[%s1779 + $0x18] sm:$0xff]
      %v1784 = vld [vmem:[%s1779 + $0x40] sm:$0xff]
      %v1785 = vld [vmem:[%s1779 + $0x48] sm:$0xff]
      %v1786 = vld [vmem:[%s1779 + $0x50] sm:$0xff]
      %v1787 = vld [vmem:[%s1779 + $0x58] sm:$0xff]
      %v1788 = vld [vmem:[%s1779 + $0x80] sm:$0xff]
      %v1789 = vld [vmem:[%s1779 + $0x88] sm:$0xff]
      %v1790 = vld [vmem:[%s1779 + $0x90] sm:$0xff]
      %v1791 = vld [vmem:[%s1779 + $0x98] sm:$0xff]
      %v1792 = vld [vmem:[%s1779 + $0xc0] sm:$0xff]
      %v1793 = vld [vmem:[%s1779 + $0xc8] sm:$0xff]
      %v1794 = vld [vmem:[%s1779 + $0xd0] sm:$0xff]
      %v1795 = vld [vmem:[%s1779 + $0xd8] sm:$0xff]
      %v1796 = vld [vmem:[%s1779 + $0x100] sm:$0xff]
      %v1797 = vld [vmem:[%s1779 + $0x108] sm:$0xff]
      %v1798 = vld [vmem:[%s1779 + $0x110] sm:$0xff]
      %v1799 = vld [vmem:[%s1779 + $0x118] sm:$0xff]
      %v1800 = vld [vmem:[%s1779 + $0x140] sm:$0xff]
      %v1801 = vld [vmem:[%s1779 + $0x148] sm:$0xff]
      %v1802 = vld [vmem:[%s1779 + $0x150] sm:$0xff]
      %v1803 = vld [vmem:[%s1779 + $0x158] sm:$0xff]
      %v1804 = vld [vmem:[%s1779 + $0x180] sm:$0xff]
      %v1805 = vld [vmem:[%s1779 + $0x188] sm:$0xff]
      %v1806 = vld [vmem:[%s1779 + $0x190] sm:$0xff]
      %v1807 = vld [vmem:[%s1779 + $0x198] sm:$0xff]
      %v1808 = vld [vmem:[%s1779 + $0x1c0] sm:$0xff]
      %v1809 = vld [vmem:[%s1779 + $0x1c8] sm:$0xff]
      %v1810 = vld [vmem:[%s1779 + $0x1d0] sm:$0xff]
      %v1811 = vld [vmem:[%s1779 + $0x1d8] sm:$0xff]
      %v1812 = vld [vmem:[%s1779 + $0x200] sm:$0xff]
      %v1813 = vld [vmem:[%s1779 + $0x208] sm:$0xff]
      %v1814 = vld [vmem:[%s1779 + $0x210] sm:$0xff]
      %v1815 = vld [vmem:[%s1779 + $0x218] sm:$0xff]
      %v1816 = vld [vmem:[%s1779 + $0x240] sm:$0xff]
      %v1817 = vld [vmem:[%s1779 + $0x248] sm:$0xff]
      %v1818 = vld [vmem:[%s1779 + $0x250] sm:$0xff]
      %v1819 = vld [vmem:[%s1779 + $0x258] sm:$0xff]
      %v1820 = vld [vmem:[%s1779 + $0x280] sm:$0xff]
      %v1821 = vld [vmem:[%s1779 + $0x288] sm:$0xff]
      %v1822 = vld [vmem:[%s1779 + $0x290] sm:$0xff]
      %v1823 = vld [vmem:[%s1779 + $0x298] sm:$0xff]
      %v1824 = vld [vmem:[%s1779 + $0x2c0] sm:$0xff]
      %v1825 = vld [vmem:[%s1779 + $0x2c8] sm:$0xff]
      %v1826 = vld [vmem:[%s1779 + $0x2d0] sm:$0xff]
      %v1827 = vld [vmem:[%s1779 + $0x2d8] sm:$0xff]
      %v1828 = vld [vmem:[%s1779 + $0x300] sm:$0xff]
      %v1829 = vld [vmem:[%s1779 + $0x308] sm:$0xff]
      %v1830 = vld [vmem:[%s1779 + $0x310] sm:$0xff]
      %v1831 = vld [vmem:[%s1779 + $0x318] sm:$0xff]
      %v1832 = vld [vmem:[%s1779 + $0x340] sm:$0xff]
      %v1833 = vld [vmem:[%s1779 + $0x348] sm:$0xff]
      %v1834 = vld [vmem:[%s1779 + $0x350] sm:$0xff]
      %v1835 = vld [vmem:[%s1779 + $0x358] sm:$0xff]
      %v1836 = vld [vmem:[%s1779 + $0x380] sm:$0xff]
      %v1837 = vld [vmem:[%s1779 + $0x388] sm:$0xff]
      %v1838 = vld [vmem:[%s1779 + $0x390] sm:$0xff]
      %v1839 = vld [vmem:[%s1779 + $0x398] sm:$0xff]
      %v1840 = vld [vmem:[%s1779 + $0x3c0] sm:$0xff]
      %v1841 = vld [vmem:[%s1779 + $0x3c8] sm:$0xff]
      %v1842 = vld [vmem:[%s1779 + $0x3d0] sm:$0xff]
      %v1843 = vld [vmem:[%s1779 + $0x3d8] sm:$0xff]
      %v1844 = vmax.f32 %v1715, %v1780
      %v1845 = vmax.f32 %v1716, %v1781
      %v1846 = vmax.f32 %v1717, %v1782
      %v1847 = vmax.f32 %v1718, %v1783
      %v1848 = vmax.f32 %v1719, %v1784
      %v1849 = vmax.f32 %v1720, %v1785
      %v1850 = vmax.f32 %v1721, %v1786
      %v1851 = vmax.f32 %v1722, %v1787
      %v1852 = vmax.f32 %v1723, %v1788
      %v1853 = vmax.f32 %v1724, %v1789
      %v1854 = vmax.f32 %v1725, %v1790
      %v1855 = vmax.f32 %v1726, %v1791
      %v1856 = vmax.f32 %v1727, %v1792
      %v1857 = vmax.f32 %v1728, %v1793
      %v1858 = vmax.f32 %v1729, %v1794
      %v1859 = vmax.f32 %v1730, %v1795
      %v1860 = vmax.f32 %v1731, %v1796
      %v1861 = vmax.f32 %v1732, %v1797
      %v1862 = vmax.f32 %v1733, %v1798
      %v1863 = vmax.f32 %v1734, %v1799
      %v1864 = vmax.f32 %v1735, %v1800
      %v1865 = vmax.f32 %v1736, %v1801
      %v1866 = vmax.f32 %v1737, %v1802
      %v1867 = vmax.f32 %v1738, %v1803
      %v1868 = vmax.f32 %v1739, %v1804
      %v1869 = vmax.f32 %v1740, %v1805
      %v1870 = vmax.f32 %v1741, %v1806
      %v1871 = vmax.f32 %v1742, %v1807
      %v1872 = vmax.f32 %v1743, %v1808
      %v1873 = vmax.f32 %v1744, %v1809
      %v1874 = vmax.f32 %v1745, %v1810
      %v1875 = vmax.f32 %v1746, %v1811
      %v1876 = vmax.f32 %v1747, %v1812
      %v1877 = vmax.f32 %v1748, %v1813
      %v1878 = vmax.f32 %v1749, %v1814
      %v1879 = vmax.f32 %v1750, %v1815
      %v1880 = vmax.f32 %v1751, %v1816
      %v1881 = vmax.f32 %v1752, %v1817
      %v1882 = vmax.f32 %v1753, %v1818
      %v1883 = vmax.f32 %v1754, %v1819
      %v1884 = vmax.f32 %v1755, %v1820
      %v1885 = vmax.f32 %v1756, %v1821
      %v1886 = vmax.f32 %v1757, %v1822
      %v1887 = vmax.f32 %v1758, %v1823
      %v1888 = vmax.f32 %v1759, %v1824
      %v1889 = vmax.f32 %v1760, %v1825
      %v1890 = vmax.f32 %v1761, %v1826
      %v1891 = vmax.f32 %v1762, %v1827
      %v1892 = vmax.f32 %v1763, %v1828
      %v1893 = vmax.f32 %v1764, %v1829
      %v1894 = vmax.f32 %v1765, %v1830
      %v1895 = vmax.f32 %v1766, %v1831
      %v1896 = vmax.f32 %v1767, %v1832
      %v1897 = vmax.f32 %v1768, %v1833
      %v1898 = vmax.f32 %v1769, %v1834
      %v1899 = vmax.f32 %v1770, %v1835
      %v1900 = vmax.f32 %v1771, %v1836
      %v1901 = vmax.f32 %v1772, %v1837
      %v1902 = vmax.f32 %v1773, %v1838
      %v1903 = vmax.f32 %v1774, %v1839
      %v1904 = vmax.f32 %v1775, %v1840
      %v1905 = vmax.f32 %v1776, %v1841
      %v1906 = vmax.f32 %v1777, %v1842
      %v1907 = vmax.f32 %v1778, %v1843
      %1908 = vst.msk [vmem:[#allocation2] sm:$0xff] %vm1586, %v1844
      %1909 = vst.msk [vmem:[#allocation2 + $0x8] sm:$0xff] %vm1586, %v1845
      %1910 = vst.msk [vmem:[#allocation2 + $0x10] sm:$0xff] %vm1586, %v1846
      %1911 = vst.msk [vmem:[#allocation2 + $0x18] sm:$0xff] %vm1586, %v1847
      %1912 = vst.msk [vmem:[#allocation2 + $0x20] sm:$0xff] %vm1586, %v1848
      %1913 = vst.msk [vmem:[#allocation2 + $0x28] sm:$0xff] %vm1586, %v1849
      %1914 = vst.msk [vmem:[#allocation2 + $0x30] sm:$0xff] %vm1586, %v1850
      %1915 = vst.msk [vmem:[#allocation2 + $0x38] sm:$0xff] %vm1586, %v1851
      %1916 = vst.msk [vmem:[#allocation2 + $0x40] sm:$0xff] %vm1586, %v1852
      %1917 = vst.msk [vmem:[#allocation2 + $0x48] sm:$0xff] %vm1586, %v1853
      %1918 = vst.msk [vmem:[#allocation2 + $0x50] sm:$0xff] %vm1586, %v1854
      %1919 = vst.msk [vmem:[#allocation2 + $0x58] sm:$0xff] %vm1586, %v1855
      %1920 = vst.msk [vmem:[#allocation2 + $0x60] sm:$0xff] %vm1586, %v1856
      %1921 = vst.msk [vmem:[#allocation2 + $0x68] sm:$0xff] %vm1586, %v1857
      %1922 = vst.msk [vmem:[#allocation2 + $0x70] sm:$0xff] %vm1586, %v1858
      %1923 = vst.msk [vmem:[#allocation2 + $0x78] sm:$0xff] %vm1586, %v1859
      %1924 = vst.msk [vmem:[#allocation2 + $0x80] sm:$0xff] %vm1586, %v1860
      %1925 = vst.msk [vmem:[#allocation2 + $0x88] sm:$0xff] %vm1586, %v1861
      %1926 = vst.msk [vmem:[#allocation2 + $0x90] sm:$0xff] %vm1586, %v1862
      %1927 = vst.msk [vmem:[#allocation2 + $0x98] sm:$0xff] %vm1586, %v1863
      %1928 = vst.msk [vmem:[#allocation2 + $0xa0] sm:$0xff] %vm1586, %v1864
      %1929 = vst.msk [vmem:[#allocation2 + $0xa8] sm:$0xff] %vm1586, %v1865
      %1930 = vst.msk [vmem:[#allocation2 + $0xb0] sm:$0xff] %vm1586, %v1866
      %1931 = vst.msk [vmem:[#allocation2 + $0xb8] sm:$0xff] %vm1586, %v1867
      %1932 = vst.msk [vmem:[#allocation2 + $0xc0] sm:$0xff] %vm1586, %v1868
      %1933 = vst.msk [vmem:[#allocation2 + $0xc8] sm:$0xff] %vm1586, %v1869
      %1934 = vst.msk [vmem:[#allocation2 + $0xd0] sm:$0xff] %vm1586, %v1870
      %1935 = vst.msk [vmem:[#allocation2 + $0xd8] sm:$0xff] %vm1586, %v1871
      %1936 = vst.msk [vmem:[#allocation2 + $0xe0] sm:$0xff] %vm1586, %v1872
      %1937 = vst.msk [vmem:[#allocation2 + $0xe8] sm:$0xff] %vm1586, %v1873
      %1938 = vst.msk [vmem:[#allocation2 + $0xf0] sm:$0xff] %vm1586, %v1874
      %1939 = vst.msk [vmem:[#allocation2 + $0xf8] sm:$0xff] %vm1586, %v1875
      %1940 = vst.msk [vmem:[#allocation2 + $0x100] sm:$0xff] %vm1586, %v1876
      %1941 = vst.msk [vmem:[#allocation2 + $0x108] sm:$0xff] %vm1586, %v1877
      %1942 = vst.msk [vmem:[#allocation2 + $0x110] sm:$0xff] %vm1586, %v1878
      %1943 = vst.msk [vmem:[#allocation2 + $0x118] sm:$0xff] %vm1586, %v1879
      %1944 = vst.msk [vmem:[#allocation2 + $0x120] sm:$0xff] %vm1586, %v1880
      %1945 = vst.msk [vmem:[#allocation2 + $0x128] sm:$0xff] %vm1586, %v1881
      %1946 = vst.msk [vmem:[#allocation2 + $0x130] sm:$0xff] %vm1586, %v1882
      %1947 = vst.msk [vmem:[#allocation2 + $0x138] sm:$0xff] %vm1586, %v1883
      %1948 = vst.msk [vmem:[#allocation2 + $0x140] sm:$0xff] %vm1586, %v1884
      %1949 = vst.msk [vmem:[#allocation2 + $0x148] sm:$0xff] %vm1586, %v1885
      %1950 = vst.msk [vmem:[#allocation2 + $0x150] sm:$0xff] %vm1586, %v1886
      %1951 = vst.msk [vmem:[#allocation2 + $0x158] sm:$0xff] %vm1586, %v1887
      %1952 = vst.msk [vmem:[#allocation2 + $0x160] sm:$0xff] %vm1586, %v1888
      %1953 = vst.msk [vmem:[#allocation2 + $0x168] sm:$0xff] %vm1586, %v1889
      %1954 = vst.msk [vmem:[#allocation2 + $0x170] sm:$0xff] %vm1586, %v1890
      %1955 = vst.msk [vmem:[#allocation2 + $0x178] sm:$0xff] %vm1586, %v1891
      %1956 = vst.msk [vmem:[#allocation2 + $0x180] sm:$0xff] %vm1586, %v1892
      %1957 = vst.msk [vmem:[#allocation2 + $0x188] sm:$0xff] %vm1586, %v1893
      %1958 = vst.msk [vmem:[#allocation2 + $0x190] sm:$0xff] %vm1586, %v1894
      %1959 = vst.msk [vmem:[#allocation2 + $0x198] sm:$0xff] %vm1586, %v1895
      %1960 = vst.msk [vmem:[#allocation2 + $0x1a0] sm:$0xff] %vm1586, %v1896
      %1961 = vst.msk [vmem:[#allocation2 + $0x1a8] sm:$0xff] %vm1586, %v1897
      %1962 = vst.msk [vmem:[#allocation2 + $0x1b0] sm:$0xff] %vm1586, %v1898
      %1963 = vst.msk [vmem:[#allocation2 + $0x1b8] sm:$0xff] %vm1586, %v1899
      %1964 = vst.msk [vmem:[#allocation2 + $0x1c0] sm:$0xff] %vm1586, %v1900
      %1965 = vst.msk [vmem:[#allocation2 + $0x1c8] sm:$0xff] %vm1586, %v1901
      %1966 = vst.msk [vmem:[#allocation2 + $0x1d0] sm:$0xff] %vm1586, %v1902
      %1967 = vst.msk [vmem:[#allocation2 + $0x1d8] sm:$0xff] %vm1586, %v1903
      %1968 = vst.msk [vmem:[#allocation2 + $0x1e0] sm:$0xff] %vm1586, %v1904
      %1969 = vst.msk [vmem:[#allocation2 + $0x1e8] sm:$0xff] %vm1586, %v1905
      %1970 = vst.msk [vmem:[#allocation2 + $0x1f0] sm:$0xff] %vm1586, %v1906
      %1971 = vst.msk [vmem:[#allocation2 + $0x1f8] sm:$0xff] %vm1586, %v1907
      %v1972 = vld [vmem:[#allocation2] ss:$2 sm:$0xff]
      %s1973 = scalar_lea.vmem [#allocation2], 16
      %v1974 = vld [vmem:[%s1973] ss:$2 sm:$0xff]
      %s1975 = scalar_lea.vmem [#allocation2], 32
      %v1976 = vld [vmem:[%s1975] ss:$2 sm:$0xff]
      %s1977 = scalar_lea.vmem [#allocation2], 48
      %v1978 = vld [vmem:[%s1977] ss:$2 sm:$0xff]
      %s1979 = scalar_lea.vmem [#allocation2], 64
      %v1980 = vld [vmem:[%s1979] ss:$2 sm:$0xff]
      %s1981 = scalar_lea.vmem [#allocation2], 80
      %v1982 = vld [vmem:[%s1981] ss:$2 sm:$0xff]
      %s1983 = scalar_lea.vmem [#allocation2], 96
      %v1984 = vld [vmem:[%s1983] ss:$2 sm:$0xff]
      %s1985 = scalar_lea.vmem [#allocation2], 112
      %v1986 = vld [vmem:[%s1985] ss:$2 sm:$0xff]
      %s1987 = scalar_lea.vmem [#allocation2], 128
      %v1988 = vld [vmem:[%s1987] ss:$2 sm:$0xff]
      %s1989 = scalar_lea.vmem [#allocation2], 144
      %v1990 = vld [vmem:[%s1989] ss:$2 sm:$0xff]
      %s1991 = scalar_lea.vmem [#allocation2], 160
      %v1992 = vld [vmem:[%s1991] ss:$2 sm:$0xff]
      %s1993 = scalar_lea.vmem [#allocation2], 176
      %v1994 = vld [vmem:[%s1993] ss:$2 sm:$0xff]
      %s1995 = scalar_lea.vmem [#allocation2], 192
      %v1996 = vld [vmem:[%s1995] ss:$2 sm:$0xff]
      %s1997 = scalar_lea.vmem [#allocation2], 208
      %v1998 = vld [vmem:[%s1997] ss:$2 sm:$0xff]
      %s1999 = scalar_lea.vmem [#allocation2], 224
      %v2000 = vld [vmem:[%s1999] ss:$2 sm:$0xff]
      %s2001 = scalar_lea.vmem [#allocation2], 240
      %v2002 = vld [vmem:[%s2001] ss:$2 sm:$0xff]
      %s2003 = scalar_lea.vmem [#allocation2], 256
      %v2004 = vld [vmem:[%s2003] ss:$2 sm:$0xff]
      %s2005 = scalar_lea.vmem [#allocation2], 272
      %v2006 = vld [vmem:[%s2005] ss:$2 sm:$0xff]
      %s2007 = scalar_lea.vmem [#allocation2], 288
      %v2008 = vld [vmem:[%s2007] ss:$2 sm:$0xff]
      %s2009 = scalar_lea.vmem [#allocation2], 304
      %v2010 = vld [vmem:[%s2009] ss:$2 sm:$0xff]
      %s2011 = scalar_lea.vmem [#allocation2], 320
      %v2012 = vld [vmem:[%s2011] ss:$2 sm:$0xff]
      %s2013 = scalar_lea.vmem [#allocation2], 336
      %v2014 = vld [vmem:[%s2013] ss:$2 sm:$0xff]
      %s2015 = scalar_lea.vmem [#allocation2], 352
      %v2016 = vld [vmem:[%s2015] ss:$2 sm:$0xff]
      %s2017 = scalar_lea.vmem [#allocation2], 368
      %v2018 = vld [vmem:[%s2017] ss:$2 sm:$0xff]
      %s2019 = scalar_lea.vmem [#allocation2], 384
      %v2020 = vld [vmem:[%s2019] ss:$2 sm:$0xff]
      %s2021 = scalar_lea.vmem [#allocation2], 400
      %v2022 = vld [vmem:[%s2021] ss:$2 sm:$0xff]
      %s2023 = scalar_lea.vmem [#allocation2], 416
      %v2024 = vld [vmem:[%s2023] ss:$2 sm:$0xff]
      %s2025 = scalar_lea.vmem [#allocation2], 432
      %v2026 = vld [vmem:[%s2025] ss:$2 sm:$0xff]
      %s2027 = scalar_lea.vmem [#allocation2], 448
      %v2028 = vld [vmem:[%s2027] ss:$2 sm:$0xff]
      %s2029 = scalar_lea.vmem [#allocation2], 464
      %v2030 = vld [vmem:[%s2029] ss:$2 sm:$0xff]
      %s2031 = scalar_lea.vmem [#allocation2], 480
      %v2032 = vld [vmem:[%s2031] ss:$2 sm:$0xff]
      %s2033 = scalar_lea.vmem [#allocation2], 496
      %v2034 = vld [vmem:[%s2033] ss:$2 sm:$0xff]
      %s2035 = scalar_lea.vmem [#allocation2], 1
      %v2036 = vld [vmem:[%s2035] ss:$2 sm:$0xff]
      %s2037 = scalar_lea.vmem [#allocation2], 17
      %v2038 = vld [vmem:[%s2037] ss:$2 sm:$0xff]
      %s2039 = scalar_lea.vmem [#allocation2], 33
      %v2040 = vld [vmem:[%s2039] ss:$2 sm:$0xff]
      %s2041 = scalar_lea.vmem [#allocation2], 49
      %v2042 = vld [vmem:[%s2041] ss:$2 sm:$0xff]
      %s2043 = scalar_lea.vmem [#allocation2], 65
      %v2044 = vld [vmem:[%s2043] ss:$2 sm:$0xff]
      %s2045 = scalar_lea.vmem [#allocation2], 81
      %v2046 = vld [vmem:[%s2045] ss:$2 sm:$0xff]
      %s2047 = scalar_lea.vmem [#allocation2], 97
      %v2048 = vld [vmem:[%s2047] ss:$2 sm:$0xff]
      %s2049 = scalar_lea.vmem [#allocation2], 113
      %v2050 = vld [vmem:[%s2049] ss:$2 sm:$0xff]
      %s2051 = scalar_lea.vmem [#allocation2], 129
      %v2052 = vld [vmem:[%s2051] ss:$2 sm:$0xff]
      %s2053 = scalar_lea.vmem [#allocation2], 145
      %v2054 = vld [vmem:[%s2053] ss:$2 sm:$0xff]
      %s2055 = scalar_lea.vmem [#allocation2], 161
      %v2056 = vld [vmem:[%s2055] ss:$2 sm:$0xff]
      %s2057 = scalar_lea.vmem [#allocation2], 177
      %v2058 = vld [vmem:[%s2057] ss:$2 sm:$0xff]
      %s2059 = scalar_lea.vmem [#allocation2], 193
      %v2060 = vld [vmem:[%s2059] ss:$2 sm:$0xff]
      %s2061 = scalar_lea.vmem [#allocation2], 209
      %v2062 = vld [vmem:[%s2061] ss:$2 sm:$0xff]
      %s2063 = scalar_lea.vmem [#allocation2], 225
      %v2064 = vld [vmem:[%s2063] ss:$2 sm:$0xff]
      %s2065 = scalar_lea.vmem [#allocation2], 241
      %v2066 = vld [vmem:[%s2065] ss:$2 sm:$0xff]
      %s2067 = scalar_lea.vmem [#allocation2], 257
      %v2068 = vld [vmem:[%s2067] ss:$2 sm:$0xff]
      %s2069 = scalar_lea.vmem [#allocation2], 273
      %v2070 = vld [vmem:[%s2069] ss:$2 sm:$0xff]
      %s2071 = scalar_lea.vmem [#allocation2], 289
      %v2072 = vld [vmem:[%s2071] ss:$2 sm:$0xff]
      %s2073 = scalar_lea.vmem [#allocation2], 305
      %v2074 = vld [vmem:[%s2073] ss:$2 sm:$0xff]
      %s2075 = scalar_lea.vmem [#allocation2], 321
      %v2076 = vld [vmem:[%s2075] ss:$2 sm:$0xff]
      %s2077 = scalar_lea.vmem [#allocation2], 337
      %v2078 = vld [vmem:[%s2077] ss:$2 sm:$0xff]
      %s2079 = scalar_lea.vmem [#allocation2], 353
      %v2080 = vld [vmem:[%s2079] ss:$2 sm:$0xff]
      %s2081 = scalar_lea.vmem [#allocation2], 369
      %v2082 = vld [vmem:[%s2081] ss:$2 sm:$0xff]
      %s2083 = scalar_lea.vmem [#allocation2], 385
      %v2084 = vld [vmem:[%s2083] ss:$2 sm:$0xff]
      %s2085 = scalar_lea.vmem [#allocation2], 401
      %v2086 = vld [vmem:[%s2085] ss:$2 sm:$0xff]
      %s2087 = scalar_lea.vmem [#allocation2], 417
      %v2088 = vld [vmem:[%s2087] ss:$2 sm:$0xff]
      %s2089 = scalar_lea.vmem [#allocation2], 433
      %v2090 = vld [vmem:[%s2089] ss:$2 sm:$0xff]
      %s2091 = scalar_lea.vmem [#allocation2], 449
      %v2092 = vld [vmem:[%s2091] ss:$2 sm:$0xff]
      %s2093 = scalar_lea.vmem [#allocation2], 465
      %v2094 = vld [vmem:[%s2093] ss:$2 sm:$0xff]
      %s2095 = scalar_lea.vmem [#allocation2], 481
      %v2096 = vld [vmem:[%s2095] ss:$2 sm:$0xff]
      %s2097 = scalar_lea.vmem [#allocation2], 497
      %v2098 = vld [vmem:[%s2097] ss:$2 sm:$0xff]
      %v2099 = vmax.f32 %v1972, %v2036
      %v2100 = vmax.f32 %v1974, %v2038
      %v2101 = vmax.f32 %v1976, %v2040
      %v2102 = vmax.f32 %v1978, %v2042
      %v2103 = vmax.f32 %v1980, %v2044
      %v2104 = vmax.f32 %v1982, %v2046
      %v2105 = vmax.f32 %v1984, %v2048
      %v2106 = vmax.f32 %v1986, %v2050
      %v2107 = vmax.f32 %v1988, %v2052
      %v2108 = vmax.f32 %v1990, %v2054
      %v2109 = vmax.f32 %v1992, %v2056
      %v2110 = vmax.f32 %v1994, %v2058
      %v2111 = vmax.f32 %v1996, %v2060
      %v2112 = vmax.f32 %v1998, %v2062
      %v2113 = vmax.f32 %v2000, %v2064
      %v2114 = vmax.f32 %v2002, %v2066
      %v2115 = vmax.f32 %v2004, %v2068
      %v2116 = vmax.f32 %v2006, %v2070
      %v2117 = vmax.f32 %v2008, %v2072
      %v2118 = vmax.f32 %v2010, %v2074
      %v2119 = vmax.f32 %v2012, %v2076
      %v2120 = vmax.f32 %v2014, %v2078
      %v2121 = vmax.f32 %v2016, %v2080
      %v2122 = vmax.f32 %v2018, %v2082
      %v2123 = vmax.f32 %v2020, %v2084
      %v2124 = vmax.f32 %v2022, %v2086
      %v2125 = vmax.f32 %v2024, %v2088
      %v2126 = vmax.f32 %v2026, %v2090
      %v2127 = vmax.f32 %v2028, %v2092
      %v2128 = vmax.f32 %v2030, %v2094
      %v2129 = vmax.f32 %v2032, %v2096
      %v2130 = vmax.f32 %v2034, %v2098
      %2131 = vst.msk [vmem:[#allocation3] sm:$0xff] %vm1586, 0.0
      %2132 = vst.msk [vmem:[#allocation3 + $0x8] sm:$0xff] %vm1586, 0.0
      %vm2133 = vcmask 254976
      %2134 = vst.msk [vmem:[#allocation3 + $0x10] sm:$0x3] %vm2133, 0.0
      %2135 = vst.msk [vmem:[#allocation3 + $0x18] sm:$0xff] %vm1586, 0.0
      %2136 = vst.msk [vmem:[#allocation3 + $0x20] sm:$0xff] %vm1586, 0.0
      %2137 = vst.msk [vmem:[#allocation3 + $0x28] sm:$0x3] %vm2133, 0.0
      %2138 = vst.msk [vmem:[#allocation3 + $0x30] sm:$0xff] %vm1586, 0.0
      %2139 = vst.msk [vmem:[#allocation3 + $0x38] sm:$0xff] %vm1586, 0.0
      %2140 = vst.msk [vmem:[#allocation3 + $0x40] sm:$0x3] %vm2133, 0.0
      %2141 = vst.msk [vmem:[#allocation3 + $0x48] sm:$0xff] %vm1586, 0.0
      %2142 = vst.msk [vmem:[#allocation3 + $0x50] sm:$0xff] %vm1586, 0.0
      %2143 = vst.msk [vmem:[#allocation3 + $0x58] sm:$0x3] %vm2133, 0.0
      %2144 = vst.msk [vmem:[#allocation3 + $0x60] sm:$0xff] %vm1586, 0.0
      %2145 = vst.msk [vmem:[#allocation3 + $0x68] sm:$0xff] %vm1586, 0.0
      %2146 = vst.msk [vmem:[#allocation3 + $0x70] sm:$0x3] %vm2133, 0.0
      %2147 = vst.msk [vmem:[#allocation3 + $0x78] sm:$0xff] %vm1586, 0.0
      %2148 = vst.msk [vmem:[#allocation3 + $0x80] sm:$0xff] %vm1586, 0.0
      %2149 = vst.msk [vmem:[#allocation3 + $0x88] sm:$0x3] %vm2133, 0.0
      %2150 = vst.msk [vmem:[#allocation3 + $0x90] sm:$0xff] %vm1586, 0.0
      %2151 = vst.msk [vmem:[#allocation3 + $0x98] sm:$0xff] %vm1586, 0.0
      %2152 = vst.msk [vmem:[#allocation3 + $0xa0] sm:$0x3] %vm2133, 0.0
      %2153 = vst.msk [vmem:[#allocation3 + $0xa8] sm:$0xff] %vm1586, 0.0
      %2154 = vst.msk [vmem:[#allocation3 + $0xb0] sm:$0xff] %vm1586, 0.0
      %2155 = vst.msk [vmem:[#allocation3 + $0xb8] sm:$0x3] %vm2133, 0.0
      %2156 = vst.msk [vmem:[#allocation3 + $0xc0] sm:$0xff] %vm1586, 0.0
      %2157 = vst.msk [vmem:[#allocation3 + $0xc8] sm:$0xff] %vm1586, 0.0
      %2158 = vst.msk [vmem:[#allocation3 + $0xd0] sm:$0x3] %vm2133, 0.0
      %2159 = vst.msk [vmem:[#allocation3 + $0xd8] sm:$0xff] %vm1586, 0.0
      %2160 = vst.msk [vmem:[#allocation3 + $0xe0] sm:$0xff] %vm1586, 0.0
      %2161 = vst.msk [vmem:[#allocation3 + $0xe8] sm:$0x3] %vm2133, 0.0
      %2162 = vst.msk [vmem:[#allocation3 + $0xf0] sm:$0xff] %vm1586, 0.0
      %2163 = vst.msk [vmem:[#allocation3 + $0xf8] sm:$0xff] %vm1586, 0.0
      %2164 = vst.msk [vmem:[#allocation3 + $0x100] sm:$0x3] %vm2133, 0.0
      %2165 = vst.msk [vmem:[#allocation3 + $0x108] sm:$0xff] %vm1586, 0.0
      %2166 = vst.msk [vmem:[#allocation3 + $0x110] sm:$0xff] %vm1586, 0.0
      %2167 = vst.msk [vmem:[#allocation3 + $0x118] sm:$0x3] %vm2133, 0.0
      %2168 = vst.msk [vmem:[#allocation3 + $0x120] sm:$0xff] %vm1586, 0.0
      %2169 = vst.msk [vmem:[#allocation3 + $0x128] sm:$0xff] %vm1586, 0.0
      %2170 = vst.msk [vmem:[#allocation3 + $0x130] sm:$0x3] %vm2133, 0.0
      %2171 = vst.msk [vmem:[#allocation3 + $0x138] sm:$0xff] %vm1586, 0.0
      %2172 = vst.msk [vmem:[#allocation3 + $0x140] sm:$0xff] %vm1586, 0.0
      %2173 = vst.msk [vmem:[#allocation3 + $0x148] sm:$0x3] %vm2133, 0.0
      %2174 = vst.msk [vmem:[#allocation3 + $0x150] sm:$0xff] %vm1586, 0.0
      %2175 = vst.msk [vmem:[#allocation3 + $0x158] sm:$0xff] %vm1586, 0.0
      %2176 = vst.msk [vmem:[#allocation3 + $0x160] sm:$0x3] %vm2133, 0.0
      %2177 = vst.msk [vmem:[#allocation3 + $0x168] sm:$0xff] %vm1586, 0.0
      %2178 = vst.msk [vmem:[#allocation3 + $0x170] sm:$0xff] %vm1586, 0.0
      %2179 = vst.msk [vmem:[#allocation3 + $0x178] sm:$0x3] %vm2133, 0.0
      %2180 = vst.msk [vmem:[#allocation3 + $0x180] sm:$0xff] %vm1586, 0.0
      %2181 = vst.msk [vmem:[#allocation3 + $0x188] sm:$0xff] %vm1586, 0.0
      %2182 = vst.msk [vmem:[#allocation3 + $0x190] sm:$0x3] %vm2133, 0.0
      %2183 = vst.msk [vmem:[#allocation3 + $0x198] sm:$0xff] %vm1586, 0.0
      %2184 = vst.msk [vmem:[#allocation3 + $0x1a0] sm:$0xff] %vm1586, 0.0
      %2185 = vst.msk [vmem:[#allocation3 + $0x1a8] sm:$0x3] %vm2133, 0.0
      %s2186 = scalar_lea.vmem [#allocation3], 24
      %2187 = vst.msk [vmem:[%s2186 + $0x1] sm:$0xff] %vm1586, %v2099
      %2188 = vst.msk [vmem:[%s2186 + $0x9] sm:$0xff] %vm1586, %v2100
      %2189 = vst.msk [vmem:[%s2186 + $0x19] sm:$0xff] %vm1586, %v2101
      %2190 = vst.msk [vmem:[%s2186 + $0x21] sm:$0xff] %vm1586, %v2102
      %2191 = vst.msk [vmem:[%s2186 + $0x31] sm:$0xff] %vm1586, %v2103
      %2192 = vst.msk [vmem:[%s2186 + $0x39] sm:$0xff] %vm1586, %v2104
      %2193 = vst.msk [vmem:[%s2186 + $0x49] sm:$0xff] %vm1586, %v2105
      %2194 = vst.msk [vmem:[%s2186 + $0x51] sm:$0xff] %vm1586, %v2106
      %2195 = vst.msk [vmem:[%s2186 + $0x61] sm:$0xff] %vm1586, %v2107
      %2196 = vst.msk [vmem:[%s2186 + $0x69] sm:$0xff] %vm1586, %v2108
      %2197 = vst.msk [vmem:[%s2186 + $0x79] sm:$0xff] %vm1586, %v2109
      %2198 = vst.msk [vmem:[%s2186 + $0x81] sm:$0xff] %vm1586, %v2110
      %2199 = vst.msk [vmem:[%s2186 + $0x91] sm:$0xff] %vm1586, %v2111
      %2200 = vst.msk [vmem:[%s2186 + $0x99] sm:$0xff] %vm1586, %v2112
      %2201 = vst.msk [vmem:[%s2186 + $0xa9] sm:$0xff] %vm1586, %v2113
      %2202 = vst.msk [vmem:[%s2186 + $0xb1] sm:$0xff] %vm1586, %v2114
      %2203 = vst.msk [vmem:[%s2186 + $0xc1] sm:$0xff] %vm1586, %v2115
      %2204 = vst.msk [vmem:[%s2186 + $0xc9] sm:$0xff] %vm1586, %v2116
      %2205 = vst.msk [vmem:[%s2186 + $0xd9] sm:$0xff] %vm1586, %v2117
      %2206 = vst.msk [vmem:[%s2186 + $0xe1] sm:$0xff] %vm1586, %v2118
      %2207 = vst.msk [vmem:[%s2186 + $0xf1] sm:$0xff] %vm1586, %v2119
      %2208 = vst.msk [vmem:[%s2186 + $0xf9] sm:$0xff] %vm1586, %v2120
      %2209 = vst.msk [vmem:[%s2186 + $0x109] sm:$0xff] %vm1586, %v2121
      %2210 = vst.msk [vmem:[%s2186 + $0x111] sm:$0xff] %vm1586, %v2122
      %2211 = vst.msk [vmem:[%s2186 + $0x121] sm:$0xff] %vm1586, %v2123
      %2212 = vst.msk [vmem:[%s2186 + $0x129] sm:$0xff] %vm1586, %v2124
      %2213 = vst.msk [vmem:[%s2186 + $0x139] sm:$0xff] %vm1586, %v2125
      %2214 = vst.msk [vmem:[%s2186 + $0x141] sm:$0xff] %vm1586, %v2126
      %2215 = vst.msk [vmem:[%s2186 + $0x151] sm:$0xff] %vm1586, %v2127
      %2216 = vst.msk [vmem:[%s2186 + $0x159] sm:$0xff] %vm1586, %v2128
      %2217 = vst.msk [vmem:[%s2186 + $0x169] sm:$0xff] %vm1586, %v2129
      %2218 = vst.msk [vmem:[%s2186 + $0x171] sm:$0xff] %vm1586, %v2130
      %v2219 = vld [vmem:[#allocation3] sm:$0xff]
      %v2220 = vld [vmem:[#allocation3 + $0x8] sm:$0xff]
      %v2221 = vld [vmem:[#allocation3 + $0x10] sm:$0x3]
      %v2222 = vld [vmem:[#allocation3 + $0x18] sm:$0xff]
      %v2223 = vld [vmem:[#allocation3 + $0x20] sm:$0xff]
      %v2224 = vld [vmem:[#allocation3 + $0x28] sm:$0x3]
      %v2225 = vld [vmem:[#allocation3 + $0x30] sm:$0xff]
      %v2226 = vld [vmem:[#allocation3 + $0x38] sm:$0xff]
      %v2227 = vld [vmem:[#allocation3 + $0x40] sm:$0x3]
      %v2228 = vld [vmem:[#allocation3 + $0x48] sm:$0xff]
      %v2229 = vld [vmem:[#allocation3 + $0x50] sm:$0xff]
      %v2230 = vld [vmem:[#allocation3 + $0x58] sm:$0x3]
      %v2231 = vld [vmem:[#allocation3 + $0x60] sm:$0xff]
      %v2232 = vld [vmem:[#allocation3 + $0x68] sm:$0xff]
      %v2233 = vld [vmem:[#allocation3 + $0x70] sm:$0x3]
      %v2234 = vld [vmem:[#allocation3 + $0x78] sm:$0xff]
      %v2235 = vld [vmem:[#allocation3 + $0x80] sm:$0xff]
      %v2236 = vld [vmem:[#allocation3 + $0x88] sm:$0x3]
      %v2237 = vld [vmem:[#allocation3 + $0x90] sm:$0xff]
      %v2238 = vld [vmem:[#allocation3 + $0x98] sm:$0xff]
      %v2239 = vld [vmem:[#allocation3 + $0xa0] sm:$0x3]
      %v2240 = vld [vmem:[#allocation3 + $0xa8] sm:$0xff]
      %v2241 = vld [vmem:[#allocation3 + $0xb0] sm:$0xff]
      %v2242 = vld [vmem:[#allocation3 + $0xb8] sm:$0x3]
      %v2243 = vld [vmem:[#allocation3 + $0xc0] sm:$0xff]
      %v2244 = vld [vmem:[#allocation3 + $0xc8] sm:$0xff]
      %v2245 = vld [vmem:[#allocation3 + $0xd0] sm:$0x3]
      %v2246 = vld [vmem:[#allocation3 + $0xd8] sm:$0xff]
      %v2247 = vld [vmem:[#allocation3 + $0xe0] sm:$0xff]
      %v2248 = vld [vmem:[#allocation3 + $0xe8] sm:$0x3]
      %v2249 = vld [vmem:[#allocation3 + $0xf0] sm:$0xff]
      %v2250 = vld [vmem:[#allocation3 + $0xf8] sm:$0xff]
      %v2251 = vld [vmem:[#allocation3 + $0x100] sm:$0x3]
      %v2252 = vld [vmem:[#allocation3 + $0x108] sm:$0xff]
      %v2253 = vld [vmem:[#allocation3 + $0x110] sm:$0xff]
      %v2254 = vld [vmem:[#allocation3 + $0x118] sm:$0x3]
      %v2255 = vld [vmem:[#allocation3 + $0x120] sm:$0xff]
      %v2256 = vld [vmem:[#allocation3 + $0x128] sm:$0xff]
      %v2257 = vld [vmem:[#allocation3 + $0x130] sm:$0x3]
      %v2258 = vld [vmem:[#allocation3 + $0x138] sm:$0xff]
      %v2259 = vld [vmem:[#allocation3 + $0x140] sm:$0xff]
      %v2260 = vld [vmem:[#allocation3 + $0x148] sm:$0x3]
      %v2261 = vld [vmem:[#allocation3 + $0x150] sm:$0xff]
      %v2262 = vld [vmem:[#allocation3 + $0x158] sm:$0xff]
      %v2263 = vld [vmem:[#allocation3 + $0x160] sm:$0x3]
      %v2264 = vld [vmem:[#allocation3 + $0x168] sm:$0xff]
      %v2265 = vld [vmem:[#allocation3 + $0x170] sm:$0xff]
      %v2266 = vld [vmem:[#allocation3 + $0x178] sm:$0x3]
      %vm2315 = vcmask 1046528
      %v2316 = vrot.slane %v2219, 1
      %v2317 = vrot.slane %v2220, 1
      %v2318 = vsel %vm2315, %v2316, %v2317
      %v2319 = vrot.slane %v2221, 1
      %v2320 = vsel %vm2315, %v2317, %v2319
      %v2321 = vrot.slane %v2222, 1
      %v2322 = vrot.slane %v2223, 1
      %v2323 = vsel %vm2315, %v2321, %v2322
      %v2324 = vrot.slane %v2224, 1
      %v2325 = vsel %vm2315, %v2322, %v2324
      %v2326 = vrot.slane %v2225, 1
      %v2327 = vrot.slane %v2226, 1
      %v2328 = vsel %vm2315, %v2326, %v2327
      %v2329 = vrot.slane %v2227, 1
      %v2330 = vsel %vm2315, %v2327, %v2329
      %v2331 = vrot.slane %v2228, 1
      %v2332 = vrot.slane %v2229, 1
      %v2333 = vsel %vm2315, %v2331, %v2332
      %v2334 = vrot.slane %v2230, 1
      %v2335 = vsel %vm2315, %v2332, %v2334
      %v2336 = vrot.slane %v2231, 1
      %v2337 = vrot.slane %v2232, 1
      %v2338 = vsel %vm2315, %v2336, %v2337
      %v2339 = vrot.slane %v2233, 1
      %v2340 = vsel %vm2315, %v2337, %v2339
      %v2341 = vrot.slane %v2234, 1
      %v2342 = vrot.slane %v2235, 1
      %v2343 = vsel %vm2315, %v2341, %v2342
      %v2344 = vrot.slane %v2236, 1
      %v2345 = vsel %vm2315, %v2342, %v2344
      %v2346 = vrot.slane %v2237, 1
      %v2347 = vrot.slane %v2238, 1
      %v2348 = vsel %vm2315, %v2346, %v2347
      %v2349 = vrot.slane %v2239, 1
      %v2350 = vsel %vm2315, %v2347, %v2349
      %v2351 = vrot.slane %v2240, 1
      %v2352 = vrot.slane %v2241, 1
      %v2353 = vsel %vm2315, %v2351, %v2352
      %v2354 = vrot.slane %v2242, 1
      %v2355 = vsel %vm2315, %v2352, %v2354
      %v2356 = vrot.slane %v2243, 1
      %v2357 = vrot.slane %v2244, 1
      %v2358 = vsel %vm2315, %v2356, %v2357
      %v2359 = vrot.slane %v2245, 1
      %v2360 = vsel %vm2315, %v2357, %v2359
      %v2361 = vrot.slane %v2246, 1
      %v2362 = vrot.slane %v2247, 1
      %v2363 = vsel %vm2315, %v2361, %v2362
      %v2364 = vrot.slane %v2248, 1
      %v2365 = vsel %vm2315, %v2362, %v2364
      %v2366 = vrot.slane %v2249, 1
      %v2367 = vrot.slane %v2250, 1
      %v2368 = vsel %vm2315, %v2366, %v2367
      %v2369 = vrot.slane %v2251, 1
      %v2370 = vsel %vm2315, %v2367, %v2369
      %v2371 = vrot.slane %v2252, 1
      %v2372 = vrot.slane %v2253, 1
      %v2373 = vsel %vm2315, %v2371, %v2372
      %v2374 = vrot.slane %v2254, 1
      %v2375 = vsel %vm2315, %v2372, %v2374
      %v2376 = vrot.slane %v2255, 1
      %v2377 = vrot.slane %v2256, 1
      %v2378 = vsel %vm2315, %v2376, %v2377
      %v2379 = vrot.slane %v2257, 1
      %v2380 = vsel %vm2315, %v2377, %v2379
      %v2381 = vrot.slane %v2258, 1
      %v2382 = vrot.slane %v2259, 1
      %v2383 = vsel %vm2315, %v2381, %v2382
      %v2384 = vrot.slane %v2260, 1
      %v2385 = vsel %vm2315, %v2382, %v2384
      %v2386 = vrot.slane %v2261, 1
      %v2387 = vrot.slane %v2262, 1
      %v2388 = vsel %vm2315, %v2386, %v2387
      %v2389 = vrot.slane %v2263, 1
      %v2390 = vsel %vm2315, %v2387, %v2389
      %v2391 = vrot.slane %v2264, 1
      %v2392 = vrot.slane %v2265, 1
      %v2393 = vsel %vm2315, %v2391, %v2392
      %v2394 = vrot.slane %v2266, 1
      %v2395 = vsel %vm2315, %v2392, %v2394
      %2396 = vrot.lane.b32.xlu0 %v2318, 32
      %v2397 = vpop.permute.xlu0 %2396
      %2398 = vrot.lane.b32.xlu0 %v2320, 32
      %v2399 = vpop.permute.xlu0 %2398
      %2400 = vrot.lane.b32.xlu0 %v2323, 32
      %v2401 = vpop.permute.xlu0 %2400
      %2402 = vrot.lane.b32.xlu0 %v2325, 32
      %v2403 = vpop.permute.xlu0 %2402
      %2404 = vrot.lane.b32.xlu0 %v2328, 32
      %v2405 = vpop.permute.xlu0 %2404
      %2406 = vrot.lane.b32.xlu0 %v2330, 32
      %v2407 = vpop.permute.xlu0 %2406
      %2408 = vrot.lane.b32.xlu0 %v2333, 32
      %v2409 = vpop.permute.xlu0 %2408
      %2410 = vrot.lane.b32.xlu0 %v2335, 32
      %v2411 = vpop.permute.xlu0 %2410
      %2412 = vrot.lane.b32.xlu0 %v2338, 32
      %v2413 = vpop.permute.xlu0 %2412
      %2414 = vrot.lane.b32.xlu0 %v2340, 32
      %v2415 = vpop.permute.xlu0 %2414
      %2416 = vrot.lane.b32.xlu0 %v2343, 32
      %v2417 = vpop.permute.xlu0 %2416
      %2418 = vrot.lane.b32.xlu0 %v2345, 32
      %v2419 = vpop.permute.xlu0 %2418
      %2420 = vrot.lane.b32.xlu0 %v2348, 32
      %v2421 = vpop.permute.xlu0 %2420
      %2422 = vrot.lane.b32.xlu0 %v2350, 32
      %v2423 = vpop.permute.xlu0 %2422
      %2424 = vrot.lane.b32.xlu0 %v2353, 32
      %v2425 = vpop.permute.xlu0 %2424
      %2426 = vrot.lane.b32.xlu0 %v2355, 32
      %v2427 = vpop.permute.xlu0 %2426
      %2428 = vrot.lane.b32.xlu0 %v2358, 32
      %v2429 = vpop.permute.xlu0 %2428
      %2430 = vrot.lane.b32.xlu0 %v2360, 32
      %v2431 = vpop.permute.xlu0 %2430
      %2432 = vrot.lane.b32.xlu0 %v2363, 32
      %v2433 = vpop.permute.xlu0 %2432
      %2434 = vrot.lane.b32.xlu0 %v2365, 32
      %v2435 = vpop.permute.xlu0 %2434
      %2436 = vrot.lane.b32.xlu0 %v2368, 32
      %v2437 = vpop.permute.xlu0 %2436
      %2438 = vrot.lane.b32.xlu0 %v2370, 32
      %v2439 = vpop.permute.xlu0 %2438
      %2440 = vrot.lane.b32.xlu0 %v2373, 32
      %v2441 = vpop.permute.xlu0 %2440
      %2442 = vrot.lane.b32.xlu0 %v2375, 32
      %v2443 = vpop.permute.xlu0 %2442
      %2444 = vrot.lane.b32.xlu0 %v2378, 32
      %v2445 = vpop.permute.xlu0 %2444
      %2446 = vrot.lane.b32.xlu0 %v2380, 32
      %v2447 = vpop.permute.xlu0 %2446
      %2448 = vrot.lane.b32.xlu0 %v2383, 32
      %v2449 = vpop.permute.xlu0 %2448
      %2450 = vrot.lane.b32.xlu0 %v2385, 32
      %v2451 = vpop.permute.xlu0 %2450
      %2452 = vrot.lane.b32.xlu0 %v2388, 32
      %v2453 = vpop.permute.xlu0 %2452
      %2454 = vrot.lane.b32.xlu0 %v2390, 32
      %v2455 = vpop.permute.xlu0 %2454
      %2456 = vrot.lane.b32.xlu0 %v2393, 32
      %v2457 = vpop.permute.xlu0 %2456
      %2458 = vrot.lane.b32.xlu0 %v2395, 32
      %v2459 = vpop.permute.xlu0 %2458
      %vm2492 = vcmask 1045504
      %v2493 = vrot.slane %v2219, 2
      %v2494 = vrot.slane %v2220, 2
      %v2495 = vsel %vm2492, %v2493, %v2494
      %v2496 = vrot.slane %v2221, 2
      %v2497 = vsel %vm2492, %v2494, %v2496
      %v2498 = vrot.slane %v2222, 2
      %v2499 = vrot.slane %v2223, 2
      %v2500 = vsel %vm2492, %v2498, %v2499
      %v2501 = vrot.slane %v2224, 2
      %v2502 = vsel %vm2492, %v2499, %v2501
      %v2503 = vrot.slane %v2225, 2
      %v2504 = vrot.slane %v2226, 2
      %v2505 = vsel %vm2492, %v2503, %v2504
      %v2506 = vrot.slane %v2227, 2
      %v2507 = vsel %vm2492, %v2504, %v2506
      %v2508 = vrot.slane %v2228, 2
      %v2509 = vrot.slane %v2229, 2
      %v2510 = vsel %vm2492, %v2508, %v2509
      %v2511 = vrot.slane %v2230, 2
      %v2512 = vsel %vm2492, %v2509, %v2511
      %v2513 = vrot.slane %v2231, 2
      %v2514 = vrot.slane %v2232, 2
      %v2515 = vsel %vm2492, %v2513, %v2514
      %v2516 = vrot.slane %v2233, 2
      %v2517 = vsel %vm2492, %v2514, %v2516
      %v2518 = vrot.slane %v2234, 2
      %v2519 = vrot.slane %v2235, 2
      %v2520 = vsel %vm2492, %v2518, %v2519
      %v2521 = vrot.slane %v2236, 2
      %v2522 = vsel %vm2492, %v2519, %v2521
      %v2523 = vrot.slane %v2237, 2
      %v2524 = vrot.slane %v2238, 2
      %v2525 = vsel %vm2492, %v2523, %v2524
      %v2526 = vrot.slane %v2239, 2
      %v2527 = vsel %vm2492, %v2524, %v2526
      %v2528 = vrot.slane %v2240, 2
      %v2529 = vrot.slane %v2241, 2
      %v2530 = vsel %vm2492, %v2528, %v2529
      %v2531 = vrot.slane %v2242, 2
      %v2532 = vsel %vm2492, %v2529, %v2531
      %v2533 = vrot.slane %v2243, 2
      %v2534 = vrot.slane %v2244, 2
      %v2535 = vsel %vm2492, %v2533, %v2534
      %v2536 = vrot.slane %v2245, 2
      %v2537 = vsel %vm2492, %v2534, %v2536
      %v2538 = vrot.slane %v2246, 2
      %v2539 = vrot.slane %v2247, 2
      %v2540 = vsel %vm2492, %v2538, %v2539
      %v2541 = vrot.slane %v2248, 2
      %v2542 = vsel %vm2492, %v2539, %v2541
      %v2543 = vrot.slane %v2249, 2
      %v2544 = vrot.slane %v2250, 2
      %v2545 = vsel %vm2492, %v2543, %v2544
      %v2546 = vrot.slane %v2251, 2
      %v2547 = vsel %vm2492, %v2544, %v2546
      %v2548 = vrot.slane %v2252, 2
      %v2549 = vrot.slane %v2253, 2
      %v2550 = vsel %vm2492, %v2548, %v2549
      %v2551 = vrot.slane %v2254, 2
      %v2552 = vsel %vm2492, %v2549, %v2551
      %v2553 = vrot.slane %v2255, 2
      %v2554 = vrot.slane %v2256, 2
      %v2555 = vsel %vm2492, %v2553, %v2554
      %v2556 = vrot.slane %v2257, 2
      %v2557 = vsel %vm2492, %v2554, %v2556
      %v2558 = vrot.slane %v2258, 2
      %v2559 = vrot.slane %v2259, 2
      %v2560 = vsel %vm2492, %v2558, %v2559
      %v2561 = vrot.slane %v2260, 2
      %v2562 = vsel %vm2492, %v2559, %v2561
      %v2563 = vrot.slane %v2261, 2
      %v2564 = vrot.slane %v2262, 2
      %v2565 = vsel %vm2492, %v2563, %v2564
      %v2566 = vrot.slane %v2263, 2
      %v2567 = vsel %vm2492, %v2564, %v2566
      %v2568 = vrot.slane %v2264, 2
      %v2569 = vrot.slane %v2265, 2
      %v2570 = vsel %vm2492, %v2568, %v2569
      %v2571 = vrot.slane %v2266, 2
      %v2572 = vsel %vm2492, %v2569, %v2571
      %2573 = vrot.lane.b32.xlu0 %v2495, 64
      %v2574 = vpop.permute.xlu0 %2573
      %2575 = vrot.lane.b32.xlu0 %v2497, 64
      %v2576 = vpop.permute.xlu0 %2575
      %2577 = vrot.lane.b32.xlu0 %v2500, 64
      %v2578 = vpop.permute.xlu0 %2577
      %2579 = vrot.lane.b32.xlu0 %v2502, 64
      %v2580 = vpop.permute.xlu0 %2579
      %2581 = vrot.lane.b32.xlu0 %v2505, 64
      %v2582 = vpop.permute.xlu0 %2581
      %2583 = vrot.lane.b32.xlu0 %v2507, 64
      %v2584 = vpop.permute.xlu0 %2583
      %2585 = vrot.lane.b32.xlu0 %v2510, 64
      %v2586 = vpop.permute.xlu0 %2585
      %2587 = vrot.lane.b32.xlu0 %v2512, 64
      %v2588 = vpop.permute.xlu0 %2587
      %2589 = vrot.lane.b32.xlu0 %v2515, 64
      %v2590 = vpop.permute.xlu0 %2589
      %2591 = vrot.lane.b32.xlu0 %v2517, 64
      %v2592 = vpop.permute.xlu0 %2591
      %2593 = vrot.lane.b32.xlu0 %v2520, 64
      %v2594 = vpop.permute.xlu0 %2593
      %2595 = vrot.lane.b32.xlu0 %v2522, 64
      %v2596 = vpop.permute.xlu0 %2595
      %2597 = vrot.lane.b32.xlu0 %v2525, 64
      %v2598 = vpop.permute.xlu0 %2597
      %2599 = vrot.lane.b32.xlu0 %v2527, 64
      %v2600 = vpop.permute.xlu0 %2599
      %2601 = vrot.lane.b32.xlu0 %v2530, 64
      %v2602 = vpop.permute.xlu0 %2601
      %2603 = vrot.lane.b32.xlu0 %v2532, 64
      %v2604 = vpop.permute.xlu0 %2603
      %2605 = vrot.lane.b32.xlu0 %v2535, 64
      %v2606 = vpop.permute.xlu0 %2605
      %2607 = vrot.lane.b32.xlu0 %v2537, 64
      %v2608 = vpop.permute.xlu0 %2607
      %2609 = vrot.lane.b32.xlu0 %v2540, 64
      %v2610 = vpop.permute.xlu0 %2609
      %2611 = vrot.lane.b32.xlu0 %v2542, 64
      %v2612 = vpop.permute.xlu0 %2611
      %2613 = vrot.lane.b32.xlu0 %v2545, 64
      %v2614 = vpop.permute.xlu0 %2613
      %2615 = vrot.lane.b32.xlu0 %v2547, 64
      %v2616 = vpop.permute.xlu0 %2615
      %2617 = vrot.lane.b32.xlu0 %v2550, 64
      %v2618 = vpop.permute.xlu0 %2617
      %2619 = vrot.lane.b32.xlu0 %v2552, 64
      %v2620 = vpop.permute.xlu0 %2619
      %2621 = vrot.lane.b32.xlu0 %v2555, 64
      %v2622 = vpop.permute.xlu0 %2621
      %2623 = vrot.lane.b32.xlu0 %v2557, 64
      %v2624 = vpop.permute.xlu0 %2623
      %2625 = vrot.lane.b32.xlu0 %v2560, 64
      %v2626 = vpop.permute.xlu0 %2625
      %2627 = vrot.lane.b32.xlu0 %v2562, 64
      %v2628 = vpop.permute.xlu0 %2627
      %2629 = vrot.lane.b32.xlu0 %v2565, 64
      %v2630 = vpop.permute.xlu0 %2629
      %2631 = vrot.lane.b32.xlu0 %v2567, 64
      %v2632 = vpop.permute.xlu0 %2631
      %2633 = vrot.lane.b32.xlu0 %v2570, 64
      %v2634 = vpop.permute.xlu0 %2633
      %2635 = vrot.lane.b32.xlu0 %v2572, 64
      %v2636 = vpop.permute.xlu0 %2635
      %v2669 = vsel %vm1586, %v2219, %v2397
      %v2670 = vsel %vm1586, %v2220, %v2399
      %v2671 = vsel %vm1586, %v2222, %v2401
      %v2672 = vsel %vm1586, %v2223, %v2403
      %v2673 = vsel %vm1586, %v2225, %v2405
      %v2674 = vsel %vm1586, %v2226, %v2407
      %v2675 = vsel %vm1586, %v2228, %v2409
      %v2676 = vsel %vm1586, %v2229, %v2411
      %v2677 = vsel %vm1586, %v2231, %v2413
      %v2678 = vsel %vm1586, %v2232, %v2415
      %v2679 = vsel %vm1586, %v2234, %v2417
      %v2680 = vsel %vm1586, %v2235, %v2419
      %v2681 = vsel %vm1586, %v2237, %v2421
      %v2682 = vsel %vm1586, %v2238, %v2423
      %v2683 = vsel %vm1586, %v2240, %v2425
      %v2684 = vsel %vm1586, %v2241, %v2427
      %v2685 = vsel %vm1586, %v2243, %v2429
      %v2686 = vsel %vm1586, %v2244, %v2431
      %v2687 = vsel %vm1586, %v2246, %v2433
      %v2688 = vsel %vm1586, %v2247, %v2435
      %v2689 = vsel %vm1586, %v2249, %v2437
      %v2690 = vsel %vm1586, %v2250, %v2439
      %v2691 = vsel %vm1586, %v2252, %v2441
      %v2692 = vsel %vm1586, %v2253, %v2443
      %v2693 = vsel %vm1586, %v2255, %v2445
      %v2694 = vsel %vm1586, %v2256, %v2447
      %v2695 = vsel %vm1586, %v2258, %v2449
      %v2696 = vsel %vm1586, %v2259, %v2451
      %v2697 = vsel %vm1586, %v2261, %v2453
      %v2698 = vsel %vm1586, %v2262, %v2455
      %v2699 = vsel %vm1586, %v2264, %v2457
      %v2700 = vsel %vm1586, %v2265, %v2459
      %vm2701 = vcmask 523264
      %v2702 = vsel %vm2701, %v2669, %v2574
      %v2703 = vsel %vm2701, %v2670, %v2576
      %v2704 = vsel %vm2701, %v2671, %v2578
      %v2705 = vsel %vm2701, %v2672, %v2580
      %v2706 = vsel %vm2701, %v2673, %v2582
      %v2707 = vsel %vm2701, %v2674, %v2584
      %v2708 = vsel %vm2701, %v2675, %v2586
      %v2709 = vsel %vm2701, %v2676, %v2588
      %v2710 = vsel %vm2701, %v2677, %v2590
      %v2711 = vsel %vm2701, %v2678, %v2592
      %v2712 = vsel %vm2701, %v2679, %v2594
      %v2713 = vsel %vm2701, %v2680, %v2596
      %v2714 = vsel %vm2701, %v2681, %v2598
      %v2715 = vsel %vm2701, %v2682, %v2600
      %v2716 = vsel %vm2701, %v2683, %v2602
      %v2717 = vsel %vm2701, %v2684, %v2604
      %v2718 = vsel %vm2701, %v2685, %v2606
      %v2719 = vsel %vm2701, %v2686, %v2608
      %v2720 = vsel %vm2701, %v2687, %v2610
      %v2721 = vsel %vm2701, %v2688, %v2612
      %v2722 = vsel %vm2701, %v2689, %v2614
      %v2723 = vsel %vm2701, %v2690, %v2616
      %v2724 = vsel %vm2701, %v2691, %v2618
      %v2725 = vsel %vm2701, %v2692, %v2620
      %v2726 = vsel %vm2701, %v2693, %v2622
      %v2727 = vsel %vm2701, %v2694, %v2624
      %v2728 = vsel %vm2701, %v2695, %v2626
      %v2729 = vsel %vm2701, %v2696, %v2628
      %v2730 = vsel %vm2701, %v2697, %v2630
      %v2731 = vsel %vm2701, %v2698, %v2632
      %v2732 = vsel %vm2701, %v2699, %v2634
      %v2733 = vsel %vm2701, %v2700, %v2636
      %v2734 = vld [vmem:[%s3] sm:$0xff]
      %v2735 = vld [vmem:[%s3 + $0x8] sm:$0xff]
      %v2736 = vld [vmem:[%s3 + $0x10] sm:$0xff]
      %v2737 = vld [vmem:[%s3 + $0x18] sm:$0xff]
      %v2738 = vld [vmem:[%s3 + $0x20] sm:$0xff]
      %v2739 = vld [vmem:[%s3 + $0x28] sm:$0xff]
      %v2740 = vld [vmem:[%s3 + $0x30] sm:$0xff]
      %v2741 = vld [vmem:[%s3 + $0x38] sm:$0xff]
      %v2742 = vld [vmem:[%s3 + $0x40] sm:$0xff]
      %v2743 = vld [vmem:[%s3 + $0x48] sm:$0xff]
      %v2744 = vld [vmem:[%s3 + $0x50] sm:$0xff]
      %v2745 = vld [vmem:[%s3 + $0x58] sm:$0xff]
      %v2746 = vld [vmem:[%s2186] sm:$0xff]
      %v2747 = vld [vmem:[%s2186 + $0x8] sm:$0xff]
      %v2748 = vld [vmem:[%s2186 + $0x10] sm:$0x3]
      %v2749 = vld [vmem:[%s2186 + $0x18] sm:$0xff]
      %v2750 = vld [vmem:[%s2186 + $0x20] sm:$0xff]
      %v2751 = vld [vmem:[%s2186 + $0x28] sm:$0x3]
      %v2752 = vld [vmem:[%s2186 + $0x30] sm:$0xff]
      %v2753 = vld [vmem:[%s2186 + $0x38] sm:$0xff]
      %v2754 = vld [vmem:[%s2186 + $0x40] sm:$0x3]
      %v2755 = vld [vmem:[%s2186 + $0x48] sm:$0xff]
      %v2756 = vld [vmem:[%s2186 + $0x50] sm:$0xff]
      %v2757 = vld [vmem:[%s2186 + $0x58] sm:$0x3]
      %v2758 = vld [vmem:[%s2186 + $0x60] sm:$0xff]
      %v2759 = vld [vmem:[%s2186 + $0x68] sm:$0xff]
      %v2760 = vld [vmem:[%s2186 + $0x70] sm:$0x3]
      %v2761 = vld [vmem:[%s2186 + $0x78] sm:$0xff]
      %v2762 = vld [vmem:[%s2186 + $0x80] sm:$0xff]
      %v2763 = vld [vmem:[%s2186 + $0x88] sm:$0x3]
      %v2764 = vld [vmem:[%s2186 + $0x90] sm:$0xff]
      %v2765 = vld [vmem:[%s2186 + $0x98] sm:$0xff]
      %v2766 = vld [vmem:[%s2186 + $0xa0] sm:$0x3]
      %v2767 = vld [vmem:[%s2186 + $0xa8] sm:$0xff]
      %v2768 = vld [vmem:[%s2186 + $0xb0] sm:$0xff]
      %v2769 = vld [vmem:[%s2186 + $0xb8] sm:$0x3]
      %v2770 = vld [vmem:[%s2186 + $0xc0] sm:$0xff]
      %v2771 = vld [vmem:[%s2186 + $0xc8] sm:$0xff]
      %v2772 = vld [vmem:[%s2186 + $0xd0] sm:$0x3]
      %v2773 = vld [vmem:[%s2186 + $0xd8] sm:$0xff]
      %v2774 = vld [vmem:[%s2186 + $0xe0] sm:$0xff]
      %v2775 = vld [vmem:[%s2186 + $0xe8] sm:$0x3]
      %v2776 = vld [vmem:[%s2186 + $0xf0] sm:$0xff]
      %v2777 = vld [vmem:[%s2186 + $0xf8] sm:$0xff]
      %v2778 = vld [vmem:[%s2186 + $0x100] sm:$0x3]
      %v2779 = vld [vmem:[%s2186 + $0x108] sm:$0xff]
      %v2780 = vld [vmem:[%s2186 + $0x110] sm:$0xff]
      %v2781 = vld [vmem:[%s2186 + $0x118] sm:$0x3]
      %v2782 = vld [vmem:[%s2186 + $0x120] sm:$0xff]
      %v2783 = vld [vmem:[%s2186 + $0x128] sm:$0xff]
      %v2784 = vld [vmem:[%s2186 + $0x130] sm:$0x3]
      %v2785 = vld [vmem:[%s2186 + $0x138] sm:$0xff]
      %v2786 = vld [vmem:[%s2186 + $0x140] sm:$0xff]
      %v2787 = vld [vmem:[%s2186 + $0x148] sm:$0x3]
      %v2788 = vld [vmem:[%s2186 + $0x150] sm:$0xff]
      %v2789 = vld [vmem:[%s2186 + $0x158] sm:$0xff]
      %v2790 = vld [vmem:[%s2186 + $0x160] sm:$0x3]
      %v2791 = vld [vmem:[%s2186 + $0x168] sm:$0xff]
      %v2792 = vld [vmem:[%s2186 + $0x170] sm:$0xff]
      %v2793 = vld [vmem:[%s2186 + $0x178] sm:$0x3]
      %v2842 = vrot.slane %v2746, 1
      %v2843 = vrot.slane %v2747, 1
      %v2844 = vsel %vm2315, %v2842, %v2843
      %v2845 = vrot.slane %v2748, 1
      %v2846 = vsel %vm2315, %v2843, %v2845
      %v2847 = vrot.slane %v2749, 1
      %v2848 = vrot.slane %v2750, 1
      %v2849 = vsel %vm2315, %v2847, %v2848
      %v2850 = vrot.slane %v2751, 1
      %v2851 = vsel %vm2315, %v2848, %v2850
      %v2852 = vrot.slane %v2752, 1
      %v2853 = vrot.slane %v2753, 1
      %v2854 = vsel %vm2315, %v2852, %v2853
      %v2855 = vrot.slane %v2754, 1
      %v2856 = vsel %vm2315, %v2853, %v2855
      %v2857 = vrot.slane %v2755, 1
      %v2858 = vrot.slane %v2756, 1
      %v2859 = vsel %vm2315, %v2857, %v2858
      %v2860 = vrot.slane %v2757, 1
      %v2861 = vsel %vm2315, %v2858, %v2860
      %v2862 = vrot.slane %v2758, 1
      %v2863 = vrot.slane %v2759, 1
      %v2864 = vsel %vm2315, %v2862, %v2863
      %v2865 = vrot.slane %v2760, 1
      %v2866 = vsel %vm2315, %v2863, %v2865
      %v2867 = vrot.slane %v2761, 1
      %v2868 = vrot.slane %v2762, 1
      %v2869 = vsel %vm2315, %v2867, %v2868
      %v2870 = vrot.slane %v2763, 1
      %v2871 = vsel %vm2315, %v2868, %v2870
      %v2872 = vrot.slane %v2764, 1
      %v2873 = vrot.slane %v2765, 1
      %v2874 = vsel %vm2315, %v2872, %v2873
      %v2875 = vrot.slane %v2766, 1
      %v2876 = vsel %vm2315, %v2873, %v2875
      %v2877 = vrot.slane %v2767, 1
      %v2878 = vrot.slane %v2768, 1
      %v2879 = vsel %vm2315, %v2877, %v2878
      %v2880 = vrot.slane %v2769, 1
      %v2881 = vsel %vm2315, %v2878, %v2880
      %v2882 = vrot.slane %v2770, 1
      %v2883 = vrot.slane %v2771, 1
      %v2884 = vsel %vm2315, %v2882, %v2883
      %v2885 = vrot.slane %v2772, 1
      %v2886 = vsel %vm2315, %v2883, %v2885
      %v2887 = vrot.slane %v2773, 1
      %v2888 = vrot.slane %v2774, 1
      %v2889 = vsel %vm2315, %v2887, %v2888
      %v2890 = vrot.slane %v2775, 1
      %v2891 = vsel %vm2315, %v2888, %v2890
      %v2892 = vrot.slane %v2776, 1
      %v2893 = vrot.slane %v2777, 1
      %v2894 = vsel %vm2315, %v2892, %v2893
      %v2895 = vrot.slane %v2778, 1
      %v2896 = vsel %vm2315, %v2893, %v2895
      %v2897 = vrot.slane %v2779, 1
      %v2898 = vrot.slane %v2780, 1
      %v2899 = vsel %vm2315, %v2897, %v2898
      %v2900 = vrot.slane %v2781, 1
      %v2901 = vsel %vm2315, %v2898, %v2900
      %v2902 = vrot.slane %v2782, 1
      %v2903 = vrot.slane %v2783, 1
      %v2904 = vsel %vm2315, %v2902, %v2903
      %v2905 = vrot.slane %v2784, 1
      %v2906 = vsel %vm2315, %v2903, %v2905
      %v2907 = vrot.slane %v2785, 1
      %v2908 = vrot.slane %v2786, 1
      %v2909 = vsel %vm2315, %v2907, %v2908
      %v2910 = vrot.slane %v2787, 1
      %v2911 = vsel %vm2315, %v2908, %v2910
      %v2912 = vrot.slane %v2788, 1
      %v2913 = vrot.slane %v2789, 1
      %v2914 = vsel %vm2315, %v2912, %v2913
      %v2915 = vrot.slane %v2790, 1
      %v2916 = vsel %vm2315, %v2913, %v2915
      %v2917 = vrot.slane %v2791, 1
      %v2918 = vrot.slane %v2792, 1
      %v2919 = vsel %vm2315, %v2917, %v2918
      %v2920 = vrot.slane %v2793, 1
      %v2921 = vsel %vm2315, %v2918, %v2920
      %2922 = vrot.lane.b32.xlu0 %v2844, 32
      %v2923 = vpop.permute.xlu0 %2922
      %2924 = vrot.lane.b32.xlu0 %v2846, 32
      %v2925 = vpop.permute.xlu0 %2924
      %2926 = vrot.lane.b32.xlu0 %v2849, 32
      %v2927 = vpop.permute.xlu0 %2926
      %2928 = vrot.lane.b32.xlu0 %v2851, 32
      %v2929 = vpop.permute.xlu0 %2928
      %2930 = vrot.lane.b32.xlu0 %v2854, 32
      %v2931 = vpop.permute.xlu0 %2930
      %2932 = vrot.lane.b32.xlu0 %v2856, 32
      %v2933 = vpop.permute.xlu0 %2932
      %2934 = vrot.lane.b32.xlu0 %v2859, 32
      %v2935 = vpop.permute.xlu0 %2934
      %2936 = vrot.lane.b32.xlu0 %v2861, 32
      %v2937 = vpop.permute.xlu0 %2936
      %2938 = vrot.lane.b32.xlu0 %v2864, 32
      %v2939 = vpop.permute.xlu0 %2938
      %2940 = vrot.lane.b32.xlu0 %v2866, 32
      %v2941 = vpop.permute.xlu0 %2940
      %2942 = vrot.lane.b32.xlu0 %v2869, 32
      %v2943 = vpop.permute.xlu0 %2942
      %2944 = vrot.lane.b32.xlu0 %v2871, 32
      %v2945 = vpop.permute.xlu0 %2944
      %2946 = vrot.lane.b32.xlu0 %v2874, 32
      %v2947 = vpop.permute.xlu0 %2946
      %2948 = vrot.lane.b32.xlu0 %v2876, 32
      %v2949 = vpop.permute.xlu0 %2948
      %2950 = vrot.lane.b32.xlu0 %v2879, 32
      %v2951 = vpop.permute.xlu0 %2950
      %2952 = vrot.lane.b32.xlu0 %v2881, 32
      %v2953 = vpop.permute.xlu0 %2952
      %2954 = vrot.lane.b32.xlu0 %v2884, 32
      %v2955 = vpop.permute.xlu0 %2954
      %2956 = vrot.lane.b32.xlu0 %v2886, 32
      %v2957 = vpop.permute.xlu0 %2956
      %2958 = vrot.lane.b32.xlu0 %v2889, 32
      %v2959 = vpop.permute.xlu0 %2958
      %2960 = vrot.lane.b32.xlu0 %v2891, 32
      %v2961 = vpop.permute.xlu0 %2960
      %2962 = vrot.lane.b32.xlu0 %v2894, 32
      %v2963 = vpop.permute.xlu0 %2962
      %2964 = vrot.lane.b32.xlu0 %v2896, 32
      %v2965 = vpop.permute.xlu0 %2964
      %2966 = vrot.lane.b32.xlu0 %v2899, 32
      %v2967 = vpop.permute.xlu0 %2966
      %2968 = vrot.lane.b32.xlu0 %v2901, 32
      %v2969 = vpop.permute.xlu0 %2968
      %2970 = vrot.lane.b32.xlu0 %v2904, 32
      %v2971 = vpop.permute.xlu0 %2970
      %2972 = vrot.lane.b32.xlu0 %v2906, 32
      %v2973 = vpop.permute.xlu0 %2972
      %2974 = vrot.lane.b32.xlu0 %v2909, 32
      %v2975 = vpop.permute.xlu0 %2974
      %2976 = vrot.lane.b32.xlu0 %v2911, 32
      %v2977 = vpop.permute.xlu0 %2976
      %2978 = vrot.lane.b32.xlu0 %v2914, 32
      %v2979 = vpop.permute.xlu0 %2978
      %2980 = vrot.lane.b32.xlu0 %v2916, 32
      %v2981 = vpop.permute.xlu0 %2980
      %2982 = vrot.lane.b32.xlu0 %v2919, 32
      %v2983 = vpop.permute.xlu0 %2982
      %2984 = vrot.lane.b32.xlu0 %v2921, 32
      %v2985 = vpop.permute.xlu0 %2984
      %v3018 = vrot.slane %v2746, 2
      %v3019 = vrot.slane %v2747, 2
      %v3020 = vsel %vm2492, %v3018, %v3019
      %v3021 = vrot.slane %v2748, 2
      %v3022 = vsel %vm2492, %v3019, %v3021
      %v3023 = vrot.slane %v2749, 2
      %v3024 = vrot.slane %v2750, 2
      %v3025 = vsel %vm2492, %v3023, %v3024
      %v3026 = vrot.slane %v2751, 2
      %v3027 = vsel %vm2492, %v3024, %v3026
      %v3028 = vrot.slane %v2752, 2
      %v3029 = vrot.slane %v2753, 2
      %v3030 = vsel %vm2492, %v3028, %v3029
      %v3031 = vrot.slane %v2754, 2
      %v3032 = vsel %vm2492, %v3029, %v3031
      %v3033 = vrot.slane %v2755, 2
      %v3034 = vrot.slane %v2756, 2
      %v3035 = vsel %vm2492, %v3033, %v3034
      %v3036 = vrot.slane %v2757, 2
      %v3037 = vsel %vm2492, %v3034, %v3036
      %v3038 = vrot.slane %v2758, 2
      %v3039 = vrot.slane %v2759, 2
      %v3040 = vsel %vm2492, %v3038, %v3039
      %v3041 = vrot.slane %v2760, 2
      %v3042 = vsel %vm2492, %v3039, %v3041
      %v3043 = vrot.slane %v2761, 2
      %v3044 = vrot.slane %v2762, 2
      %v3045 = vsel %vm2492, %v3043, %v3044
      %v3046 = vrot.slane %v2763, 2
      %v3047 = vsel %vm2492, %v3044, %v3046
      %v3048 = vrot.slane %v2764, 2
      %v3049 = vrot.slane %v2765, 2
      %v3050 = vsel %vm2492, %v3048, %v3049
      %v3051 = vrot.slane %v2766, 2
      %v3052 = vsel %vm2492, %v3049, %v3051
      %v3053 = vrot.slane %v2767, 2
      %v3054 = vrot.slane %v2768, 2
      %v3055 = vsel %vm2492, %v3053, %v3054
      %v3056 = vrot.slane %v2769, 2
      %v3057 = vsel %vm2492, %v3054, %v3056
      %v3058 = vrot.slane %v2770, 2
      %v3059 = vrot.slane %v2771, 2
      %v3060 = vsel %vm2492, %v3058, %v3059
      %v3061 = vrot.slane %v2772, 2
      %v3062 = vsel %vm2492, %v3059, %v3061
      %v3063 = vrot.slane %v2773, 2
      %v3064 = vrot.slane %v2774, 2
      %v3065 = vsel %vm2492, %v3063, %v3064
      %v3066 = vrot.slane %v2775, 2
      %v3067 = vsel %vm2492, %v3064, %v3066
      %v3068 = vrot.slane %v2776, 2
      %v3069 = vrot.slane %v2777, 2
      %v3070 = vsel %vm2492, %v3068, %v3069
      %v3071 = vrot.slane %v2778, 2
      %v3072 = vsel %vm2492, %v3069, %v3071
      %v3073 = vrot.slane %v2779, 2
      %v3074 = vrot.slane %v2780, 2
      %v3075 = vsel %vm2492, %v3073, %v3074
      %v3076 = vrot.slane %v2781, 2
      %v3077 = vsel %vm2492, %v3074, %v3076
      %v3078 = vrot.slane %v2782, 2
      %v3079 = vrot.slane %v2783, 2
      %v3080 = vsel %vm2492, %v3078, %v3079
      %v3081 = vrot.slane %v2784, 2
      %v3082 = vsel %vm2492, %v3079, %v3081
      %v3083 = vrot.slane %v2785, 2
      %v3084 = vrot.slane %v2786, 2
      %v3085 = vsel %vm2492, %v3083, %v3084
      %v3086 = vrot.slane %v2787, 2
      %v3087 = vsel %vm2492, %v3084, %v3086
      %v3088 = vrot.slane %v2788, 2
      %v3089 = vrot.slane %v2789, 2
      %v3090 = vsel %vm2492, %v3088, %v3089
      %v3091 = vrot.slane %v2790, 2
      %v3092 = vsel %vm2492, %v3089, %v3091
      %v3093 = vrot.slane %v2791, 2
      %v3094 = vrot.slane %v2792, 2
      %v3095 = vsel %vm2492, %v3093, %v3094
      %v3096 = vrot.slane %v2793, 2
      %v3097 = vsel %vm2492, %v3094, %v3096
      %3098 = vrot.lane.b32.xlu0 %v3020, 64
      %v3099 = vpop.permute.xlu0 %3098
      %3100 = vrot.lane.b32.xlu0 %v3022, 64
      %v3101 = vpop.permute.xlu0 %3100
      %3102 = vrot.lane.b32.xlu0 %v3025, 64
      %v3103 = vpop.permute.xlu0 %3102
      %3104 = vrot.lane.b32.xlu0 %v3027, 64
      %v3105 = vpop.permute.xlu0 %3104
      %3106 = vrot.lane.b32.xlu0 %v3030, 64
      %v3107 = vpop.permute.xlu0 %3106
      %3108 = vrot.lane.b32.xlu0 %v3032, 64
      %v3109 = vpop.permute.xlu0 %3108
      %3110 = vrot.lane.b32.xlu0 %v3035, 64
      %v3111 = vpop.permute.xlu0 %3110
      %3112 = vrot.lane.b32.xlu0 %v3037, 64
      %v3113 = vpop.permute.xlu0 %3112
      %3114 = vrot.lane.b32.xlu0 %v3040, 64
      %v3115 = vpop.permute.xlu0 %3114
      %3116 = vrot.lane.b32.xlu0 %v3042, 64
      %v3117 = vpop.permute.xlu0 %3116
      %3118 = vrot.lane.b32.xlu0 %v3045, 64
      %v3119 = vpop.permute.xlu0 %3118
      %3120 = vrot.lane.b32.xlu0 %v3047, 64
      %v3121 = vpop.permute.xlu0 %3120
      %3122 = vrot.lane.b32.xlu0 %v3050, 64
      %v3123 = vpop.permute.xlu0 %3122
      %3124 = vrot.lane.b32.xlu0 %v3052, 64
      %v3125 = vpop.permute.xlu0 %3124
      %3126 = vrot.lane.b32.xlu0 %v3055, 64
      %v3127 = vpop.permute.xlu0 %3126
      %3128 = vrot.lane.b32.xlu0 %v3057, 64
      %v3129 = vpop.permute.xlu0 %3128
      %3130 = vrot.lane.b32.xlu0 %v3060, 64
      %v3131 = vpop.permute.xlu0 %3130
      %3132 = vrot.lane.b32.xlu0 %v3062, 64
      %v3133 = vpop.permute.xlu0 %3132
      %3134 = vrot.lane.b32.xlu0 %v3065, 64
      %v3135 = vpop.permute.xlu0 %3134
      %3136 = vrot.lane.b32.xlu0 %v3067, 64
      %v3137 = vpop.permute.xlu0 %3136
      %3138 = vrot.lane.b32.xlu0 %v3070, 64
      %v3139 = vpop.permute.xlu0 %3138
      %3140 = vrot.lane.b32.xlu0 %v3072, 64
      %v3141 = vpop.permute.xlu0 %3140
      %3142 = vrot.lane.b32.xlu0 %v3075, 64
      %v3143 = vpop.permute.xlu0 %3142
      %3144 = vrot.lane.b32.xlu0 %v3077, 64
      %v3145 = vpop.permute.xlu0 %3144
      %3146 = vrot.lane.b32.xlu0 %v3080, 64
      %v3147 = vpop.permute.xlu0 %3146
      %3148 = vrot.lane.b32.xlu0 %v3082, 64
      %v3149 = vpop.permute.xlu0 %3148
      %3150 = vrot.lane.b32.xlu0 %v3085, 64
      %v3151 = vpop.permute.xlu0 %3150
      %3152 = vrot.lane.b32.xlu0 %v3087, 64
      %v3153 = vpop.permute.xlu0 %3152
      %3154 = vrot.lane.b32.xlu0 %v3090, 64
      %v3155 = vpop.permute.xlu0 %3154
      %3156 = vrot.lane.b32.xlu0 %v3092, 64
      %v3157 = vpop.permute.xlu0 %3156
      %3158 = vrot.lane.b32.xlu0 %v3095, 64
      %v3159 = vpop.permute.xlu0 %3158
      %3160 = vrot.lane.b32.xlu0 %v3097, 64
      %v3161 = vpop.permute.xlu0 %3160
      %v3194 = vsel %vm1586, %v2746, %v2923
      %v3195 = vsel %vm1586, %v2747, %v2925
      %v3196 = vsel %vm1586, %v2749, %v2927
      %v3197 = vsel %vm1586, %v2750, %v2929
      %v3198 = vsel %vm1586, %v2752, %v2931
      %v3199 = vsel %vm1586, %v2753, %v2933
      %v3200 = vsel %vm1586, %v2755, %v2935
      %v3201 = vsel %vm1586, %v2756, %v2937
      %v3202 = vsel %vm1586, %v2758, %v2939
      %v3203 = vsel %vm1586, %v2759, %v2941
      %v3204 = vsel %vm1586, %v2761, %v2943
      %v3205 = vsel %vm1586, %v2762, %v2945
      %v3206 = vsel %vm1586, %v2764, %v2947
      %v3207 = vsel %vm1586, %v2765, %v2949
      %v3208 = vsel %vm1586, %v2767, %v2951
      %v3209 = vsel %vm1586, %v2768, %v2953
      %v3210 = vsel %vm1586, %v2770, %v2955
      %v3211 = vsel %vm1586, %v2771, %v2957
      %v3212 = vsel %vm1586, %v2773, %v2959
      %v3213 = vsel %vm1586, %v2774, %v2961
      %v3214 = vsel %vm1586, %v2776, %v2963
      %v3215 = vsel %vm1586, %v2777, %v2965
      %v3216 = vsel %vm1586, %v2779, %v2967
      %v3217 = vsel %vm1586, %v2780, %v2969
      %v3218 = vsel %vm1586, %v2782, %v2971
      %v3219 = vsel %vm1586, %v2783, %v2973
      %v3220 = vsel %vm1586, %v2785, %v2975
      %v3221 = vsel %vm1586, %v2786, %v2977
      %v3222 = vsel %vm1586, %v2788, %v2979
      %v3223 = vsel %vm1586, %v2789, %v2981
      %v3224 = vsel %vm1586, %v2791, %v2983
      %v3225 = vsel %vm1586, %v2792, %v2985
      %v3226 = vsel %vm2701, %v3194, %v3099
      %v3227 = vsel %vm2701, %v3195, %v3101
      %v3228 = vsel %vm2701, %v3196, %v3103
      %v3229 = vsel %vm2701, %v3197, %v3105
      %v3230 = vsel %vm2701, %v3198, %v3107
      %v3231 = vsel %vm2701, %v3199, %v3109
      %v3232 = vsel %vm2701, %v3200, %v3111
      %v3233 = vsel %vm2701, %v3201, %v3113
      %v3234 = vsel %vm2701, %v3202, %v3115
      %v3235 = vsel %vm2701, %v3203, %v3117
      %v3236 = vsel %vm2701, %v3204, %v3119
      %v3237 = vsel %vm2701, %v3205, %v3121
      %v3238 = vsel %vm2701, %v3206, %v3123
      %v3239 = vsel %vm2701, %v3207, %v3125
      %v3240 = vsel %vm2701, %v3208, %v3127
      %v3241 = vsel %vm2701, %v3209, %v3129
      %v3242 = vsel %vm2701, %v3210, %v3131
      %v3243 = vsel %vm2701, %v3211, %v3133
      %v3244 = vsel %vm2701, %v3212, %v3135
      %v3245 = vsel %vm2701, %v3213, %v3137
      %v3246 = vsel %vm2701, %v3214, %v3139
      %v3247 = vsel %vm2701, %v3215, %v3141
      %v3248 = vsel %vm2701, %v3216, %v3143
      %v3249 = vsel %vm2701, %v3217, %v3145
      %v3250 = vsel %vm2701, %v3218, %v3147
      %v3251 = vsel %vm2701, %v3219, %v3149
      %v3252 = vsel %vm2701, %v3220, %v3151
      %v3253 = vsel %vm2701, %v3221, %v3153
      %v3254 = vsel %vm2701, %v3222, %v3155
      %v3255 = vsel %vm2701, %v3223, %v3157
      %v3256 = vsel %vm2701, %v3224, %v3159
      %v3257 = vsel %vm2701, %v3225, %v3161
      %s3258 = scalar_lea.vmem %s3, 96
      %v3259 = vld [vmem:[%s3258] sm:$0xff]
      %v3260 = vld [vmem:[%s3258 + $0x8] sm:$0xff]
      %v3261 = vld [vmem:[%s3258 + $0x10] sm:$0xff]
      %v3262 = vld [vmem:[%s3258 + $0x18] sm:$0xff]
      %v3263 = vld [vmem:[%s3258 + $0x20] sm:$0xff]
      %v3264 = vld [vmem:[%s3258 + $0x28] sm:$0xff]
      %v3265 = vld [vmem:[%s3258 + $0x30] sm:$0xff]
      %v3266 = vld [vmem:[%s3258 + $0x38] sm:$0xff]
      %v3267 = vld [vmem:[%s3258 + $0x40] sm:$0xff]
      %v3268 = vld [vmem:[%s3258 + $0x48] sm:$0xff]
      %v3269 = vld [vmem:[%s3258 + $0x50] sm:$0xff]
      %v3270 = vld [vmem:[%s3258 + $0x58] sm:$0xff]
      %vm3271 = vcmask 785408
      %v3273 = vsel %vm3271, %v3226, 0
      %v3276 = vsel %vm3271, %v3227, 0
      %v3279 = vsel %vm3271, %v3228, 0
      %v3282 = vsel %vm3271, %v3229, 0
      %v3285 = vsel %vm3271, %v3230, 0
      %v3288 = vsel %vm3271, %v3231, 0
      %v3291 = vsel %vm3271, %v3232, 0
      %v3294 = vsel %vm3271, %v3233, 0
      %v3297 = vsel %vm3271, %v3234, 0
      %v3300 = vsel %vm3271, %v3235, 0
      %v3303 = vsel %vm3271, %v3236, 0
      %v3306 = vsel %vm3271, %v3237, 0
      %v3309 = vsel %vm3271, %v3238, 0
      %v3312 = vsel %vm3271, %v3239, 0
      %v3315 = vsel %vm3271, %v3240, 0
      %v3318 = vsel %vm3271, %v3241, 0
      %v3321 = vsel %vm3271, %v3242, 0
      %v3324 = vsel %vm3271, %v3243, 0
      %v3327 = vsel %vm3271, %v3244, 0
      %v3330 = vsel %vm3271, %v3245, 0
      %v3333 = vsel %vm3271, %v3246, 0
      %v3336 = vsel %vm3271, %v3247, 0
      %v3339 = vsel %vm3271, %v3248, 0
      %v3342 = vsel %vm3271, %v3249, 0
      %v3345 = vsel %vm3271, %v3250, 0
      %v3348 = vsel %vm3271, %v3251, 0
      %v3351 = vsel %vm3271, %v3252, 0
      %v3354 = vsel %vm3271, %v3253, 0
      %v3357 = vsel %vm3271, %v3254, 0
      %v3360 = vsel %vm3271, %v3255, 0
      %v3363 = vsel %vm3271, %v3256, 0
      %v3366 = vsel %vm3271, %v3257, 0
      %3368 = vmatprep.subr.mxu0 0.0
      %3369 = vmatpush1.msra.mxu0 %v3259
      %3370 = vmatprep.subr.mxu0 0.0
      %3371 = vmatpush1.msra.mxu0 %v3260
      %3372 = vmatprep.subr.mxu0 0.0
      %3373 = vmatpush1.msra.mxu0 %v3261
      %3374 = vmatprep.subr.mxu0 0.0
      %3375 = vmatpush1.msra.mxu0 %v3262
      %3376 = vmatprep.subr.mxu0 0.0
      %3377 = vmatpush1.msra.mxu0 %v3263
      %3378 = vmatprep.subr.mxu0 0.0
      %3379 = vmatpush1.msra.mxu0 %v3264
      %3380 = vmatprep.subr.mxu0 0.0
      %3381 = vmatpush1.msra.mxu0 %v3265
      %3382 = vmatprep.subr.mxu0 0.0
      %3383 = vmatpush1.msra.mxu0 %v3266
      %3384 = vmatprep.subr.mxu0 0.0
      %3385 = vmatpush1.msra.mxu0 %v3267
      %3386 = vmatprep.subr.mxu0 0.0
      %3387 = vmatpush1.msra.mxu0 %v3268
      %3388 = vmatprep.subr.mxu0 0.0
      %3389 = vmatpush1.msra.mxu0 %v3269
      %3390 = vmatprep.subr.mxu0 0.0
      %3391 = vmatpush1.msra.mxu0 %v3270
      %3392 = vmatprep.subr.mxu0 0.0
      %3393 = vmatpush1.msra.mxu0 0.0
      %3394 = vmatprep.subr.mxu0 0.0
      %3395 = vmatpush1.msra.mxu0 0.0
      %3396 = vmatprep.subr.mxu0 0.0
      %3397 = vmatpush1.msra.mxu0 0.0
      %3398 = vmatprep.subr.mxu0 0.0
      %3399 = vmatpush1.msra.mxu0 0.0
      %3400 = vmatprep.subr.mxu0 0.0
      %3401 = vmatpush1.msra.mxu0 0.0
      %3402 = vmatprep.subr.mxu0 0.0
      %3403 = vmatpush1.msra.mxu0 0.0
      %3404 = vmatprep.subr.mxu0 0.0
      %3405 = vmatpush1.msra.mxu0 0.0
      %3406 = vmatprep.subr.mxu0 0.0
      %3407 = vmatpush1.msra.mxu0 0.0
      %3408 = vmatprep.subr.mxu0 0.0
      %3409 = vmatpush1.msra.mxu0 0.0
      %3410 = vmatprep.subr.mxu0 0.0
      %3411 = vmatpush1.msra.mxu0 0.0
      %3412 = vmatprep.subr.mxu0 0.0
      %3413 = vmatpush1.msra.mxu0 0.0
      %3414 = vmatprep.subr.mxu0 0.0
      %3415 = vmatpush1.msra.mxu0 0.0
      %3416 = vmatprep.subr.mxu0 0.0
      %3417 = vmatpush1.msra.mxu0 0.0
      %3418 = vmatprep.subr.mxu0 0.0
      %3419 = vmatpush1.msra.mxu0 0.0
      %3420 = vmatprep.subr.mxu0 0.0
      %3421 = vmatpush1.msra.mxu0 0.0
      %3422 = vmatprep.subr.mxu0 0.0
      %3423 = vmatpush1.msra.mxu0 0.0
      %3424 = vmatprep.subr.mxu0 0.0
      %3425 = vmatpush1.msra.mxu0 0.0
      %3426 = vmatprep.subr.mxu0 0.0
      %3427 = vmatpush1.msra.mxu0 0.0
      %3428 = vmatprep.subr.mxu0 0.0
      %3429 = vmatpush1.msra.mxu0 0.0
      %3430 = vmatprep.subr.mxu0 0.0
      %3431 = vmatpush1.msra.mxu0 0.0
      %3432 = vmatprep.mubr.f32.mxu0 0.0
      %3433 = vmatmul.mubr.f32.gmra.mrb[0].mxu0 %v3273
      %v3434 = vpop.f32.mrb[0].mxu0
      %v3435 = vadd.f32 0.0, %v3434
      %v3436 = vpop.f32.mrb[0].mxu0
      %3437 = vmatprep.mubr.f32.mxu0 0.0
      %3438 = vmatmul.mubr.f32.gmra.mrb[0].mxu0 %v3276
      %v3439 = vpop.f32.mrb[0].mxu0
      %v3440 = vadd.f32 0.0, %v3439
      %v3441 = vpop.f32.mrb[0].mxu0
      %3442 = vmatprep.mubr.f32.mxu0 0.0
      %3443 = vmatmul.mubr.f32.gmra.mrb[0].mxu0 %v3279
      %v3444 = vpop.f32.mrb[0].mxu0
      %v3445 = vadd.f32 0.0, %v3444
      %v3446 = vpop.f32.mrb[0].mxu0
      %3447 = vmatprep.mubr.f32.mxu0 0.0
      %3448 = vmatmul.mubr.f32.gmra.mrb[0].mxu0 %v3282
      %v3449 = vpop.f32.mrb[0].mxu0
      %v3450 = vadd.f32 0.0, %v3449
      %v3451 = vpop.f32.mrb[0].mxu0
      %3452 = vmatprep.mubr.f32.mxu0 0.0
      %3453 = vmatmul.mubr.f32.gmra.mrb[0].mxu0 %v3285
      %v3454 = vpop.f32.mrb[0].mxu0
      %v3455 = vadd.f32 0.0, %v3454
      %v3456 = vpop.f32.mrb[0].mxu0
      %3457 = vmatprep.mubr.f32.mxu0 0.0
      %3458 = vmatmul.mubr.f32.gmra.mrb[0].mxu0 %v3288
      %v3459 = vpop.f32.mrb[0].mxu0
      %v3460 = vadd.f32 0.0, %v3459
      %v3461 = vpop.f32.mrb[0].mxu0
      %3462 = vmatprep.mubr.f32.mxu0 0.0
      %3463 = vmatmul.mubr.f32.gmra.mrb[0].mxu0 %v3291
      %v3464 = vpop.f32.mrb[0].mxu0
      %v3465 = vadd.f32 0.0, %v3464
      %v3466 = vpop.f32.mrb[0].mxu0
      %3467 = vmatprep.mubr.f32.mxu0 0.0
      %3468 = vmatmul.mubr.f32.gmra.mrb[0].mxu0 %v3294
      %v3469 = vpop.f32.mrb[0].mxu0
      %v3470 = vadd.f32 0.0, %v3469
      %v3471 = vpop.f32.mrb[0].mxu0
      %3472 = vmatprep.mubr.f32.mxu0 0.0
      %3473 = vmatmul.mubr.f32.gmra.mrb[0].mxu0 %v3297
      %v3474 = vpop.f32.mrb[0].mxu0
      %v3475 = vadd.f32 0.0, %v3474
      %v3476 = vpop.f32.mrb[0].mxu0
      %3477 = vmatprep.mubr.f32.mxu0 0.0
      %3478 = vmatmul.mubr.f32.gmra.mrb[0].mxu0 %v3300
      %v3479 = vpop.f32.mrb[0].mxu0
      %v3480 = vadd.f32 0.0, %v3479
      %v3481 = vpop.f32.mrb[0].mxu0
      %3482 = vmatprep.mubr.f32.mxu0 0.0
      %3483 = vmatmul.mubr.f32.gmra.mrb[0].mxu0 %v3303
      %v3484 = vpop.f32.mrb[0].mxu0
      %v3485 = vadd.f32 0.0, %v3484
      %v3486 = vpop.f32.mrb[0].mxu0
      %3487 = vmatprep.mubr.f32.mxu0 0.0
      %3488 = vmatmul.mubr.f32.gmra.mrb[0].mxu0 %v3306
      %v3489 = vpop.f32.mrb[0].mxu0
      %v3490 = vadd.f32 0.0, %v3489
      %v3491 = vpop.f32.mrb[0].mxu0
      %3492 = vmatprep.mubr.f32.mxu0 0.0
      %3493 = vmatmul.mubr.f32.gmra.mrb[0].mxu0 %v3309
      %v3494 = vpop.f32.mrb[0].mxu0
      %v3495 = vadd.f32 0.0, %v3494
      %v3496 = vpop.f32.mrb[0].mxu0
      %3497 = vmatprep.mubr.f32.mxu0 0.0
      %3498 = vmatmul.mubr.f32.gmra.mrb[0].mxu0 %v3312
      %v3499 = vpop.f32.mrb[0].mxu0
      %v3500 = vadd.f32 0.0, %v3499
      %v3501 = vpop.f32.mrb[0].mxu0
      %3502 = vmatprep.mubr.f32.mxu0 0.0
      %3503 = vmatmul.mubr.f32.gmra.mrb[0].mxu0 %v3315
      %v3504 = vpop.f32.mrb[0].mxu0
      %v3505 = vadd.f32 0.0, %v3504
      %v3506 = vpop.f32.mrb[0].mxu0
      %3507 = vmatprep.mubr.f32.mxu0 0.0
      %3508 = vmatmul.mubr.f32.gmra.mrb[0].mxu0 %v3318
      %v3509 = vpop.f32.mrb[0].mxu0
      %v3510 = vadd.f32 0.0, %v3509
      %v3511 = vpop.f32.mrb[0].mxu0
      %3512 = vmatprep.mubr.f32.mxu0 0.0
      %3513 = vmatmul.mubr.f32.gmra.mrb[0].mxu0 %v3321
      %v3514 = vpop.f32.mrb[0].mxu0
      %v3515 = vadd.f32 0.0, %v3514
      %v3516 = vpop.f32.mrb[0].mxu0
      %3517 = vmatprep.mubr.f32.mxu0 0.0
      %3518 = vmatmul.mubr.f32.gmra.mrb[0].mxu0 %v3324
      %v3519 = vpop.f32.mrb[0].mxu0
      %v3520 = vadd.f32 0.0, %v3519
      %v3521 = vpop.f32.mrb[0].mxu0
      %3522 = vmatprep.mubr.f32.mxu0 0.0
      %3523 = vmatmul.mubr.f32.gmra.mrb[0].mxu0 %v3327
      %v3524 = vpop.f32.mrb[0].mxu0
      %v3525 = vadd.f32 0.0, %v3524
      %v3526 = vpop.f32.mrb[0].mxu0
      %3527 = vmatprep.mubr.f32.mxu0 0.0
      %3528 = vmatmul.mubr.f32.gmra.mrb[0].mxu0 %v3330
      %v3529 = vpop.f32.mrb[0].mxu0
      %v3530 = vadd.f32 0.0, %v3529
      %v3531 = vpop.f32.mrb[0].mxu0
      %3532 = vmatprep.mubr.f32.mxu0 0.0
      %3533 = vmatmul.mubr.f32.gmra.mrb[0].mxu0 %v3333
      %v3534 = vpop.f32.mrb[0].mxu0
      %v3535 = vadd.f32 0.0, %v3534
      %v3536 = vpop.f32.mrb[0].mxu0
      %3537 = vmatprep.mubr.f32.mxu0 0.0
      %3538 = vmatmul.mubr.f32.gmra.mrb[0].mxu0 %v3336
      %v3539 = vpop.f32.mrb[0].mxu0
      %v3540 = vadd.f32 0.0, %v3539
      %v3541 = vpop.f32.mrb[0].mxu0
      %3542 = vmatprep.mubr.f32.mxu0 0.0
      %3543 = vmatmul.mubr.f32.gmra.mrb[0].mxu0 %v3339
      %v3544 = vpop.f32.mrb[0].mxu0
      %v3545 = vadd.f32 0.0, %v3544
      %v3546 = vpop.f32.mrb[0].mxu0
      %3547 = vmatprep.mubr.f32.mxu0 0.0
      %3548 = vmatmul.mubr.f32.gmra.mrb[0].mxu0 %v3342
      %v3549 = vpop.f32.mrb[0].mxu0
      %v3550 = vadd.f32 0.0, %v3549
      %v3551 = vpop.f32.mrb[0].mxu0
      %3552 = vmatprep.mubr.f32.mxu0 0.0
      %3553 = vmatmul.mubr.f32.gmra.mrb[0].mxu0 %v3345
      %v3554 = vpop.f32.mrb[0].mxu0
      %v3555 = vadd.f32 0.0, %v3554
      %v3556 = vpop.f32.mrb[0].mxu0
      %3557 = vmatprep.mubr.f32.mxu0 0.0
      %3558 = vmatmul.mubr.f32.gmra.mrb[0].mxu0 %v3348
      %v3559 = vpop.f32.mrb[0].mxu0
      %v3560 = vadd.f32 0.0, %v3559
      %v3561 = vpop.f32.mrb[0].mxu0
      %3562 = vmatprep.mubr.f32.mxu0 0.0
      %3563 = vmatmul.mubr.f32.gmra.mrb[0].mxu0 %v3351
      %v3564 = vpop.f32.mrb[0].mxu0
      %v3565 = vadd.f32 0.0, %v3564
      %v3566 = vpop.f32.mrb[0].mxu0
      %3567 = vmatprep.mubr.f32.mxu0 0.0
      %3568 = vmatmul.mubr.f32.gmra.mrb[0].mxu0 %v3354
      %v3569 = vpop.f32.mrb[0].mxu0
      %v3570 = vadd.f32 0.0, %v3569
      %v3571 = vpop.f32.mrb[0].mxu0
      %3572 = vmatprep.mubr.f32.mxu0 0.0
      %3573 = vmatmul.mubr.f32.gmra.mrb[0].mxu0 %v3357
      %v3574 = vpop.f32.mrb[0].mxu0
      %v3575 = vadd.f32 0.0, %v3574
      %v3576 = vpop.f32.mrb[0].mxu0
      %3577 = vmatprep.mubr.f32.mxu0 0.0
      %3578 = vmatmul.mubr.f32.gmra.mrb[0].mxu0 %v3360
      %v3579 = vpop.f32.mrb[0].mxu0
      %v3580 = vadd.f32 0.0, %v3579
      %v3581 = vpop.f32.mrb[0].mxu0
      %3582 = vmatprep.mubr.f32.mxu0 0.0
      %3583 = vmatmul.mubr.f32.gmra.mrb[0].mxu0 %v3363
      %v3584 = vpop.f32.mrb[0].mxu0
      %v3585 = vadd.f32 0.0, %v3584
      %v3586 = vpop.f32.mrb[0].mxu0
      %3587 = vmatprep.mubr.f32.mxu0 0.0
      %3588 = vmatmul.mubr.f32.gmra.mrb[0].mxu0 %v3366
      %v3589 = vpop.f32.mrb[0].mxu0
      %v3590 = vadd.f32 0.0, %v3589
      %v3591 = vpop.f32.mrb[0].mxu0
      %3592 = vdwg.mxu0
      %v3594 = vsel %vm3271, %v2702, 0
      %v3597 = vsel %vm3271, %v2703, 0
      %v3600 = vsel %vm3271, %v2704, 0
      %v3603 = vsel %vm3271, %v2705, 0
      %v3606 = vsel %vm3271, %v2706, 0
      %v3609 = vsel %vm3271, %v2707, 0
      %v3612 = vsel %vm3271, %v2708, 0
      %v3615 = vsel %vm3271, %v2709, 0
      %v3618 = vsel %vm3271, %v2710, 0
      %v3621 = vsel %vm3271, %v2711, 0
      %v3624 = vsel %vm3271, %v2712, 0
      %v3627 = vsel %vm3271, %v2713, 0
      %v3630 = vsel %vm3271, %v2714, 0
      %v3633 = vsel %vm3271, %v2715, 0
      %v3636 = vsel %vm3271, %v2716, 0
      %v3639 = vsel %vm3271, %v2717, 0
      %v3642 = vsel %vm3271, %v2718, 0
      %v3645 = vsel %vm3271, %v2719, 0
      %v3648 = vsel %vm3271, %v2720, 0
      %v3651 = vsel %vm3271, %v2721, 0
      %v3654 = vsel %vm3271, %v2722, 0
      %v3657 = vsel %vm3271, %v2723, 0
      %v3660 = vsel %vm3271, %v2724, 0
      %v3663 = vsel %vm3271, %v2725, 0
      %v3666 = vsel %vm3271, %v2726, 0
      %v3669 = vsel %vm3271, %v2727, 0
      %v3672 = vsel %vm3271, %v2728, 0
      %v3675 = vsel %vm3271, %v2729, 0
      %v3678 = vsel %vm3271, %v2730, 0
      %v3681 = vsel %vm3271, %v2731, 0
      %v3684 = vsel %vm3271, %v2732, 0
      %v3687 = vsel %vm3271, %v2733, 0
      %3689 = vmatprep.subr.mxu0 0.0
      %3690 = vmatpush1.msra.mxu0 %v2734
      %3691 = vmatprep.subr.mxu0 0.0
      %3692 = vmatpush1.msra.mxu0 %v2735
      %3693 = vmatprep.subr.mxu0 0.0
      %3694 = vmatpush1.msra.mxu0 %v2736
      %3695 = vmatprep.subr.mxu0 0.0
      %3696 = vmatpush1.msra.mxu0 %v2737
      %3697 = vmatprep.subr.mxu0 0.0
      %3698 = vmatpush1.msra.mxu0 %v2738
      %3699 = vmatprep.subr.mxu0 0.0
      %3700 = vmatpush1.msra.mxu0 %v2739
      %3701 = vmatprep.subr.mxu0 0.0
      %3702 = vmatpush1.msra.mxu0 %v2740
      %3703 = vmatprep.subr.mxu0 0.0
      %3704 = vmatpush1.msra.mxu0 %v2741
      %3705 = vmatprep.subr.mxu0 0.0
      %3706 = vmatpush1.msra.mxu0 %v2742
      %3707 = vmatprep.subr.mxu0 0.0
      %3708 = vmatpush1.msra.mxu0 %v2743
      %3709 = vmatprep.subr.mxu0 0.0
      %3710 = vmatpush1.msra.mxu0 %v2744
      %3711 = vmatprep.subr.mxu0 0.0
      %3712 = vmatpush1.msra.mxu0 %v2745
      %3713 = vmatprep.subr.mxu0 0.0
      %3714 = vmatpush1.msra.mxu0 0.0
      %3715 = vmatprep.subr.mxu0 0.0
      %3716 = vmatpush1.msra.mxu0 0.0
      %3717 = vmatprep.subr.mxu0 0.0
      %3718 = vmatpush1.msra.mxu0 0.0
      %3719 = vmatprep.subr.mxu0 0.0
      %3720 = vmatpush1.msra.mxu0 0.0
      %3721 = vmatprep.subr.mxu0 0.0
      %3722 = vmatpush1.msra.mxu0 0.0
      %3723 = vmatprep.subr.mxu0 0.0
      %3724 = vmatpush1.msra.mxu0 0.0
      %3725 = vmatprep.subr.mxu0 0.0
      %3726 = vmatpush1.msra.mxu0 0.0
      %3727 = vmatprep.subr.mxu0 0.0
      %3728 = vmatpush1.msra.mxu0 0.0
      %3729 = vmatprep.subr.mxu0 0.0
      %3730 = vmatpush1.msra.mxu0 0.0
      %3731 = vmatprep.subr.mxu0 0.0
      %3732 = vmatpush1.msra.mxu0 0.0
      %3733 = vmatprep.subr.mxu0 0.0
      %3734 = vmatpush1.msra.mxu0 0.0
      %3735 = vmatprep.subr.mxu0 0.0
      %3736 = vmatpush1.msra.mxu0 0.0
      %3737 = vmatprep.subr.mxu0 0.0
      %3738 = vmatpush1.msra.mxu0 0.0
      %3739 = vmatprep.subr.mxu0 0.0
      %3740 = vmatpush1.msra.mxu0 0.0
      %3741 = vmatprep.subr.mxu0 0.0
      %3742 = vmatpush1.msra.mxu0 0.0
      %3743 = vmatprep.subr.mxu0 0.0
      %3744 = vmatpush1.msra.mxu0 0.0
      %3745 = vmatprep.subr.mxu0 0.0
      %3746 = vmatpush1.msra.mxu0 0.0
      %3747 = vmatprep.subr.mxu0 0.0
      %3748 = vmatpush1.msra.mxu0 0.0
      %3749 = vmatprep.subr.mxu0 0.0
      %3750 = vmatpush1.msra.mxu0 0.0
      %3751 = vmatprep.subr.mxu0 0.0
      %3752 = vmatpush1.msra.mxu0 0.0
      %3753 = vmatprep.mubr.f32.mxu0 0.0
      %3754 = vmatmul.mubr.f32.gmra.mrb[0].mxu0 %v3594
      %v3755 = vpop.f32.mrb[0].mxu0
      %v3756 = vadd.f32 %v3435, %v3755
      %v3757 = vpop.f32.mrb[0].mxu0
      %3758 = vmatprep.mubr.f32.mxu0 0.0
      %3759 = vmatmul.mubr.f32.gmra.mrb[0].mxu0 %v3597
      %v3760 = vpop.f32.mrb[0].mxu0
      %v3761 = vadd.f32 %v3440, %v3760
      %v3762 = vpop.f32.mrb[0].mxu0
      %3763 = vmatprep.mubr.f32.mxu0 0.0
      %3764 = vmatmul.mubr.f32.gmra.mrb[0].mxu0 %v3600
      %v3765 = vpop.f32.mrb[0].mxu0
      %v3766 = vadd.f32 %v3445, %v3765
      %v3767 = vpop.f32.mrb[0].mxu0
      %3768 = vmatprep.mubr.f32.mxu0 0.0
      %3769 = vmatmul.mubr.f32.gmra.mrb[0].mxu0 %v3603
      %v3770 = vpop.f32.mrb[0].mxu0
      %v3771 = vadd.f32 %v3450, %v3770
      %v3772 = vpop.f32.mrb[0].mxu0
      %3773 = vmatprep.mubr.f32.mxu0 0.0
      %3774 = vmatmul.mubr.f32.gmra.mrb[0].mxu0 %v3606
      %v3775 = vpop.f32.mrb[0].mxu0
      %v3776 = vadd.f32 %v3455, %v3775
      %v3777 = vpop.f32.mrb[0].mxu0
      %3778 = vmatprep.mubr.f32.mxu0 0.0
      %3779 = vmatmul.mubr.f32.gmra.mrb[0].mxu0 %v3609
      %v3780 = vpop.f32.mrb[0].mxu0
      %v3781 = vadd.f32 %v3460, %v3780
      %v3782 = vpop.f32.mrb[0].mxu0
      %3783 = vmatprep.mubr.f32.mxu0 0.0
      %3784 = vmatmul.mubr.f32.gmra.mrb[0].mxu0 %v3612
      %v3785 = vpop.f32.mrb[0].mxu0
      %v3786 = vadd.f32 %v3465, %v3785
      %v3787 = vpop.f32.mrb[0].mxu0
      %3788 = vmatprep.mubr.f32.mxu0 0.0
      %3789 = vmatmul.mubr.f32.gmra.mrb[0].mxu0 %v3615
      %v3790 = vpop.f32.mrb[0].mxu0
      %v3791 = vadd.f32 %v3470, %v3790
      %v3792 = vpop.f32.mrb[0].mxu0
      %3793 = vmatprep.mubr.f32.mxu0 0.0
      %3794 = vmatmul.mubr.f32.gmra.mrb[0].mxu0 %v3618
      %v3795 = vpop.f32.mrb[0].mxu0
      %v3796 = vadd.f32 %v3475, %v3795
      %v3797 = vpop.f32.mrb[0].mxu0
      %3798 = vmatprep.mubr.f32.mxu0 0.0
      %3799 = vmatmul.mubr.f32.gmra.mrb[0].mxu0 %v3621
      %v3800 = vpop.f32.mrb[0].mxu0
      %v3801 = vadd.f32 %v3480, %v3800
      %v3802 = vpop.f32.mrb[0].mxu0
      %3803 = vmatprep.mubr.f32.mxu0 0.0
      %3804 = vmatmul.mubr.f32.gmra.mrb[0].mxu0 %v3624
      %v3805 = vpop.f32.mrb[0].mxu0
      %v3806 = vadd.f32 %v3485, %v3805
      %v3807 = vpop.f32.mrb[0].mxu0
      %3808 = vmatprep.mubr.f32.mxu0 0.0
      %3809 = vmatmul.mubr.f32.gmra.mrb[0].mxu0 %v3627
      %v3810 = vpop.f32.mrb[0].mxu0
      %v3811 = vadd.f32 %v3490, %v3810
      %v3812 = vpop.f32.mrb[0].mxu0
      %3813 = vmatprep.mubr.f32.mxu0 0.0
      %3814 = vmatmul.mubr.f32.gmra.mrb[0].mxu0 %v3630
      %v3815 = vpop.f32.mrb[0].mxu0
      %v3816 = vadd.f32 %v3495, %v3815
      %v3817 = vpop.f32.mrb[0].mxu0
      %3818 = vmatprep.mubr.f32.mxu0 0.0
      %3819 = vmatmul.mubr.f32.gmra.mrb[0].mxu0 %v3633
      %v3820 = vpop.f32.mrb[0].mxu0
      %v3821 = vadd.f32 %v3500, %v3820
      %v3822 = vpop.f32.mrb[0].mxu0
      %3823 = vmatprep.mubr.f32.mxu0 0.0
      %3824 = vmatmul.mubr.f32.gmra.mrb[0].mxu0 %v3636
      %v3825 = vpop.f32.mrb[0].mxu0
      %v3826 = vadd.f32 %v3505, %v3825
      %v3827 = vpop.f32.mrb[0].mxu0
      %3828 = vmatprep.mubr.f32.mxu0 0.0
      %3829 = vmatmul.mubr.f32.gmra.mrb[0].mxu0 %v3639
      %v3830 = vpop.f32.mrb[0].mxu0
      %v3831 = vadd.f32 %v3510, %v3830
      %v3832 = vpop.f32.mrb[0].mxu0
      %3833 = vmatprep.mubr.f32.mxu0 0.0
      %3834 = vmatmul.mubr.f32.gmra.mrb[0].mxu0 %v3642
      %v3835 = vpop.f32.mrb[0].mxu0
      %v3836 = vadd.f32 %v3515, %v3835
      %v3837 = vpop.f32.mrb[0].mxu0
      %3838 = vmatprep.mubr.f32.mxu0 0.0
      %3839 = vmatmul.mubr.f32.gmra.mrb[0].mxu0 %v3645
      %v3840 = vpop.f32.mrb[0].mxu0
      %v3841 = vadd.f32 %v3520, %v3840
      %v3842 = vpop.f32.mrb[0].mxu0
      %3843 = vmatprep.mubr.f32.mxu0 0.0
      %3844 = vmatmul.mubr.f32.gmra.mrb[0].mxu0 %v3648
      %v3845 = vpop.f32.mrb[0].mxu0
      %v3846 = vadd.f32 %v3525, %v3845
      %v3847 = vpop.f32.mrb[0].mxu0
      %3848 = vmatprep.mubr.f32.mxu0 0.0
      %3849 = vmatmul.mubr.f32.gmra.mrb[0].mxu0 %v3651
      %v3850 = vpop.f32.mrb[0].mxu0
      %v3851 = vadd.f32 %v3530, %v3850
      %v3852 = vpop.f32.mrb[0].mxu0
      %3853 = vmatprep.mubr.f32.mxu0 0.0
      %3854 = vmatmul.mubr.f32.gmra.mrb[0].mxu0 %v3654
      %v3855 = vpop.f32.mrb[0].mxu0
      %v3856 = vadd.f32 %v3535, %v3855
      %v3857 = vpop.f32.mrb[0].mxu0
      %3858 = vmatprep.mubr.f32.mxu0 0.0
      %3859 = vmatmul.mubr.f32.gmra.mrb[0].mxu0 %v3657
      %v3860 = vpop.f32.mrb[0].mxu0
      %v3861 = vadd.f32 %v3540, %v3860
      %v3862 = vpop.f32.mrb[0].mxu0
      %3863 = vmatprep.mubr.f32.mxu0 0.0
      %3864 = vmatmul.mubr.f32.gmra.mrb[0].mxu0 %v3660
      %v3865 = vpop.f32.mrb[0].mxu0
      %v3866 = vadd.f32 %v3545, %v3865
      %v3867 = vpop.f32.mrb[0].mxu0
      %3868 = vmatprep.mubr.f32.mxu0 0.0
      %3869 = vmatmul.mubr.f32.gmra.mrb[0].mxu0 %v3663
      %v3870 = vpop.f32.mrb[0].mxu0
      %v3871 = vadd.f32 %v3550, %v3870
      %v3872 = vpop.f32.mrb[0].mxu0
      %3873 = vmatprep.mubr.f32.mxu0 0.0
      %3874 = vmatmul.mubr.f32.gmra.mrb[0].mxu0 %v3666
      %v3875 = vpop.f32.mrb[0].mxu0
      %v3876 = vadd.f32 %v3555, %v3875
      %v3877 = vpop.f32.mrb[0].mxu0
      %3878 = vmatprep.mubr.f32.mxu0 0.0
      %3879 = vmatmul.mubr.f32.gmra.mrb[0].mxu0 %v3669
      %v3880 = vpop.f32.mrb[0].mxu0
      %v3881 = vadd.f32 %v3560, %v3880
      %v3882 = vpop.f32.mrb[0].mxu0
      %3883 = vmatprep.mubr.f32.mxu0 0.0
      %3884 = vmatmul.mubr.f32.gmra.mrb[0].mxu0 %v3672
      %v3885 = vpop.f32.mrb[0].mxu0
      %v3886 = vadd.f32 %v3565, %v3885
      %v3887 = vpop.f32.mrb[0].mxu0
      %3888 = vmatprep.mubr.f32.mxu0 0.0
      %3889 = vmatmul.mubr.f32.gmra.mrb[0].mxu0 %v3675
      %v3890 = vpop.f32.mrb[0].mxu0
      %v3891 = vadd.f32 %v3570, %v3890
      %v3892 = vpop.f32.mrb[0].mxu0
      %3893 = vmatprep.mubr.f32.mxu0 0.0
      %3894 = vmatmul.mubr.f32.gmra.mrb[0].mxu0 %v3678
      %v3895 = vpop.f32.mrb[0].mxu0
      %v3896 = vadd.f32 %v3575, %v3895
      %v3897 = vpop.f32.mrb[0].mxu0
      %3898 = vmatprep.mubr.f32.mxu0 0.0
      %3899 = vmatmul.mubr.f32.gmra.mrb[0].mxu0 %v3681
      %v3900 = vpop.f32.mrb[0].mxu0
      %v3901 = vadd.f32 %v3580, %v3900
      %v3902 = vpop.f32.mrb[0].mxu0
      %3903 = vmatprep.mubr.f32.mxu0 0.0
      %3904 = vmatmul.mubr.f32.gmra.mrb[0].mxu0 %v3684
      %v3905 = vpop.f32.mrb[0].mxu0
      %v3906 = vadd.f32 %v3585, %v3905
      %v3907 = vpop.f32.mrb[0].mxu0
      %3908 = vmatprep.mubr.f32.mxu0 0.0
      %3909 = vmatmul.mubr.f32.gmra.mrb[0].mxu0 %v3687
      %v3910 = vpop.f32.mrb[0].mxu0
      %v3911 = vadd.f32 %v3590, %v3910
      %v3912 = vpop.f32.mrb[0].mxu0
      %3913 = vdwg.mxu0
      %s3914 = scalar_lea.vmem [#allocation3], 48
      %v3915 = vld [vmem:[%s3914] sm:$0xff]
      %v3916 = vld [vmem:[%s3914 + $0x8] sm:$0xff]
      %v3917 = vld [vmem:[%s3914 + $0x10] sm:$0x3]
      %v3918 = vld [vmem:[%s3914 + $0x18] sm:$0xff]
      %v3919 = vld [vmem:[%s3914 + $0x20] sm:$0xff]
      %v3920 = vld [vmem:[%s3914 + $0x28] sm:$0x3]
      %v3921 = vld [vmem:[%s3914 + $0x30] sm:$0xff]
      %v3922 = vld [vmem:[%s3914 + $0x38] sm:$0xff]
      %v3923 = vld [vmem:[%s3914 + $0x40] sm:$0x3]
      %v3924 = vld [vmem:[%s3914 + $0x48] sm:$0xff]
      %v3925 = vld [vmem:[%s3914 + $0x50] sm:$0xff]
      %v3926 = vld [vmem:[%s3914 + $0x58] sm:$0x3]
      %v3927 = vld [vmem:[%s3914 + $0x60] sm:$0xff]
      %v3928 = vld [vmem:[%s3914 + $0x68] sm:$0xff]
      %v3929 = vld [vmem:[%s3914 + $0x70] sm:$0x3]
      %v3930 = vld [vmem:[%s3914 + $0x78] sm:$0xff]
      %v3931 = vld [vmem:[%s3914 + $0x80] sm:$0xff]
      %v3932 = vld [vmem:[%s3914 + $0x88] sm:$0x3]
      %v3933 = vld [vmem:[%s3914 + $0x90] sm:$0xff]
      %v3934 = vld [vmem:[%s3914 + $0x98] sm:$0xff]
      %v3935 = vld [vmem:[%s3914 + $0xa0] sm:$0x3]
      %v3936 = vld [vmem:[%s3914 + $0xa8] sm:$0xff]
      %v3937 = vld [vmem:[%s3914 + $0xb0] sm:$0xff]
      %v3938 = vld [vmem:[%s3914 + $0xb8] sm:$0x3]
      %v3939 = vld [vmem:[%s3914 + $0xc0] sm:$0xff]
      %v3940 = vld [vmem:[%s3914 + $0xc8] sm:$0xff]
      %v3941 = vld [vmem:[%s3914 + $0xd0] sm:$0x3]
      %v3942 = vld [vmem:[%s3914 + $0xd8] sm:$0xff]
      %v3943 = vld [vmem:[%s3914 + $0xe0] sm:$0xff]
      %v3944 = vld [vmem:[%s3914 + $0xe8] sm:$0x3]
      %v3945 = vld [vmem:[%s3914 + $0xf0] sm:$0xff]
      %v3946 = vld [vmem:[%s3914 + $0xf8] sm:$0xff]
      %v3947 = vld [vmem:[%s3914 + $0x100] sm:$0x3]
      %v3948 = vld [vmem:[%s3914 + $0x108] sm:$0xff]
      %v3949 = vld [vmem:[%s3914 + $0x110] sm:$0xff]
      %v3950 = vld [vmem:[%s3914 + $0x118] sm:$0x3]
      %v3951 = vld [vmem:[%s3914 + $0x120] sm:$0xff]
      %v3952 = vld [vmem:[%s3914 + $0x128] sm:$0xff]
      %v3953 = vld [vmem:[%s3914 + $0x130] sm:$0x3]
      %v3954 = vld [vmem:[%s3914 + $0x138] sm:$0xff]
      %v3955 = vld [vmem:[%s3914 + $0x140] sm:$0xff]
      %v3956 = vld [vmem:[%s3914 + $0x148] sm:$0x3]
      %v3957 = vld [vmem:[%s3914 + $0x150] sm:$0xff]
      %v3958 = vld [vmem:[%s3914 + $0x158] sm:$0xff]
      %v3959 = vld [vmem:[%s3914 + $0x160] sm:$0x3]
      %v3960 = vld [vmem:[%s3914 + $0x168] sm:$0xff]
      %v3961 = vld [vmem:[%s3914 + $0x170] sm:$0xff]
      %v3962 = vld [vmem:[%s3914 + $0x178] sm:$0x3]
      %v4011 = vrot.slane %v3915, 1
      %v4012 = vrot.slane %v3916, 1
      %v4013 = vsel %vm2315, %v4011, %v4012
      %v4014 = vrot.slane %v3917, 1
      %v4015 = vsel %vm2315, %v4012, %v4014
      %v4016 = vrot.slane %v3918, 1
      %v4017 = vrot.slane %v3919, 1
      %v4018 = vsel %vm2315, %v4016, %v4017
      %v4019 = vrot.slane %v3920, 1
      %v4020 = vsel %vm2315, %v4017, %v4019
      %v4021 = vrot.slane %v3921, 1
      %v4022 = vrot.slane %v3922, 1
      %v4023 = vsel %vm2315, %v4021, %v4022
      %v4024 = vrot.slane %v3923, 1
      %v4025 = vsel %vm2315, %v4022, %v4024
      %v4026 = vrot.slane %v3924, 1
      %v4027 = vrot.slane %v3925, 1
      %v4028 = vsel %vm2315, %v4026, %v4027
      %v4029 = vrot.slane %v3926, 1
      %v4030 = vsel %vm2315, %v4027, %v4029
      %v4031 = vrot.slane %v3927, 1
      %v4032 = vrot.slane %v3928, 1
      %v4033 = vsel %vm2315, %v4031, %v4032
      %v4034 = vrot.slane %v3929, 1
      %v4035 = vsel %vm2315, %v4032, %v4034
      %v4036 = vrot.slane %v3930, 1
      %v4037 = vrot.slane %v3931, 1
      %v4038 = vsel %vm2315, %v4036, %v4037
      %v4039 = vrot.slane %v3932, 1
      %v4040 = vsel %vm2315, %v4037, %v4039
      %v4041 = vrot.slane %v3933, 1
      %v4042 = vrot.slane %v3934, 1
      %v4043 = vsel %vm2315, %v4041, %v4042
      %v4044 = vrot.slane %v3935, 1
      %v4045 = vsel %vm2315, %v4042, %v4044
      %v4046 = vrot.slane %v3936, 1
      %v4047 = vrot.slane %v3937, 1
      %v4048 = vsel %vm2315, %v4046, %v4047
      %v4049 = vrot.slane %v3938, 1
      %v4050 = vsel %vm2315, %v4047, %v4049
      %v4051 = vrot.slane %v3939, 1
      %v4052 = vrot.slane %v3940, 1
      %v4053 = vsel %vm2315, %v4051, %v4052
      %v4054 = vrot.slane %v3941, 1
      %v4055 = vsel %vm2315, %v4052, %v4054
      %v4056 = vrot.slane %v3942, 1
      %v4057 = vrot.slane %v3943, 1
      %v4058 = vsel %vm2315, %v4056, %v4057
      %v4059 = vrot.slane %v3944, 1
      %v4060 = vsel %vm2315, %v4057, %v4059
      %v4061 = vrot.slane %v3945, 1
      %v4062 = vrot.slane %v3946, 1
      %v4063 = vsel %vm2315, %v4061, %v4062
      %v4064 = vrot.slane %v3947, 1
      %v4065 = vsel %vm2315, %v4062, %v4064
      %v4066 = vrot.slane %v3948, 1
      %v4067 = vrot.slane %v3949, 1
      %v4068 = vsel %vm2315, %v4066, %v4067
      %v4069 = vrot.slane %v3950, 1
      %v4070 = vsel %vm2315, %v4067, %v4069
      %v4071 = vrot.slane %v3951, 1
      %v4072 = vrot.slane %v3952, 1
      %v4073 = vsel %vm2315, %v4071, %v4072
      %v4074 = vrot.slane %v3953, 1
      %v4075 = vsel %vm2315, %v4072, %v4074
      %v4076 = vrot.slane %v3954, 1
      %v4077 = vrot.slane %v3955, 1
      %v4078 = vsel %vm2315, %v4076, %v4077
      %v4079 = vrot.slane %v3956, 1
      %v4080 = vsel %vm2315, %v4077, %v4079
      %v4081 = vrot.slane %v3957, 1
      %v4082 = vrot.slane %v3958, 1
      %v4083 = vsel %vm2315, %v4081, %v4082
      %v4084 = vrot.slane %v3959, 1
      %v4085 = vsel %vm2315, %v4082, %v4084
      %v4086 = vrot.slane %v3960, 1
      %v4087 = vrot.slane %v3961, 1
      %v4088 = vsel %vm2315, %v4086, %v4087
      %v4089 = vrot.slane %v3962, 1
      %v4090 = vsel %vm2315, %v4087, %v4089
      %4091 = vrot.lane.b32.xlu0 %v4013, 32
      %v4092 = vpop.permute.xlu0 %4091
      %4093 = vrot.lane.b32.xlu0 %v4015, 32
      %v4094 = vpop.permute.xlu0 %4093
      %4095 = vrot.lane.b32.xlu0 %v4018, 32
      %v4096 = vpop.permute.xlu0 %4095
      %4097 = vrot.lane.b32.xlu0 %v4020, 32
      %v4098 = vpop.permute.xlu0 %4097
      %4099 = vrot.lane.b32.xlu0 %v4023, 32
      %v4100 = vpop.permute.xlu0 %4099
      %4101 = vrot.lane.b32.xlu0 %v4025, 32
      %v4102 = vpop.permute.xlu0 %4101
      %4103 = vrot.lane.b32.xlu0 %v4028, 32
      %v4104 = vpop.permute.xlu0 %4103
      %4105 = vrot.lane.b32.xlu0 %v4030, 32
      %v4106 = vpop.permute.xlu0 %4105
      %4107 = vrot.lane.b32.xlu0 %v4033, 32
      %v4108 = vpop.permute.xlu0 %4107
      %4109 = vrot.lane.b32.xlu0 %v4035, 32
      %v4110 = vpop.permute.xlu0 %4109
      %4111 = vrot.lane.b32.xlu0 %v4038, 32
      %v4112 = vpop.permute.xlu0 %4111
      %4113 = vrot.lane.b32.xlu0 %v4040, 32
      %v4114 = vpop.permute.xlu0 %4113
      %4115 = vrot.lane.b32.xlu0 %v4043, 32
      %v4116 = vpop.permute.xlu0 %4115
      %4117 = vrot.lane.b32.xlu0 %v4045, 32
      %v4118 = vpop.permute.xlu0 %4117
      %4119 = vrot.lane.b32.xlu0 %v4048, 32
      %v4120 = vpop.permute.xlu0 %4119
      %4121 = vrot.lane.b32.xlu0 %v4050, 32
      %v4122 = vpop.permute.xlu0 %4121
      %4123 = vrot.lane.b32.xlu0 %v4053, 32
      %v4124 = vpop.permute.xlu0 %4123
      %4125 = vrot.lane.b32.xlu0 %v4055, 32
      %v4126 = vpop.permute.xlu0 %4125
      %4127 = vrot.lane.b32.xlu0 %v4058, 32
      %v4128 = vpop.permute.xlu0 %4127
      %4129 = vrot.lane.b32.xlu0 %v4060, 32
      %v4130 = vpop.permute.xlu0 %4129
      %4131 = vrot.lane.b32.xlu0 %v4063, 32
      %v4132 = vpop.permute.xlu0 %4131
      %4133 = vrot.lane.b32.xlu0 %v4065, 32
      %v4134 = vpop.permute.xlu0 %4133
      %4135 = vrot.lane.b32.xlu0 %v4068, 32
      %v4136 = vpop.permute.xlu0 %4135
      %4137 = vrot.lane.b32.xlu0 %v4070, 32
      %v4138 = vpop.permute.xlu0 %4137
      %4139 = vrot.lane.b32.xlu0 %v4073, 32
      %v4140 = vpop.permute.xlu0 %4139
      %4141 = vrot.lane.b32.xlu0 %v4075, 32
      %v4142 = vpop.permute.xlu0 %4141
      %4143 = vrot.lane.b32.xlu0 %v4078, 32
      %v4144 = vpop.permute.xlu0 %4143
      %4145 = vrot.lane.b32.xlu0 %v4080, 32
      %v4146 = vpop.permute.xlu0 %4145
      %4147 = vrot.lane.b32.xlu0 %v4083, 32
      %v4148 = vpop.permute.xlu0 %4147
      %4149 = vrot.lane.b32.xlu0 %v4085, 32
      %v4150 = vpop.permute.xlu0 %4149
      %4151 = vrot.lane.b32.xlu0 %v4088, 32
      %v4152 = vpop.permute.xlu0 %4151
      %4153 = vrot.lane.b32.xlu0 %v4090, 32
      %v4154 = vpop.permute.xlu0 %4153
      %v4187 = vrot.slane %v3915, 2
      %v4188 = vrot.slane %v3916, 2
      %v4189 = vsel %vm2492, %v4187, %v4188
      %v4190 = vrot.slane %v3917, 2
      %v4191 = vsel %vm2492, %v4188, %v4190
      %v4192 = vrot.slane %v3918, 2
      %v4193 = vrot.slane %v3919, 2
      %v4194 = vsel %vm2492, %v4192, %v4193
      %v4195 = vrot.slane %v3920, 2
      %v4196 = vsel %vm2492, %v4193, %v4195
      %v4197 = vrot.slane %v3921, 2
      %v4198 = vrot.slane %v3922, 2
      %v4199 = vsel %vm2492, %v4197, %v4198
      %v4200 = vrot.slane %v3923, 2
      %v4201 = vsel %vm2492, %v4198, %v4200
      %v4202 = vrot.slane %v3924, 2
      %v4203 = vrot.slane %v3925, 2
      %v4204 = vsel %vm2492, %v4202, %v4203
      %v4205 = vrot.slane %v3926, 2
      %v4206 = vsel %vm2492, %v4203, %v4205
      %v4207 = vrot.slane %v3927, 2
      %v4208 = vrot.slane %v3928, 2
      %v4209 = vsel %vm2492, %v4207, %v4208
      %v4210 = vrot.slane %v3929, 2
      %v4211 = vsel %vm2492, %v4208, %v4210
      %v4212 = vrot.slane %v3930, 2
      %v4213 = vrot.slane %v3931, 2
      %v4214 = vsel %vm2492, %v4212, %v4213
      %v4215 = vrot.slane %v3932, 2
      %v4216 = vsel %vm2492, %v4213, %v4215
      %v4217 = vrot.slane %v3933, 2
      %v4218 = vrot.slane %v3934, 2
      %v4219 = vsel %vm2492, %v4217, %v4218
      %v4220 = vrot.slane %v3935, 2
      %v4221 = vsel %vm2492, %v4218, %v4220
      %v4222 = vrot.slane %v3936, 2
      %v4223 = vrot.slane %v3937, 2
      %v4224 = vsel %vm2492, %v4222, %v4223
      %v4225 = vrot.slane %v3938, 2
      %v4226 = vsel %vm2492, %v4223, %v4225
      %v4227 = vrot.slane %v3939, 2
      %v4228 = vrot.slane %v3940, 2
      %v4229 = vsel %vm2492, %v4227, %v4228
      %v4230 = vrot.slane %v3941, 2
      %v4231 = vsel %vm2492, %v4228, %v4230
      %v4232 = vrot.slane %v3942, 2
      %v4233 = vrot.slane %v3943, 2
      %v4234 = vsel %vm2492, %v4232, %v4233
      %v4235 = vrot.slane %v3944, 2
      %v4236 = vsel %vm2492, %v4233, %v4235
      %v4237 = vrot.slane %v3945, 2
      %v4238 = vrot.slane %v3946, 2
      %v4239 = vsel %vm2492, %v4237, %v4238
      %v4240 = vrot.slane %v3947, 2
      %v4241 = vsel %vm2492, %v4238, %v4240
      %v4242 = vrot.slane %v3948, 2
      %v4243 = vrot.slane %v3949, 2
      %v4244 = vsel %vm2492, %v4242, %v4243
      %v4245 = vrot.slane %v3950, 2
      %v4246 = vsel %vm2492, %v4243, %v4245
      %v4247 = vrot.slane %v3951, 2
      %v4248 = vrot.slane %v3952, 2
      %v4249 = vsel %vm2492, %v4247, %v4248
      %v4250 = vrot.slane %v3953, 2
      %v4251 = vsel %vm2492, %v4248, %v4250
      %v4252 = vrot.slane %v3954, 2
      %v4253 = vrot.slane %v3955, 2
      %v4254 = vsel %vm2492, %v4252, %v4253
      %v4255 = vrot.slane %v3956, 2
      %v4256 = vsel %vm2492, %v4253, %v4255
      %v4257 = vrot.slane %v3957, 2
      %v4258 = vrot.slane %v3958, 2
      %v4259 = vsel %vm2492, %v4257, %v4258
      %v4260 = vrot.slane %v3959, 2
      %v4261 = vsel %vm2492, %v4258, %v4260
      %v4262 = vrot.slane %v3960, 2
      %v4263 = vrot.slane %v3961, 2
      %v4264 = vsel %vm2492, %v4262, %v4263
      %v4265 = vrot.slane %v3962, 2
      %v4266 = vsel %vm2492, %v4263, %v4265
      %4267 = vrot.lane.b32.xlu0 %v4189, 64
      %v4268 = vpop.permute.xlu0 %4267
      %4269 = vrot.lane.b32.xlu0 %v4191, 64
      %v4270 = vpop.permute.xlu0 %4269
      %4271 = vrot.lane.b32.xlu0 %v4194, 64
      %v4272 = vpop.permute.xlu0 %4271
      %4273 = vrot.lane.b32.xlu0 %v4196, 64
      %v4274 = vpop.permute.xlu0 %4273
      %4275 = vrot.lane.b32.xlu0 %v4199, 64
      %v4276 = vpop.permute.xlu0 %4275
      %4277 = vrot.lane.b32.xlu0 %v4201, 64
      %v4278 = vpop.permute.xlu0 %4277
      %4279 = vrot.lane.b32.xlu0 %v4204, 64
      %v4280 = vpop.permute.xlu0 %4279
      %4281 = vrot.lane.b32.xlu0 %v4206, 64
      %v4282 = vpop.permute.xlu0 %4281
      %4283 = vrot.lane.b32.xlu0 %v4209, 64
      %v4284 = vpop.permute.xlu0 %4283
      %4285 = vrot.lane.b32.xlu0 %v4211, 64
      %v4286 = vpop.permute.xlu0 %4285
      %4287 = vrot.lane.b32.xlu0 %v4214, 64
      %v4288 = vpop.permute.xlu0 %4287
      %4289 = vrot.lane.b32.xlu0 %v4216, 64
      %v4290 = vpop.permute.xlu0 %4289
      %4291 = vrot.lane.b32.xlu0 %v4219, 64
      %v4292 = vpop.permute.xlu0 %4291
      %4293 = vrot.lane.b32.xlu0 %v4221, 64
      %v4294 = vpop.permute.xlu0 %4293
      %4295 = vrot.lane.b32.xlu0 %v4224, 64
      %v4296 = vpop.permute.xlu0 %4295
      %4297 = vrot.lane.b32.xlu0 %v4226, 64
      %v4298 = vpop.permute.xlu0 %4297
      %4299 = vrot.lane.b32.xlu0 %v4229, 64
      %v4300 = vpop.permute.xlu0 %4299
      %4301 = vrot.lane.b32.xlu0 %v4231, 64
      %v4302 = vpop.permute.xlu0 %4301
      %4303 = vrot.lane.b32.xlu0 %v4234, 64
      %v4304 = vpop.permute.xlu0 %4303
      %4305 = vrot.lane.b32.xlu0 %v4236, 64
      %v4306 = vpop.permute.xlu0 %4305
      %4307 = vrot.lane.b32.xlu0 %v4239, 64
      %v4308 = vpop.permute.xlu0 %4307
      %4309 = vrot.lane.b32.xlu0 %v4241, 64
      %v4310 = vpop.permute.xlu0 %4309
      %4311 = vrot.lane.b32.xlu0 %v4244, 64
      %v4312 = vpop.permute.xlu0 %4311
      %4313 = vrot.lane.b32.xlu0 %v4246, 64
      %v4314 = vpop.permute.xlu0 %4313
      %4315 = vrot.lane.b32.xlu0 %v4249, 64
      %v4316 = vpop.permute.xlu0 %4315
      %4317 = vrot.lane.b32.xlu0 %v4251, 64
      %v4318 = vpop.permute.xlu0 %4317
      %4319 = vrot.lane.b32.xlu0 %v4254, 64
      %v4320 = vpop.permute.xlu0 %4319
      %4321 = vrot.lane.b32.xlu0 %v4256, 64
      %v4322 = vpop.permute.xlu0 %4321
      %4323 = vrot.lane.b32.xlu0 %v4259, 64
      %v4324 = vpop.permute.xlu0 %4323
      %4325 = vrot.lane.b32.xlu0 %v4261, 64
      %v4326 = vpop.permute.xlu0 %4325
      %4327 = vrot.lane.b32.xlu0 %v4264, 64
      %v4328 = vpop.permute.xlu0 %4327
      %4329 = vrot.lane.b32.xlu0 %v4266, 64
      %v4330 = vpop.permute.xlu0 %4329
      %v4363 = vsel %vm1586, %v3915, %v4092
      %v4364 = vsel %vm1586, %v3916, %v4094
      %v4365 = vsel %vm1586, %v3918, %v4096
      %v4366 = vsel %vm1586, %v3919, %v4098
      %v4367 = vsel %vm1586, %v3921, %v4100
      %v4368 = vsel %vm1586, %v3922, %v4102
      %v4369 = vsel %vm1586, %v3924, %v4104
      %v4370 = vsel %vm1586, %v3925, %v4106
      %v4371 = vsel %vm1586, %v3927, %v4108
      %v4372 = vsel %vm1586, %v3928, %v4110
      %v4373 = vsel %vm1586, %v3930, %v4112
      %v4374 = vsel %vm1586, %v3931, %v4114
      %v4375 = vsel %vm1586, %v3933, %v4116
      %v4376 = vsel %vm1586, %v3934, %v4118
      %v4377 = vsel %vm1586, %v3936, %v4120
      %v4378 = vsel %vm1586, %v3937, %v4122
      %v4379 = vsel %vm1586, %v3939, %v4124
      %v4380 = vsel %vm1586, %v3940, %v4126
      %v4381 = vsel %vm1586, %v3942, %v4128
      %v4382 = vsel %vm1586, %v3943, %v4130
      %v4383 = vsel %vm1586, %v3945, %v4132
      %v4384 = vsel %vm1586, %v3946, %v4134
      %v4385 = vsel %vm1586, %v3948, %v4136
      %v4386 = vsel %vm1586, %v3949, %v4138
      %v4387 = vsel %vm1586, %v3951, %v4140
      %v4388 = vsel %vm1586, %v3952, %v4142
      %v4389 = vsel %vm1586, %v3954, %v4144
      %v4390 = vsel %vm1586, %v3955, %v4146
      %v4391 = vsel %vm1586, %v3957, %v4148
      %v4392 = vsel %vm1586, %v3958, %v4150
      %v4393 = vsel %vm1586, %v3960, %v4152
      %v4394 = vsel %vm1586, %v3961, %v4154
      %v4395 = vsel %vm2701, %v4363, %v4268
      %v4396 = vsel %vm2701, %v4364, %v4270
      %v4397 = vsel %vm2701, %v4365, %v4272
      %v4398 = vsel %vm2701, %v4366, %v4274
      %v4399 = vsel %vm2701, %v4367, %v4276
      %v4400 = vsel %vm2701, %v4368, %v4278
      %v4401 = vsel %vm2701, %v4369, %v4280
      %v4402 = vsel %vm2701, %v4370, %v4282
      %v4403 = vsel %vm2701, %v4371, %v4284
      %v4404 = vsel %vm2701, %v4372, %v4286
      %v4405 = vsel %vm2701, %v4373, %v4288
      %v4406 = vsel %vm2701, %v4374, %v4290
      %v4407 = vsel %vm2701, %v4375, %v4292
      %v4408 = vsel %vm2701, %v4376, %v4294
      %v4409 = vsel %vm2701, %v4377, %v4296
      %v4410 = vsel %vm2701, %v4378, %v4298
      %v4411 = vsel %vm2701, %v4379, %v4300
      %v4412 = vsel %vm2701, %v4380, %v4302
      %v4413 = vsel %vm2701, %v4381, %v4304
      %v4414 = vsel %vm2701, %v4382, %v4306
      %v4415 = vsel %vm2701, %v4383, %v4308
      %v4416 = vsel %vm2701, %v4384, %v4310
      %v4417 = vsel %vm2701, %v4385, %v4312
      %v4418 = vsel %vm2701, %v4386, %v4314
      %v4419 = vsel %vm2701, %v4387, %v4316
      %v4420 = vsel %vm2701, %v4388, %v4318
      %v4421 = vsel %vm2701, %v4389, %v4320
      %v4422 = vsel %vm2701, %v4390, %v4322
      %v4423 = vsel %vm2701, %v4391, %v4324
      %v4424 = vsel %vm2701, %v4392, %v4326
      %v4425 = vsel %vm2701, %v4393, %v4328
      %v4426 = vsel %vm2701, %v4394, %v4330
      %s4427 = scalar_lea.vmem %s3, 192
      %v4428 = vld [vmem:[%s4427] sm:$0xff]
      %v4429 = vld [vmem:[%s4427 + $0x8] sm:$0xff]
      %v4430 = vld [vmem:[%s4427 + $0x10] sm:$0xff]
      %v4431 = vld [vmem:[%s4427 + $0x18] sm:$0xff]
      %v4432 = vld [vmem:[%s4427 + $0x20] sm:$0xff]
      %v4433 = vld [vmem:[%s4427 + $0x28] sm:$0xff]
      %v4434 = vld [vmem:[%s4427 + $0x30] sm:$0xff]
      %v4435 = vld [vmem:[%s4427 + $0x38] sm:$0xff]
      %v4436 = vld [vmem:[%s4427 + $0x40] sm:$0xff]
      %v4437 = vld [vmem:[%s4427 + $0x48] sm:$0xff]
      %v4438 = vld [vmem:[%s4427 + $0x50] sm:$0xff]
      %v4439 = vld [vmem:[%s4427 + $0x58] sm:$0xff]
      %v4441 = vsel %vm3271, %v4395, 0
      %v4444 = vsel %vm3271, %v4396, 0
      %v4447 = vsel %vm3271, %v4397, 0
      %v4450 = vsel %vm3271, %v4398, 0
      %v4453 = vsel %vm3271, %v4399, 0
      %v4456 = vsel %vm3271, %v4400, 0
      %v4459 = vsel %vm3271, %v4401, 0
      %v4462 = vsel %vm3271, %v4402, 0
      %v4465 = vsel %vm3271, %v4403, 0
      %v4468 = vsel %vm3271, %v4404, 0
      %v4471 = vsel %vm3271, %v4405, 0
      %v4474 = vsel %vm3271, %v4406, 0
      %v4477 = vsel %vm3271, %v4407, 0
      %v4480 = vsel %vm3271, %v4408, 0
      %v4483 = vsel %vm3271, %v4409, 0
      %v4486 = vsel %vm3271, %v4410, 0
      %v4489 = vsel %vm3271, %v4411, 0
      %v4492 = vsel %vm3271, %v4412, 0
      %v4495 = vsel %vm3271, %v4413, 0
      %v4498 = vsel %vm3271, %v4414, 0
      %v4501 = vsel %vm3271, %v4415, 0
      %v4504 = vsel %vm3271, %v4416, 0
      %v4507 = vsel %vm3271, %v4417, 0
      %v4510 = vsel %vm3271, %v4418, 0
      %v4513 = vsel %vm3271, %v4419, 0
      %v4516 = vsel %vm3271, %v4420, 0
      %v4519 = vsel %vm3271, %v4421, 0
      %v4522 = vsel %vm3271, %v4422, 0
      %v4525 = vsel %vm3271, %v4423, 0
      %v4528 = vsel %vm3271, %v4424, 0
      %v4531 = vsel %vm3271, %v4425, 0
      %v4534 = vsel %vm3271, %v4426, 0
      %4536 = vmatprep.subr.mxu0 0.0
      %4537 = vmatpush1.msra.mxu0 %v4428
      %4538 = vmatprep.subr.mxu0 0.0
      %4539 = vmatpush1.msra.mxu0 %v4429
      %4540 = vmatprep.subr.mxu0 0.0
      %4541 = vmatpush1.msra.mxu0 %v4430
      %4542 = vmatprep.subr.mxu0 0.0
      %4543 = vmatpush1.msra.mxu0 %v4431
      %4544 = vmatprep.subr.mxu0 0.0
      %4545 = vmatpush1.msra.mxu0 %v4432
      %4546 = vmatprep.subr.mxu0 0.0
      %4547 = vmatpush1.msra.mxu0 %v4433
      %4548 = vmatprep.subr.mxu0 0.0
      %4549 = vmatpush1.msra.mxu0 %v4434
      %4550 = vmatprep.subr.mxu0 0.0
      %4551 = vmatpush1.msra.mxu0 %v4435
      %4552 = vmatprep.subr.mxu0 0.0
      %4553 = vmatpush1.msra.mxu0 %v4436
      %4554 = vmatprep.subr.mxu0 0.0
      %4555 = vmatpush1.msra.mxu0 %v4437
      %4556 = vmatprep.subr.mxu0 0.0
      %4557 = vmatpush1.msra.mxu0 %v4438
      %4558 = vmatprep.subr.mxu0 0.0
      %4559 = vmatpush1.msra.mxu0 %v4439
      %4560 = vmatprep.subr.mxu0 0.0
      %4561 = vmatpush1.msra.mxu0 0.0
      %4562 = vmatprep.subr.mxu0 0.0
      %4563 = vmatpush1.msra.mxu0 0.0
      %4564 = vmatprep.subr.mxu0 0.0
      %4565 = vmatpush1.msra.mxu0 0.0
      %4566 = vmatprep.subr.mxu0 0.0
      %4567 = vmatpush1.msra.mxu0 0.0
      %4568 = vmatprep.subr.mxu0 0.0
      %4569 = vmatpush1.msra.mxu0 0.0
      %4570 = vmatprep.subr.mxu0 0.0
      %4571 = vmatpush1.msra.mxu0 0.0
      %4572 = vmatprep.subr.mxu0 0.0
      %4573 = vmatpush1.msra.mxu0 0.0
      %4574 = vmatprep.subr.mxu0 0.0
      %4575 = vmatpush1.msra.mxu0 0.0
      %4576 = vmatprep.subr.mxu0 0.0
      %4577 = vmatpush1.msra.mxu0 0.0
      %4578 = vmatprep.subr.mxu0 0.0
      %4579 = vmatpush1.msra.mxu0 0.0
      %4580 = vmatprep.subr.mxu0 0.0
      %4581 = vmatpush1.msra.mxu0 0.0
      %4582 = vmatprep.subr.mxu0 0.0
      %4583 = vmatpush1.msra.mxu0 0.0
      %4584 = vmatprep.subr.mxu0 0.0
      %4585 = vmatpush1.msra.mxu0 0.0
      %4586 = vmatprep.subr.mxu0 0.0
      %4587 = vmatpush1.msra.mxu0 0.0
      %4588 = vmatprep.subr.mxu0 0.0
      %4589 = vmatpush1.msra.mxu0 0.0
      %4590 = vmatprep.subr.mxu0 0.0
      %4591 = vmatpush1.msra.mxu0 0.0
      %4592 = vmatprep.subr.mxu0 0.0
      %4593 = vmatpush1.msra.mxu0 0.0
      %4594 = vmatprep.subr.mxu0 0.0
      %4595 = vmatpush1.msra.mxu0 0.0
      %4596 = vmatprep.subr.mxu0 0.0
      %4597 = vmatpush1.msra.mxu0 0.0
      %4598 = vmatprep.subr.mxu0 0.0
      %4599 = vmatpush1.msra.mxu0 0.0
      %4600 = vmatprep.mubr.f32.mxu0 0.0
      %4601 = vmatmul.mubr.f32.gmra.mrb[0].mxu0 %v4441
      %v4602 = vpop.f32.mrb[0].mxu0
      %v4603 = vadd.f32 0.0, %v4602
      %v4604 = vpop.f32.mrb[0].mxu0
      %4605 = vmatprep.mubr.f32.mxu0 0.0
      %4606 = vmatmul.mubr.f32.gmra.mrb[0].mxu0 %v4444
      %v4607 = vpop.f32.mrb[0].mxu0
      %v4608 = vadd.f32 0.0, %v4607
      %v4609 = vpop.f32.mrb[0].mxu0
      %4610 = vmatprep.mubr.f32.mxu0 0.0
      %4611 = vmatmul.mubr.f32.gmra.mrb[0].mxu0 %v4447
      %v4612 = vpop.f32.mrb[0].mxu0
      %v4613 = vadd.f32 0.0, %v4612
      %v4614 = vpop.f32.mrb[0].mxu0
      %4615 = vmatprep.mubr.f32.mxu0 0.0
      %4616 = vmatmul.mubr.f32.gmra.mrb[0].mxu0 %v4450
      %v4617 = vpop.f32.mrb[0].mxu0
      %v4618 = vadd.f32 0.0, %v4617
      %v4619 = vpop.f32.mrb[0].mxu0
      %4620 = vmatprep.mubr.f32.mxu0 0.0
      %4621 = vmatmul.mubr.f32.gmra.mrb[0].mxu0 %v4453
      %v4622 = vpop.f32.mrb[0].mxu0
      %v4623 = vadd.f32 0.0, %v4622
      %v4624 = vpop.f32.mrb[0].mxu0
      %4625 = vmatprep.mubr.f32.mxu0 0.0
      %4626 = vmatmul.mubr.f32.gmra.mrb[0].mxu0 %v4456
      %v4627 = vpop.f32.mrb[0].mxu0
      %v4628 = vadd.f32 0.0, %v4627
      %v4629 = vpop.f32.mrb[0].mxu0
      %4630 = vmatprep.mubr.f32.mxu0 0.0
      %4631 = vmatmul.mubr.f32.gmra.mrb[0].mxu0 %v4459
      %v4632 = vpop.f32.mrb[0].mxu0
      %v4633 = vadd.f32 0.0, %v4632
      %v4634 = vpop.f32.mrb[0].mxu0
      %4635 = vmatprep.mubr.f32.mxu0 0.0
      %4636 = vmatmul.mubr.f32.gmra.mrb[0].mxu0 %v4462
      %v4637 = vpop.f32.mrb[0].mxu0
      %v4638 = vadd.f32 0.0, %v4637
      %v4639 = vpop.f32.mrb[0].mxu0
      %4640 = vmatprep.mubr.f32.mxu0 0.0
      %4641 = vmatmul.mubr.f32.gmra.mrb[0].mxu0 %v4465
      %v4642 = vpop.f32.mrb[0].mxu0
      %v4643 = vadd.f32 0.0, %v4642
      %v4644 = vpop.f32.mrb[0].mxu0
      %4645 = vmatprep.mubr.f32.mxu0 0.0
      %4646 = vmatmul.mubr.f32.gmra.mrb[0].mxu0 %v4468
      %v4647 = vpop.f32.mrb[0].mxu0
      %v4648 = vadd.f32 0.0, %v4647
      %v4649 = vpop.f32.mrb[0].mxu0
      %4650 = vmatprep.mubr.f32.mxu0 0.0
      %4651 = vmatmul.mubr.f32.gmra.mrb[0].mxu0 %v4471
      %v4652 = vpop.f32.mrb[0].mxu0
      %v4653 = vadd.f32 0.0, %v4652
      %v4654 = vpop.f32.mrb[0].mxu0
      %4655 = vmatprep.mubr.f32.mxu0 0.0
      %4656 = vmatmul.mubr.f32.gmra.mrb[0].mxu0 %v4474
      %v4657 = vpop.f32.mrb[0].mxu0
      %v4658 = vadd.f32 0.0, %v4657
      %v4659 = vpop.f32.mrb[0].mxu0
      %4660 = vmatprep.mubr.f32.mxu0 0.0
      %4661 = vmatmul.mubr.f32.gmra.mrb[0].mxu0 %v4477
      %v4662 = vpop.f32.mrb[0].mxu0
      %v4663 = vadd.f32 0.0, %v4662
      %v4664 = vpop.f32.mrb[0].mxu0
      %4665 = vmatprep.mubr.f32.mxu0 0.0
      %4666 = vmatmul.mubr.f32.gmra.mrb[0].mxu0 %v4480
      %v4667 = vpop.f32.mrb[0].mxu0
      %v4668 = vadd.f32 0.0, %v4667
      %v4669 = vpop.f32.mrb[0].mxu0
      %4670 = vmatprep.mubr.f32.mxu0 0.0
      %4671 = vmatmul.mubr.f32.gmra.mrb[0].mxu0 %v4483
      %v4672 = vpop.f32.mrb[0].mxu0
      %v4673 = vadd.f32 0.0, %v4672
      %v4674 = vpop.f32.mrb[0].mxu0
      %4675 = vmatprep.mubr.f32.mxu0 0.0
      %4676 = vmatmul.mubr.f32.gmra.mrb[0].mxu0 %v4486
      %v4677 = vpop.f32.mrb[0].mxu0
      %v4678 = vadd.f32 0.0, %v4677
      %v4679 = vpop.f32.mrb[0].mxu0
      %4680 = vmatprep.mubr.f32.mxu0 0.0
      %4681 = vmatmul.mubr.f32.gmra.mrb[0].mxu0 %v4489
      %v4682 = vpop.f32.mrb[0].mxu0
      %v4683 = vadd.f32 0.0, %v4682
      %v4684 = vpop.f32.mrb[0].mxu0
      %4685 = vmatprep.mubr.f32.mxu0 0.0
      %4686 = vmatmul.mubr.f32.gmra.mrb[0].mxu0 %v4492
      %v4687 = vpop.f32.mrb[0].mxu0
      %v4688 = vadd.f32 0.0, %v4687
      %v4689 = vpop.f32.mrb[0].mxu0
      %4690 = vmatprep.mubr.f32.mxu0 0.0
      %4691 = vmatmul.mubr.f32.gmra.mrb[0].mxu0 %v4495
      %v4692 = vpop.f32.mrb[0].mxu0
      %v4693 = vadd.f32 0.0, %v4692
      %v4694 = vpop.f32.mrb[0].mxu0
      %4695 = vmatprep.mubr.f32.mxu0 0.0
      %4696 = vmatmul.mubr.f32.gmra.mrb[0].mxu0 %v4498
      %v4697 = vpop.f32.mrb[0].mxu0
      %v4698 = vadd.f32 0.0, %v4697
      %v4699 = vpop.f32.mrb[0].mxu0
      %4700 = vmatprep.mubr.f32.mxu0 0.0
      %4701 = vmatmul.mubr.f32.gmra.mrb[0].mxu0 %v4501
      %v4702 = vpop.f32.mrb[0].mxu0
      %v4703 = vadd.f32 0.0, %v4702
      %v4704 = vpop.f32.mrb[0].mxu0
      %4705 = vmatprep.mubr.f32.mxu0 0.0
      %4706 = vmatmul.mubr.f32.gmra.mrb[0].mxu0 %v4504
      %v4707 = vpop.f32.mrb[0].mxu0
      %v4708 = vadd.f32 0.0, %v4707
      %v4709 = vpop.f32.mrb[0].mxu0
      %4710 = vmatprep.mubr.f32.mxu0 0.0
      %4711 = vmatmul.mubr.f32.gmra.mrb[0].mxu0 %v4507
      %v4712 = vpop.f32.mrb[0].mxu0
      %v4713 = vadd.f32 0.0, %v4712
      %v4714 = vpop.f32.mrb[0].mxu0
      %4715 = vmatprep.mubr.f32.mxu0 0.0
      %4716 = vmatmul.mubr.f32.gmra.mrb[0].mxu0 %v4510
      %v4717 = vpop.f32.mrb[0].mxu0
      %v4718 = vadd.f32 0.0, %v4717
      %v4719 = vpop.f32.mrb[0].mxu0
      %4720 = vmatprep.mubr.f32.mxu0 0.0
      %4721 = vmatmul.mubr.f32.gmra.mrb[0].mxu0 %v4513
      %v4722 = vpop.f32.mrb[0].mxu0
      %v4723 = vadd.f32 0.0, %v4722
      %v4724 = vpop.f32.mrb[0].mxu0
      %4725 = vmatprep.mubr.f32.mxu0 0.0
      %4726 = vmatmul.mubr.f32.gmra.mrb[0].mxu0 %v4516
      %v4727 = vpop.f32.mrb[0].mxu0
      %v4728 = vadd.f32 0.0, %v4727
      %v4729 = vpop.f32.mrb[0].mxu0
      %4730 = vmatprep.mubr.f32.mxu0 0.0
      %4731 = vmatmul.mubr.f32.gmra.mrb[0].mxu0 %v4519
      %v4732 = vpop.f32.mrb[0].mxu0
      %v4733 = vadd.f32 0.0, %v4732
      %v4734 = vpop.f32.mrb[0].mxu0
      %4735 = vmatprep.mubr.f32.mxu0 0.0
      %4736 = vmatmul.mubr.f32.gmra.mrb[0].mxu0 %v4522
      %v4737 = vpop.f32.mrb[0].mxu0
      %v4738 = vadd.f32 0.0, %v4737
      %v4739 = vpop.f32.mrb[0].mxu0
      %4740 = vmatprep.mubr.f32.mxu0 0.0
      %4741 = vmatmul.mubr.f32.gmra.mrb[0].mxu0 %v4525
      %v4742 = vpop.f32.mrb[0].mxu0
      %v4743 = vadd.f32 0.0, %v4742
      %v4744 = vpop.f32.mrb[0].mxu0
      %4745 = vmatprep.mubr.f32.mxu0 0.0
      %4746 = vmatmul.mubr.f32.gmra.mrb[0].mxu0 %v4528
      %v4747 = vpop.f32.mrb[0].mxu0
      %v4748 = vadd.f32 0.0, %v4747
      %v4749 = vpop.f32.mrb[0].mxu0
      %4750 = vmatprep.mubr.f32.mxu0 0.0
      %4751 = vmatmul.mubr.f32.gmra.mrb[0].mxu0 %v4531
      %v4752 = vpop.f32.mrb[0].mxu0
      %v4753 = vadd.f32 0.0, %v4752
      %v4754 = vpop.f32.mrb[0].mxu0
      %4755 = vmatprep.mubr.f32.mxu0 0.0
      %4756 = vmatmul.mubr.f32.gmra.mrb[0].mxu0 %v4534
      %v4757 = vpop.f32.mrb[0].mxu0
      %v4758 = vadd.f32 0.0, %v4757
      %v4759 = vpop.f32.mrb[0].mxu0
      %4760 = vdwg.mxu0
      %v4761 = vadd.f32 %v3756, %v4603
      %v4762 = vadd.f32 %v3761, %v4608
      %v4763 = vadd.f32 %v3766, %v4613
      %v4764 = vadd.f32 %v3771, %v4618
      %v4765 = vadd.f32 %v3776, %v4623
      %v4766 = vadd.f32 %v3781, %v4628
      %v4767 = vadd.f32 %v3786, %v4633
      %v4768 = vadd.f32 %v3791, %v4638
      %v4769 = vadd.f32 %v3796, %v4643
      %v4770 = vadd.f32 %v3801, %v4648
      %v4771 = vadd.f32 %v3806, %v4653
      %v4772 = vadd.f32 %v3811, %v4658
      %v4773 = vadd.f32 %v3816, %v4663
      %v4774 = vadd.f32 %v3821, %v4668
      %v4775 = vadd.f32 %v3826, %v4673
      %v4776 = vadd.f32 %v3831, %v4678
      %v4777 = vadd.f32 %v3836, %v4683
      %v4778 = vadd.f32 %v3841, %v4688
      %v4779 = vadd.f32 %v3846, %v4693
      %v4780 = vadd.f32 %v3851, %v4698
      %v4781 = vadd.f32 %v3856, %v4703
      %v4782 = vadd.f32 %v3861, %v4708
      %v4783 = vadd.f32 %v3866, %v4713
      %v4784 = vadd.f32 %v3871, %v4718
      %v4785 = vadd.f32 %v3876, %v4723
      %v4786 = vadd.f32 %v3881, %v4728
      %v4787 = vadd.f32 %v3886, %v4733
      %v4788 = vadd.f32 %v3891, %v4738
      %v4789 = vadd.f32 %v3896, %v4743
      %v4790 = vadd.f32 %v3901, %v4748
      %v4791 = vadd.f32 %v3906, %v4753
      %v4792 = vadd.f32 %v3911, %v4758
      %v4793 = vld [vmem:[%s4] sm:$0x1]
      %v4795 = vlaneseq
      %v4796 = vshrl.u32 %v4795, 7
      %v4797 = vsub.s32 0, %v4796
      %v4798 = vrot.slane %v4793, %v4797
      %v4800 = vadd.f32 %v4761, %v4798
      %v4801 = vadd.f32 %v4762, %v4798
      %v4802 = vadd.f32 %v4763, %v4798
      %v4803 = vadd.f32 %v4764, %v4798
      %v4804 = vadd.f32 %v4765, %v4798
      %v4805 = vadd.f32 %v4766, %v4798
      %v4806 = vadd.f32 %v4767, %v4798
      %v4807 = vadd.f32 %v4768, %v4798
      %v4808 = vadd.f32 %v4769, %v4798
      %v4809 = vadd.f32 %v4770, %v4798
      %v4810 = vadd.f32 %v4771, %v4798
      %v4811 = vadd.f32 %v4772, %v4798
      %v4812 = vadd.f32 %v4773, %v4798
      %v4813 = vadd.f32 %v4774, %v4798
      %v4814 = vadd.f32 %v4775, %v4798
      %v4815 = vadd.f32 %v4776, %v4798
      %v4816 = vadd.f32 %v4777, %v4798
      %v4817 = vadd.f32 %v4778, %v4798
      %v4818 = vadd.f32 %v4779, %v4798
      %v4819 = vadd.f32 %v4780, %v4798
      %v4820 = vadd.f32 %v4781, %v4798
      %v4821 = vadd.f32 %v4782, %v4798
      %v4822 = vadd.f32 %v4783, %v4798
      %v4823 = vadd.f32 %v4784, %v4798
      %v4824 = vadd.f32 %v4785, %v4798
      %v4825 = vadd.f32 %v4786, %v4798
      %v4826 = vadd.f32 %v4787, %v4798
      %v4827 = vadd.f32 %v4788, %v4798
      %v4828 = vadd.f32 %v4789, %v4798
      %v4829 = vadd.f32 %v4790, %v4798
      %v4830 = vadd.f32 %v4791, %v4798
      %v4831 = vadd.f32 %v4792, %v4798
      %v4832 = vmax.f32 %v4800, 0.0
      %v4833 = vmax.f32 %v4801, 0.0
      %v4834 = vmax.f32 %v4802, 0.0
      %v4835 = vmax.f32 %v4803, 0.0
      %v4836 = vmax.f32 %v4804, 0.0
      %v4837 = vmax.f32 %v4805, 0.0
      %v4838 = vmax.f32 %v4806, 0.0
      %v4839 = vmax.f32 %v4807, 0.0
      %v4840 = vmax.f32 %v4808, 0.0
      %v4841 = vmax.f32 %v4809, 0.0
      %v4842 = vmax.f32 %v4810, 0.0
      %v4843 = vmax.f32 %v4811, 0.0
      %v4844 = vmax.f32 %v4812, 0.0
      %v4845 = vmax.f32 %v4813, 0.0
      %v4846 = vmax.f32 %v4814, 0.0
      %v4847 = vmax.f32 %v4815, 0.0
      %v4848 = vmax.f32 %v4816, 0.0
      %v4849 = vmax.f32 %v4817, 0.0
      %v4850 = vmax.f32 %v4818, 0.0
      %v4851 = vmax.f32 %v4819, 0.0
      %v4852 = vmax.f32 %v4820, 0.0
      %v4853 = vmax.f32 %v4821, 0.0
      %v4854 = vmax.f32 %v4822, 0.0
      %v4855 = vmax.f32 %v4823, 0.0
      %v4856 = vmax.f32 %v4824, 0.0
      %v4857 = vmax.f32 %v4825, 0.0
      %v4858 = vmax.f32 %v4826, 0.0
      %v4859 = vmax.f32 %v4827, 0.0
      %v4860 = vmax.f32 %v4828, 0.0
      %v4861 = vmax.f32 %v4829, 0.0
      %v4862 = vmax.f32 %v4830, 0.0
      %v4863 = vmax.f32 %v4831, 0.0
      %4864 = vst.msk [vmem:[#allocation4] sm:$0xff] %vm2701, %v4832
      %4865 = vst.msk [vmem:[#allocation4 + $0x8] sm:$0xff] %vm2701, %v4833
      %4866 = vst.msk [vmem:[#allocation4 + $0x10] sm:$0xff] %vm2701, %v4834
      %4867 = vst.msk [vmem:[#allocation4 + $0x18] sm:$0xff] %vm2701, %v4835
      %4868 = vst.msk [vmem:[#allocation4 + $0x20] sm:$0xff] %vm2701, %v4836
      %4869 = vst.msk [vmem:[#allocation4 + $0x28] sm:$0xff] %vm2701, %v4837
      %4870 = vst.msk [vmem:[#allocation4 + $0x30] sm:$0xff] %vm2701, %v4838
      %4871 = vst.msk [vmem:[#allocation4 + $0x38] sm:$0xff] %vm2701, %v4839
      %4872 = vst.msk [vmem:[#allocation4 + $0x40] sm:$0xff] %vm2701, %v4840
      %4873 = vst.msk [vmem:[#allocation4 + $0x48] sm:$0xff] %vm2701, %v4841
      %4874 = vst.msk [vmem:[#allocation4 + $0x50] sm:$0xff] %vm2701, %v4842
      %4875 = vst.msk [vmem:[#allocation4 + $0x58] sm:$0xff] %vm2701, %v4843
      %4876 = vst.msk [vmem:[#allocation4 + $0x60] sm:$0xff] %vm2701, %v4844
      %4877 = vst.msk [vmem:[#allocation4 + $0x68] sm:$0xff] %vm2701, %v4845
      %4878 = vst.msk [vmem:[#allocation4 + $0x70] sm:$0xff] %vm2701, %v4846
      %4879 = vst.msk [vmem:[#allocation4 + $0x78] sm:$0xff] %vm2701, %v4847
      %4880 = vst.msk [vmem:[#allocation4 + $0x80] sm:$0xff] %vm2701, %v4848
      %4881 = vst.msk [vmem:[#allocation4 + $0x88] sm:$0xff] %vm2701, %v4849
      %4882 = vst.msk [vmem:[#allocation4 + $0x90] sm:$0xff] %vm2701, %v4850
      %4883 = vst.msk [vmem:[#allocation4 + $0x98] sm:$0xff] %vm2701, %v4851
      %4884 = vst.msk [vmem:[#allocation4 + $0xa0] sm:$0xff] %vm2701, %v4852
      %4885 = vst.msk [vmem:[#allocation4 + $0xa8] sm:$0xff] %vm2701, %v4853
      %4886 = vst.msk [vmem:[#allocation4 + $0xb0] sm:$0xff] %vm2701, %v4854
      %4887 = vst.msk [vmem:[#allocation4 + $0xb8] sm:$0xff] %vm2701, %v4855
      %4888 = vst.msk [vmem:[#allocation4 + $0xc0] sm:$0xff] %vm2701, %v4856
      %4889 = vst.msk [vmem:[#allocation4 + $0xc8] sm:$0xff] %vm2701, %v4857
      %4890 = vst.msk [vmem:[#allocation4 + $0xd0] sm:$0xff] %vm2701, %v4858
      %4891 = vst.msk [vmem:[#allocation4 + $0xd8] sm:$0xff] %vm2701, %v4859
      %4892 = vst.msk [vmem:[#allocation4 + $0xe0] sm:$0xff] %vm2701, %v4860
      %4893 = vst.msk [vmem:[#allocation4 + $0xe8] sm:$0xff] %vm2701, %v4861
      %4894 = vst.msk [vmem:[#allocation4 + $0xf0] sm:$0xff] %vm2701, %v4862
      %4895 = vst.msk [vmem:[#allocation4 + $0xf8] sm:$0xff] %vm2701, %v4863
      %v4896 = vld [vmem:[#allocation4] sm:$0xff]
      %v4897 = vld [vmem:[#allocation4 + $0x8] sm:$0xff]
      %v4898 = vld [vmem:[#allocation4 + $0x20] sm:$0xff]
      %v4899 = vld [vmem:[#allocation4 + $0x28] sm:$0xff]
      %v4900 = vld [vmem:[#allocation4 + $0x40] sm:$0xff]
      %v4901 = vld [vmem:[#allocation4 + $0x48] sm:$0xff]
      %v4902 = vld [vmem:[#allocation4 + $0x60] sm:$0xff]
      %v4903 = vld [vmem:[#allocation4 + $0x68] sm:$0xff]
      %v4904 = vld [vmem:[#allocation4 + $0x80] sm:$0xff]
      %v4905 = vld [vmem:[#allocation4 + $0x88] sm:$0xff]
      %v4906 = vld [vmem:[#allocation4 + $0xa0] sm:$0xff]
      %v4907 = vld [vmem:[#allocation4 + $0xa8] sm:$0xff]
      %v4908 = vld [vmem:[#allocation4 + $0xc0] sm:$0xff]
      %v4909 = vld [vmem:[#allocation4 + $0xc8] sm:$0xff]
      %v4910 = vld [vmem:[#allocation4 + $0xe0] sm:$0xff]
      %v4911 = vld [vmem:[#allocation4 + $0xe8] sm:$0xff]
      %s4912 = scalar_lea.vmem [#allocation4], 16
      %v4913 = vld [vmem:[%s4912] sm:$0xff]
      %v4914 = vld [vmem:[%s4912 + $0x8] sm:$0xff]
      %v4915 = vld [vmem:[%s4912 + $0x20] sm:$0xff]
      %v4916 = vld [vmem:[%s4912 + $0x28] sm:$0xff]
      %v4917 = vld [vmem:[%s4912 + $0x40] sm:$0xff]
      %v4918 = vld [vmem:[%s4912 + $0x48] sm:$0xff]
      %v4919 = vld [vmem:[%s4912 + $0x60] sm:$0xff]
      %v4920 = vld [vmem:[%s4912 + $0x68] sm:$0xff]
      %v4921 = vld [vmem:[%s4912 + $0x80] sm:$0xff]
      %v4922 = vld [vmem:[%s4912 + $0x88] sm:$0xff]
      %v4923 = vld [vmem:[%s4912 + $0xa0] sm:$0xff]
      %v4924 = vld [vmem:[%s4912 + $0xa8] sm:$0xff]
      %v4925 = vld [vmem:[%s4912 + $0xc0] sm:$0xff]
      %v4926 = vld [vmem:[%s4912 + $0xc8] sm:$0xff]
      %v4927 = vld [vmem:[%s4912 + $0xe0] sm:$0xff]
      %v4928 = vld [vmem:[%s4912 + $0xe8] sm:$0xff]
      %v4929 = vmax.f32 %v4896, %v4913
      %v4930 = vmax.f32 %v4897, %v4914
      %v4931 = vmax.f32 %v4898, %v4915
      %v4932 = vmax.f32 %v4899, %v4916
      %v4933 = vmax.f32 %v4900, %v4917
      %v4934 = vmax.f32 %v4901, %v4918
      %v4935 = vmax.f32 %v4902, %v4919
      %v4936 = vmax.f32 %v4903, %v4920
      %v4937 = vmax.f32 %v4904, %v4921
      %v4938 = vmax.f32 %v4905, %v4922
      %v4939 = vmax.f32 %v4906, %v4923
      %v4940 = vmax.f32 %v4907, %v4924
      %v4941 = vmax.f32 %v4908, %v4925
      %v4942 = vmax.f32 %v4909, %v4926
      %v4943 = vmax.f32 %v4910, %v4927
      %v4944 = vmax.f32 %v4911, %v4928
      %4945 = vst.msk [vmem:[#allocation4] sm:$0xff] %vm2701, %v4929
      %4946 = vst.msk [vmem:[#allocation4 + $0x8] sm:$0xff] %vm2701, %v4930
      %4947 = vst.msk [vmem:[#allocation4 + $0x10] sm:$0xff] %vm2701, %v4931
      %4948 = vst.msk [vmem:[#allocation4 + $0x18] sm:$0xff] %vm2701, %v4932
      %4949 = vst.msk [vmem:[#allocation4 + $0x20] sm:$0xff] %vm2701, %v4933
      %4950 = vst.msk [vmem:[#allocation4 + $0x28] sm:$0xff] %vm2701, %v4934
      %4951 = vst.msk [vmem:[#allocation4 + $0x30] sm:$0xff] %vm2701, %v4935
      %4952 = vst.msk [vmem:[#allocation4 + $0x38] sm:$0xff] %vm2701, %v4936
      %4953 = vst.msk [vmem:[#allocation4 + $0x40] sm:$0xff] %vm2701, %v4937
      %4954 = vst.msk [vmem:[#allocation4 + $0x48] sm:$0xff] %vm2701, %v4938
      %4955 = vst.msk [vmem:[#allocation4 + $0x50] sm:$0xff] %vm2701, %v4939
      %4956 = vst.msk [vmem:[#allocation4 + $0x58] sm:$0xff] %vm2701, %v4940
      %4957 = vst.msk [vmem:[#allocation4 + $0x60] sm:$0xff] %vm2701, %v4941
      %4958 = vst.msk [vmem:[#allocation4 + $0x68] sm:$0xff] %vm2701, %v4942
      %4959 = vst.msk [vmem:[#allocation4 + $0x70] sm:$0xff] %vm2701, %v4943
      %4960 = vst.msk [vmem:[#allocation4 + $0x78] sm:$0xff] %vm2701, %v4944
      %v4961 = vld [vmem:[#allocation4] ss:$2 sm:$0xff]
      %s4962 = scalar_lea.vmem [#allocation4], 16
      %v4963 = vld [vmem:[%s4962] ss:$2 sm:$0xff]
      %s4964 = scalar_lea.vmem [#allocation4], 32
      %v4965 = vld [vmem:[%s4964] ss:$2 sm:$0xff]
      %s4966 = scalar_lea.vmem [#allocation4], 48
      %v4967 = vld [vmem:[%s4966] ss:$2 sm:$0xff]
      %s4968 = scalar_lea.vmem [#allocation4], 64
      %v4969 = vld [vmem:[%s4968] ss:$2 sm:$0xff]
      %s4970 = scalar_lea.vmem [#allocation4], 80
      %v4971 = vld [vmem:[%s4970] ss:$2 sm:$0xff]
      %s4972 = scalar_lea.vmem [#allocation4], 96
      %v4973 = vld [vmem:[%s4972] ss:$2 sm:$0xff]
      %s4974 = scalar_lea.vmem [#allocation4], 112
      %v4975 = vld [vmem:[%s4974] ss:$2 sm:$0xff]
      %s4976 = scalar_lea.vmem [#allocation4], 1
      %v4977 = vld [vmem:[%s4976] ss:$2 sm:$0xff]
      %s4978 = scalar_lea.vmem [#allocation4], 17
      %v4979 = vld [vmem:[%s4978] ss:$2 sm:$0xff]
      %s4980 = scalar_lea.vmem [#allocation4], 33
      %v4981 = vld [vmem:[%s4980] ss:$2 sm:$0xff]
      %s4982 = scalar_lea.vmem [#allocation4], 49
      %v4983 = vld [vmem:[%s4982] ss:$2 sm:$0xff]
      %s4984 = scalar_lea.vmem [#allocation4], 65
      %v4985 = vld [vmem:[%s4984] ss:$2 sm:$0xff]
      %s4986 = scalar_lea.vmem [#allocation4], 81
      %v4987 = vld [vmem:[%s4986] ss:$2 sm:$0xff]
      %s4988 = scalar_lea.vmem [#allocation4], 97
      %v4989 = vld [vmem:[%s4988] ss:$2 sm:$0xff]
      %s4990 = scalar_lea.vmem [#allocation4], 113
      %v4991 = vld [vmem:[%s4990] ss:$2 sm:$0xff]
      %v4992 = vmax.f32 %v4961, %v4977
      %v4993 = vmax.f32 %v4963, %v4979
      %v4994 = vmax.f32 %v4965, %v4981
      %v4995 = vmax.f32 %v4967, %v4983
      %v4996 = vmax.f32 %v4969, %v4985
      %v4997 = vmax.f32 %v4971, %v4987
      %v4998 = vmax.f32 %v4973, %v4989
      %v4999 = vmax.f32 %v4975, %v4991
      %5000 = vst.msk [vmem:[%s224] sm:$0xff] %vm2701, %v4992
      %5001 = vst.msk [vmem:[%s224 + $0x8] sm:$0xff] %vm2701, %v4993
      %5002 = vst.msk [vmem:[%s224 + $0x10] sm:$0xff] %vm2701, %v4994
      %5003 = vst.msk [vmem:[%s224 + $0x18] sm:$0xff] %vm2701, %v4995
      %5004 = vst.msk [vmem:[%s224 + $0x20] sm:$0xff] %vm2701, %v4996
      %5005 = vst.msk [vmem:[%s224 + $0x28] sm:$0xff] %vm2701, %v4997
      %5006 = vst.msk [vmem:[%s224 + $0x30] sm:$0xff] %vm2701, %v4998
      %5007 = vst.msk [vmem:[%s224 + $0x38] sm:$0xff] %vm2701, %v4999
      %p5008 = scmp.lt.s32.totalorder %s16, 1
      %s5009 = scalar_select %p5008, %s16, 1
      %s5010 = smul.addr %s5009, 8
      %s5011 = smul.addr %s5010, 8
      %s5012 = scalar_lea.vmem %s5, %s5011
      // Predicated region
      $region41: #{credal_cnn_forward.2} parent=39 // pred_check
        %p5013 = pneg %p144
      $region42: #{credal_cnn_forward.2} parent=39 // pred_check_branch
        %5015 = sbr.rel (%p5013) target = $region44
      $region43: #{credal_cnn_forward.2} parent=39 // pred_region
        _
      $region44: #{credal_cnn_forward.2} parent=39 // pred_fallthru
        _
    $region40: #{credal_cnn_forward.2} parent=5 // pred_fallthru
      _
    %p5016 = scmp.le.s32.totalorder 2, %s11
    // Predicated region
    $region45: #{credal_cnn_forward.2} parent=5 // pred_check
      %p5017 = pneg %p5016
    $region46: #{credal_cnn_forward.2} parent=5 // pred_check_branch
      %5019 = sbr.rel (%p5017) target = $region48
    $region47: #{credal_cnn_forward.2} parent=5 // pred_region
      %s5020 = ssub.s32 %s11, 2
      // Predicated region
      $region49: #{credal_cnn_forward.2} parent=47 // pred_check
        %p5021 = pneg %p150
      $region50: #{credal_cnn_forward.2} parent=47 // pred_check_branch
        %5023 = sbr.rel (%p5021) target = $region52
      $region51: #{credal_cnn_forward.2} parent=47 // pred_region
        %p5024 = scmp.lt.s32.totalorder %s17, 1
        %s5025 = scalar_select %p5024, %s17, 1
        %s5026 = smul.addr %s5025, 8
        %s5027 = smul.addr %s5026, 8
        %s5028 = scalar_lea.vmem %s5, %s5027
      $region52: #{credal_cnn_forward.2} parent=47 // pred_fallthru
        _
    $region48: #{credal_cnn_forward.2} parent=5 // pred_fallthru
      _
  $region6: #{credal_cnn_forward.2} parent=0 // loop_footer
    %s15 = sadd.s32 1, %s11
  $region7: #{credal_cnn_forward.2} parent=0 // loop_footer_branch
    %10 = sbr.rel target = $region3
  $region8: #{credal_cnn_forward.2} parent=0 // loop_exit
    _

</llo_original>
